<compile_context>
chip_gen: v7x
topology: tpu7x:2x2x1
jax: 0.10.0
libtpu: 0.0.40
codegen_flags: <defaults>
</compile_context>

<pallas_src>
import functools

import jax
import jax.numpy as jnp
from jax import lax
from jax.experimental import pallas as pl
from jax.experimental.pallas import tpu as pltpu


def _round_up(x, m):
    return (x + m - 1) // m * m


# ----------------------------------------------------------------------------
# Kernel 1: row-tiled  out = x @ w + b   (hoisted gates_x for LSTM layer 1).
# ----------------------------------------------------------------------------
def _matmul_bias_kernel(x_ref, w_ref, b_ref, o_ref):
    o_ref[...] = (
        jnp.dot(x_ref[...], w_ref[...], preferred_element_type=jnp.float32)
        + b_ref[...]
    )


def matmul_bias(x, w, b, *, tile_r=512):
    rows, k = x.shape
    n = w.shape[1]
    tr = min(tile_r, rows)
    rows_pad = _round_up(rows, tr)
    if rows_pad != rows:
        x = jnp.pad(x, ((0, rows_pad - rows), (0, 0)))
    out = pl.pallas_call(
        _matmul_bias_kernel,
        out_shape=jax.ShapeDtypeStruct((rows_pad, n), jnp.float32),
        grid=(rows_pad // tr,),
        in_specs=[
            pl.BlockSpec((tr, k), lambda r: (r, 0)),
            pl.BlockSpec(memory_space=pltpu.MemorySpace.VMEM),   # weight resident
            pl.BlockSpec(memory_space=pltpu.MemorySpace.VMEM),   # bias resident
        ],
        out_specs=pl.BlockSpec((tr, n), lambda r: (r, 0)),
        compiler_params=pltpu.CompilerParams(dimension_semantics=("parallel",)),
    )(x, w, b)
    return out[:rows] if rows_pad != rows else out


# ----------------------------------------------------------------------------
# Kernel 2: fused 2-layer LSTM.  Time chunked on the grid, h/c carried in VMEM.
# Gate column order is [i | f | o | g]  (reordered at param-prep time).
# ----------------------------------------------------------------------------
def _fused_lstm2_kernel(gx1_ref, whh1_ref, wih2_ref, whh2_ref, b2_ref,
                        out_ref, h1_s, c1_s, h2_s, c2_s):
    hdim = h1_s.shape[-1]

    @pl.when(pl.program_id(0) == 0)
    def _():
        h1_s[...] = jnp.zeros_like(h1_s)
        c1_s[...] = jnp.zeros_like(c1_s)
        h2_s[...] = jnp.zeros_like(h2_s)
        c2_s[...] = jnp.zeros_like(c2_s)

    def cell(gates, c_prev):
        sig = jax.nn.sigmoid(gates[:, : 3 * hdim])     # (B, 3H) contiguous slab
        g = jnp.tanh(gates[:, 3 * hdim:])              # (B, H)
        i = sig[:, 0 * hdim:1 * hdim]
        f = sig[:, 1 * hdim:2 * hdim]
        o = sig[:, 2 * hdim:3 * hdim]
        c_new = f * c_prev + i * g
        h_new = o * jnp.tanh(c_new)
        return h_new, c_new

    t_chunk = gx1_ref.shape[0]

    def body(t, carry):
        h1, c1, h2, c2 = carry
        # Layer 1: x@W_ih1 + bias1 was hoisted into gx1; only the recurrent
        # matmul is on the serial critical path.
        g1 = gx1_ref[t] + jnp.dot(h1, whh1_ref[...],
                                  preferred_element_type=jnp.float32)
        h1, c1 = cell(g1, c1)
        # Layer 2 consumes h1 of the same timestep (fused; no HBM round trip).
        g2 = (jnp.dot(h1, wih2_ref[...], preferred_element_type=jnp.float32)
              + jnp.dot(h2, whh2_ref[...], preferred_element_type=jnp.float32)
              + b2_ref[...])
        h2, c2 = cell(g2, c2)
        out_ref[t] = h2
        return (h1, c1, h2, c2)

    carry0 = (h1_s[...], c1_s[...], h2_s[...], c2_s[...])
    h1, c1, h2, c2 = lax.fori_loop(0, t_chunk, body, carry0, unroll=True)
    h1_s[...] = h1
    c1_s[...] = c1
    h2_s[...] = h2
    c2_s[...] = c2


def fused_lstm2(gx1, w_hh1_t, w_ih2_t, w_hh2_t, b2, *, t_chunk=8):
    seq_len, b_pad, gdim = gx1.shape
    hdim = w_hh1_t.shape[0]
    tc = min(t_chunk, seq_len)
    seq_pad = _round_up(seq_len, tc)
    if seq_pad != seq_len:
        gx1 = jnp.pad(gx1, ((0, seq_pad - seq_len), (0, 0), (0, 0)))
    out = pl.pallas_call(
        _fused_lstm2_kernel,
        out_shape=jax.ShapeDtypeStruct((seq_pad, b_pad, hdim), jnp.float32),
        grid=(seq_pad // tc,),
        in_specs=[
            pl.BlockSpec((tc, b_pad, gdim), lambda t: (t, 0, 0)),      # gates_x
            pl.BlockSpec(memory_space=pltpu.MemorySpace.VMEM),         # W_hh1^T
            pl.BlockSpec(memory_space=pltpu.MemorySpace.VMEM),         # W_ih2^T
            pl.BlockSpec(memory_space=pltpu.MemorySpace.VMEM),         # W_hh2^T
            pl.BlockSpec(memory_space=pltpu.MemorySpace.VMEM),         # bias2
        ],
        out_specs=pl.BlockSpec((tc, b_pad, hdim), lambda t: (t, 0, 0)),
        scratch_shapes=[pltpu.VMEM((b_pad, hdim), jnp.float32)] * 4,   # h1,c1,h2,c2
        compiler_params=pltpu.CompilerParams(
            dimension_semantics=("arbitrary",)),   # time is sequential
    )(gx1, w_hh1_t, w_ih2_t, w_hh2_t, b2)
    return out[:seq_len] if seq_pad != seq_len else out


# ----------------------------------------------------------------------------
# Kernel 3: output projection + log_softmax, row tiled.
# ----------------------------------------------------------------------------
def _proj_logsoftmax_kernel(h_ref, w_ref, b_ref, o_ref):
    logits = (
        jnp.dot(h_ref[...], w_ref[...], preferred_element_type=jnp.float32)
        + b_ref[...]
    )
    m = jnp.max(logits, axis=-1, keepdims=True)
    z = logits - m
    lse = jnp.log(jnp.sum(jnp.exp(z), axis=-1, keepdims=True))
    o_ref[...] = z - lse


def proj_log_softmax(h_flat, w_out_t, b_out, *, tile_r=512):
    rows, hdim = h_flat.shape
    vdim = w_out_t.shape[1]
    tr = min(tile_r, rows)
    rows_pad = _round_up(rows, tr)
    if rows_pad != rows:
        h_flat = jnp.pad(h_flat, ((0, rows_pad - rows), (0, 0)))
    out = pl.pallas_call(
        _proj_logsoftmax_kernel,
        out_shape=jax.ShapeDtypeStruct((rows_pad, vdim), jnp.float32),
        grid=(rows_pad // tr,),
        in_specs=[
            pl.BlockSpec((tr, hdim), lambda r: (r, 0)),
            pl.BlockSpec(memory_space=pltpu.MemorySpace.VMEM),
            pl.BlockSpec(memory_space=pltpu.MemorySpace.VMEM),
        ],
        out_specs=pl.BlockSpec((tr, vdim), lambda r: (r, 0)),
        compiler_params=pltpu.CompilerParams(dimension_semantics=("parallel",)),
    )(h_flat, w_out_t, b_out)
    return out[:rows] if rows_pad != rows else out


# ----------------------------------------------------------------------------
# Parameters: PyTorch-layout init, then one-time prep (transpose / reorder /
# pad / pre-add biases).
# ----------------------------------------------------------------------------
def init_params(key, vocab_size, n_fac, n_hidden, layers=2):
    ks = jax.random.split(key, 4 + 4 * layers)
    s = 0.1
    params = {
        "emb": s * jax.random.normal(ks[0], (vocab_size, n_fac), jnp.float32),
        "w_out": s * jax.random.normal(ks[1], (vocab_size, n_hidden), jnp.float32),
        "b_out": s * jax.random.normal(ks[2], (vocab_size,), jnp.float32),
        "lstm": [],
    }
    for l in range(layers):
        in_dim = n_fac if l == 0 else n_hidden
        kw = ks[4 + 4 * l: 4 + 4 * (l + 1)]
        params["lstm"].append({
            "w_ih": s * jax.random.normal(kw[0], (4 * n_hidden, in_dim), jnp.float32),
            "w_hh": s * jax.random.normal(kw[1], (4 * n_hidden, n_hidden), jnp.float32),
            "b_ih": s * jax.random.normal(kw[2], (4 * n_hidden,), jnp.float32),
            "b_hh": s * jax.random.normal(kw[3], (4 * n_hidden,), jnp.float32),
        })
    return params


def prepare_params(params):
    """One-time: transpose, reorder gates [i,f,g,o]->[i,f,o,g], pad to (8,128) tiles."""
    emb = params["emb"]
    vocab, n_fac = emb.shape
    lstm = params["lstm"]
    assert len(lstm) == 2, "fused kernel implements the module default of 2 LSTM layers"
    H = lstm[0]["w_hh"].shape[1]
    Hp = _round_up(H, 128)
    Vp = _round_up(vocab, 128)

    def pack_gates_w(w, in_dim_pad):
        # w: PyTorch (4H, in_dim), gate rows stacked [i, f, g, o].
        wi, wf, wg, wo = jnp.split(w, 4, axis=0)
        cols = []
        for p in (wi, wf, wo, wg):                       # -> column order [i,f,o,g]
            pt = jnp.pad(p.T, ((0, in_dim_pad - p.shape[1]), (0, Hp - H)))
            cols.append(pt)
        return jnp.concatenate(cols, axis=1)             # (in_dim_pad, 4*Hp)

    def pack_gates_b(b):
        bi, bf, bg, bo = jnp.split(b, 4)
        parts = [jnp.pad(p, (0, Hp - H)) for p in (bi, bf, bo, bg)]
        return jnp.concatenate(parts).reshape(1, 4 * Hp)

    l1, l2 = lstm
    w_out_t = jnp.pad(params["w_out"].T, ((0, Hp - H), (0, Vp - vocab)))
    b_out = jnp.pad(params["b_out"], (0, Vp - vocab),
                    constant_values=-1e30).reshape(1, Vp)   # mask padded vocab cols
    return {
        "emb": emb,
        "w_ih1_t": pack_gates_w(l1["w_ih"], n_fac),          # (n_fac, 4Hp)
        "w_hh1_t": pack_gates_w(l1["w_hh"], Hp),             # (Hp, 4Hp)
        "b1": pack_gates_b(l1["b_ih"] + l1["b_hh"]),         # (1, 4Hp)
        "w_ih2_t": pack_gates_w(l2["w_ih"], Hp),             # (Hp, 4Hp)
        "w_hh2_t": pack_gates_w(l2["w_hh"], Hp),             # (Hp, 4Hp)
        "b2": pack_gates_b(l2["b_ih"] + l2["b_hh"]),         # (1, 4Hp)
        "w_out_t": w_out_t,                                  # (Hp, Vp)
        "b_out": b_out,                                      # (1, Vp)
    }


# ----------------------------------------------------------------------------
# CharRnn forward.
# ----------------------------------------------------------------------------
@jax.jit
def char_rnn_forward(prep, inp):
    """inp: (seq_len, batch) int32 token ids.  Returns (seq_len, batch, vocab) log-probs."""
    seq_len, batch = inp.shape
    vocab = prep["emb"].shape[0]
    hp = prep["w_hh1_t"].shape[0]

    # Embedding lookup (gather) — plain JAX glue.
    x = jnp.take(prep["emb"], inp, axis=0)               # (seq, batch, n_fac)
    b_pad = _round_up(batch, 8)
    if b_pad != batch:
        x = jnp.pad(x, ((0, 0), (0, b_pad - batch), (0, 0)))
    rows = seq_len * b_pad

    # Hoisted layer-1 input matmul over ALL timesteps (fills the MXU).
    gx1 = matmul_bias(x.reshape(rows, -1), prep["w_ih1_t"], prep["b1"])
    gx1 = gx1.reshape(seq_len, b_pad, -1)                 # (seq, B_pad, 4Hp)

    # Fused 2-layer LSTM recurrence.
    # TODO(synk): inter-layer dropout(p=0.1) is training-only; omitted (eval semantics).
    # TODO(synk): hidden state starts at zeros each call (fresh init_hidden_state);
    #             cross-call stateful carry of self.h is left to the caller.
    h2 = fused_lstm2(gx1, prep["w_hh1_t"], prep["w_ih2_t"],
                     prep["w_hh2_t"], prep["b2"])          # (seq, B_pad, Hp)

    # Output projection + log_softmax.
    logp = proj_log_softmax(h2.reshape(rows, hp), prep["w_out_t"], prep["b_out"])
    return logp.reshape(seq_len, b_pad, -1)[:, :batch, :vocab]


if __name__ == "__main__":
    vocab_size, n_fac, n_hidden, layers = 32, 16, 32, 2
    seq_len, batch = 8, 8

    key = jax.random.PRNGKey(0)
    k_params, k_inp = jax.random.split(key)
    raw_params = init_params(k_params, vocab_size, n_fac, n_hidden, layers)
    prep = prepare_params(raw_params)
    inp = jax.random.randint(k_inp, (seq_len, batch), 0, vocab_size, dtype=jnp.int32)

    out = char_rnn_forward(prep, inp)
    jax.block_until_ready(out)
    assert out.shape == (seq_len, batch, vocab_size)
    assert out.dtype == jnp.float32
    # log_softmax sanity: probabilities sum to 1 along vocab.
    assert bool(jnp.all(jnp.abs(jnp.sum(jnp.exp(out), axis=-1) - 1.0) < 1e-3))
    print("KERNEL_OK")
</pallas_src>

<mosaic_0001>
module attributes {stable_mosaic.version = 11 : i64} {
  func.func @_matmul_bias_kernel(%arg0: i32, %arg1: memref<64x16xf32, #tpu.memory_space<vmem>>, %arg2: memref<16x512xf32, #tpu.memory_space<vmem>>, %arg3: memref<1x512xf32, #tpu.memory_space<vmem>>, %arg4: memref<64x512xf32, #tpu.memory_space<vmem>>) attributes {dimension_semantics = [#tpu.dimension_semantics<parallel>], iteration_bounds = array<i64: 1>, scalar_prefetch = 0 : i64, scratch_operands = 0 : i64, tpu.core_type = #tpu.core_type<tc>, window_params = [{transform_indices = @transform_0, window_bounds = array<i64: 64, 16>}, {pipeline_mode = #tpu.pipeline_mode<synchronous>, transform_indices = @transform_1, window_bounds = array<i64: 16, 512>}, {pipeline_mode = #tpu.pipeline_mode<synchronous>, transform_indices = @transform_2, window_bounds = array<i64: 1, 512>}, {transform_indices = @transform_3, window_bounds = array<i64: 64, 512>}]} {
    %c0 = arith.constant 0 : index
    %c0_0 = arith.constant 0 : index
    %0 = vector.load %arg1[%c0, %c0_0] : memref<64x16xf32, #tpu.memory_space<vmem>>, vector<64x16xf32>
    %c0_1 = arith.constant 0 : index
    %c0_2 = arith.constant 0 : index
    %1 = vector.load %arg2[%c0_1, %c0_2] : memref<16x512xf32, #tpu.memory_space<vmem>>, vector<16x512xf32>
    %cst = arith.constant dense<0.000000e+00> : vector<64x512xf32>
    %2 = tpu.matmul %0, %1, %cst {dimension_numbers = #tpu.dot_dimension_numbers<[1], [0], [0], [1], [0, 0, 1, 1], [], []>} : vector<64x16xf32>, vector<16x512xf32>, vector<64x512xf32> -> vector<64x512xf32>
    %c0_3 = arith.constant 0 : index
    %c0_4 = arith.constant 0 : index
    %3 = vector.load %arg3[%c0_3, %c0_4] : memref<1x512xf32, #tpu.memory_space<vmem>>, vector<1x512xf32>
    %4 = vector.broadcast %3 : vector<1x512xf32> to vector<64x512xf32>
    %5 = arith.addf %2, %4 : vector<64x512xf32>
    %c0_5 = arith.constant 0 : index
    %c0_6 = arith.constant 0 : index
    %6 = vector.load %arg4[%c0_5, %c0_6] : memref<64x512xf32, #tpu.memory_space<vmem>>, vector<64x512xf32>
    tpu.vector_store %arg4[%c0_5, %c0_6], %5 {strides = array<i32>} : memref<64x512xf32, #tpu.memory_space<vmem>>, vector<64x512xf32>,
    return
  }
  func.func @transform_0(%arg0: i32) -> (i32, i32) {
    %c0_i32 = arith.constant 0 : i32
    %c0_i32_0 = arith.constant 0 : i32
    return %arg0, %c0_i32 : i32, i32
  }
  func.func @transform_1(%arg0: i32) -> (i32, i32) {
    %c0_i32 = arith.constant 0 : i32
    %c0_i32_0 = arith.constant 0 : i32
    %c0_i32_1 = arith.constant 0 : i32
    return %c0_i32, %c0_i32_0 : i32, i32
  }
  func.func @transform_2(%arg0: i32) -> (i32, i32) {
    %c0_i32 = arith.constant 0 : i32
    %c0_i32_0 = arith.constant 0 : i32
    %c0_i32_1 = arith.constant 0 : i32
    return %c0_i32, %c0_i32_0 : i32, i32
  }
  func.func @transform_3(%arg0: i32) -> (i32, i32) {
    %c0_i32 = arith.constant 0 : i32
    %c0_i32_0 = arith.constant 0 : i32
    return %arg0, %c0_i32 : i32, i32
  }
}

module attributes {stable_mosaic.version = 11 : i64} {
  func.func @_proj_logsoftmax_kernel(%arg0: i32, %arg1: memref<64x128xf32, #tpu.memory_space<vmem>>, %arg2: memref<128x128xf32, #tpu.memory_space<vmem>>, %arg3: memref<1x128xf32, #tpu.memory_space<vmem>>, %arg4: memref<64x128xf32, #tpu.memory_space<vmem>>) attributes {dimension_semantics = [#tpu.dimension_semantics<parallel>], iteration_bounds = array<i64: 1>, scalar_prefetch = 0 : i64, scratch_operands = 0 : i64, tpu.core_type = #tpu.core_type<tc>, window_params = [{transform_indices = @transform_0, window_bounds = array<i64: 64, 128>}, {pipeline_mode = #tpu.pipeline_mode<synchronous>, transform_indices = @transform_1, window_bounds = array<i64: 128, 128>}, {pipeline_mode = #tpu.pipeline_mode<synchronous>, transform_indices = @transform_2, window_bounds = array<i64: 1, 128>}, {transform_indices = @transform_3, window_bounds = array<i64: 64, 128>}]} {
    %c0 = arith.constant 0 : index
    %c0_0 = arith.constant 0 : index
    %0 = vector.load %arg1[%c0, %c0_0] : memref<64x128xf32, #tpu.memory_space<vmem>>, vector<64x128xf32>
    %c0_1 = arith.constant 0 : index
    %c0_2 = arith.constant 0 : index
    %1 = vector.load %arg2[%c0_1, %c0_2] : memref<128x128xf32, #tpu.memory_space<vmem>>, vector<128x128xf32>
    %cst = arith.constant dense<0.000000e+00> : vector<64x128xf32>
    %2 = tpu.matmul %0, %1, %cst {dimension_numbers = #tpu.dot_dimension_numbers<[1], [0], [0], [1], [0, 0, 1, 1], [], []>} : vector<64x128xf32>, vector<128x128xf32>, vector<64x128xf32> -> vector<64x128xf32>
    %c0_3 = arith.constant 0 : index
    %c0_4 = arith.constant 0 : index
    %3 = vector.load %arg3[%c0_3, %c0_4] : memref<1x128xf32, #tpu.memory_space<vmem>>, vector<1x128xf32>
    %4 = vector.broadcast %3 : vector<1x128xf32> to vector<64x128xf32>
    %5 = arith.addf %2, %4 : vector<64x128xf32>
    %cst_5 = arith.constant dense<0xFF800000> : vector<64xf32>
    %6 = vector.multi_reduction <maximumf>, %5, %cst_5 [1] : vector<64x128xf32> to vector<64xf32>
    %7 = vector.shape_cast %6 : vector<64xf32> to vector<64x1xf32>
    %8 = vector.broadcast %7 : vector<64x1xf32> to vector<64x128xf32>
    %9 = arith.subf %5, %8 : vector<64x128xf32>
    %10 = math.exp %9 : vector<64x128xf32>
    %cst_6 = arith.constant dense<0.000000e+00> : vector<64xf32>
    %11 = vector.multi_reduction <add>, %10, %cst_6 [1] : vector<64x128xf32> to vector<64xf32>
    %12 = vector.shape_cast %11 : vector<64xf32> to vector<64x1xf32>
    %13 = math.log %12 : vector<64x1xf32>
    %14 = vector.broadcast %13 : vector<64x1xf32> to vector<64x128xf32>
    %15 = arith.subf %9, %14 : vector<64x128xf32>
    %c0_7 = arith.constant 0 : index
    %c0_8 = arith.constant 0 : index
    %16 = vector.load %arg4[%c0_7, %c0_8] : memref<64x128xf32, #tpu.memory_space<vmem>>, vector<64x128xf32>
    tpu.vector_store %arg4[%c0_7, %c0_8], %15 {strides = array<i32>} : memref<64x128xf32, #tpu.memory_space<vmem>>, vector<64x128xf32>,
    return
  }
  func.func @transform_0(%arg0: i32) -> (i32, i32) {
    %c0_i32 = arith.constant 0 : i32
    %c0_i32_0 = arith.constant 0 : i32
    return %arg0, %c0_i32 : i32, i32
  }
  func.func @transform_1(%arg0: i32) -> (i32, i32) {
    %c0_i32 = arith.constant 0 : i32
    %c0_i32_0 = arith.constant 0 : i32
    %c0_i32_1 = arith.constant 0 : i32
    return %c0_i32, %c0_i32_0 : i32, i32
  }
  func.func @transform_2(%arg0: i32) -> (i32, i32) {
    %c0_i32 = arith.constant 0 : i32
    %c0_i32_0 = arith.constant 0 : i32
    %c0_i32_1 = arith.constant 0 : i32
    return %c0_i32, %c0_i32_0 : i32, i32
  }
  func.func @transform_3(%arg0: i32) -> (i32, i32) {
    %c0_i32 = arith.constant 0 : i32
    %c0_i32_0 = arith.constant 0 : i32
    return %arg0, %c0_i32 : i32, i32
  }
}

module attributes {stable_mosaic.version = 11 : i64} {
  func.func @_fused_lstm2_kernel(%arg0: i32, %arg1: memref<8x8x512xf32, #tpu.memory_space<vmem>>, %arg2: memref<128x512xf32, #tpu.memory_space<vmem>>, %arg3: memref<128x512xf32, #tpu.memory_space<vmem>>, %arg4: memref<128x512xf32, #tpu.memory_space<vmem>>, %arg5: memref<1x512xf32, #tpu.memory_space<vmem>>, %arg6: memref<8x8x128xf32, #tpu.memory_space<vmem>>, %arg7: memref<8x128xf32, #tpu.memory_space<vmem>>, %arg8: memref<8x128xf32, #tpu.memory_space<vmem>>, %arg9: memref<8x128xf32, #tpu.memory_space<vmem>>, %arg10: memref<8x128xf32, #tpu.memory_space<vmem>>) attributes {dimension_semantics = [#tpu.dimension_semantics<arbitrary>], iteration_bounds = array<i64: 1>, scalar_prefetch = 0 : i64, scratch_operands = 4 : i64, tpu.core_type = #tpu.core_type<tc>, window_params = [{transform_indices = @transform_0, window_bounds = array<i64: 8, 8, 512>}, {pipeline_mode = #tpu.pipeline_mode<synchronous>, transform_indices = @transform_1, window_bounds = array<i64: 128, 512>}, {pipeline_mode = #tpu.pipeline_mode<synchronous>, transform_indices = @transform_2, window_bounds = array<i64: 128, 512>}, {pipeline_mode = #tpu.pipeline_mode<synchronous>, transform_indices = @transform_3, window_bounds = array<i64: 128, 512>}, {pipeline_mode = #tpu.pipeline_mode<synchronous>, transform_indices = @transform_4, window_bounds = array<i64: 1, 512>}, {transform_indices = @transform_5, window_bounds = array<i64: 8, 8, 128>}]} {
    %c0_i32 = arith.constant 0 : i32
    %0 = arith.cmpi eq, %arg0, %c0_i32 : i32
    %1 = arith.extui %0 : i1 to i32
    %c0_i32_0 = arith.constant 0 : i32
    %2 = arith.cmpi ne, %1, %c0_i32_0 : i32
    scf.if %2 {
      %cst_152 = arith.constant 0.000000e+00 : f32
      %411 = vector.broadcast %cst_152 : f32 to vector<8x128xf32>
      %c0_153 = arith.constant 0 : index
      %c0_154 = arith.constant 0 : index
      %412 = vector.load %arg7[%c0_153, %c0_154] : memref<8x128xf32, #tpu.memory_space<vmem>>, vector<8x128xf32>
      tpu.vector_store %arg7[%c0_153, %c0_154], %411 {strides = array<i32>} : memref<8x128xf32, #tpu.memory_space<vmem>>, vector<8x128xf32>,
      %cst_155 = arith.constant 0.000000e+00 : f32
      %413 = vector.broadcast %cst_155 : f32 to vector<8x128xf32>
      %c0_156 = arith.constant 0 : index
      %c0_157 = arith.constant 0 : index
      %414 = vector.load %arg8[%c0_156, %c0_157] : memref<8x128xf32, #tpu.memory_space<vmem>>, vector<8x128xf32>
      tpu.vector_store %arg8[%c0_156, %c0_157], %413 {strides = array<i32>} : memref<8x128xf32, #tpu.memory_space<vmem>>, vector<8x128xf32>,
      %cst_158 = arith.constant 0.000000e+00 : f32
      %415 = vector.broadcast %cst_158 : f32 to vector<8x128xf32>
      %c0_159 = arith.constant 0 : index
      %c0_160 = arith.constant 0 : index
      %416 = vector.load %arg9[%c0_159, %c0_160] : memref<8x128xf32, #tpu.memory_space<vmem>>, vector<8x128xf32>
      tpu.vector_store %arg9[%c0_159, %c0_160], %415 {strides = array<i32>} : memref<8x128xf32, #tpu.memory_space<vmem>>, vector<8x128xf32>,
      %cst_161 = arith.constant 0.000000e+00 : f32
      %417 = vector.broadcast %cst_161 : f32 to vector<8x128xf32>
      %c0_162 = arith.constant 0 : index
      %c0_163 = arith.constant 0 : index
      %418 = vector.load %arg10[%c0_162, %c0_163] : memref<8x128xf32, #tpu.memory_space<vmem>>, vector<8x128xf32>
      tpu.vector_store %arg10[%c0_162, %c0_163], %417 {strides = array<i32>} : memref<8x128xf32, #tpu.memory_space<vmem>>, vector<8x128xf32>,
    } else {
    }
    %c0 = arith.constant 0 : index
    %c0_1 = arith.constant 0 : index
    %3 = vector.load %arg7[%c0, %c0_1] : memref<8x128xf32, #tpu.memory_space<vmem>>, vector<8x128xf32>
    %c0_2 = arith.constant 0 : index
    %c0_3 = arith.constant 0 : index
    %4 = vector.load %arg8[%c0_2, %c0_3] : memref<8x128xf32, #tpu.memory_space<vmem>>, vector<8x128xf32>
    %c0_4 = arith.constant 0 : index
    %c0_5 = arith.constant 0 : index
    %5 = vector.load %arg9[%c0_4, %c0_5] : memref<8x128xf32, #tpu.memory_space<vmem>>, vector<8x128xf32>
    %c0_6 = arith.constant 0 : index
    %c0_7 = arith.constant 0 : index
    %6 = vector.load %arg10[%c0_6, %c0_7] : memref<8x128xf32, #tpu.memory_space<vmem>>, vector<8x128xf32>
    %c0_i32_8 = arith.constant 0 : i32
    %7 = arith.index_cast %c0_i32_8 : i32 to index
    %c0_9 = arith.constant 0 : index
    %c0_10 = arith.constant 0 : index
    %8 = vector.load %arg1[%7, %c0_9, %c0_10] : memref<8x8x512xf32, #tpu.memory_space<vmem>>, vector<1x8x512xf32>
    %9 = vector.shape_cast %8 : vector<1x8x512xf32> to vector<8x512xf32>
    %c0_11 = arith.constant 0 : index
    %c0_12 = arith.constant 0 : index
    %10 = vector.load %arg2[%c0_11, %c0_12] : memref<128x512xf32, #tpu.memory_space<vmem>>, vector<128x512xf32>
    %cst = arith.constant dense<0.000000e+00> : vector<8x512xf32>
    %11 = tpu.matmul %3, %10, %cst {dimension_numbers = #tpu.dot_dimension_numbers<[1], [0], [0], [1], [0, 0, 1, 1], [], []>} : vector<8x128xf32>, vector<128x512xf32>, vector<8x512xf32> -> vector<8x512xf32>
    %12 = arith.addf %9, %11 : vector<8x512xf32>
    %13 = vector.extract_strided_slice %12 {offsets = [0, 0], sizes = [8, 384], strides = [1, 1]} : vector<8x512xf32> to vector<8x384xf32>
    %14 = arith.negf %13 : vector<8x384xf32>
    %15 = math.exp %14 : vector<8x384xf32>
    %cst_13 = arith.constant 1.000000e+00 : f32
    %16 = vector.broadcast %cst_13 : f32 to vector<8x384xf32>
    %17 = arith.addf %16, %15 : vector<8x384xf32>
    %18 = arith.divf %16, %17 : vector<8x384xf32>
    %19 = vector.extract_strided_slice %12 {offsets = [0, 384], sizes = [8, 128], strides = [1, 1]} : vector<8x512xf32> to vector<8x128xf32>
    %20 = math.tanh %19 : vector<8x128xf32>
    %21 = vector.extract_strided_slice %18 {offsets = [0, 0], sizes = [8, 128], strides = [1, 1]} : vector<8x384xf32> to vector<8x128xf32>
    %22 = vector.extract_strided_slice %18 {offsets = [0, 128], sizes = [8, 128], strides = [1, 1]} : vector<8x384xf32> to vector<8x128xf32>
    %23 = vector.extract_strided_slice %18 {offsets = [0, 256], sizes = [8, 128], strides = [1, 1]} : vector<8x384xf32> to vector<8x128xf32>
    %24 = arith.mulf %22, %4 : vector<8x128xf32>
    %25 = arith.mulf %21, %20 : vector<8x128xf32>
    %26 = arith.addf %24, %25 : vector<8x128xf32>
    %27 = math.tanh %26 : vector<8x128xf32>
    %28 = arith.mulf %23, %27 : vector<8x128xf32>
    %c0_14 = arith.constant 0 : index
    %c0_15 = arith.constant 0 : index
    %29 = vector.load %arg3[%c0_14, %c0_15] : memref<128x512xf32, #tpu.memory_space<vmem>>, vector<128x512xf32>
    %cst_16 = arith.constant dense<0.000000e+00> : vector<8x512xf32>
    %30 = tpu.matmul %28, %29, %cst_16 {dimension_numbers = #tpu.dot_dimension_numbers<[1], [0], [0], [1], [0, 0, 1, 1], [], []>} : vector<8x128xf32>, vector<128x512xf32>, vector<8x512xf32> -> vector<8x512xf32>
    %c0_17 = arith.constant 0 : index
    %c0_18 = arith.constant 0 : index
    %31 = vector.load %arg4[%c0_17, %c0_18] : memref<128x512xf32, #tpu.memory_space<vmem>>, vector<128x512xf32>
    %cst_19 = arith.constant dense<0.000000e+00> : vector<8x512xf32>
    %32 = tpu.matmul %5, %31, %cst_19 {dimension_numbers = #tpu.dot_dimension_numbers<[1], [0], [0], [1], [0, 0, 1, 1], [], []>} : vector<8x128xf32>, vector<128x512xf32>, vector<8x512xf32> -> vector<8x512xf32>
    %33 = arith.addf %30, %32 : vector<8x512xf32>
    %c0_20 = arith.constant 0 : index
    %c0_21 = arith.constant 0 : index
    %34 = vector.load %arg5[%c0_20, %c0_21] : memref<1x512xf32, #tpu.memory_space<vmem>>, vector<1x512xf32>
    %35 = vector.broadcast %34 : vector<1x512xf32> to vector<8x512xf32>
    %36 = arith.addf %33, %35 : vector<8x512xf32>
    %37 = vector.extract_strided_slice %36 {offsets = [0, 0], sizes = [8, 384], strides = [1, 1]} : vector<8x512xf32> to vector<8x384xf32>
    %38 = arith.negf %37 : vector<8x384xf32>
    %39 = math.exp %38 : vector<8x384xf32>
    %cst_22 = arith.constant 1.000000e+00 : f32
    %40 = vector.broadcast %cst_22 : f32 to vector<8x384xf32>
    %41 = arith.addf %40, %39 : vector<8x384xf32>
    %42 = arith.divf %40, %41 : vector<8x384xf32>
    %43 = vector.extract_strided_slice %36 {offsets = [0, 384], sizes = [8, 128], strides = [1, 1]} : vector<8x512xf32> to vector<8x128xf32>
    %44 = math.tanh %43 : vector<8x128xf32>
    %45 = vector.extract_strided_slice %42 {offsets = [0, 0], sizes = [8, 128], strides = [1, 1]} : vector<8x384xf32> to vector<8x128xf32>
    %46 = vector.extract_strided_slice %42 {offsets = [0, 128], sizes = [8, 128], strides = [1, 1]} : vector<8x384xf32> to vector<8x128xf32>
    %47 = vector.extract_strided_slice %42 {offsets = [0, 256], sizes = [8, 128], strides = [1, 1]} : vector<8x384xf32> to vector<8x128xf32>
    %48 = arith.mulf %46, %6 : vector<8x128xf32>
    %49 = arith.mulf %45, %44 : vector<8x128xf32>
    %50 = arith.addf %48, %49 : vector<8x128xf32>
    %51 = math.tanh %50 : vector<8x128xf32>
    %52 = arith.mulf %47, %51 : vector<8x128xf32>
    %53 = arith.index_cast %c0_i32_8 : i32 to index
    %c0_23 = arith.constant 0 : index
    %c0_24 = arith.constant 0 : index
    %54 = vector.load %arg6[%53, %c0_23, %c0_24] : memref<8x8x128xf32, #tpu.memory_space<vmem>>, vector<1x8x128xf32>
    %55 = vector.shape_cast %54 : vector<1x8x128xf32> to vector<8x128xf32>
    %56 = vector.shape_cast %52 : vector<8x128xf32> to vector<1x8x128xf32>
    tpu.vector_store %arg6[%53, %c0_23, %c0_24], %56 {strides = array<i32>} : memref<8x8x128xf32, #tpu.memory_space<vmem>>, vector<1x8x128xf32>,
    %c1_i32 = arith.constant 1 : i32
    %57 = arith.index_cast %c1_i32 : i32 to index
    %c0_25 = arith.constant 0 : index
    %c0_26 = arith.constant 0 : index
    %58 = vector.load %arg1[%57, %c0_25, %c0_26] : memref<8x8x512xf32, #tpu.memory_space<vmem>>, vector<1x8x512xf32>
    %59 = vector.shape_cast %58 : vector<1x8x512xf32> to vector<8x512xf32>
    %c0_27 = arith.constant 0 : index
    %c0_28 = arith.constant 0 : index
    %60 = vector.load %arg2[%c0_27, %c0_28] : memref<128x512xf32, #tpu.memory_space<vmem>>, vector<128x512xf32>
    %cst_29 = arith.constant dense<0.000000e+00> : vector<8x512xf32>
    %61 = tpu.matmul %28, %60, %cst_29 {dimension_numbers = #tpu.dot_dimension_numbers<[1], [0], [0], [1], [0, 0, 1, 1], [], []>} : vector<8x128xf32>, vector<128x512xf32>, vector<8x512xf32> -> vector<8x512xf32>
    %62 = arith.addf %59, %61 : vector<8x512xf32>
    %63 = vector.extract_strided_slice %62 {offsets = [0, 0], sizes = [8, 384], strides = [1, 1]} : vector<8x512xf32> to vector<8x384xf32>
    %64 = arith.negf %63 : vector<8x384xf32>
    %65 = math.exp %64 : vector<8x384xf32>
    %cst_30 = arith.constant 1.000000e+00 : f32
    %66 = vector.broadcast %cst_30 : f32 to vector<8x384xf32>
    %67 = arith.addf %66, %65 : vector<8x384xf32>
    %68 = arith.divf %66, %67 : vector<8x384xf32>
    %69 = vector.extract_strided_slice %62 {offsets = [0, 384], sizes = [8, 128], strides = [1, 1]} : vector<8x512xf32> to vector<8x128xf32>
    %70 = math.tanh %69 : vector<8x128xf32>
    %71 = vector.extract_strided_slice %68 {offsets = [0, 0], sizes = [8, 128], strides = [1, 1]} : vector<8x384xf32> to vector<8x128xf32>
    %72 = vector.extract_strided_slice %68 {offsets = [0, 128], sizes = [8, 128], strides = [1, 1]} : vector<8x384xf32> to vector<8x128xf32>
    %73 = vector.extract_strided_slice %68 {offsets = [0, 256], sizes = [8, 128], strides = [1, 1]} : vector<8x384xf32> to vector<8x128xf32>
    %74 = arith.mulf %72, %26 : vector<8x128xf32>
    %75 = arith.mulf %71, %70 : vector<8x128xf32>
    %76 = arith.addf %74, %75 : vector<8x128xf32>
    %77 = math.tanh %76 : vector<8x128xf32>
    %78 = arith.mulf %73, %77 : vector<8x128xf32>
    %c0_31 = arith.constant 0 : index
    %c0_32 = arith.constant 0 : index
    %79 = vector.load %arg3[%c0_31, %c0_32] : memref<128x512xf32, #tpu.memory_space<vmem>>, vector<128x512xf32>
    %cst_33 = arith.constant dense<0.000000e+00> : vector<8x512xf32>
    %80 = tpu.matmul %78, %79, %cst_33 {dimension_numbers = #tpu.dot_dimension_numbers<[1], [0], [0], [1], [0, 0, 1, 1], [], []>} : vector<8x128xf32>, vector<128x512xf32>, vector<8x512xf32> -> vector<8x512xf32>
    %c0_34 = arith.constant 0 : index
    %c0_35 = arith.constant 0 : index
    %81 = vector.load %arg4[%c0_34, %c0_35] : memref<128x512xf32, #tpu.memory_space<vmem>>, vector<128x512xf32>
    %cst_36 = arith.constant dense<0.000000e+00> : vector<8x512xf32>
    %82 = tpu.matmul %52, %81, %cst_36 {dimension_numbers = #tpu.dot_dimension_numbers<[1], [0], [0], [1], [0, 0, 1, 1], [], []>} : vector<8x128xf32>, vector<128x512xf32>, vector<8x512xf32> -> vector<8x512xf32>
    %83 = arith.addf %80, %82 : vector<8x512xf32>
    %c0_37 = arith.constant 0 : index
    %c0_38 = arith.constant 0 : index
    %84 = vector.load %arg5[%c0_37, %c0_38] : memref<1x512xf32, #tpu.memory_space<vmem>>, vector<1x512xf32>
    %85 = vector.broadcast %84 : vector<1x512xf32> to vector<8x512xf32>
    %86 = arith.addf %83, %85 : vector<8x512xf32>
    %87 = vector.extract_strided_slice %86 {offsets = [0, 0], sizes = [8, 384], strides = [1, 1]} : vector<8x512xf32> to vector<8x384xf32>
    %88 = arith.negf %87 : vector<8x384xf32>
    %89 = math.exp %88 : vector<8x384xf32>
    %cst_39 = arith.constant 1.000000e+00 : f32
    %90 = vector.broadcast %cst_39 : f32 to vector<8x384xf32>
    %91 = arith.addf %90, %89 : vector<8x384xf32>
    %92 = arith.divf %90, %91 : vector<8x384xf32>
    %93 = vector.extract_strided_slice %86 {offsets = [0, 384], sizes = [8, 128], strides = [1, 1]} : vector<8x512xf32> to vector<8x128xf32>
    %94 = math.tanh %93 : vector<8x128xf32>
    %95 = vector.extract_strided_slice %92 {offsets = [0, 0], sizes = [8, 128], strides = [1, 1]} : vector<8x384xf32> to vector<8x128xf32>
    %96 = vector.extract_strided_slice %92 {offsets = [0, 128], sizes = [8, 128], strides = [1, 1]} : vector<8x384xf32> to vector<8x128xf32>
    %97 = vector.extract_strided_slice %92 {offsets = [0, 256], sizes = [8, 128], strides = [1, 1]} : vector<8x384xf32> to vector<8x128xf32>
    %98 = arith.mulf %96, %50 : vector<8x128xf32>
    %99 = arith.mulf %95, %94 : vector<8x128xf32>
    %100 = arith.addf %98, %99 : vector<8x128xf32>
    %101 = math.tanh %100 : vector<8x128xf32>
    %102 = arith.mulf %97, %101 : vector<8x128xf32>
    %103 = arith.index_cast %c1_i32 : i32 to index
    %c0_40 = arith.constant 0 : index
    %c0_41 = arith.constant 0 : index
    %104 = vector.load %arg6[%103, %c0_40, %c0_41] : memref<8x8x128xf32, #tpu.memory_space<vmem>>, vector<1x8x128xf32>
    %105 = vector.shape_cast %104 : vector<1x8x128xf32> to vector<8x128xf32>
    %106 = vector.shape_cast %102 : vector<8x128xf32> to vector<1x8x128xf32>
    tpu.vector_store %arg6[%103, %c0_40, %c0_41], %106 {strides = array<i32>} : memref<8x8x128xf32, #tpu.memory_space<vmem>>, vector<1x8x128xf32>,
    %c2_i32 = arith.constant 2 : i32
    %107 = arith.index_cast %c2_i32 : i32 to index
    %c0_42 = arith.constant 0 : index
    %c0_43 = arith.constant 0 : index
    %108 = vector.load %arg1[%107, %c0_42, %c0_43] : memref<8x8x512xf32, #tpu.memory_space<vmem>>, vector<1x8x512xf32>
    %109 = vector.shape_cast %108 : vector<1x8x512xf32> to vector<8x512xf32>
    %c0_44 = arith.constant 0 : index
    %c0_45 = arith.constant 0 : index
    %110 = vector.load %arg2[%c0_44, %c0_45] : memref<128x512xf32, #tpu.memory_space<vmem>>, vector<128x512xf32>
    %cst_46 = arith.constant dense<0.000000e+00> : vector<8x512xf32>
    %111 = tpu.matmul %78, %110, %cst_46 {dimension_numbers = #tpu.dot_dimension_numbers<[1], [0], [0], [1], [0, 0, 1, 1], [], []>} : vector<8x128xf32>, vector<128x512xf32>, vector<8x512xf32> -> vector<8x512xf32>
    %112 = arith.addf %109, %111 : vector<8x512xf32>
    %113 = vector.extract_strided_slice %112 {offsets = [0, 0], sizes = [8, 384], strides = [1, 1]} : vector<8x512xf32> to vector<8x384xf32>
    %114 = arith.negf %113 : vector<8x384xf32>
    %115 = math.exp %114 : vector<8x384xf32>
    %cst_47 = arith.constant 1.000000e+00 : f32
    %116 = vector.broadcast %cst_47 : f32 to vector<8x384xf32>
    %117 = arith.addf %116, %115 : vector<8x384xf32>
    %118 = arith.divf %116, %117 : vector<8x384xf32>
    %119 = vector.extract_strided_slice %112 {offsets = [0, 384], sizes = [8, 128], strides = [1, 1]} : vector<8x512xf32> to vector<8x128xf32>
    %120 = math.tanh %119 : vector<8x128xf32>
    %121 = vector.extract_strided_slice %118 {offsets = [0, 0], sizes = [8, 128], strides = [1, 1]} : vector<8x384xf32> to vector<8x128xf32>
    %122 = vector.extract_strided_slice %118 {offsets = [0, 128], sizes = [8, 128], strides = [1, 1]} : vector<8x384xf32> to vector<8x128xf32>
    %123 = vector.extract_strided_slice %118 {offsets = [0, 256], sizes = [8, 128], strides = [1, 1]} : vector<8x384xf32> to vector<8x128xf32>
    %124 = arith.mulf %122, %76 : vector<8x128xf32>
    %125 = arith.mulf %121, %120 : vector<8x128xf32>
    %126 = arith.addf %124, %125 : vector<8x128xf32>
    %127 = math.tanh %126 : vector<8x128xf32>
    %128 = arith.mulf %123, %127 : vector<8x128xf32>
    %c0_48 = arith.constant 0 : index
    %c0_49 = arith.constant 0 : index
    %129 = vector.load %arg3[%c0_48, %c0_49] : memref<128x512xf32, #tpu.memory_space<vmem>>, vector<128x512xf32>
    %cst_50 = arith.constant dense<0.000000e+00> : vector<8x512xf32>
    %130 = tpu.matmul %128, %129, %cst_50 {dimension_numbers = #tpu.dot_dimension_numbers<[1], [0], [0], [1], [0, 0, 1, 1], [], []>} : vector<8x128xf32>, vector<128x512xf32>, vector<8x512xf32> -> vector<8x512xf32>
    %c0_51 = arith.constant 0 : index
    %c0_52 = arith.constant 0 : index
    %131 = vector.load %arg4[%c0_51, %c0_52] : memref<128x512xf32, #tpu.memory_space<vmem>>, vector<128x512xf32>
    %cst_53 = arith.constant dense<0.000000e+00> : vector<8x512xf32>
    %132 = tpu.matmul %102, %131, %cst_53 {dimension_numbers = #tpu.dot_dimension_numbers<[1], [0], [0], [1], [0, 0, 1, 1], [], []>} : vector<8x128xf32>, vector<128x512xf32>, vector<8x512xf32> -> vector<8x512xf32>
    %133 = arith.addf %130, %132 : vector<8x512xf32>
    %c0_54 = arith.constant 0 : index
    %c0_55 = arith.constant 0 : index
    %134 = vector.load %arg5[%c0_54, %c0_55] : memref<1x512xf32, #tpu.memory_space<vmem>>, vector<1x512xf32>
    %135 = vector.broadcast %134 : vector<1x512xf32> to vector<8x512xf32>
    %136 = arith.addf %133, %135 : vector<8x512xf32>
    %137 = vector.extract_strided_slice %136 {offsets = [0, 0], sizes = [8, 384], strides = [1, 1]} : vector<8x512xf32> to vector<8x384xf32>
    %138 = arith.negf %137 : vector<8x384xf32>
    %139 = math.exp %138 : vector<8x384xf32>
    %cst_56 = arith.constant 1.000000e+00 : f32
    %140 = vector.broadcast %cst_56 : f32 to vector<8x384xf32>
    %141 = arith.addf %140, %139 : vector<8x384xf32>
    %142 = arith.divf %140, %141 : vector<8x384xf32>
    %143 = vector.extract_strided_slice %136 {offsets = [0, 384], sizes = [8, 128], strides = [1, 1]} : vector<8x512xf32> to vector<8x128xf32>
    %144 = math.tanh %143 : vector<8x128xf32>
    %145 = vector.extract_strided_slice %142 {offsets = [0, 0], sizes = [8, 128], strides = [1, 1]} : vector<8x384xf32> to vector<8x128xf32>
    %146 = vector.extract_strided_slice %142 {offsets = [0, 128], sizes = [8, 128], strides = [1, 1]} : vector<8x384xf32> to vector<8x128xf32>
    %147 = vector.extract_strided_slice %142 {offsets = [0, 256], sizes = [8, 128], strides = [1, 1]} : vector<8x384xf32> to vector<8x128xf32>
    %148 = arith.mulf %146, %100 : vector<8x128xf32>
    %149 = arith.mulf %145, %144 : vector<8x128xf32>
    %150 = arith.addf %148, %149 : vector<8x128xf32>
    %151 = math.tanh %150 : vector<8x128xf32>
    %152 = arith.mulf %147, %151 : vector<8x128xf32>
    %153 = arith.index_cast %c2_i32 : i32 to index
    %c0_57 = arith.constant 0 : index
    %c0_58 = arith.constant 0 : index
    %154 = vector.load %arg6[%153, %c0_57, %c0_58] : memref<8x8x128xf32, #tpu.memory_space<vmem>>, vector<1x8x128xf32>
    %155 = vector.shape_cast %154 : vector<1x8x128xf32> to vector<8x128xf32>
    %156 = vector.shape_cast %152 : vector<8x128xf32> to vector<1x8x128xf32>
    tpu.vector_store %arg6[%153, %c0_57, %c0_58], %156 {strides = array<i32>} : memref<8x8x128xf32, #tpu.memory_space<vmem>>, vector<1x8x128xf32>,
    %c3_i32 = arith.constant 3 : i32
    %157 = arith.index_cast %c3_i32 : i32 to index
    %c0_59 = arith.constant 0 : index
    %c0_60 = arith.constant 0 : index
    %158 = vector.load %arg1[%157, %c0_59, %c0_60] : memref<8x8x512xf32, #tpu.memory_space<vmem>>, vector<1x8x512xf32>
    %159 = vector.shape_cast %158 : vector<1x8x512xf32> to vector<8x512xf32>
    %c0_61 = arith.constant 0 : index
    %c0_62 = arith.constant 0 : index
    %160 = vector.load %arg2[%c0_61, %c0_62] : memref<128x512xf32, #tpu.memory_space<vmem>>, vector<128x512xf32>
    %cst_63 = arith.constant dense<0.000000e+00> : vector<8x512xf32>
    %161 = tpu.matmul %128, %160, %cst_63 {dimension_numbers = #tpu.dot_dimension_numbers<[1], [0], [0], [1], [0, 0, 1, 1], [], []>} : vector<8x128xf32>, vector<128x512xf32>, vector<8x512xf32> -> vector<8x512xf32>
    %162 = arith.addf %159, %161 : vector<8x512xf32>
    %163 = vector.extract_strided_slice %162 {offsets = [0, 0], sizes = [8, 384], strides = [1, 1]} : vector<8x512xf32> to vector<8x384xf32>
    %164 = arith.negf %163 : vector<8x384xf32>
    %165 = math.exp %164 : vector<8x384xf32>
    %cst_64 = arith.constant 1.000000e+00 : f32
    %166 = vector.broadcast %cst_64 : f32 to vector<8x384xf32>
    %167 = arith.addf %166, %165 : vector<8x384xf32>
    %168 = arith.divf %166, %167 : vector<8x384xf32>
    %169 = vector.extract_strided_slice %162 {offsets = [0, 384], sizes = [8, 128], strides = [1, 1]} : vector<8x512xf32> to vector<8x128xf32>
    %170 = math.tanh %169 : vector<8x128xf32>
    %171 = vector.extract_strided_slice %168 {offsets = [0, 0], sizes = [8, 128], strides = [1, 1]} : vector<8x384xf32> to vector<8x128xf32>
    %172 = vector.extract_strided_slice %168 {offsets = [0, 128], sizes = [8, 128], strides = [1, 1]} : vector<8x384xf32> to vector<8x128xf32>
    %173 = vector.extract_strided_slice %168 {offsets = [0, 256], sizes = [8, 128], strides = [1, 1]} : vector<8x384xf32> to vector<8x128xf32>
    %174 = arith.mulf %172, %126 : vector<8x128xf32>
    %175 = arith.mulf %171, %170 : vector<8x128xf32>
    %176 = arith.addf %174, %175 : vector<8x128xf32>
    %177 = math.tanh %176 : vector<8x128xf32>
    %178 = arith.mulf %173, %177 : vector<8x128xf32>
    %c0_65 = arith.constant 0 : index
    %c0_66 = arith.constant 0 : index
    %179 = vector.load %arg3[%c0_65, %c0_66] : memref<128x512xf32, #tpu.memory_space<vmem>>, vector<128x512xf32>
    %cst_67 = arith.constant dense<0.000000e+00> : vector<8x512xf32>
    %180 = tpu.matmul %178, %179, %cst_67 {dimension_numbers = #tpu.dot_dimension_numbers<[1], [0], [0], [1], [0, 0, 1, 1], [], []>} : vector<8x128xf32>, vector<128x512xf32>, vector<8x512xf32> -> vector<8x512xf32>
    %c0_68 = arith.constant 0 : index
    %c0_69 = arith.constant 0 : index
    %181 = vector.load %arg4[%c0_68, %c0_69] : memref<128x512xf32, #tpu.memory_space<vmem>>, vector<128x512xf32>
    %cst_70 = arith.constant dense<0.000000e+00> : vector<8x512xf32>
    %182 = tpu.matmul %152, %181, %cst_70 {dimension_numbers = #tpu.dot_dimension_numbers<[1], [0], [0], [1], [0, 0, 1, 1], [], []>} : vector<8x128xf32>, vector<128x512xf32>, vector<8x512xf32> -> vector<8x512xf32>
    %183 = arith.addf %180, %182 : vector<8x512xf32>
    %c0_71 = arith.constant 0 : index
    %c0_72 = arith.constant 0 : index
    %184 = vector.load %arg5[%c0_71, %c0_72] : memref<1x512xf32, #tpu.memory_space<vmem>>, vector<1x512xf32>
    %185 = vector.broadcast %184 : vector<1x512xf32> to vector<8x512xf32>
    %186 = arith.addf %183, %185 : vector<8x512xf32>
    %187 = vector.extract_strided_slice %186 {offsets = [0, 0], sizes = [8, 384], strides = [1, 1]} : vector<8x512xf32> to vector<8x384xf32>
    %188 = arith.negf %187 : vector<8x384xf32>
    %189 = math.exp %188 : vector<8x384xf32>
    %cst_73 = arith.constant 1.000000e+00 : f32
    %190 = vector.broadcast %cst_73 : f32 to vector<8x384xf32>
    %191 = arith.addf %190, %189 : vector<8x384xf32>
    %192 = arith.divf %190, %191 : vector<8x384xf32>
    %193 = vector.extract_strided_slice %186 {offsets = [0, 384], sizes = [8, 128], strides = [1, 1]} : vector<8x512xf32> to vector<8x128xf32>
    %194 = math.tanh %193 : vector<8x128xf32>
    %195 = vector.extract_strided_slice %192 {offsets = [0, 0], sizes = [8, 128], strides = [1, 1]} : vector<8x384xf32> to vector<8x128xf32>
    %196 = vector.extract_strided_slice %192 {offsets = [0, 128], sizes = [8, 128], strides = [1, 1]} : vector<8x384xf32> to vector<8x128xf32>
    %197 = vector.extract_strided_slice %192 {offsets = [0, 256], sizes = [8, 128], strides = [1, 1]} : vector<8x384xf32> to vector<8x128xf32>
    %198 = arith.mulf %196, %150 : vector<8x128xf32>
    %199 = arith.mulf %195, %194 : vector<8x128xf32>
    %200 = arith.addf %198, %199 : vector<8x128xf32>
    %201 = math.tanh %200 : vector<8x128xf32>
    %202 = arith.mulf %197, %201 : vector<8x128xf32>
    %203 = arith.index_cast %c3_i32 : i32 to index
    %c0_74 = arith.constant 0 : index
    %c0_75 = arith.constant 0 : index
    %204 = vector.load %arg6[%203, %c0_74, %c0_75] : memref<8x8x128xf32, #tpu.memory_space<vmem>>, vector<1x8x128xf32>
    %205 = vector.shape_cast %204 : vector<1x8x128xf32> to vector<8x128xf32>
    %206 = vector.shape_cast %202 : vector<8x128xf32> to vector<1x8x128xf32>
    tpu.vector_store %arg6[%203, %c0_74, %c0_75], %206 {strides = array<i32>} : memref<8x8x128xf32, #tpu.memory_space<vmem>>, vector<1x8x128xf32>,
    %c4_i32 = arith.constant 4 : i32
    %207 = arith.index_cast %c4_i32 : i32 to index
    %c0_76 = arith.constant 0 : index
    %c0_77 = arith.constant 0 : index
    %208 = vector.load %arg1[%207, %c0_76, %c0_77] : memref<8x8x512xf32, #tpu.memory_space<vmem>>, vector<1x8x512xf32>
    %209 = vector.shape_cast %208 : vector<1x8x512xf32> to vector<8x512xf32>
    %c0_78 = arith.constant 0 : index
    %c0_79 = arith.constant 0 : index
    %210 = vector.load %arg2[%c0_78, %c0_79] : memref<128x512xf32, #tpu.memory_space<vmem>>, vector<128x512xf32>
    %cst_80 = arith.constant dense<0.000000e+00> : vector<8x512xf32>
    %211 = tpu.matmul %178, %210, %cst_80 {dimension_numbers = #tpu.dot_dimension_numbers<[1], [0], [0], [1], [0, 0, 1, 1], [], []>} : vector<8x128xf32>, vector<128x512xf32>, vector<8x512xf32> -> vector<8x512xf32>
    %212 = arith.addf %209, %211 : vector<8x512xf32>
    %213 = vector.extract_strided_slice %212 {offsets = [0, 0], sizes = [8, 384], strides = [1, 1]} : vector<8x512xf32> to vector<8x384xf32>
    %214 = arith.negf %213 : vector<8x384xf32>
    %215 = math.exp %214 : vector<8x384xf32>
    %cst_81 = arith.constant 1.000000e+00 : f32
    %216 = vector.broadcast %cst_81 : f32 to vector<8x384xf32>
    %217 = arith.addf %216, %215 : vector<8x384xf32>
    %218 = arith.divf %216, %217 : vector<8x384xf32>
    %219 = vector.extract_strided_slice %212 {offsets = [0, 384], sizes = [8, 128], strides = [1, 1]} : vector<8x512xf32> to vector<8x128xf32>
    %220 = math.tanh %219 : vector<8x128xf32>
    %221 = vector.extract_strided_slice %218 {offsets = [0, 0], sizes = [8, 128], strides = [1, 1]} : vector<8x384xf32> to vector<8x128xf32>
    %222 = vector.extract_strided_slice %218 {offsets = [0, 128], sizes = [8, 128], strides = [1, 1]} : vector<8x384xf32> to vector<8x128xf32>
    %223 = vector.extract_strided_slice %218 {offsets = [0, 256], sizes = [8, 128], strides = [1, 1]} : vector<8x384xf32> to vector<8x128xf32>
    %224 = arith.mulf %222, %176 : vector<8x128xf32>
    %225 = arith.mulf %221, %220 : vector<8x128xf32>
    %226 = arith.addf %224, %225 : vector<8x128xf32>
    %227 = math.tanh %226 : vector<8x128xf32>
    %228 = arith.mulf %223, %227 : vector<8x128xf32>
    %c0_82 = arith.constant 0 : index
    %c0_83 = arith.constant 0 : index
    %229 = vector.load %arg3[%c0_82, %c0_83] : memref<128x512xf32, #tpu.memory_space<vmem>>, vector<128x512xf32>
    %cst_84 = arith.constant dense<0.000000e+00> : vector<8x512xf32>
    %230 = tpu.matmul %228, %229, %cst_84 {dimension_numbers = #tpu.dot_dimension_numbers<[1], [0], [0], [1], [0, 0, 1, 1], [], []>} : vector<8x128xf32>, vector<128x512xf32>, vector<8x512xf32> -> vector<8x512xf32>
    %c0_85 = arith.constant 0 : index
    %c0_86 = arith.constant 0 : index
    %231 = vector.load %arg4[%c0_85, %c0_86] : memref<128x512xf32, #tpu.memory_space<vmem>>, vector<128x512xf32>
    %cst_87 = arith.constant dense<0.000000e+00> : vector<8x512xf32>
    %232 = tpu.matmul %202, %231, %cst_87 {dimension_numbers = #tpu.dot_dimension_numbers<[1], [0], [0], [1], [0, 0, 1, 1], [], []>} : vector<8x128xf32>, vector<128x512xf32>, vector<8x512xf32> -> vector<8x512xf32>
    %233 = arith.addf %230, %232 : vector<8x512xf32>
    %c0_88 = arith.constant 0 : index
    %c0_89 = arith.constant 0 : index
    %234 = vector.load %arg5[%c0_88, %c0_89] : memref<1x512xf32, #tpu.memory_space<vmem>>, vector<1x512xf32>
    %235 = vector.broadcast %234 : vector<1x512xf32> to vector<8x512xf32>
    %236 = arith.addf %233, %235 : vector<8x512xf32>
    %237 = vector.extract_strided_slice %236 {offsets = [0, 0], sizes = [8, 384], strides = [1, 1]} : vector<8x512xf32> to vector<8x384xf32>
    %238 = arith.negf %237 : vector<8x384xf32>
    %239 = math.exp %238 : vector<8x384xf32>
    %cst_90 = arith.constant 1.000000e+00 : f32
    %240 = vector.broadcast %cst_90 : f32 to vector<8x384xf32>
    %241 = arith.addf %240, %239 : vector<8x384xf32>
    %242 = arith.divf %240, %241 : vector<8x384xf32>
    %243 = vector.extract_strided_slice %236 {offsets = [0, 384], sizes = [8, 128], strides = [1, 1]} : vector<8x512xf32> to vector<8x128xf32>
    %244 = math.tanh %243 : vector<8x128xf32>
    %245 = vector.extract_strided_slice %242 {offsets = [0, 0], sizes = [8, 128], strides = [1, 1]} : vector<8x384xf32> to vector<8x128xf32>
    %246 = vector.extract_strided_slice %242 {offsets = [0, 128], sizes = [8, 128], strides = [1, 1]} : vector<8x384xf32> to vector<8x128xf32>
    %247 = vector.extract_strided_slice %242 {offsets = [0, 256], sizes = [8, 128], strides = [1, 1]} : vector<8x384xf32> to vector<8x128xf32>
    %248 = arith.mulf %246, %200 : vector<8x128xf32>
    %249 = arith.mulf %245, %244 : vector<8x128xf32>
    %250 = arith.addf %248, %249 : vector<8x128xf32>
    %251 = math.tanh %250 : vector<8x128xf32>
    %252 = arith.mulf %247, %251 : vector<8x128xf32>
    %253 = arith.index_cast %c4_i32 : i32 to index
    %c0_91 = arith.constant 0 : index
    %c0_92 = arith.constant 0 : index
    %254 = vector.load %arg6[%253, %c0_91, %c0_92] : memref<8x8x128xf32, #tpu.memory_space<vmem>>, vector<1x8x128xf32>
    %255 = vector.shape_cast %254 : vector<1x8x128xf32> to vector<8x128xf32>
    %256 = vector.shape_cast %252 : vector<8x128xf32> to vector<1x8x128xf32>
    tpu.vector_store %arg6[%253, %c0_91, %c0_92], %256 {strides = array<i32>} : memref<8x8x128xf32, #tpu.memory_space<vmem>>, vector<1x8x128xf32>,
    %c5_i32 = arith.constant 5 : i32
    %257 = arith.index_cast %c5_i32 : i32 to index
    %c0_93 = arith.constant 0 : index
    %c0_94 = arith.constant 0 : index
    %258 = vector.load %arg1[%257, %c0_93, %c0_94] : memref<8x8x512xf32, #tpu.memory_space<vmem>>, vector<1x8x512xf32>
    %259 = vector.shape_cast %258 : vector<1x8x512xf32> to vector<8x512xf32>
    %c0_95 = arith.constant 0 : index
    %c0_96 = arith.constant 0 : index
    %260 = vector.load %arg2[%c0_95, %c0_96] : memref<128x512xf32, #tpu.memory_space<vmem>>, vector<128x512xf32>
    %cst_97 = arith.constant dense<0.000000e+00> : vector<8x512xf32>
    %261 = tpu.matmul %228, %260, %cst_97 {dimension_numbers = #tpu.dot_dimension_numbers<[1], [0], [0], [1], [0, 0, 1, 1], [], []>} : vector<8x128xf32>, vector<128x512xf32>, vector<8x512xf32> -> vector<8x512xf32>
    %262 = arith.addf %259, %261 : vector<8x512xf32>
    %263 = vector.extract_strided_slice %262 {offsets = [0, 0], sizes = [8, 384], strides = [1, 1]} : vector<8x512xf32> to vector<8x384xf32>
    %264 = arith.negf %263 : vector<8x384xf32>
    %265 = math.exp %264 : vector<8x384xf32>
    %cst_98 = arith.constant 1.000000e+00 : f32
    %266 = vector.broadcast %cst_98 : f32 to vector<8x384xf32>
    %267 = arith.addf %266, %265 : vector<8x384xf32>
    %268 = arith.divf %266, %267 : vector<8x384xf32>
    %269 = vector.extract_strided_slice %262 {offsets = [0, 384], sizes = [8, 128], strides = [1, 1]} : vector<8x512xf32> to vector<8x128xf32>
    %270 = math.tanh %269 : vector<8x128xf32>
    %271 = vector.extract_strided_slice %268 {offsets = [0, 0], sizes = [8, 128], strides = [1, 1]} : vector<8x384xf32> to vector<8x128xf32>
    %272 = vector.extract_strided_slice %268 {offsets = [0, 128], sizes = [8, 128], strides = [1, 1]} : vector<8x384xf32> to vector<8x128xf32>
    %273 = vector.extract_strided_slice %268 {offsets = [0, 256], sizes = [8, 128], strides = [1, 1]} : vector<8x384xf32> to vector<8x128xf32>
    %274 = arith.mulf %272, %226 : vector<8x128xf32>
    %275 = arith.mulf %271, %270 : vector<8x128xf32>
    %276 = arith.addf %274, %275 : vector<8x128xf32>
    %277 = math.tanh %276 : vector<8x128xf32>
    %278 = arith.mulf %273, %277 : vector<8x128xf32>
    %c0_99 = arith.constant 0 : index
    %c0_100 = arith.constant 0 : index
    %279 = vector.load %arg3[%c0_99, %c0_100] : memref<128x512xf32, #tpu.memory_space<vmem>>, vector<128x512xf32>
    %cst_101 = arith.constant dense<0.000000e+00> : vector<8x512xf32>
    %280 = tpu.matmul %278, %279, %cst_101 {dimension_numbers = #tpu.dot_dimension_numbers<[1], [0], [0], [1], [0, 0, 1, 1], [], []>} : vector<8x128xf32>, vector<128x512xf32>, vector<8x512xf32> -> vector<8x512xf32>
    %c0_102 = arith.constant 0 : index
    %c0_103 = arith.constant 0 : index
    %281 = vector.load %arg4[%c0_102, %c0_103] : memref<128x512xf32, #tpu.memory_space<vmem>>, vector<128x512xf32>
    %cst_104 = arith.constant dense<0.000000e+00> : vector<8x512xf32>
    %282 = tpu.matmul %252, %281, %cst_104 {dimension_numbers = #tpu.dot_dimension_numbers<[1], [0], [0], [1], [0, 0, 1, 1], [], []>} : vector<8x128xf32>, vector<128x512xf32>, vector<8x512xf32> -> vector<8x512xf32>
    %283 = arith.addf %280, %282 : vector<8x512xf32>
    %c0_105 = arith.constant 0 : index
    %c0_106 = arith.constant 0 : index
    %284 = vector.load %arg5[%c0_105, %c0_106] : memref<1x512xf32, #tpu.memory_space<vmem>>, vector<1x512xf32>
    %285 = vector.broadcast %284 : vector<1x512xf32> to vector<8x512xf32>
    %286 = arith.addf %283, %285 : vector<8x512xf32>
    %287 = vector.extract_strided_slice %286 {offsets = [0, 0], sizes = [8, 384], strides = [1, 1]} : vector<8x512xf32> to vector<8x384xf32>
    %288 = arith.negf %287 : vector<8x384xf32>
    %289 = math.exp %288 : vector<8x384xf32>
    %cst_107 = arith.constant 1.000000e+00 : f32
    %290 = vector.broadcast %cst_107 : f32 to vector<8x384xf32>
    %291 = arith.addf %290, %289 : vector<8x384xf32>
    %292 = arith.divf %290, %291 : vector<8x384xf32>
    %293 = vector.extract_strided_slice %286 {offsets = [0, 384], sizes = [8, 128], strides = [1, 1]} : vector<8x512xf32> to vector<8x128xf32>
    %294 = math.tanh %293 : vector<8x128xf32>
    %295 = vector.extract_strided_slice %292 {offsets = [0, 0], sizes = [8, 128], strides = [1, 1]} : vector<8x384xf32> to vector<8x128xf32>
    %296 = vector.extract_strided_slice %292 {offsets = [0, 128], sizes = [8, 128], strides = [1, 1]} : vector<8x384xf32> to vector<8x128xf32>
    %297 = vector.extract_strided_slice %292 {offsets = [0, 256], sizes = [8, 128], strides = [1, 1]} : vector<8x384xf32> to vector<8x128xf32>
    %298 = arith.mulf %296, %250 : vector<8x128xf32>
    %299 = arith.mulf %295, %294 : vector<8x128xf32>
    %300 = arith.addf %298, %299 : vector<8x128xf32>
    %301 = math.tanh %300 : vector<8x128xf32>
    %302 = arith.mulf %297, %301 : vector<8x128xf32>
    %303 = arith.index_cast %c5_i32 : i32 to index
    %c0_108 = arith.constant 0 : index
    %c0_109 = arith.constant 0 : index
    %304 = vector.load %arg6[%303, %c0_108, %c0_109] : memref<8x8x128xf32, #tpu.memory_space<vmem>>, vector<1x8x128xf32>
    %305 = vector.shape_cast %304 : vector<1x8x128xf32> to vector<8x128xf32>
    %306 = vector.shape_cast %302 : vector<8x128xf32> to vector<1x8x128xf32>
    tpu.vector_store %arg6[%303, %c0_108, %c0_109], %306 {strides = array<i32>} : memref<8x8x128xf32, #tpu.memory_space<vmem>>, vector<1x8x128xf32>,
    %c6_i32 = arith.constant 6 : i32
    %307 = arith.index_cast %c6_i32 : i32 to index
    %c0_110 = arith.constant 0 : index
    %c0_111 = arith.constant 0 : index
    %308 = vector.load %arg1[%307, %c0_110, %c0_111] : memref<8x8x512xf32, #tpu.memory_space<vmem>>, vector<1x8x512xf32>
    %309 = vector.shape_cast %308 : vector<1x8x512xf32> to vector<8x512xf32>
    %c0_112 = arith.constant 0 : index
    %c0_113 = arith.constant 0 : index
    %310 = vector.load %arg2[%c0_112, %c0_113] : memref<128x512xf32, #tpu.memory_space<vmem>>, vector<128x512xf32>
    %cst_114 = arith.constant dense<0.000000e+00> : vector<8x512xf32>
    %311 = tpu.matmul %278, %310, %cst_114 {dimension_numbers = #tpu.dot_dimension_numbers<[1], [0], [0], [1], [0, 0, 1, 1], [], []>} : vector<8x128xf32>, vector<128x512xf32>, vector<8x512xf32> -> vector<8x512xf32>
    %312 = arith.addf %309, %311 : vector<8x512xf32>
    %313 = vector.extract_strided_slice %312 {offsets = [0, 0], sizes = [8, 384], strides = [1, 1]} : vector<8x512xf32> to vector<8x384xf32>
    %314 = arith.negf %313 : vector<8x384xf32>
    %315 = math.exp %314 : vector<8x384xf32>
    %cst_115 = arith.constant 1.000000e+00 : f32
    %316 = vector.broadcast %cst_115 : f32 to vector<8x384xf32>
    %317 = arith.addf %316, %315 : vector<8x384xf32>
    %318 = arith.divf %316, %317 : vector<8x384xf32>
    %319 = vector.extract_strided_slice %312 {offsets = [0, 384], sizes = [8, 128], strides = [1, 1]} : vector<8x512xf32> to vector<8x128xf32>
    %320 = math.tanh %319 : vector<8x128xf32>
    %321 = vector.extract_strided_slice %318 {offsets = [0, 0], sizes = [8, 128], strides = [1, 1]} : vector<8x384xf32> to vector<8x128xf32>
    %322 = vector.extract_strided_slice %318 {offsets = [0, 128], sizes = [8, 128], strides = [1, 1]} : vector<8x384xf32> to vector<8x128xf32>
    %323 = vector.extract_strided_slice %318 {offsets = [0, 256], sizes = [8, 128], strides = [1, 1]} : vector<8x384xf32> to vector<8x128xf32>
    %324 = arith.mulf %322, %276 : vector<8x128xf32>
    %325 = arith.mulf %321, %320 : vector<8x128xf32>
    %326 = arith.addf %324, %325 : vector<8x128xf32>
    %327 = math.tanh %326 : vector<8x128xf32>
    %328 = arith.mulf %323, %327 : vector<8x128xf32>
    %c0_116 = arith.constant 0 : index
    %c0_117 = arith.constant 0 : index
    %329 = vector.load %arg3[%c0_116, %c0_117] : memref<128x512xf32, #tpu.memory_space<vmem>>, vector<128x512xf32>
    %cst_118 = arith.constant dense<0.000000e+00> : vector<8x512xf32>
    %330 = tpu.matmul %328, %329, %cst_118 {dimension_numbers = #tpu.dot_dimension_numbers<[1], [0], [0], [1], [0, 0, 1, 1], [], []>} : vector<8x128xf32>, vector<128x512xf32>, vector<8x512xf32> -> vector<8x512xf32>
    %c0_119 = arith.constant 0 : index
    %c0_120 = arith.constant 0 : index
    %331 = vector.load %arg4[%c0_119, %c0_120] : memref<128x512xf32, #tpu.memory_space<vmem>>, vector<128x512xf32>
    %cst_121 = arith.constant dense<0.000000e+00> : vector<8x512xf32>
    %332 = tpu.matmul %302, %331, %cst_121 {dimension_numbers = #tpu.dot_dimension_numbers<[1], [0], [0], [1], [0, 0, 1, 1], [], []>} : vector<8x128xf32>, vector<128x512xf32>, vector<8x512xf32> -> vector<8x512xf32>
    %333 = arith.addf %330, %332 : vector<8x512xf32>
    %c0_122 = arith.constant 0 : index
    %c0_123 = arith.constant 0 : index
    %334 = vector.load %arg5[%c0_122, %c0_123] : memref<1x512xf32, #tpu.memory_space<vmem>>, vector<1x512xf32>
    %335 = vector.broadcast %334 : vector<1x512xf32> to vector<8x512xf32>
    %336 = arith.addf %333, %335 : vector<8x512xf32>
    %337 = vector.extract_strided_slice %336 {offsets = [0, 0], sizes = [8, 384], strides = [1, 1]} : vector<8x512xf32> to vector<8x384xf32>
    %338 = arith.negf %337 : vector<8x384xf32>
    %339 = math.exp %338 : vector<8x384xf32>
    %cst_124 = arith.constant 1.000000e+00 : f32
    %340 = vector.broadcast %cst_124 : f32 to vector<8x384xf32>
    %341 = arith.addf %340, %339 : vector<8x384xf32>
    %342 = arith.divf %340, %341 : vector<8x384xf32>
    %343 = vector.extract_strided_slice %336 {offsets = [0, 384], sizes = [8, 128], strides = [1, 1]} : vector<8x512xf32> to vector<8x128xf32>
    %344 = math.tanh %343 : vector<8x128xf32>
    %345 = vector.extract_strided_slice %342 {offsets = [0, 0], sizes = [8, 128], strides = [1, 1]} : vector<8x384xf32> to vector<8x128xf32>
    %346 = vector.extract_strided_slice %342 {offsets = [0, 128], sizes = [8, 128], strides = [1, 1]} : vector<8x384xf32> to vector<8x128xf32>
    %347 = vector.extract_strided_slice %342 {offsets = [0, 256], sizes = [8, 128], strides = [1, 1]} : vector<8x384xf32> to vector<8x128xf32>
    %348 = arith.mulf %346, %300 : vector<8x128xf32>
    %349 = arith.mulf %345, %344 : vector<8x128xf32>
    %350 = arith.addf %348, %349 : vector<8x128xf32>
    %351 = math.tanh %350 : vector<8x128xf32>
    %352 = arith.mulf %347, %351 : vector<8x128xf32>
    %353 = arith.index_cast %c6_i32 : i32 to index
    %c0_125 = arith.constant 0 : index
    %c0_126 = arith.constant 0 : index
    %354 = vector.load %arg6[%353, %c0_125, %c0_126] : memref<8x8x128xf32, #tpu.memory_space<vmem>>, vector<1x8x128xf32>
    %355 = vector.shape_cast %354 : vector<1x8x128xf32> to vector<8x128xf32>
    %356 = vector.shape_cast %352 : vector<8x128xf32> to vector<1x8x128xf32>
    tpu.vector_store %arg6[%353, %c0_125, %c0_126], %356 {strides = array<i32>} : memref<8x8x128xf32, #tpu.memory_space<vmem>>, vector<1x8x128xf32>,
    %c7_i32 = arith.constant 7 : i32
    %357 = arith.index_cast %c7_i32 : i32 to index
    %c0_127 = arith.constant 0 : index
    %c0_128 = arith.constant 0 : index
    %358 = vector.load %arg1[%357, %c0_127, %c0_128] : memref<8x8x512xf32, #tpu.memory_space<vmem>>, vector<1x8x512xf32>
    %359 = vector.shape_cast %358 : vector<1x8x512xf32> to vector<8x512xf32>
    %c0_129 = arith.constant 0 : index
    %c0_130 = arith.constant 0 : index
    %360 = vector.load %arg2[%c0_129, %c0_130] : memref<128x512xf32, #tpu.memory_space<vmem>>, vector<128x512xf32>
    %cst_131 = arith.constant dense<0.000000e+00> : vector<8x512xf32>
    %361 = tpu.matmul %328, %360, %cst_131 {dimension_numbers = #tpu.dot_dimension_numbers<[1], [0], [0], [1], [0, 0, 1, 1], [], []>} : vector<8x128xf32>, vector<128x512xf32>, vector<8x512xf32> -> vector<8x512xf32>
    %362 = arith.addf %359, %361 : vector<8x512xf32>
    %363 = vector.extract_strided_slice %362 {offsets = [0, 0], sizes = [8, 384], strides = [1, 1]} : vector<8x512xf32> to vector<8x384xf32>
    %364 = arith.negf %363 : vector<8x384xf32>
    %365 = math.exp %364 : vector<8x384xf32>
    %cst_132 = arith.constant 1.000000e+00 : f32
    %366 = vector.broadcast %cst_132 : f32 to vector<8x384xf32>
    %367 = arith.addf %366, %365 : vector<8x384xf32>
    %368 = arith.divf %366, %367 : vector<8x384xf32>
    %369 = vector.extract_strided_slice %362 {offsets = [0, 384], sizes = [8, 128], strides = [1, 1]} : vector<8x512xf32> to vector<8x128xf32>
    %370 = math.tanh %369 : vector<8x128xf32>
    %371 = vector.extract_strided_slice %368 {offsets = [0, 0], sizes = [8, 128], strides = [1, 1]} : vector<8x384xf32> to vector<8x128xf32>
    %372 = vector.extract_strided_slice %368 {offsets = [0, 128], sizes = [8, 128], strides = [1, 1]} : vector<8x384xf32> to vector<8x128xf32>
    %373 = vector.extract_strided_slice %368 {offsets = [0, 256], sizes = [8, 128], strides = [1, 1]} : vector<8x384xf32> to vector<8x128xf32>
    %374 = arith.mulf %372, %326 : vector<8x128xf32>
    %375 = arith.mulf %371, %370 : vector<8x128xf32>
    %376 = arith.addf %374, %375 : vector<8x128xf32>
    %377 = math.tanh %376 : vector<8x128xf32>
    %378 = arith.mulf %373, %377 : vector<8x128xf32>
    %c0_133 = arith.constant 0 : index
    %c0_134 = arith.constant 0 : index
    %379 = vector.load %arg3[%c0_133, %c0_134] : memref<128x512xf32, #tpu.memory_space<vmem>>, vector<128x512xf32>
    %cst_135 = arith.constant dense<0.000000e+00> : vector<8x512xf32>
    %380 = tpu.matmul %378, %379, %cst_135 {dimension_numbers = #tpu.dot_dimension_numbers<[1], [0], [0], [1], [0, 0, 1, 1], [], []>} : vector<8x128xf32>, vector<128x512xf32>, vector<8x512xf32> -> vector<8x512xf32>
    %c0_136 = arith.constant 0 : index
    %c0_137 = arith.constant 0 : index
    %381 = vector.load %arg4[%c0_136, %c0_137] : memref<128x512xf32, #tpu.memory_space<vmem>>, vector<128x512xf32>
    %cst_138 = arith.constant dense<0.000000e+00> : vector<8x512xf32>
    %382 = tpu.matmul %352, %381, %cst_138 {dimension_numbers = #tpu.dot_dimension_numbers<[1], [0], [0], [1], [0, 0, 1, 1], [], []>} : vector<8x128xf32>, vector<128x512xf32>, vector<8x512xf32> -> vector<8x512xf32>
    %383 = arith.addf %380, %382 : vector<8x512xf32>
    %c0_139 = arith.constant 0 : index
    %c0_140 = arith.constant 0 : index
    %384 = vector.load %arg5[%c0_139, %c0_140] : memref<1x512xf32, #tpu.memory_space<vmem>>, vector<1x512xf32>
    %385 = vector.broadcast %384 : vector<1x512xf32> to vector<8x512xf32>
    %386 = arith.addf %383, %385 : vector<8x512xf32>
    %387 = vector.extract_strided_slice %386 {offsets = [0, 0], sizes = [8, 384], strides = [1, 1]} : vector<8x512xf32> to vector<8x384xf32>
    %388 = arith.negf %387 : vector<8x384xf32>
    %389 = math.exp %388 : vector<8x384xf32>
    %cst_141 = arith.constant 1.000000e+00 : f32
    %390 = vector.broadcast %cst_141 : f32 to vector<8x384xf32>
    %391 = arith.addf %390, %389 : vector<8x384xf32>
    %392 = arith.divf %390, %391 : vector<8x384xf32>
    %393 = vector.extract_strided_slice %386 {offsets = [0, 384], sizes = [8, 128], strides = [1, 1]} : vector<8x512xf32> to vector<8x128xf32>
    %394 = math.tanh %393 : vector<8x128xf32>
    %395 = vector.extract_strided_slice %392 {offsets = [0, 0], sizes = [8, 128], strides = [1, 1]} : vector<8x384xf32> to vector<8x128xf32>
    %396 = vector.extract_strided_slice %392 {offsets = [0, 128], sizes = [8, 128], strides = [1, 1]} : vector<8x384xf32> to vector<8x128xf32>
    %397 = vector.extract_strided_slice %392 {offsets = [0, 256], sizes = [8, 128], strides = [1, 1]} : vector<8x384xf32> to vector<8x128xf32>
    %398 = arith.mulf %396, %350 : vector<8x128xf32>
    %399 = arith.mulf %395, %394 : vector<8x128xf32>
    %400 = arith.addf %398, %399 : vector<8x128xf32>
    %401 = math.tanh %400 : vector<8x128xf32>
    %402 = arith.mulf %397, %401 : vector<8x128xf32>
    %403 = arith.index_cast %c7_i32 : i32 to index
    %c0_142 = arith.constant 0 : index
    %c0_143 = arith.constant 0 : index
    %404 = vector.load %arg6[%403, %c0_142, %c0_143] : memref<8x8x128xf32, #tpu.memory_space<vmem>>, vector<1x8x128xf32>
    %405 = vector.shape_cast %404 : vector<1x8x128xf32> to vector<8x128xf32>
    %406 = vector.shape_cast %402 : vector<8x128xf32> to vector<1x8x128xf32>
    tpu.vector_store %arg6[%403, %c0_142, %c0_143], %406 {strides = array<i32>} : memref<8x8x128xf32, #tpu.memory_space<vmem>>, vector<1x8x128xf32>,
    %c8_i32 = arith.constant 8 : i32
    %c0_144 = arith.constant 0 : index
    %c0_145 = arith.constant 0 : index
    %407 = vector.load %arg7[%c0_144, %c0_145] : memref<8x128xf32, #tpu.memory_space<vmem>>, vector<8x128xf32>
    tpu.vector_store %arg7[%c0_144, %c0_145], %378 {strides = array<i32>} : memref<8x128xf32, #tpu.memory_space<vmem>>, vector<8x128xf32>,
    %c0_146 = arith.constant 0 : index
    %c0_147 = arith.constant 0 : index
    %408 = vector.load %arg8[%c0_146, %c0_147] : memref<8x128xf32, #tpu.memory_space<vmem>>, vector<8x128xf32>
    tpu.vector_store %arg8[%c0_146, %c0_147], %376 {strides = array<i32>} : memref<8x128xf32, #tpu.memory_space<vmem>>, vector<8x128xf32>,
    %c0_148 = arith.constant 0 : index
    %c0_149 = arith.constant 0 : index
    %409 = vector.load %arg9[%c0_148, %c0_149] : memref<8x128xf32, #tpu.memory_space<vmem>>, vector<8x128xf32>
    tpu.vector_store %arg9[%c0_148, %c0_149], %402 {strides = array<i32>} : memref<8x128xf32, #tpu.memory_space<vmem>>, vector<8x128xf32>,
    %c0_150 = arith.constant 0 : index
    %c0_151 = arith.constant 0 : index
    %410 = vector.load %arg10[%c0_150, %c0_151] : memref<8x128xf32, #tpu.memory_space<vmem>>, vector<8x128xf32>
    tpu.vector_store %arg10[%c0_150, %c0_151], %400 {strides = array<i32>} : memref<8x128xf32, #tpu.memory_space<vmem>>, vector<8x128xf32>,
    return
  }
  func.func @transform_0(%arg0: i32) -> (i32, i32, i32) {
    %c0_i32 = arith.constant 0 : i32
    %c0_i32_0 = arith.constant 0 : i32
    %c0_i32_1 = arith.constant 0 : i32
    return %arg0, %c0_i32, %c0_i32_0 : i32, i32, i32
  }
  func.func @transform_1(%arg0: i32) -> (i32, i32) {
    %c0_i32 = arith.constant 0 : i32
    %c0_i32_0 = arith.constant 0 : i32
    %c0_i32_1 = arith.constant 0 : i32
    return %c0_i32, %c0_i32_0 : i32, i32
  }
  func.func @transform_2(%arg0: i32) -> (i32, i32) {
    %c0_i32 = arith.constant 0 : i32
    %c0_i32_0 = arith.constant 0 : i32
    %c0_i32_1 = arith.constant 0 : i32
    return %c0_i32, %c0_i32_0 : i32, i32
  }
  func.func @transform_3(%arg0: i32) -> (i32, i32) {
    %c0_i32 = arith.constant 0 : i32
    %c0_i32_0 = arith.constant 0 : i32
    %c0_i32_1 = arith.constant 0 : i32
    return %c0_i32, %c0_i32_0 : i32, i32
  }
  func.func @transform_4(%arg0: i32) -> (i32, i32) {
    %c0_i32 = arith.constant 0 : i32
    %c0_i32_0 = arith.constant 0 : i32
    %c0_i32_1 = arith.constant 0 : i32
    return %c0_i32, %c0_i32_0 : i32, i32
  }
  func.func @transform_5(%arg0: i32) -> (i32, i32, i32) {
    %c0_i32 = arith.constant 0 : i32
    %c0_i32_0 = arith.constant 0 : i32
    %c0_i32_1 = arith.constant 0 : i32
    return %arg0, %c0_i32, %c0_i32_0 : i32, i32, i32
  }
}

</mosaic_0001>

<llo_original>
// kernel: char_rnn_forward.5
$region0: #{char_rnn_forward.5}
  #allocation0 [shape = 'u32[]', space=smem, size = 0x4, offset = 0x4, fixed_abs, tag = 'smem constant byte address 0x4 - core index']
  #allocation1 [shape = 'u32[144,128]{1,0:T(1,128)}', space=vmem, size = 0x12000, scoped, tag = 'internal scratch']
  %s0 = inlined_call_operand.vmem [shape: f32[64,128], index: 0, kind: input, shape index: {}]
  %s1 = inlined_call_operand.vmem [shape: f32[128,128], index: 1, kind: input, shape index: {}]
  %s2 = inlined_call_operand.vmem [shape: f32[1,128], index: 2, kind: input, shape index: {}]
  %s3 = inlined_call_operand.hbm [shape: f32[64,128], index: 3, kind: output, shape index: {}]
  %s4 = sld [smem:[#allocation0]]
  $region22: #{char_rnn_forward.5} parent=0
    _
  %s6 = ssub.s32 1, %s4
  %s7 = scalar_select 0, %s6, %s4
  $region1: #{char_rnn_forward.5} parent=0
    #allocation2 [shape = 'u8[32768]{0}', space=vmem, size = 0x8000, scoped, tag = 'output window, operand 0, single buffered']
    #allocation3 [shape = 's32[1]{0}', space=sflag, size = 0x4, scoped, tag = 'scoped memory for char_rnn_forward.5']
    %8 = vsyncpa [#allocation3], 0
    // Predicated region
    $region2: #{char_rnn_forward.5} parent=1 // pred_check
      _
    $region3: #{char_rnn_forward.5} parent=1 // pred_check_branch
      %10 = sbr.rel (0) target = $region5
    $region4: #{char_rnn_forward.5} parent=1 // pred_region
      _
    $region5: #{char_rnn_forward.5} parent=1 // pred_fallthru
      _
    // Predicated region
    $region6: #{char_rnn_forward.5} parent=1 // pred_check
      _
    $region7: #{char_rnn_forward.5} parent=1 // pred_check_branch
      %12 = sbr.rel (0) target = $region9
    $region8: #{char_rnn_forward.5} parent=1 // pred_region
      _
    $region9: #{char_rnn_forward.5} parent=1 // pred_fallthru
      _
    // Predicated region
    $region10: #{char_rnn_forward.5} parent=1 // pred_check
      _
    $region11: #{char_rnn_forward.5} parent=1 // pred_check_branch
      %14 = sbr.rel (0) target = $region13
    $region12: #{char_rnn_forward.5} parent=1 // pred_region
      _
    $region13: #{char_rnn_forward.5} parent=1 // pred_fallthru
      _
    %v15 = vld [vmem:[%s0] sm:$0xff]
    %v16 = vld [vmem:[%s0 + $0x8] sm:$0xff]
    %v17 = vld [vmem:[%s0 + $0x10] sm:$0xff]
    %v18 = vld [vmem:[%s0 + $0x18] sm:$0xff]
    %v19 = vld [vmem:[%s0 + $0x20] sm:$0xff]
    %v20 = vld [vmem:[%s0 + $0x28] sm:$0xff]
    %v21 = vld [vmem:[%s0 + $0x30] sm:$0xff]
    %v22 = vld [vmem:[%s0 + $0x38] sm:$0xff]
    %v23 = vld [vmem:[%s1] sm:$0xff]
    %v24 = vld [vmem:[%s1 + $0x8] sm:$0xff]
    %v25 = vld [vmem:[%s1 + $0x10] sm:$0xff]
    %v26 = vld [vmem:[%s1 + $0x18] sm:$0xff]
    %v27 = vld [vmem:[%s1 + $0x20] sm:$0xff]
    %v28 = vld [vmem:[%s1 + $0x28] sm:$0xff]
    %v29 = vld [vmem:[%s1 + $0x30] sm:$0xff]
    %v30 = vld [vmem:[%s1 + $0x38] sm:$0xff]
    %v31 = vld [vmem:[%s1 + $0x40] sm:$0xff]
    %v32 = vld [vmem:[%s1 + $0x48] sm:$0xff]
    %v33 = vld [vmem:[%s1 + $0x50] sm:$0xff]
    %v34 = vld [vmem:[%s1 + $0x58] sm:$0xff]
    %v35 = vld [vmem:[%s1 + $0x60] sm:$0xff]
    %v36 = vld [vmem:[%s1 + $0x68] sm:$0xff]
    %v37 = vld [vmem:[%s1 + $0x70] sm:$0xff]
    %v38 = vld [vmem:[%s1 + $0x78] sm:$0xff]
    %v39 = vld [vmem:[%s2] sm:$0x1]
    %v41 = vlaneseq
    %v42 = vshrl.u32 %v41, 7
    %v43 = vsub.s32 0, %v42
    %v44 = vrot.slane %v39, %v43
    %46 = vmatprep.subr.mxu0 0.0
    %47 = vmatpush1.msra.mxu0 %v23
    %48 = vmatprep.subr.mxu0 0.0
    %49 = vmatpush1.msra.mxu0 %v24
    %50 = vmatprep.subr.mxu0 0.0
    %51 = vmatpush1.msra.mxu0 %v25
    %52 = vmatprep.subr.mxu0 0.0
    %53 = vmatpush1.msra.mxu0 %v26
    %54 = vmatprep.subr.mxu0 0.0
    %55 = vmatpush1.msra.mxu0 %v27
    %56 = vmatprep.subr.mxu0 0.0
    %57 = vmatpush1.msra.mxu0 %v28
    %58 = vmatprep.subr.mxu0 0.0
    %59 = vmatpush1.msra.mxu0 %v29
    %60 = vmatprep.subr.mxu0 0.0
    %61 = vmatpush1.msra.mxu0 %v30
    %62 = vmatprep.subr.mxu0 0.0
    %63 = vmatpush1.msra.mxu0 %v31
    %64 = vmatprep.subr.mxu0 0.0
    %65 = vmatpush1.msra.mxu0 %v32
    %66 = vmatprep.subr.mxu0 0.0
    %67 = vmatpush1.msra.mxu0 %v33
    %68 = vmatprep.subr.mxu0 0.0
    %69 = vmatpush1.msra.mxu0 %v34
    %70 = vmatprep.subr.mxu0 0.0
    %71 = vmatpush1.msra.mxu0 %v35
    %72 = vmatprep.subr.mxu0 0.0
    %73 = vmatpush1.msra.mxu0 %v36
    %74 = vmatprep.subr.mxu0 0.0
    %75 = vmatpush1.msra.mxu0 %v37
    %76 = vmatprep.subr.mxu0 0.0
    %77 = vmatpush1.msra.mxu0 %v38
    %78 = vmatprep.subr.mxu0 0.0
    %79 = vmatpush1.msra.mxu0 0.0
    %80 = vmatprep.subr.mxu0 0.0
    %81 = vmatpush1.msra.mxu0 0.0
    %82 = vmatprep.subr.mxu0 0.0
    %83 = vmatpush1.msra.mxu0 0.0
    %84 = vmatprep.subr.mxu0 0.0
    %85 = vmatpush1.msra.mxu0 0.0
    %86 = vmatprep.subr.mxu0 0.0
    %87 = vmatpush1.msra.mxu0 0.0
    %88 = vmatprep.subr.mxu0 0.0
    %89 = vmatpush1.msra.mxu0 0.0
    %90 = vmatprep.subr.mxu0 0.0
    %91 = vmatpush1.msra.mxu0 0.0
    %92 = vmatprep.subr.mxu0 0.0
    %93 = vmatpush1.msra.mxu0 0.0
    %94 = vmatprep.subr.mxu0 0.0
    %95 = vmatpush1.msra.mxu0 0.0
    %96 = vmatprep.subr.mxu0 0.0
    %97 = vmatpush1.msra.mxu0 0.0
    %98 = vmatprep.subr.mxu0 0.0
    %99 = vmatpush1.msra.mxu0 0.0
    %100 = vmatprep.subr.mxu0 0.0
    %101 = vmatpush1.msra.mxu0 0.0
    %102 = vmatprep.subr.mxu0 0.0
    %103 = vmatpush1.msra.mxu0 0.0
    %104 = vmatprep.subr.mxu0 0.0
    %105 = vmatpush1.msra.mxu0 0.0
    %106 = vmatprep.subr.mxu0 0.0
    %107 = vmatpush1.msra.mxu0 0.0
    %108 = vmatprep.subr.mxu0 0.0
    %109 = vmatpush1.msra.mxu0 0.0
    %110 = vmatprep.mubr.f32.mxu0 0.0
    %111 = vmatmul.mubr.f32.gmra.mrb[0].mxu0 %v15
    %v112 = vpop.f32.mrb[0].mxu0
    %v113 = vadd.f32 %v44, %v112
    %v114 = vpop.f32.mrb[0].mxu0
    %115 = vmatprep.mubr.f32.mxu0 0.0
    %116 = vmatmul.mubr.f32.gmra.mrb[0].mxu0 %v16
    %v117 = vpop.f32.mrb[0].mxu0
    %v118 = vadd.f32 %v44, %v117
    %v119 = vpop.f32.mrb[0].mxu0
    %120 = vmatprep.mubr.f32.mxu0 0.0
    %121 = vmatmul.mubr.f32.gmra.mrb[0].mxu0 %v17
    %v122 = vpop.f32.mrb[0].mxu0
    %v123 = vadd.f32 %v44, %v122
    %v124 = vpop.f32.mrb[0].mxu0
    %125 = vmatprep.mubr.f32.mxu0 0.0
    %126 = vmatmul.mubr.f32.gmra.mrb[0].mxu0 %v18
    %v127 = vpop.f32.mrb[0].mxu0
    %v128 = vadd.f32 %v44, %v127
    %v129 = vpop.f32.mrb[0].mxu0
    %130 = vmatprep.mubr.f32.mxu0 0.0
    %131 = vmatmul.mubr.f32.gmra.mrb[0].mxu0 %v19
    %v132 = vpop.f32.mrb[0].mxu0
    %v133 = vadd.f32 %v44, %v132
    %v134 = vpop.f32.mrb[0].mxu0
    %135 = vmatprep.mubr.f32.mxu0 0.0
    %136 = vmatmul.mubr.f32.gmra.mrb[0].mxu0 %v20
    %v137 = vpop.f32.mrb[0].mxu0
    %v138 = vadd.f32 %v44, %v137
    %v139 = vpop.f32.mrb[0].mxu0
    %140 = vmatprep.mubr.f32.mxu0 0.0
    %141 = vmatmul.mubr.f32.gmra.mrb[0].mxu0 %v21
    %v142 = vpop.f32.mrb[0].mxu0
    %v143 = vadd.f32 %v44, %v142
    %v144 = vpop.f32.mrb[0].mxu0
    %145 = vmatprep.mubr.f32.mxu0 0.0
    %146 = vmatmul.mubr.f32.gmra.mrb[0].mxu0 %v22
    %v147 = vpop.f32.mrb[0].mxu0
    %v148 = vadd.f32 %v44, %v147
    %v149 = vpop.f32.mrb[0].mxu0
    %150 = vdwg.mxu0
    %151 = vmax.xlane.f32.xlu0 %v113
    %v152 = vpop.xlane.xlu0 %151
    %153 = vmax.xlane.f32.xlu0 %v118
    %v154 = vpop.xlane.xlu0 %153
    %155 = vmax.xlane.f32.xlu0 %v123
    %v156 = vpop.xlane.xlu0 %155
    %157 = vmax.xlane.f32.xlu0 %v128
    %v158 = vpop.xlane.xlu0 %157
    %159 = vmax.xlane.f32.xlu0 %v133
    %v160 = vpop.xlane.xlu0 %159
    %161 = vmax.xlane.f32.xlu0 %v138
    %v162 = vpop.xlane.xlu0 %161
    %163 = vmax.xlane.f32.xlu0 %v143
    %v164 = vpop.xlane.xlu0 %163
    %165 = vmax.xlane.f32.xlu0 %v148
    %v166 = vpop.xlane.xlu0 %165
    %v167 = vsub.f32 %v113, %v152
    %v168 = vsub.f32 %v118, %v154
    %v169 = vsub.f32 %v123, %v156
    %v170 = vsub.f32 %v128, %v158
    %v171 = vsub.f32 %v133, %v160
    %v172 = vsub.f32 %v138, %v162
    %v173 = vsub.f32 %v143, %v164
    %v174 = vsub.f32 %v148, %v166
    %v175 = vmul.f32 %v167, 1.442695
    %v176 = vpow.pop %v175
    %v177 = vmul.f32 %v168, 1.442695
    %v178 = vpow.pop %v177
    %v179 = vmul.f32 %v169, 1.442695
    %v180 = vpow.pop %v179
    %v181 = vmul.f32 %v170, 1.442695
    %v182 = vpow.pop %v181
    %v183 = vmul.f32 %v171, 1.442695
    %v184 = vpow.pop %v183
    %v185 = vmul.f32 %v172, 1.442695
    %v186 = vpow.pop %v185
    %v187 = vmul.f32 %v173, 1.442695
    %v188 = vpow.pop %v187
    %v189 = vmul.f32 %v174, 1.442695
    %v190 = vpow.pop %v189
    %191 = vadd.xlane.f32.xlu0 %v176
    %v192 = vpop.xlane.xlu0 %191
    %193 = vadd.xlane.f32.xlu0 %v178
    %v194 = vpop.xlane.xlu0 %193
    %195 = vadd.xlane.f32.xlu0 %v180
    %v196 = vpop.xlane.xlu0 %195
    %197 = vadd.xlane.f32.xlu0 %v182
    %v198 = vpop.xlane.xlu0 %197
    %199 = vadd.xlane.f32.xlu0 %v184
    %v200 = vpop.xlane.xlu0 %199
    %201 = vadd.xlane.f32.xlu0 %v186
    %v202 = vpop.xlane.xlu0 %201
    %203 = vadd.xlane.f32.xlu0 %v188
    %v204 = vpop.xlane.xlu0 %203
    %205 = vadd.xlane.f32.xlu0 %v190
    %v206 = vpop.xlane.xlu0 %205
    %v207 = vlog2.pop %v192
    %v208 = vmul.f32 %v207, 0.6931472
    %v209 = vlog2.pop %v194
    %v210 = vmul.f32 %v209, 0.6931472
    %v211 = vlog2.pop %v196
    %v212 = vmul.f32 %v211, 0.6931472
    %v213 = vlog2.pop %v198
    %v214 = vmul.f32 %v213, 0.6931472
    %v215 = vlog2.pop %v200
    %v216 = vmul.f32 %v215, 0.6931472
    %v217 = vlog2.pop %v202
    %v218 = vmul.f32 %v217, 0.6931472
    %v219 = vlog2.pop %v204
    %v220 = vmul.f32 %v219, 0.6931472
    %v221 = vlog2.pop %v206
    %v222 = vmul.f32 %v221, 0.6931472
    %v223 = vsub.f32 %v167, %v208
    %v224 = vsub.f32 %v168, %v210
    %v225 = vsub.f32 %v169, %v212
    %v226 = vsub.f32 %v170, %v214
    %v227 = vsub.f32 %v171, %v216
    %v228 = vsub.f32 %v172, %v218
    %v229 = vsub.f32 %v173, %v220
    %v230 = vsub.f32 %v174, %v222
    %231 = vst [vmem:[#allocation2] sm:$0xff] %v223
    %232 = vst [vmem:[#allocation2 + $0x8] sm:$0xff] %v224
    %233 = vst [vmem:[#allocation2 + $0x10] sm:$0xff] %v225
    %234 = vst [vmem:[#allocation2 + $0x18] sm:$0xff] %v226
    %235 = vst [vmem:[#allocation2 + $0x20] sm:$0xff] %v227
    %236 = vst [vmem:[#allocation2 + $0x28] sm:$0xff] %v228
    %237 = vst [vmem:[#allocation2 + $0x30] sm:$0xff] %v229
    %238 = vst [vmem:[#allocation2 + $0x38] sm:$0xff] %v230
    // Predicated region
    $region14: #{char_rnn_forward.5} parent=1 // pred_check
      _
    $region15: #{char_rnn_forward.5} parent=1 // pred_check_branch
      %240 = sbr.rel (0) target = $region17
    $region16: #{char_rnn_forward.5} parent=1 // pred_region
      %s242 = ssub.s32 1024, 1024
      %243 = vsyncadd [#allocation3], %s242
      %s244 = sshll.u32 [#allocation2], 4
      %s245 = int_to_ptr.vmem [resolvable:$true] %s244
      %250 = dma.vmem_to_hbm [thread:$0]  %s245, 1024, %s3, [#allocation3], 128, 128, 8
    $region17: #{char_rnn_forward.5} parent=1 // pred_fallthru
      _
    // Predicated region
    $region18: #{char_rnn_forward.5} parent=1 // pred_check
      _
    $region19: #{char_rnn_forward.5} parent=1 // pred_check_branch
      %252 = sbr.rel (0) target = $region21
    $region20: #{char_rnn_forward.5} parent=1 // pred_region
      %253 = dma.done [#allocation3], 1024
    $region21: #{char_rnn_forward.5} parent=1 // pred_fallthru
      _
    %254 = vsyncpa [#allocation3], 1

// kernel: char_rnn_forward.3
$region0: #{char_rnn_forward.3}
  #allocation0 [shape = 'u32[]', space=smem, size = 0x4, offset = 0x4, fixed_abs, tag = 'smem constant byte address 0x4 - core index']
  #allocation1 [shape = 'u32[144,128]{1,0:T(1,128)}', space=vmem, size = 0x12000, scoped, tag = 'internal scratch']
  %s0 = inlined_call_operand.vmem [shape: f32[64,16], index: 0, kind: input, shape index: {}]
  %s1 = inlined_call_operand.vmem [shape: f32[16,512], index: 1, kind: input, shape index: {}]
  %s2 = inlined_call_operand.vmem [shape: f32[1,512], index: 2, kind: input, shape index: {}]
  %s3 = inlined_call_operand.vmem [shape: f32[64,512], index: 3, kind: output, shape index: {}]
  %s4 = sld [smem:[#allocation0]]
  $region22: #{char_rnn_forward.3} parent=0
    _
  %s6 = ssub.s32 1, %s4
  %s7 = scalar_select 0, %s6, %s4
  // Predicated region
  $region2: #{char_rnn_forward.3} parent=0 // pred_check
    _
  $region3: #{char_rnn_forward.3} parent=0 // pred_check_branch
    %9 = sbr.rel (0) target = $region5
  $region4: #{char_rnn_forward.3} parent=0 // pred_region
    _
  $region5: #{char_rnn_forward.3} parent=0 // pred_fallthru
    _
  // Predicated region
  $region6: #{char_rnn_forward.3} parent=0 // pred_check
    _
  $region7: #{char_rnn_forward.3} parent=0 // pred_check_branch
    %11 = sbr.rel (0) target = $region9
  $region8: #{char_rnn_forward.3} parent=0 // pred_region
    _
  $region9: #{char_rnn_forward.3} parent=0 // pred_fallthru
    _
  // Predicated region
  $region10: #{char_rnn_forward.3} parent=0 // pred_check
    _
  $region11: #{char_rnn_forward.3} parent=0 // pred_check_branch
    %13 = sbr.rel (0) target = $region13
  $region12: #{char_rnn_forward.3} parent=0 // pred_region
    _
  $region13: #{char_rnn_forward.3} parent=0 // pred_fallthru
    _
  %v14 = vld [vmem:[%s0] sm:$0xff]
  %v15 = vld [vmem:[%s0 + $0x8] sm:$0xff]
  %v16 = vld [vmem:[%s0 + $0x10] sm:$0xff]
  %v17 = vld [vmem:[%s0 + $0x18] sm:$0xff]
  %v18 = vld [vmem:[%s0 + $0x20] sm:$0xff]
  %v19 = vld [vmem:[%s0 + $0x28] sm:$0xff]
  %v20 = vld [vmem:[%s0 + $0x30] sm:$0xff]
  %v21 = vld [vmem:[%s0 + $0x38] sm:$0xff]
  %v22 = vld [vmem:[%s1] sm:$0xff]
  %v23 = vld [vmem:[%s1 + $0x8] sm:$0xff]
  %v24 = vld [vmem:[%s1 + $0x10] sm:$0xff]
  %v25 = vld [vmem:[%s1 + $0x18] sm:$0xff]
  %v26 = vld [vmem:[%s1 + $0x20] sm:$0xff]
  %v27 = vld [vmem:[%s1 + $0x28] sm:$0xff]
  %v28 = vld [vmem:[%s1 + $0x30] sm:$0xff]
  %v29 = vld [vmem:[%s1 + $0x38] sm:$0xff]
  %v30 = vld [vmem:[%s2] sm:$0xf]
  %v32 = vlaneseq
  %v33 = vshrl.u32 %v32, 7
  %v34 = vsub.s32 0, %v33
  %v35 = vrot.slane %v30, %v34
  %v36 = vlaneseq
  %v37 = vshrl.u32 %v36, 7
  %v38 = vsub.s32 1, %v37
  %v39 = vrot.slane %v30, %v38
  %v40 = vlaneseq
  %v41 = vshrl.u32 %v40, 7
  %v42 = vsub.s32 2, %v41
  %v43 = vrot.slane %v30, %v42
  %v44 = vlaneseq
  %v45 = vshrl.u32 %v44, 7
  %v46 = vsub.s32 3, %v45
  %v47 = vrot.slane %v30, %v46
  %vm52 = vcmask 130048
  %v54 = vsel %vm52, %v14, 0
  %v57 = vsel %vm52, %v15, 0
  %v60 = vsel %vm52, %v16, 0
  %v63 = vsel %vm52, %v17, 0
  %v66 = vsel %vm52, %v18, 0
  %v69 = vsel %vm52, %v19, 0
  %v72 = vsel %vm52, %v20, 0
  %v75 = vsel %vm52, %v21, 0
  %77 = vmatprep.subr.mxu0 %v23
  %78 = vmatpush1.msra.mxu0 %v22
  %79 = vmatprep.subr.mxu0 %v27
  %80 = vmatpush1.msra.mxu0 %v26
  %81 = vmatprep.subr.mxu0 0.0
  %82 = vmatpush1.msra.mxu0 0.0
  %83 = vmatprep.subr.mxu0 0.0
  %84 = vmatpush1.msra.mxu0 0.0
  %85 = vmatprep.subr.mxu0 0.0
  %86 = vmatpush1.msra.mxu0 0.0
  %87 = vmatprep.subr.mxu0 0.0
  %88 = vmatpush1.msra.mxu0 0.0
  %89 = vmatprep.subr.mxu0 0.0
  %90 = vmatpush1.msra.mxu0 0.0
  %91 = vmatprep.subr.mxu0 0.0
  %92 = vmatpush1.msra.mxu0 0.0
  %93 = vmatprep.subr.mxu0 0.0
  %94 = vmatpush1.msra.mxu0 0.0
  %95 = vmatprep.subr.mxu0 0.0
  %96 = vmatpush1.msra.mxu0 0.0
  %97 = vmatprep.subr.mxu0 0.0
  %98 = vmatpush1.msra.mxu0 0.0
  %99 = vmatprep.subr.mxu0 0.0
  %100 = vmatpush1.msra.mxu0 0.0
  %101 = vmatprep.subr.mxu0 0.0
  %102 = vmatpush1.msra.mxu0 0.0
  %103 = vmatprep.subr.mxu0 0.0
  %104 = vmatpush1.msra.mxu0 0.0
  %105 = vmatprep.subr.mxu0 0.0
  %106 = vmatpush1.msra.mxu0 0.0
  %107 = vmatprep.subr.mxu0 0.0
  %108 = vmatpush1.msra.mxu0 0.0
  %109 = vmatprep.subr.mxu0 0.0
  %110 = vmatpush1.msra.mxu0 0.0
  %111 = vmatprep.subr.mxu0 0.0
  %112 = vmatpush1.msra.mxu0 0.0
  %113 = vmatprep.subr.mxu0 0.0
  %114 = vmatpush1.msra.mxu0 0.0
  %115 = vmatprep.subr.mxu0 0.0
  %116 = vmatpush1.msra.mxu0 0.0
  %117 = vmatprep.subr.mxu0 0.0
  %118 = vmatpush1.msra.mxu0 0.0
  %119 = vmatprep.subr.mxu0 0.0
  %120 = vmatpush1.msra.mxu0 0.0
  %121 = vmatprep.subr.mxu0 0.0
  %122 = vmatpush1.msra.mxu0 0.0
  %123 = vmatprep.subr.mxu0 0.0
  %124 = vmatpush1.msra.mxu0 0.0
  %125 = vmatprep.subr.mxu0 0.0
  %126 = vmatpush1.msra.mxu0 0.0
  %127 = vmatprep.subr.mxu0 0.0
  %128 = vmatpush1.msra.mxu0 0.0
  %129 = vmatprep.subr.mxu0 0.0
  %130 = vmatpush1.msra.mxu0 0.0
  %131 = vmatprep.subr.mxu0 0.0
  %132 = vmatpush1.msra.mxu0 0.0
  %133 = vmatprep.subr.mxu0 0.0
  %134 = vmatpush1.msra.mxu0 0.0
  %135 = vmatprep.subr.mxu0 0.0
  %136 = vmatpush1.msra.mxu0 0.0
  %137 = vmatprep.subr.mxu0 0.0
  %138 = vmatpush1.msra.mxu0 0.0
  %139 = vmatprep.subr.mxu0 0.0
  %140 = vmatpush1.msra.mxu0 0.0
  %141 = vmatprep.mubr.f32.mxu0 0.0
  %142 = vmatmul.mubr.f32.gmra.mrb[0].mxu0 %v54
  %v143 = vpop.f32.mrb[0].mxu0
  %v144 = vadd.f32 %v35, %v143
  %v145 = vpop.f32.mrb[0].mxu0
  %v146 = vadd.f32 %v39, %v145
  %147 = vmatprep.mubr.f32.mxu0 0.0
  %148 = vmatmul.mubr.f32.gmra.mrb[0].mxu0 %v57
  %v149 = vpop.f32.mrb[0].mxu0
  %v150 = vadd.f32 %v35, %v149
  %v151 = vpop.f32.mrb[0].mxu0
  %v152 = vadd.f32 %v39, %v151
  %153 = vmatprep.mubr.f32.mxu0 0.0
  %154 = vmatmul.mubr.f32.gmra.mrb[0].mxu0 %v60
  %v155 = vpop.f32.mrb[0].mxu0
  %v156 = vadd.f32 %v35, %v155
  %v157 = vpop.f32.mrb[0].mxu0
  %v158 = vadd.f32 %v39, %v157
  %159 = vmatprep.mubr.f32.mxu0 0.0
  %160 = vmatmul.mubr.f32.gmra.mrb[0].mxu0 %v63
  %v161 = vpop.f32.mrb[0].mxu0
  %v162 = vadd.f32 %v35, %v161
  %v163 = vpop.f32.mrb[0].mxu0
  %v164 = vadd.f32 %v39, %v163
  %165 = vmatprep.mubr.f32.mxu0 0.0
  %166 = vmatmul.mubr.f32.gmra.mrb[0].mxu0 %v66
  %v167 = vpop.f32.mrb[0].mxu0
  %v168 = vadd.f32 %v35, %v167
  %v169 = vpop.f32.mrb[0].mxu0
  %v170 = vadd.f32 %v39, %v169
  %171 = vmatprep.mubr.f32.mxu0 0.0
  %172 = vmatmul.mubr.f32.gmra.mrb[0].mxu0 %v69
  %v173 = vpop.f32.mrb[0].mxu0
  %v174 = vadd.f32 %v35, %v173
  %v175 = vpop.f32.mrb[0].mxu0
  %v176 = vadd.f32 %v39, %v175
  %177 = vmatprep.mubr.f32.mxu0 0.0
  %178 = vmatmul.mubr.f32.gmra.mrb[0].mxu0 %v72
  %v179 = vpop.f32.mrb[0].mxu0
  %v180 = vadd.f32 %v35, %v179
  %v181 = vpop.f32.mrb[0].mxu0
  %v182 = vadd.f32 %v39, %v181
  %183 = vmatprep.mubr.f32.mxu0 0.0
  %184 = vmatmul.mubr.f32.gmra.mrb[0].mxu0 %v75
  %v185 = vpop.f32.mrb[0].mxu0
  %v186 = vadd.f32 %v35, %v185
  %v187 = vpop.f32.mrb[0].mxu0
  %v188 = vadd.f32 %v39, %v187
  %189 = vdwg.mxu0
  %190 = vmatprep.subr.mxu0 %v25
  %191 = vmatpush1.msra.mxu0 %v24
  %192 = vmatprep.subr.mxu0 %v29
  %193 = vmatpush1.msra.mxu0 %v28
  %194 = vmatprep.subr.mxu0 0.0
  %195 = vmatpush1.msra.mxu0 0.0
  %196 = vmatprep.subr.mxu0 0.0
  %197 = vmatpush1.msra.mxu0 0.0
  %198 = vmatprep.subr.mxu0 0.0
  %199 = vmatpush1.msra.mxu0 0.0
  %200 = vmatprep.subr.mxu0 0.0
  %201 = vmatpush1.msra.mxu0 0.0
  %202 = vmatprep.subr.mxu0 0.0
  %203 = vmatpush1.msra.mxu0 0.0
  %204 = vmatprep.subr.mxu0 0.0
  %205 = vmatpush1.msra.mxu0 0.0
  %206 = vmatprep.subr.mxu0 0.0
  %207 = vmatpush1.msra.mxu0 0.0
  %208 = vmatprep.subr.mxu0 0.0
  %209 = vmatpush1.msra.mxu0 0.0
  %210 = vmatprep.subr.mxu0 0.0
  %211 = vmatpush1.msra.mxu0 0.0
  %212 = vmatprep.subr.mxu0 0.0
  %213 = vmatpush1.msra.mxu0 0.0
  %214 = vmatprep.subr.mxu0 0.0
  %215 = vmatpush1.msra.mxu0 0.0
  %216 = vmatprep.subr.mxu0 0.0
  %217 = vmatpush1.msra.mxu0 0.0
  %218 = vmatprep.subr.mxu0 0.0
  %219 = vmatpush1.msra.mxu0 0.0
  %220 = vmatprep.subr.mxu0 0.0
  %221 = vmatpush1.msra.mxu0 0.0
  %222 = vmatprep.subr.mxu0 0.0
  %223 = vmatpush1.msra.mxu0 0.0
  %224 = vmatprep.subr.mxu0 0.0
  %225 = vmatpush1.msra.mxu0 0.0
  %226 = vmatprep.subr.mxu0 0.0
  %227 = vmatpush1.msra.mxu0 0.0
  %228 = vmatprep.subr.mxu0 0.0
  %229 = vmatpush1.msra.mxu0 0.0
  %230 = vmatprep.subr.mxu0 0.0
  %231 = vmatpush1.msra.mxu0 0.0
  %232 = vmatprep.subr.mxu0 0.0
  %233 = vmatpush1.msra.mxu0 0.0
  %234 = vmatprep.subr.mxu0 0.0
  %235 = vmatpush1.msra.mxu0 0.0
  %236 = vmatprep.subr.mxu0 0.0
  %237 = vmatpush1.msra.mxu0 0.0
  %238 = vmatprep.subr.mxu0 0.0
  %239 = vmatpush1.msra.mxu0 0.0
  %240 = vmatprep.subr.mxu0 0.0
  %241 = vmatpush1.msra.mxu0 0.0
  %242 = vmatprep.subr.mxu0 0.0
  %243 = vmatpush1.msra.mxu0 0.0
  %244 = vmatprep.subr.mxu0 0.0
  %245 = vmatpush1.msra.mxu0 0.0
  %246 = vmatprep.subr.mxu0 0.0
  %247 = vmatpush1.msra.mxu0 0.0
  %248 = vmatprep.subr.mxu0 0.0
  %249 = vmatpush1.msra.mxu0 0.0
  %250 = vmatprep.subr.mxu0 0.0
  %251 = vmatpush1.msra.mxu0 0.0
  %252 = vmatprep.subr.mxu0 0.0
  %253 = vmatpush1.msra.mxu0 0.0
  %254 = vmatprep.mubr.f32.mxu0 0.0
  %255 = vmatmul.mubr.f32.gmra.mrb[0].mxu0 %v54
  %v256 = vpop.f32.mrb[0].mxu0
  %v257 = vadd.f32 %v43, %v256
  %v258 = vpop.f32.mrb[0].mxu0
  %v259 = vadd.f32 %v47, %v258
  %260 = vmatprep.mubr.f32.mxu0 0.0
  %261 = vmatmul.mubr.f32.gmra.mrb[0].mxu0 %v57
  %v262 = vpop.f32.mrb[0].mxu0
  %v263 = vadd.f32 %v43, %v262
  %v264 = vpop.f32.mrb[0].mxu0
  %v265 = vadd.f32 %v47, %v264
  %266 = vmatprep.mubr.f32.mxu0 0.0
  %267 = vmatmul.mubr.f32.gmra.mrb[0].mxu0 %v60
  %v268 = vpop.f32.mrb[0].mxu0
  %v269 = vadd.f32 %v43, %v268
  %v270 = vpop.f32.mrb[0].mxu0
  %v271 = vadd.f32 %v47, %v270
  %272 = vmatprep.mubr.f32.mxu0 0.0
  %273 = vmatmul.mubr.f32.gmra.mrb[0].mxu0 %v63
  %v274 = vpop.f32.mrb[0].mxu0
  %v275 = vadd.f32 %v43, %v274
  %v276 = vpop.f32.mrb[0].mxu0
  %v277 = vadd.f32 %v47, %v276
  %278 = vmatprep.mubr.f32.mxu0 0.0
  %279 = vmatmul.mubr.f32.gmra.mrb[0].mxu0 %v66
  %v280 = vpop.f32.mrb[0].mxu0
  %v281 = vadd.f32 %v43, %v280
  %v282 = vpop.f32.mrb[0].mxu0
  %v283 = vadd.f32 %v47, %v282
  %284 = vmatprep.mubr.f32.mxu0 0.0
  %285 = vmatmul.mubr.f32.gmra.mrb[0].mxu0 %v69
  %v286 = vpop.f32.mrb[0].mxu0
  %v287 = vadd.f32 %v43, %v286
  %v288 = vpop.f32.mrb[0].mxu0
  %v289 = vadd.f32 %v47, %v288
  %290 = vmatprep.mubr.f32.mxu0 0.0
  %291 = vmatmul.mubr.f32.gmra.mrb[0].mxu0 %v72
  %v292 = vpop.f32.mrb[0].mxu0
  %v293 = vadd.f32 %v43, %v292
  %v294 = vpop.f32.mrb[0].mxu0
  %v295 = vadd.f32 %v47, %v294
  %296 = vmatprep.mubr.f32.mxu0 0.0
  %297 = vmatmul.mubr.f32.gmra.mrb[0].mxu0 %v75
  %v298 = vpop.f32.mrb[0].mxu0
  %v299 = vadd.f32 %v43, %v298
  %v300 = vpop.f32.mrb[0].mxu0
  %v301 = vadd.f32 %v47, %v300
  %302 = vdwg.mxu0
  %303 = vst [vmem:[%s3] sm:$0xff] %v144
  %304 = vst [vmem:[%s3 + $0x8] sm:$0xff] %v146
  %305 = vst [vmem:[%s3 + $0x10] sm:$0xff] %v257
  %306 = vst [vmem:[%s3 + $0x18] sm:$0xff] %v259
  %307 = vst [vmem:[%s3 + $0x20] sm:$0xff] %v150
  %308 = vst [vmem:[%s3 + $0x28] sm:$0xff] %v152
  %309 = vst [vmem:[%s3 + $0x30] sm:$0xff] %v263
  %310 = vst [vmem:[%s3 + $0x38] sm:$0xff] %v265
  %311 = vst [vmem:[%s3 + $0x40] sm:$0xff] %v156
  %312 = vst [vmem:[%s3 + $0x48] sm:$0xff] %v158
  %313 = vst [vmem:[%s3 + $0x50] sm:$0xff] %v269
  %314 = vst [vmem:[%s3 + $0x58] sm:$0xff] %v271
  %315 = vst [vmem:[%s3 + $0x60] sm:$0xff] %v162
  %316 = vst [vmem:[%s3 + $0x68] sm:$0xff] %v164
  %317 = vst [vmem:[%s3 + $0x70] sm:$0xff] %v275
  %318 = vst [vmem:[%s3 + $0x78] sm:$0xff] %v277
  %319 = vst [vmem:[%s3 + $0x80] sm:$0xff] %v168
  %320 = vst [vmem:[%s3 + $0x88] sm:$0xff] %v170
  %321 = vst [vmem:[%s3 + $0x90] sm:$0xff] %v281
  %322 = vst [vmem:[%s3 + $0x98] sm:$0xff] %v283
  %323 = vst [vmem:[%s3 + $0xa0] sm:$0xff] %v174
  %324 = vst [vmem:[%s3 + $0xa8] sm:$0xff] %v176
  %325 = vst [vmem:[%s3 + $0xb0] sm:$0xff] %v287
  %326 = vst [vmem:[%s3 + $0xb8] sm:$0xff] %v289
  %327 = vst [vmem:[%s3 + $0xc0] sm:$0xff] %v180
  %328 = vst [vmem:[%s3 + $0xc8] sm:$0xff] %v182
  %329 = vst [vmem:[%s3 + $0xd0] sm:$0xff] %v293
  %330 = vst [vmem:[%s3 + $0xd8] sm:$0xff] %v295
  %331 = vst [vmem:[%s3 + $0xe0] sm:$0xff] %v186
  %332 = vst [vmem:[%s3 + $0xe8] sm:$0xff] %v188
  %333 = vst [vmem:[%s3 + $0xf0] sm:$0xff] %v299
  %334 = vst [vmem:[%s3 + $0xf8] sm:$0xff] %v301
  // Predicated region
  $region14: #{char_rnn_forward.3} parent=0 // pred_check
    _
  $region15: #{char_rnn_forward.3} parent=0 // pred_check_branch
    %336 = sbr.rel (0) target = $region17
  $region16: #{char_rnn_forward.3} parent=0 // pred_region
    _
  $region17: #{char_rnn_forward.3} parent=0 // pred_fallthru
    _
  // Predicated region
  $region18: #{char_rnn_forward.3} parent=0 // pred_check
    _
  $region19: #{char_rnn_forward.3} parent=0 // pred_check_branch
    %338 = sbr.rel (0) target = $region21
  $region20: #{char_rnn_forward.3} parent=0 // pred_region
    _
  $region21: #{char_rnn_forward.3} parent=0 // pred_fallthru
    _

// kernel: char_rnn_forward.4
$region0: #{char_rnn_forward.4}
  #allocation0 [shape = 'u32[]', space=smem, size = 0x4, offset = 0x4, fixed_abs, tag = 'smem constant byte address 0x4 - core index']
  #allocation1 [shape = 'u32[144,128]{1,0:T(1,128)}', space=vmem, size = 0x12000, scoped, tag = 'internal scratch']
  #allocation2 [shape = 'f32[8,128]{1,0:T(8,128)}', space=vmem, size = 0x1000, scoped, tag = 'scratch operand']
  #allocation3 [shape = 'f32[8,128]{1,0:T(8,128)}', space=vmem, size = 0x1000, scoped, tag = 'scratch operand']
  #allocation4 [shape = 'f32[8,128]{1,0:T(8,128)}', space=vmem, size = 0x1000, scoped, tag = 'scratch operand']
  #allocation5 [shape = 'f32[8,128]{1,0:T(8,128)}', space=vmem, size = 0x1000, scoped, tag = 'scratch operand']
  %s0 = inlined_call_operand.vmem [shape: f32[8,8,512], index: 0, kind: input, shape index: {}]
  %s1 = inlined_call_operand.vmem [shape: f32[128,512], index: 1, kind: input, shape index: {}]
  %s2 = inlined_call_operand.vmem [shape: f32[128,512], index: 2, kind: input, shape index: {}]
  %s3 = inlined_call_operand.hbm [shape: f32[128,512], index: 3, kind: input, shape index: {}]
  %s4 = inlined_call_operand.vmem [shape: f32[1,512], index: 4, kind: input, shape index: {}]
  %s5 = inlined_call_operand.vmem [shape: f32[8,8,128], index: 5, kind: output, shape index: {}]
  %s6 = sld [smem:[#allocation0]]
  $region38: #{char_rnn_forward.4} parent=0
    _
  %s8 = ssub.s32 1, %s6
  %s9 = scalar_select 0, %s8, %s6
  $region1: #{char_rnn_forward.4} parent=0
    #allocation6 [shape = 'u8[262144]{0}', space=vmem, size = 0x40000, scoped, tag = 'input window, operand 3, single buffered']
    #allocation7 [shape = 's32[1]{0}', space=sflag, size = 0x4, scoped, tag = 'scoped memory for char_rnn_forward.4']
    %10 = vsyncpa [#allocation7], 0
    // Predicated region
    $region2: #{char_rnn_forward.4} parent=1 // pred_check
      _
    $region3: #{char_rnn_forward.4} parent=1 // pred_check_branch
      %12 = sbr.rel (0) target = $region5
    $region4: #{char_rnn_forward.4} parent=1 // pred_region
      _
    $region5: #{char_rnn_forward.4} parent=1 // pred_fallthru
      _
    // Predicated region
    $region6: #{char_rnn_forward.4} parent=1 // pred_check
      _
    $region7: #{char_rnn_forward.4} parent=1 // pred_check_branch
      %14 = sbr.rel (0) target = $region9
    $region8: #{char_rnn_forward.4} parent=1 // pred_region
      _
    $region9: #{char_rnn_forward.4} parent=1 // pred_fallthru
      _
    // Predicated region
    $region10: #{char_rnn_forward.4} parent=1 // pred_check
      _
    $region11: #{char_rnn_forward.4} parent=1 // pred_check_branch
      %16 = sbr.rel (0) target = $region13
    $region12: #{char_rnn_forward.4} parent=1 // pred_region
      _
    $region13: #{char_rnn_forward.4} parent=1 // pred_fallthru
      _
    // Predicated region
    $region14: #{char_rnn_forward.4} parent=1 // pred_check
      _
    $region15: #{char_rnn_forward.4} parent=1 // pred_check_branch
      %18 = sbr.rel (0) target = $region17
    $region16: #{char_rnn_forward.4} parent=1 // pred_region
      %s20 = ssub.s32 8192, 8192
      %21 = vsyncadd [#allocation7], %s20
      %s22 = sshll.u32 [#allocation6], 4
      %s23 = int_to_ptr.vmem [resolvable:$true] %s22
      %28 = dma.hbm_to_vmem [thread:$0]  %s3, 8192, %s23, [#allocation7], 512, 512, 32
    $region17: #{char_rnn_forward.4} parent=1 // pred_fallthru
      _
    // Predicated region
    $region18: #{char_rnn_forward.4} parent=1 // pred_check
      _
    $region19: #{char_rnn_forward.4} parent=1 // pred_check_branch
      %30 = sbr.rel (0) target = $region21
    $region20: #{char_rnn_forward.4} parent=1 // pred_region
      _
    $region21: #{char_rnn_forward.4} parent=1 // pred_fallthru
      _
    // Predicated region
    $region22: #{char_rnn_forward.4} parent=1 // pred_check
      _
    $region23: #{char_rnn_forward.4} parent=1 // pred_check_branch
      %32 = sbr.rel (0) target = $region25
    $region24: #{char_rnn_forward.4} parent=1 // pred_region
      %33 = dma.done [#allocation7], 8192
    $region25: #{char_rnn_forward.4} parent=1 // pred_fallthru
      _
    %p34 = scmp.eq.s32.totalorder 0, 0
    // Predicated region
    $region26: #{char_rnn_forward.4} parent=1 // pred_check
      %p35 = pneg %p34
    $region27: #{char_rnn_forward.4} parent=1 // pred_check_branch
      %37 = sbr.rel (%p35) target = $region29
    $region28: #{char_rnn_forward.4} parent=1 // pred_region
      %38 = vst [vmem:[#allocation2] sm:$0xff] 0.0
      %39 = vst [vmem:[#allocation3] sm:$0xff] 0.0
      %40 = vst [vmem:[#allocation4] sm:$0xff] 0.0
      %41 = vst [vmem:[#allocation5] sm:$0xff] 0.0
    $region29: #{char_rnn_forward.4} parent=1 // pred_fallthru
      _
    %v42 = vld [vmem:[#allocation2] sm:$0xff]
    %v43 = vld [vmem:[#allocation3] sm:$0xff]
    %v44 = vld [vmem:[#allocation4] sm:$0xff]
    %v45 = vld [vmem:[#allocation5] sm:$0xff]
    %v46 = vld [vmem:[%s0] sm:$0xff]
    %v47 = vld [vmem:[%s0 + $0x8] sm:$0xff]
    %v48 = vld [vmem:[%s0 + $0x10] sm:$0xff]
    %v49 = vld [vmem:[%s0 + $0x18] sm:$0xff]
    %v50 = vld [vmem:[%s1] sm:$0xff]
    %v51 = vld [vmem:[%s1 + $0x8] sm:$0xff]
    %v52 = vld [vmem:[%s1 + $0x10] sm:$0xff]
    %v53 = vld [vmem:[%s1 + $0x18] sm:$0xff]
    %v54 = vld [vmem:[%s1 + $0x20] sm:$0xff]
    %v55 = vld [vmem:[%s1 + $0x28] sm:$0xff]
    %v56 = vld [vmem:[%s1 + $0x30] sm:$0xff]
    %v57 = vld [vmem:[%s1 + $0x38] sm:$0xff]
    %v58 = vld [vmem:[%s1 + $0x40] sm:$0xff]
    %v59 = vld [vmem:[%s1 + $0x48] sm:$0xff]
    %v60 = vld [vmem:[%s1 + $0x50] sm:$0xff]
    %v61 = vld [vmem:[%s1 + $0x58] sm:$0xff]
    %v62 = vld [vmem:[%s1 + $0x60] sm:$0xff]
    %v63 = vld [vmem:[%s1 + $0x68] sm:$0xff]
    %v64 = vld [vmem:[%s1 + $0x70] sm:$0xff]
    %v65 = vld [vmem:[%s1 + $0x78] sm:$0xff]
    %v66 = vld [vmem:[%s1 + $0x80] sm:$0xff]
    %v67 = vld [vmem:[%s1 + $0x88] sm:$0xff]
    %v68 = vld [vmem:[%s1 + $0x90] sm:$0xff]
    %v69 = vld [vmem:[%s1 + $0x98] sm:$0xff]
    %v70 = vld [vmem:[%s1 + $0xa0] sm:$0xff]
    %v71 = vld [vmem:[%s1 + $0xa8] sm:$0xff]
    %v72 = vld [vmem:[%s1 + $0xb0] sm:$0xff]
    %v73 = vld [vmem:[%s1 + $0xb8] sm:$0xff]
    %v74 = vld [vmem:[%s1 + $0xc0] sm:$0xff]
    %v75 = vld [vmem:[%s1 + $0xc8] sm:$0xff]
    %v76 = vld [vmem:[%s1 + $0xd0] sm:$0xff]
    %v77 = vld [vmem:[%s1 + $0xd8] sm:$0xff]
    %v78 = vld [vmem:[%s1 + $0xe0] sm:$0xff]
    %v79 = vld [vmem:[%s1 + $0xe8] sm:$0xff]
    %v80 = vld [vmem:[%s1 + $0xf0] sm:$0xff]
    %v81 = vld [vmem:[%s1 + $0xf8] sm:$0xff]
    %v82 = vld [vmem:[%s1 + $0x100] sm:$0xff]
    %v83 = vld [vmem:[%s1 + $0x108] sm:$0xff]
    %v84 = vld [vmem:[%s1 + $0x110] sm:$0xff]
    %v85 = vld [vmem:[%s1 + $0x118] sm:$0xff]
    %v86 = vld [vmem:[%s1 + $0x120] sm:$0xff]
    %v87 = vld [vmem:[%s1 + $0x128] sm:$0xff]
    %v88 = vld [vmem:[%s1 + $0x130] sm:$0xff]
    %v89 = vld [vmem:[%s1 + $0x138] sm:$0xff]
    %v90 = vld [vmem:[%s1 + $0x140] sm:$0xff]
    %v91 = vld [vmem:[%s1 + $0x148] sm:$0xff]
    %v92 = vld [vmem:[%s1 + $0x150] sm:$0xff]
    %v93 = vld [vmem:[%s1 + $0x158] sm:$0xff]
    %v94 = vld [vmem:[%s1 + $0x160] sm:$0xff]
    %v95 = vld [vmem:[%s1 + $0x168] sm:$0xff]
    %v96 = vld [vmem:[%s1 + $0x170] sm:$0xff]
    %v97 = vld [vmem:[%s1 + $0x178] sm:$0xff]
    %v98 = vld [vmem:[%s1 + $0x180] sm:$0xff]
    %v99 = vld [vmem:[%s1 + $0x188] sm:$0xff]
    %v100 = vld [vmem:[%s1 + $0x190] sm:$0xff]
    %v101 = vld [vmem:[%s1 + $0x198] sm:$0xff]
    %v102 = vld [vmem:[%s1 + $0x1a0] sm:$0xff]
    %v103 = vld [vmem:[%s1 + $0x1a8] sm:$0xff]
    %v104 = vld [vmem:[%s1 + $0x1b0] sm:$0xff]
    %v105 = vld [vmem:[%s1 + $0x1b8] sm:$0xff]
    %v106 = vld [vmem:[%s1 + $0x1c0] sm:$0xff]
    %v107 = vld [vmem:[%s1 + $0x1c8] sm:$0xff]
    %v108 = vld [vmem:[%s1 + $0x1d0] sm:$0xff]
    %v109 = vld [vmem:[%s1 + $0x1d8] sm:$0xff]
    %v110 = vld [vmem:[%s1 + $0x1e0] sm:$0xff]
    %v111 = vld [vmem:[%s1 + $0x1e8] sm:$0xff]
    %v112 = vld [vmem:[%s1 + $0x1f0] sm:$0xff]
    %v113 = vld [vmem:[%s1 + $0x1f8] sm:$0xff]
    %114 = vmatprep.subr.mxu0 %v51
    %115 = vmatpush1.msra.mxu0 %v50
    %116 = vmatprep.subr.mxu0 %v55
    %117 = vmatpush1.msra.mxu0 %v54
    %118 = vmatprep.subr.mxu0 %v59
    %119 = vmatpush1.msra.mxu0 %v58
    %120 = vmatprep.subr.mxu0 %v63
    %121 = vmatpush1.msra.mxu0 %v62
    %122 = vmatprep.subr.mxu0 %v67
    %123 = vmatpush1.msra.mxu0 %v66
    %124 = vmatprep.subr.mxu0 %v71
    %125 = vmatpush1.msra.mxu0 %v70
    %126 = vmatprep.subr.mxu0 %v75
    %127 = vmatpush1.msra.mxu0 %v74
    %128 = vmatprep.subr.mxu0 %v79
    %129 = vmatpush1.msra.mxu0 %v78
    %130 = vmatprep.subr.mxu0 %v83
    %131 = vmatpush1.msra.mxu0 %v82
    %132 = vmatprep.subr.mxu0 %v87
    %133 = vmatpush1.msra.mxu0 %v86
    %134 = vmatprep.subr.mxu0 %v91
    %135 = vmatpush1.msra.mxu0 %v90
    %136 = vmatprep.subr.mxu0 %v95
    %137 = vmatpush1.msra.mxu0 %v94
    %138 = vmatprep.subr.mxu0 %v99
    %139 = vmatpush1.msra.mxu0 %v98
    %140 = vmatprep.subr.mxu0 %v103
    %141 = vmatpush1.msra.mxu0 %v102
    %142 = vmatprep.subr.mxu0 %v107
    %143 = vmatpush1.msra.mxu0 %v106
    %144 = vmatprep.subr.mxu0 %v111
    %145 = vmatpush1.msra.mxu0 %v110
    %146 = vmatprep.subr.mxu0 0.0
    %147 = vmatpush1.msra.mxu0 0.0
    %148 = vmatprep.subr.mxu0 0.0
    %149 = vmatpush1.msra.mxu0 0.0
    %150 = vmatprep.subr.mxu0 0.0
    %151 = vmatpush1.msra.mxu0 0.0
    %152 = vmatprep.subr.mxu0 0.0
    %153 = vmatpush1.msra.mxu0 0.0
    %154 = vmatprep.subr.mxu0 0.0
    %155 = vmatpush1.msra.mxu0 0.0
    %156 = vmatprep.subr.mxu0 0.0
    %157 = vmatpush1.msra.mxu0 0.0
    %158 = vmatprep.subr.mxu0 0.0
    %159 = vmatpush1.msra.mxu0 0.0
    %160 = vmatprep.subr.mxu0 0.0
    %161 = vmatpush1.msra.mxu0 0.0
    %162 = vmatprep.subr.mxu0 0.0
    %163 = vmatpush1.msra.mxu0 0.0
    %164 = vmatprep.subr.mxu0 0.0
    %165 = vmatpush1.msra.mxu0 0.0
    %166 = vmatprep.subr.mxu0 0.0
    %167 = vmatpush1.msra.mxu0 0.0
    %168 = vmatprep.subr.mxu0 0.0
    %169 = vmatpush1.msra.mxu0 0.0
    %170 = vmatprep.subr.mxu0 0.0
    %171 = vmatpush1.msra.mxu0 0.0
    %172 = vmatprep.subr.mxu0 0.0
    %173 = vmatpush1.msra.mxu0 0.0
    %174 = vmatprep.subr.mxu0 0.0
    %175 = vmatpush1.msra.mxu0 0.0
    %176 = vmatprep.subr.mxu0 0.0
    %177 = vmatpush1.msra.mxu0 0.0
    %178 = vmatprep.mubr.f32.mxu0 0.0
    %179 = vmatmul.mubr.f32.gmra.mrb[0].mxu0 %v42
    %v180 = vpop.f32.mrb[0].mxu0
    %v181 = vadd.f32 0.0, %v180
    %v182 = vpop.f32.mrb[0].mxu0
    %v183 = vadd.f32 0.0, %v182
    %184 = vdwg.mxu0
    %185 = vmatprep.subr.mxu0 %v53
    %186 = vmatpush1.msra.mxu0 %v52
    %187 = vmatprep.subr.mxu0 %v57
    %188 = vmatpush1.msra.mxu0 %v56
    %189 = vmatprep.subr.mxu0 %v61
    %190 = vmatpush1.msra.mxu0 %v60
    %191 = vmatprep.subr.mxu0 %v65
    %192 = vmatpush1.msra.mxu0 %v64
    %193 = vmatprep.subr.mxu0 %v69
    %194 = vmatpush1.msra.mxu0 %v68
    %195 = vmatprep.subr.mxu0 %v73
    %196 = vmatpush1.msra.mxu0 %v72
    %197 = vmatprep.subr.mxu0 %v77
    %198 = vmatpush1.msra.mxu0 %v76
    %199 = vmatprep.subr.mxu0 %v81
    %200 = vmatpush1.msra.mxu0 %v80
    %201 = vmatprep.subr.mxu0 %v85
    %202 = vmatpush1.msra.mxu0 %v84
    %203 = vmatprep.subr.mxu0 %v89
    %204 = vmatpush1.msra.mxu0 %v88
    %205 = vmatprep.subr.mxu0 %v93
    %206 = vmatpush1.msra.mxu0 %v92
    %207 = vmatprep.subr.mxu0 %v97
    %208 = vmatpush1.msra.mxu0 %v96
    %209 = vmatprep.subr.mxu0 %v101
    %210 = vmatpush1.msra.mxu0 %v100
    %211 = vmatprep.subr.mxu0 %v105
    %212 = vmatpush1.msra.mxu0 %v104
    %213 = vmatprep.subr.mxu0 %v109
    %214 = vmatpush1.msra.mxu0 %v108
    %215 = vmatprep.subr.mxu0 %v113
    %216 = vmatpush1.msra.mxu0 %v112
    %217 = vmatprep.subr.mxu0 0.0
    %218 = vmatpush1.msra.mxu0 0.0
    %219 = vmatprep.subr.mxu0 0.0
    %220 = vmatpush1.msra.mxu0 0.0
    %221 = vmatprep.subr.mxu0 0.0
    %222 = vmatpush1.msra.mxu0 0.0
    %223 = vmatprep.subr.mxu0 0.0
    %224 = vmatpush1.msra.mxu0 0.0
    %225 = vmatprep.subr.mxu0 0.0
    %226 = vmatpush1.msra.mxu0 0.0
    %227 = vmatprep.subr.mxu0 0.0
    %228 = vmatpush1.msra.mxu0 0.0
    %229 = vmatprep.subr.mxu0 0.0
    %230 = vmatpush1.msra.mxu0 0.0
    %231 = vmatprep.subr.mxu0 0.0
    %232 = vmatpush1.msra.mxu0 0.0
    %233 = vmatprep.subr.mxu0 0.0
    %234 = vmatpush1.msra.mxu0 0.0
    %235 = vmatprep.subr.mxu0 0.0
    %236 = vmatpush1.msra.mxu0 0.0
    %237 = vmatprep.subr.mxu0 0.0
    %238 = vmatpush1.msra.mxu0 0.0
    %239 = vmatprep.subr.mxu0 0.0
    %240 = vmatpush1.msra.mxu0 0.0
    %241 = vmatprep.subr.mxu0 0.0
    %242 = vmatpush1.msra.mxu0 0.0
    %243 = vmatprep.subr.mxu0 0.0
    %244 = vmatpush1.msra.mxu0 0.0
    %245 = vmatprep.subr.mxu0 0.0
    %246 = vmatpush1.msra.mxu0 0.0
    %247 = vmatprep.subr.mxu0 0.0
    %248 = vmatpush1.msra.mxu0 0.0
    %249 = vmatprep.mubr.f32.mxu0 0.0
    %250 = vmatmul.mubr.f32.gmra.mrb[0].mxu0 %v42
    %v251 = vpop.f32.mrb[0].mxu0
    %v252 = vadd.f32 0.0, %v251
    %v253 = vpop.f32.mrb[0].mxu0
    %v254 = vadd.f32 0.0, %v253
    %255 = vdwg.mxu0
    %v256 = vadd.f32 %v46, %v181
    %v257 = vadd.f32 %v47, %v183
    %v258 = vadd.f32 %v48, %v252
    %v259 = vadd.f32 %v49, %v254
    %v260 = vxor.u32 %v256, 2147483648
    %v261 = vxor.u32 %v257, 2147483648
    %v262 = vxor.u32 %v258, 2147483648
    %v263 = vmul.f32 %v260, 1.442695
    %v264 = vpow.pop %v263
    %v265 = vmul.f32 %v261, 1.442695
    %v266 = vpow.pop %v265
    %v267 = vmul.f32 %v262, 1.442695
    %v268 = vpow.pop %v267
    %v269 = vadd.f32 %v264, 1.0
    %v270 = vadd.f32 %v266, 1.0
    %v271 = vadd.f32 %v268, 1.0
    %v272 = vrcp.pop %v269
    %v273 = vmul.f32 1.0, %v272
    %v274 = vrcp.pop %v270
    %v275 = vmul.f32 1.0, %v274
    %v276 = vrcp.pop %v271
    %v277 = vmul.f32 1.0, %v276
    %v278 = vtanh.pop %v259
    %v279 = vmul.f32 %v275, %v43
    %v280 = vmul.f32 %v273, %v278
    %v281 = vadd.f32 %v279, %v280
    %v282 = vtanh.pop %v281
    %v283 = vmul.f32 %v277, %v282
    %v284 = vld [vmem:[%s2] sm:$0xff]
    %v285 = vld [vmem:[%s2 + $0x8] sm:$0xff]
    %v286 = vld [vmem:[%s2 + $0x10] sm:$0xff]
    %v287 = vld [vmem:[%s2 + $0x18] sm:$0xff]
    %v288 = vld [vmem:[%s2 + $0x20] sm:$0xff]
    %v289 = vld [vmem:[%s2 + $0x28] sm:$0xff]
    %v290 = vld [vmem:[%s2 + $0x30] sm:$0xff]
    %v291 = vld [vmem:[%s2 + $0x38] sm:$0xff]
    %v292 = vld [vmem:[%s2 + $0x40] sm:$0xff]
    %v293 = vld [vmem:[%s2 + $0x48] sm:$0xff]
    %v294 = vld [vmem:[%s2 + $0x50] sm:$0xff]
    %v295 = vld [vmem:[%s2 + $0x58] sm:$0xff]
    %v296 = vld [vmem:[%s2 + $0x60] sm:$0xff]
    %v297 = vld [vmem:[%s2 + $0x68] sm:$0xff]
    %v298 = vld [vmem:[%s2 + $0x70] sm:$0xff]
    %v299 = vld [vmem:[%s2 + $0x78] sm:$0xff]
    %v300 = vld [vmem:[%s2 + $0x80] sm:$0xff]
    %v301 = vld [vmem:[%s2 + $0x88] sm:$0xff]
    %v302 = vld [vmem:[%s2 + $0x90] sm:$0xff]
    %v303 = vld [vmem:[%s2 + $0x98] sm:$0xff]
    %v304 = vld [vmem:[%s2 + $0xa0] sm:$0xff]
    %v305 = vld [vmem:[%s2 + $0xa8] sm:$0xff]
    %v306 = vld [vmem:[%s2 + $0xb0] sm:$0xff]
    %v307 = vld [vmem:[%s2 + $0xb8] sm:$0xff]
    %v308 = vld [vmem:[%s2 + $0xc0] sm:$0xff]
    %v309 = vld [vmem:[%s2 + $0xc8] sm:$0xff]
    %v310 = vld [vmem:[%s2 + $0xd0] sm:$0xff]
    %v311 = vld [vmem:[%s2 + $0xd8] sm:$0xff]
    %v312 = vld [vmem:[%s2 + $0xe0] sm:$0xff]
    %v313 = vld [vmem:[%s2 + $0xe8] sm:$0xff]
    %v314 = vld [vmem:[%s2 + $0xf0] sm:$0xff]
    %v315 = vld [vmem:[%s2 + $0xf8] sm:$0xff]
    %v316 = vld [vmem:[%s2 + $0x100] sm:$0xff]
    %v317 = vld [vmem:[%s2 + $0x108] sm:$0xff]
    %v318 = vld [vmem:[%s2 + $0x110] sm:$0xff]
    %v319 = vld [vmem:[%s2 + $0x118] sm:$0xff]
    %v320 = vld [vmem:[%s2 + $0x120] sm:$0xff]
    %v321 = vld [vmem:[%s2 + $0x128] sm:$0xff]
    %v322 = vld [vmem:[%s2 + $0x130] sm:$0xff]
    %v323 = vld [vmem:[%s2 + $0x138] sm:$0xff]
    %v324 = vld [vmem:[%s2 + $0x140] sm:$0xff]
    %v325 = vld [vmem:[%s2 + $0x148] sm:$0xff]
    %v326 = vld [vmem:[%s2 + $0x150] sm:$0xff]
    %v327 = vld [vmem:[%s2 + $0x158] sm:$0xff]
    %v328 = vld [vmem:[%s2 + $0x160] sm:$0xff]
    %v329 = vld [vmem:[%s2 + $0x168] sm:$0xff]
    %v330 = vld [vmem:[%s2 + $0x170] sm:$0xff]
    %v331 = vld [vmem:[%s2 + $0x178] sm:$0xff]
    %v332 = vld [vmem:[%s2 + $0x180] sm:$0xff]
    %v333 = vld [vmem:[%s2 + $0x188] sm:$0xff]
    %v334 = vld [vmem:[%s2 + $0x190] sm:$0xff]
    %v335 = vld [vmem:[%s2 + $0x198] sm:$0xff]
    %v336 = vld [vmem:[%s2 + $0x1a0] sm:$0xff]
    %v337 = vld [vmem:[%s2 + $0x1a8] sm:$0xff]
    %v338 = vld [vmem:[%s2 + $0x1b0] sm:$0xff]
    %v339 = vld [vmem:[%s2 + $0x1b8] sm:$0xff]
    %v340 = vld [vmem:[%s2 + $0x1c0] sm:$0xff]
    %v341 = vld [vmem:[%s2 + $0x1c8] sm:$0xff]
    %v342 = vld [vmem:[%s2 + $0x1d0] sm:$0xff]
    %v343 = vld [vmem:[%s2 + $0x1d8] sm:$0xff]
    %v344 = vld [vmem:[%s2 + $0x1e0] sm:$0xff]
    %v345 = vld [vmem:[%s2 + $0x1e8] sm:$0xff]
    %v346 = vld [vmem:[%s2 + $0x1f0] sm:$0xff]
    %v347 = vld [vmem:[%s2 + $0x1f8] sm:$0xff]
    %v348 = vld [vmem:[#allocation6] sm:$0xff]
    %v349 = vld [vmem:[#allocation6 + $0x8] sm:$0xff]
    %v350 = vld [vmem:[#allocation6 + $0x10] sm:$0xff]
    %v351 = vld [vmem:[#allocation6 + $0x18] sm:$0xff]
    %v352 = vld [vmem:[#allocation6 + $0x20] sm:$0xff]
    %v353 = vld [vmem:[#allocation6 + $0x28] sm:$0xff]
    %v354 = vld [vmem:[#allocation6 + $0x30] sm:$0xff]
    %v355 = vld [vmem:[#allocation6 + $0x38] sm:$0xff]
    %v356 = vld [vmem:[#allocation6 + $0x40] sm:$0xff]
    %v357 = vld [vmem:[#allocation6 + $0x48] sm:$0xff]
    %v358 = vld [vmem:[#allocation6 + $0x50] sm:$0xff]
    %v359 = vld [vmem:[#allocation6 + $0x58] sm:$0xff]
    %v360 = vld [vmem:[#allocation6 + $0x60] sm:$0xff]
    %v361 = vld [vmem:[#allocation6 + $0x68] sm:$0xff]
    %v362 = vld [vmem:[#allocation6 + $0x70] sm:$0xff]
    %v363 = vld [vmem:[#allocation6 + $0x78] sm:$0xff]
    %v364 = vld [vmem:[#allocation6 + $0x80] sm:$0xff]
    %v365 = vld [vmem:[#allocation6 + $0x88] sm:$0xff]
    %v366 = vld [vmem:[#allocation6 + $0x90] sm:$0xff]
    %v367 = vld [vmem:[#allocation6 + $0x98] sm:$0xff]
    %v368 = vld [vmem:[#allocation6 + $0xa0] sm:$0xff]
    %v369 = vld [vmem:[#allocation6 + $0xa8] sm:$0xff]
    %v370 = vld [vmem:[#allocation6 + $0xb0] sm:$0xff]
    %v371 = vld [vmem:[#allocation6 + $0xb8] sm:$0xff]
    %v372 = vld [vmem:[#allocation6 + $0xc0] sm:$0xff]
    %v373 = vld [vmem:[#allocation6 + $0xc8] sm:$0xff]
    %v374 = vld [vmem:[#allocation6 + $0xd0] sm:$0xff]
    %v375 = vld [vmem:[#allocation6 + $0xd8] sm:$0xff]
    %v376 = vld [vmem:[#allocation6 + $0xe0] sm:$0xff]
    %v377 = vld [vmem:[#allocation6 + $0xe8] sm:$0xff]
    %v378 = vld [vmem:[#allocation6 + $0xf0] sm:$0xff]
    %v379 = vld [vmem:[#allocation6 + $0xf8] sm:$0xff]
    %v380 = vld [vmem:[#allocation6 + $0x100] sm:$0xff]
    %v381 = vld [vmem:[#allocation6 + $0x108] sm:$0xff]
    %v382 = vld [vmem:[#allocation6 + $0x110] sm:$0xff]
    %v383 = vld [vmem:[#allocation6 + $0x118] sm:$0xff]
    %v384 = vld [vmem:[#allocation6 + $0x120] sm:$0xff]
    %v385 = vld [vmem:[#allocation6 + $0x128] sm:$0xff]
    %v386 = vld [vmem:[#allocation6 + $0x130] sm:$0xff]
    %v387 = vld [vmem:[#allocation6 + $0x138] sm:$0xff]
    %v388 = vld [vmem:[#allocation6 + $0x140] sm:$0xff]
    %v389 = vld [vmem:[#allocation6 + $0x148] sm:$0xff]
    %v390 = vld [vmem:[#allocation6 + $0x150] sm:$0xff]
    %v391 = vld [vmem:[#allocation6 + $0x158] sm:$0xff]
    %v392 = vld [vmem:[#allocation6 + $0x160] sm:$0xff]
    %v393 = vld [vmem:[#allocation6 + $0x168] sm:$0xff]
    %v394 = vld [vmem:[#allocation6 + $0x170] sm:$0xff]
    %v395 = vld [vmem:[#allocation6 + $0x178] sm:$0xff]
    %v396 = vld [vmem:[#allocation6 + $0x180] sm:$0xff]
    %v397 = vld [vmem:[#allocation6 + $0x188] sm:$0xff]
    %v398 = vld [vmem:[#allocation6 + $0x190] sm:$0xff]
    %v399 = vld [vmem:[#allocation6 + $0x198] sm:$0xff]
    %v400 = vld [vmem:[#allocation6 + $0x1a0] sm:$0xff]
    %v401 = vld [vmem:[#allocation6 + $0x1a8] sm:$0xff]
    %v402 = vld [vmem:[#allocation6 + $0x1b0] sm:$0xff]
    %v403 = vld [vmem:[#allocation6 + $0x1b8] sm:$0xff]
    %v404 = vld [vmem:[#allocation6 + $0x1c0] sm:$0xff]
    %v405 = vld [vmem:[#allocation6 + $0x1c8] sm:$0xff]
    %v406 = vld [vmem:[#allocation6 + $0x1d0] sm:$0xff]
    %v407 = vld [vmem:[#allocation6 + $0x1d8] sm:$0xff]
    %v408 = vld [vmem:[#allocation6 + $0x1e0] sm:$0xff]
    %v409 = vld [vmem:[#allocation6 + $0x1e8] sm:$0xff]
    %v410 = vld [vmem:[#allocation6 + $0x1f0] sm:$0xff]
    %v411 = vld [vmem:[#allocation6 + $0x1f8] sm:$0xff]
    %412 = vmatprep.subr.mxu0 %v349
    %413 = vmatpush1.msra.mxu0 %v348
    %414 = vmatprep.subr.mxu0 %v353
    %415 = vmatpush1.msra.mxu0 %v352
    %416 = vmatprep.subr.mxu0 %v357
    %417 = vmatpush1.msra.mxu0 %v356
    %418 = vmatprep.subr.mxu0 %v361
    %419 = vmatpush1.msra.mxu0 %v360
    %420 = vmatprep.subr.mxu0 %v365
    %421 = vmatpush1.msra.mxu0 %v364
    %422 = vmatprep.subr.mxu0 %v369
    %423 = vmatpush1.msra.mxu0 %v368
    %424 = vmatprep.subr.mxu0 %v373
    %425 = vmatpush1.msra.mxu0 %v372
    %426 = vmatprep.subr.mxu0 %v377
    %427 = vmatpush1.msra.mxu0 %v376
    %428 = vmatprep.subr.mxu0 %v381
    %429 = vmatpush1.msra.mxu0 %v380
    %430 = vmatprep.subr.mxu0 %v385
    %431 = vmatpush1.msra.mxu0 %v384
    %432 = vmatprep.subr.mxu0 %v389
    %433 = vmatpush1.msra.mxu0 %v388
    %434 = vmatprep.subr.mxu0 %v393
    %435 = vmatpush1.msra.mxu0 %v392
    %436 = vmatprep.subr.mxu0 %v397
    %437 = vmatpush1.msra.mxu0 %v396
    %438 = vmatprep.subr.mxu0 %v401
    %439 = vmatpush1.msra.mxu0 %v400
    %440 = vmatprep.subr.mxu0 %v405
    %441 = vmatpush1.msra.mxu0 %v404
    %442 = vmatprep.subr.mxu0 %v409
    %443 = vmatpush1.msra.mxu0 %v408
    %444 = vmatprep.subr.mxu0 0.0
    %445 = vmatpush1.msra.mxu0 0.0
    %446 = vmatprep.subr.mxu0 0.0
    %447 = vmatpush1.msra.mxu0 0.0
    %448 = vmatprep.subr.mxu0 0.0
    %449 = vmatpush1.msra.mxu0 0.0
    %450 = vmatprep.subr.mxu0 0.0
    %451 = vmatpush1.msra.mxu0 0.0
    %452 = vmatprep.subr.mxu0 0.0
    %453 = vmatpush1.msra.mxu0 0.0
    %454 = vmatprep.subr.mxu0 0.0
    %455 = vmatpush1.msra.mxu0 0.0
    %456 = vmatprep.subr.mxu0 0.0
    %457 = vmatpush1.msra.mxu0 0.0
    %458 = vmatprep.subr.mxu0 0.0
    %459 = vmatpush1.msra.mxu0 0.0
    %460 = vmatprep.subr.mxu0 0.0
    %461 = vmatpush1.msra.mxu0 0.0
    %462 = vmatprep.subr.mxu0 0.0
    %463 = vmatpush1.msra.mxu0 0.0
    %464 = vmatprep.subr.mxu0 0.0
    %465 = vmatpush1.msra.mxu0 0.0
    %466 = vmatprep.subr.mxu0 0.0
    %467 = vmatpush1.msra.mxu0 0.0
    %468 = vmatprep.subr.mxu0 0.0
    %469 = vmatpush1.msra.mxu0 0.0
    %470 = vmatprep.subr.mxu0 0.0
    %471 = vmatpush1.msra.mxu0 0.0
    %472 = vmatprep.subr.mxu0 0.0
    %473 = vmatpush1.msra.mxu0 0.0
    %474 = vmatprep.subr.mxu0 0.0
    %475 = vmatpush1.msra.mxu0 0.0
    %476 = vmatprep.mubr.f32.mxu0 0.0
    %477 = vmatmul.mubr.f32.gmra.mrb[0].mxu0 %v44
    %v478 = vpop.f32.mrb[0].mxu0
    %v479 = vadd.f32 0.0, %v478
    %v480 = vpop.f32.mrb[0].mxu0
    %v481 = vadd.f32 0.0, %v480
    %482 = vdwg.mxu0
    %483 = vmatprep.subr.mxu0 %v351
    %484 = vmatpush1.msra.mxu0 %v350
    %485 = vmatprep.subr.mxu0 %v355
    %486 = vmatpush1.msra.mxu0 %v354
    %487 = vmatprep.subr.mxu0 %v359
    %488 = vmatpush1.msra.mxu0 %v358
    %489 = vmatprep.subr.mxu0 %v363
    %490 = vmatpush1.msra.mxu0 %v362
    %491 = vmatprep.subr.mxu0 %v367
    %492 = vmatpush1.msra.mxu0 %v366
    %493 = vmatprep.subr.mxu0 %v371
    %494 = vmatpush1.msra.mxu0 %v370
    %495 = vmatprep.subr.mxu0 %v375
    %496 = vmatpush1.msra.mxu0 %v374
    %497 = vmatprep.subr.mxu0 %v379
    %498 = vmatpush1.msra.mxu0 %v378
    %499 = vmatprep.subr.mxu0 %v383
    %500 = vmatpush1.msra.mxu0 %v382
    %501 = vmatprep.subr.mxu0 %v387
    %502 = vmatpush1.msra.mxu0 %v386
    %503 = vmatprep.subr.mxu0 %v391
    %504 = vmatpush1.msra.mxu0 %v390
    %505 = vmatprep.subr.mxu0 %v395
    %506 = vmatpush1.msra.mxu0 %v394
    %507 = vmatprep.subr.mxu0 %v399
    %508 = vmatpush1.msra.mxu0 %v398
    %509 = vmatprep.subr.mxu0 %v403
    %510 = vmatpush1.msra.mxu0 %v402
    %511 = vmatprep.subr.mxu0 %v407
    %512 = vmatpush1.msra.mxu0 %v406
    %513 = vmatprep.subr.mxu0 %v411
    %514 = vmatpush1.msra.mxu0 %v410
    %515 = vmatprep.subr.mxu0 0.0
    %516 = vmatpush1.msra.mxu0 0.0
    %517 = vmatprep.subr.mxu0 0.0
    %518 = vmatpush1.msra.mxu0 0.0
    %519 = vmatprep.subr.mxu0 0.0
    %520 = vmatpush1.msra.mxu0 0.0
    %521 = vmatprep.subr.mxu0 0.0
    %522 = vmatpush1.msra.mxu0 0.0
    %523 = vmatprep.subr.mxu0 0.0
    %524 = vmatpush1.msra.mxu0 0.0
    %525 = vmatprep.subr.mxu0 0.0
    %526 = vmatpush1.msra.mxu0 0.0
    %527 = vmatprep.subr.mxu0 0.0
    %528 = vmatpush1.msra.mxu0 0.0
    %529 = vmatprep.subr.mxu0 0.0
    %530 = vmatpush1.msra.mxu0 0.0
    %531 = vmatprep.subr.mxu0 0.0
    %532 = vmatpush1.msra.mxu0 0.0
    %533 = vmatprep.subr.mxu0 0.0
    %534 = vmatpush1.msra.mxu0 0.0
    %535 = vmatprep.subr.mxu0 0.0
    %536 = vmatpush1.msra.mxu0 0.0
    %537 = vmatprep.subr.mxu0 0.0
    %538 = vmatpush1.msra.mxu0 0.0
    %539 = vmatprep.subr.mxu0 0.0
    %540 = vmatpush1.msra.mxu0 0.0
    %541 = vmatprep.subr.mxu0 0.0
    %542 = vmatpush1.msra.mxu0 0.0
    %543 = vmatprep.subr.mxu0 0.0
    %544 = vmatpush1.msra.mxu0 0.0
    %545 = vmatprep.subr.mxu0 0.0
    %546 = vmatpush1.msra.mxu0 0.0
    %547 = vmatprep.mubr.f32.mxu0 0.0
    %548 = vmatmul.mubr.f32.gmra.mrb[0].mxu0 %v44
    %v549 = vpop.f32.mrb[0].mxu0
    %v550 = vadd.f32 0.0, %v549
    %v551 = vpop.f32.mrb[0].mxu0
    %v552 = vadd.f32 0.0, %v551
    %553 = vdwg.mxu0
    %554 = vmatprep.subr.mxu0 %v285
    %555 = vmatpush1.msra.mxu0 %v284
    %556 = vmatprep.subr.mxu0 %v289
    %557 = vmatpush1.msra.mxu0 %v288
    %558 = vmatprep.subr.mxu0 %v293
    %559 = vmatpush1.msra.mxu0 %v292
    %560 = vmatprep.subr.mxu0 %v297
    %561 = vmatpush1.msra.mxu0 %v296
    %562 = vmatprep.subr.mxu0 %v301
    %563 = vmatpush1.msra.mxu0 %v300
    %564 = vmatprep.subr.mxu0 %v305
    %565 = vmatpush1.msra.mxu0 %v304
    %566 = vmatprep.subr.mxu0 %v309
    %567 = vmatpush1.msra.mxu0 %v308
    %568 = vmatprep.subr.mxu0 %v313
    %569 = vmatpush1.msra.mxu0 %v312
    %570 = vmatprep.subr.mxu0 %v317
    %571 = vmatpush1.msra.mxu0 %v316
    %572 = vmatprep.subr.mxu0 %v321
    %573 = vmatpush1.msra.mxu0 %v320
    %574 = vmatprep.subr.mxu0 %v325
    %575 = vmatpush1.msra.mxu0 %v324
    %576 = vmatprep.subr.mxu0 %v329
    %577 = vmatpush1.msra.mxu0 %v328
    %578 = vmatprep.subr.mxu0 %v333
    %579 = vmatpush1.msra.mxu0 %v332
    %580 = vmatprep.subr.mxu0 %v337
    %581 = vmatpush1.msra.mxu0 %v336
    %582 = vmatprep.subr.mxu0 %v341
    %583 = vmatpush1.msra.mxu0 %v340
    %584 = vmatprep.subr.mxu0 %v345
    %585 = vmatpush1.msra.mxu0 %v344
    %586 = vmatprep.subr.mxu0 0.0
    %587 = vmatpush1.msra.mxu0 0.0
    %588 = vmatprep.subr.mxu0 0.0
    %589 = vmatpush1.msra.mxu0 0.0
    %590 = vmatprep.subr.mxu0 0.0
    %591 = vmatpush1.msra.mxu0 0.0
    %592 = vmatprep.subr.mxu0 0.0
    %593 = vmatpush1.msra.mxu0 0.0
    %594 = vmatprep.subr.mxu0 0.0
    %595 = vmatpush1.msra.mxu0 0.0
    %596 = vmatprep.subr.mxu0 0.0
    %597 = vmatpush1.msra.mxu0 0.0
    %598 = vmatprep.subr.mxu0 0.0
    %599 = vmatpush1.msra.mxu0 0.0
    %600 = vmatprep.subr.mxu0 0.0
    %601 = vmatpush1.msra.mxu0 0.0
    %602 = vmatprep.subr.mxu0 0.0
    %603 = vmatpush1.msra.mxu0 0.0
    %604 = vmatprep.subr.mxu0 0.0
    %605 = vmatpush1.msra.mxu0 0.0
    %606 = vmatprep.subr.mxu0 0.0
    %607 = vmatpush1.msra.mxu0 0.0
    %608 = vmatprep.subr.mxu0 0.0
    %609 = vmatpush1.msra.mxu0 0.0
    %610 = vmatprep.subr.mxu0 0.0
    %611 = vmatpush1.msra.mxu0 0.0
    %612 = vmatprep.subr.mxu0 0.0
    %613 = vmatpush1.msra.mxu0 0.0
    %614 = vmatprep.subr.mxu0 0.0
    %615 = vmatpush1.msra.mxu0 0.0
    %616 = vmatprep.subr.mxu0 0.0
    %617 = vmatpush1.msra.mxu0 0.0
    %618 = vmatprep.mubr.f32.mxu0 0.0
    %619 = vmatmul.mubr.f32.gmra.mrb[0].mxu0 %v283
    %v620 = vpop.f32.mrb[0].mxu0
    %v621 = vadd.f32 %v479, %v620
    %v622 = vpop.f32.mrb[0].mxu0
    %v623 = vadd.f32 %v481, %v622
    %624 = vdwg.mxu0
    %625 = vmatprep.subr.mxu0 %v287
    %626 = vmatpush1.msra.mxu0 %v286
    %627 = vmatprep.subr.mxu0 %v291
    %628 = vmatpush1.msra.mxu0 %v290
    %629 = vmatprep.subr.mxu0 %v295
    %630 = vmatpush1.msra.mxu0 %v294
    %631 = vmatprep.subr.mxu0 %v299
    %632 = vmatpush1.msra.mxu0 %v298
    %633 = vmatprep.subr.mxu0 %v303
    %634 = vmatpush1.msra.mxu0 %v302
    %635 = vmatprep.subr.mxu0 %v307
    %636 = vmatpush1.msra.mxu0 %v306
    %637 = vmatprep.subr.mxu0 %v311
    %638 = vmatpush1.msra.mxu0 %v310
    %639 = vmatprep.subr.mxu0 %v315
    %640 = vmatpush1.msra.mxu0 %v314
    %641 = vmatprep.subr.mxu0 %v319
    %642 = vmatpush1.msra.mxu0 %v318
    %643 = vmatprep.subr.mxu0 %v323
    %644 = vmatpush1.msra.mxu0 %v322
    %645 = vmatprep.subr.mxu0 %v327
    %646 = vmatpush1.msra.mxu0 %v326
    %647 = vmatprep.subr.mxu0 %v331
    %648 = vmatpush1.msra.mxu0 %v330
    %649 = vmatprep.subr.mxu0 %v335
    %650 = vmatpush1.msra.mxu0 %v334
    %651 = vmatprep.subr.mxu0 %v339
    %652 = vmatpush1.msra.mxu0 %v338
    %653 = vmatprep.subr.mxu0 %v343
    %654 = vmatpush1.msra.mxu0 %v342
    %655 = vmatprep.subr.mxu0 %v347
    %656 = vmatpush1.msra.mxu0 %v346
    %657 = vmatprep.subr.mxu0 0.0
    %658 = vmatpush1.msra.mxu0 0.0
    %659 = vmatprep.subr.mxu0 0.0
    %660 = vmatpush1.msra.mxu0 0.0
    %661 = vmatprep.subr.mxu0 0.0
    %662 = vmatpush1.msra.mxu0 0.0
    %663 = vmatprep.subr.mxu0 0.0
    %664 = vmatpush1.msra.mxu0 0.0
    %665 = vmatprep.subr.mxu0 0.0
    %666 = vmatpush1.msra.mxu0 0.0
    %667 = vmatprep.subr.mxu0 0.0
    %668 = vmatpush1.msra.mxu0 0.0
    %669 = vmatprep.subr.mxu0 0.0
    %670 = vmatpush1.msra.mxu0 0.0
    %671 = vmatprep.subr.mxu0 0.0
    %672 = vmatpush1.msra.mxu0 0.0
    %673 = vmatprep.subr.mxu0 0.0
    %674 = vmatpush1.msra.mxu0 0.0
    %675 = vmatprep.subr.mxu0 0.0
    %676 = vmatpush1.msra.mxu0 0.0
    %677 = vmatprep.subr.mxu0 0.0
    %678 = vmatpush1.msra.mxu0 0.0
    %679 = vmatprep.subr.mxu0 0.0
    %680 = vmatpush1.msra.mxu0 0.0
    %681 = vmatprep.subr.mxu0 0.0
    %682 = vmatpush1.msra.mxu0 0.0
    %683 = vmatprep.subr.mxu0 0.0
    %684 = vmatpush1.msra.mxu0 0.0
    %685 = vmatprep.subr.mxu0 0.0
    %686 = vmatpush1.msra.mxu0 0.0
    %687 = vmatprep.subr.mxu0 0.0
    %688 = vmatpush1.msra.mxu0 0.0
    %689 = vmatprep.mubr.f32.mxu0 0.0
    %690 = vmatmul.mubr.f32.gmra.mrb[0].mxu0 %v283
    %v691 = vpop.f32.mrb[0].mxu0
    %v692 = vadd.f32 %v550, %v691
    %v693 = vpop.f32.mrb[0].mxu0
    %v694 = vadd.f32 %v552, %v693
    %695 = vdwg.mxu0
    %v696 = vld [vmem:[%s4] sm:$0xf]
    %v698 = vlaneseq
    %v699 = vshrl.u32 %v698, 7
    %v700 = vsub.s32 0, %v699
    %v701 = vrot.slane %v696, %v700
    %v702 = vlaneseq
    %v703 = vshrl.u32 %v702, 7
    %v704 = vsub.s32 1, %v703
    %v705 = vrot.slane %v696, %v704
    %v706 = vlaneseq
    %v707 = vshrl.u32 %v706, 7
    %v708 = vsub.s32 2, %v707
    %v709 = vrot.slane %v696, %v708
    %v710 = vlaneseq
    %v711 = vshrl.u32 %v710, 7
    %v712 = vsub.s32 3, %v711
    %v713 = vrot.slane %v696, %v712
    %v718 = vadd.f32 %v621, %v701
    %v719 = vadd.f32 %v623, %v705
    %v720 = vadd.f32 %v692, %v709
    %v721 = vadd.f32 %v694, %v713
    %v722 = vxor.u32 %v718, 2147483648
    %v723 = vxor.u32 %v719, 2147483648
    %v724 = vxor.u32 %v720, 2147483648
    %v725 = vmul.f32 %v722, 1.442695
    %v726 = vpow.pop %v725
    %v727 = vmul.f32 %v723, 1.442695
    %v728 = vpow.pop %v727
    %v729 = vmul.f32 %v724, 1.442695
    %v730 = vpow.pop %v729
    %v731 = vadd.f32 %v726, 1.0
    %v732 = vadd.f32 %v728, 1.0
    %v733 = vadd.f32 %v730, 1.0
    %v734 = vrcp.pop %v731
    %v735 = vmul.f32 1.0, %v734
    %v736 = vrcp.pop %v732
    %v737 = vmul.f32 1.0, %v736
    %v738 = vrcp.pop %v733
    %v739 = vmul.f32 1.0, %v738
    %v740 = vtanh.pop %v721
    %v741 = vmul.f32 %v737, %v45
    %v742 = vmul.f32 %v735, %v740
    %v743 = vadd.f32 %v741, %v742
    %v744 = vtanh.pop %v743
    %v745 = vmul.f32 %v739, %v744
    %746 = vst [vmem:[%s5] sm:$0xff] %v745
    %s747 = scalar_lea.vmem %s0, 32
    %v748 = vld [vmem:[%s747] sm:$0xff]
    %v749 = vld [vmem:[%s747 + $0x8] sm:$0xff]
    %v750 = vld [vmem:[%s747 + $0x10] sm:$0xff]
    %v751 = vld [vmem:[%s747 + $0x18] sm:$0xff]
    %v752 = vld [vmem:[%s1] sm:$0xff]
    %v753 = vld [vmem:[%s1 + $0x8] sm:$0xff]
    %v754 = vld [vmem:[%s1 + $0x10] sm:$0xff]
    %v755 = vld [vmem:[%s1 + $0x18] sm:$0xff]
    %v756 = vld [vmem:[%s1 + $0x20] sm:$0xff]
    %v757 = vld [vmem:[%s1 + $0x28] sm:$0xff]
    %v758 = vld [vmem:[%s1 + $0x30] sm:$0xff]
    %v759 = vld [vmem:[%s1 + $0x38] sm:$0xff]
    %v760 = vld [vmem:[%s1 + $0x40] sm:$0xff]
    %v761 = vld [vmem:[%s1 + $0x48] sm:$0xff]
    %v762 = vld [vmem:[%s1 + $0x50] sm:$0xff]
    %v763 = vld [vmem:[%s1 + $0x58] sm:$0xff]
    %v764 = vld [vmem:[%s1 + $0x60] sm:$0xff]
    %v765 = vld [vmem:[%s1 + $0x68] sm:$0xff]
    %v766 = vld [vmem:[%s1 + $0x70] sm:$0xff]
    %v767 = vld [vmem:[%s1 + $0x78] sm:$0xff]
    %v768 = vld [vmem:[%s1 + $0x80] sm:$0xff]
    %v769 = vld [vmem:[%s1 + $0x88] sm:$0xff]
    %v770 = vld [vmem:[%s1 + $0x90] sm:$0xff]
    %v771 = vld [vmem:[%s1 + $0x98] sm:$0xff]
    %v772 = vld [vmem:[%s1 + $0xa0] sm:$0xff]
    %v773 = vld [vmem:[%s1 + $0xa8] sm:$0xff]
    %v774 = vld [vmem:[%s1 + $0xb0] sm:$0xff]
    %v775 = vld [vmem:[%s1 + $0xb8] sm:$0xff]
    %v776 = vld [vmem:[%s1 + $0xc0] sm:$0xff]
    %v777 = vld [vmem:[%s1 + $0xc8] sm:$0xff]
    %v778 = vld [vmem:[%s1 + $0xd0] sm:$0xff]
    %v779 = vld [vmem:[%s1 + $0xd8] sm:$0xff]
    %v780 = vld [vmem:[%s1 + $0xe0] sm:$0xff]
    %v781 = vld [vmem:[%s1 + $0xe8] sm:$0xff]
    %v782 = vld [vmem:[%s1 + $0xf0] sm:$0xff]
    %v783 = vld [vmem:[%s1 + $0xf8] sm:$0xff]
    %v784 = vld [vmem:[%s1 + $0x100] sm:$0xff]
    %v785 = vld [vmem:[%s1 + $0x108] sm:$0xff]
    %v786 = vld [vmem:[%s1 + $0x110] sm:$0xff]
    %v787 = vld [vmem:[%s1 + $0x118] sm:$0xff]
    %v788 = vld [vmem:[%s1 + $0x120] sm:$0xff]
    %v789 = vld [vmem:[%s1 + $0x128] sm:$0xff]
    %v790 = vld [vmem:[%s1 + $0x130] sm:$0xff]
    %v791 = vld [vmem:[%s1 + $0x138] sm:$0xff]
    %v792 = vld [vmem:[%s1 + $0x140] sm:$0xff]
    %v793 = vld [vmem:[%s1 + $0x148] sm:$0xff]
    %v794 = vld [vmem:[%s1 + $0x150] sm:$0xff]
    %v795 = vld [vmem:[%s1 + $0x158] sm:$0xff]
    %v796 = vld [vmem:[%s1 + $0x160] sm:$0xff]
    %v797 = vld [vmem:[%s1 + $0x168] sm:$0xff]
    %v798 = vld [vmem:[%s1 + $0x170] sm:$0xff]
    %v799 = vld [vmem:[%s1 + $0x178] sm:$0xff]
    %v800 = vld [vmem:[%s1 + $0x180] sm:$0xff]
    %v801 = vld [vmem:[%s1 + $0x188] sm:$0xff]
    %v802 = vld [vmem:[%s1 + $0x190] sm:$0xff]
    %v803 = vld [vmem:[%s1 + $0x198] sm:$0xff]
    %v804 = vld [vmem:[%s1 + $0x1a0] sm:$0xff]
    %v805 = vld [vmem:[%s1 + $0x1a8] sm:$0xff]
    %v806 = vld [vmem:[%s1 + $0x1b0] sm:$0xff]
    %v807 = vld [vmem:[%s1 + $0x1b8] sm:$0xff]
    %v808 = vld [vmem:[%s1 + $0x1c0] sm:$0xff]
    %v809 = vld [vmem:[%s1 + $0x1c8] sm:$0xff]
    %v810 = vld [vmem:[%s1 + $0x1d0] sm:$0xff]
    %v811 = vld [vmem:[%s1 + $0x1d8] sm:$0xff]
    %v812 = vld [vmem:[%s1 + $0x1e0] sm:$0xff]
    %v813 = vld [vmem:[%s1 + $0x1e8] sm:$0xff]
    %v814 = vld [vmem:[%s1 + $0x1f0] sm:$0xff]
    %v815 = vld [vmem:[%s1 + $0x1f8] sm:$0xff]
    %816 = vmatprep.subr.mxu0 %v753
    %817 = vmatpush1.msra.mxu0 %v752
    %818 = vmatprep.subr.mxu0 %v757
    %819 = vmatpush1.msra.mxu0 %v756
    %820 = vmatprep.subr.mxu0 %v761
    %821 = vmatpush1.msra.mxu0 %v760
    %822 = vmatprep.subr.mxu0 %v765
    %823 = vmatpush1.msra.mxu0 %v764
    %824 = vmatprep.subr.mxu0 %v769
    %825 = vmatpush1.msra.mxu0 %v768
    %826 = vmatprep.subr.mxu0 %v773
    %827 = vmatpush1.msra.mxu0 %v772
    %828 = vmatprep.subr.mxu0 %v777
    %829 = vmatpush1.msra.mxu0 %v776
    %830 = vmatprep.subr.mxu0 %v781
    %831 = vmatpush1.msra.mxu0 %v780
    %832 = vmatprep.subr.mxu0 %v785
    %833 = vmatpush1.msra.mxu0 %v784
    %834 = vmatprep.subr.mxu0 %v789
    %835 = vmatpush1.msra.mxu0 %v788
    %836 = vmatprep.subr.mxu0 %v793
    %837 = vmatpush1.msra.mxu0 %v792
    %838 = vmatprep.subr.mxu0 %v797
    %839 = vmatpush1.msra.mxu0 %v796
    %840 = vmatprep.subr.mxu0 %v801
    %841 = vmatpush1.msra.mxu0 %v800
    %842 = vmatprep.subr.mxu0 %v805
    %843 = vmatpush1.msra.mxu0 %v804
    %844 = vmatprep.subr.mxu0 %v809
    %845 = vmatpush1.msra.mxu0 %v808
    %846 = vmatprep.subr.mxu0 %v813
    %847 = vmatpush1.msra.mxu0 %v812
    %848 = vmatprep.subr.mxu0 0.0
    %849 = vmatpush1.msra.mxu0 0.0
    %850 = vmatprep.subr.mxu0 0.0
    %851 = vmatpush1.msra.mxu0 0.0
    %852 = vmatprep.subr.mxu0 0.0
    %853 = vmatpush1.msra.mxu0 0.0
    %854 = vmatprep.subr.mxu0 0.0
    %855 = vmatpush1.msra.mxu0 0.0
    %856 = vmatprep.subr.mxu0 0.0
    %857 = vmatpush1.msra.mxu0 0.0
    %858 = vmatprep.subr.mxu0 0.0
    %859 = vmatpush1.msra.mxu0 0.0
    %860 = vmatprep.subr.mxu0 0.0
    %861 = vmatpush1.msra.mxu0 0.0
    %862 = vmatprep.subr.mxu0 0.0
    %863 = vmatpush1.msra.mxu0 0.0
    %864 = vmatprep.subr.mxu0 0.0
    %865 = vmatpush1.msra.mxu0 0.0
    %866 = vmatprep.subr.mxu0 0.0
    %867 = vmatpush1.msra.mxu0 0.0
    %868 = vmatprep.subr.mxu0 0.0
    %869 = vmatpush1.msra.mxu0 0.0
    %870 = vmatprep.subr.mxu0 0.0
    %871 = vmatpush1.msra.mxu0 0.0
    %872 = vmatprep.subr.mxu0 0.0
    %873 = vmatpush1.msra.mxu0 0.0
    %874 = vmatprep.subr.mxu0 0.0
    %875 = vmatpush1.msra.mxu0 0.0
    %876 = vmatprep.subr.mxu0 0.0
    %877 = vmatpush1.msra.mxu0 0.0
    %878 = vmatprep.subr.mxu0 0.0
    %879 = vmatpush1.msra.mxu0 0.0
    %880 = vmatprep.mubr.f32.mxu0 0.0
    %881 = vmatmul.mubr.f32.gmra.mrb[0].mxu0 %v283
    %v882 = vpop.f32.mrb[0].mxu0
    %v883 = vadd.f32 0.0, %v882
    %v884 = vpop.f32.mrb[0].mxu0
    %v885 = vadd.f32 0.0, %v884
    %886 = vdwg.mxu0
    %887 = vmatprep.subr.mxu0 %v755
    %888 = vmatpush1.msra.mxu0 %v754
    %889 = vmatprep.subr.mxu0 %v759
    %890 = vmatpush1.msra.mxu0 %v758
    %891 = vmatprep.subr.mxu0 %v763
    %892 = vmatpush1.msra.mxu0 %v762
    %893 = vmatprep.subr.mxu0 %v767
    %894 = vmatpush1.msra.mxu0 %v766
    %895 = vmatprep.subr.mxu0 %v771
    %896 = vmatpush1.msra.mxu0 %v770
    %897 = vmatprep.subr.mxu0 %v775
    %898 = vmatpush1.msra.mxu0 %v774
    %899 = vmatprep.subr.mxu0 %v779
    %900 = vmatpush1.msra.mxu0 %v778
    %901 = vmatprep.subr.mxu0 %v783
    %902 = vmatpush1.msra.mxu0 %v782
    %903 = vmatprep.subr.mxu0 %v787
    %904 = vmatpush1.msra.mxu0 %v786
    %905 = vmatprep.subr.mxu0 %v791
    %906 = vmatpush1.msra.mxu0 %v790
    %907 = vmatprep.subr.mxu0 %v795
    %908 = vmatpush1.msra.mxu0 %v794
    %909 = vmatprep.subr.mxu0 %v799
    %910 = vmatpush1.msra.mxu0 %v798
    %911 = vmatprep.subr.mxu0 %v803
    %912 = vmatpush1.msra.mxu0 %v802
    %913 = vmatprep.subr.mxu0 %v807
    %914 = vmatpush1.msra.mxu0 %v806
    %915 = vmatprep.subr.mxu0 %v811
    %916 = vmatpush1.msra.mxu0 %v810
    %917 = vmatprep.subr.mxu0 %v815
    %918 = vmatpush1.msra.mxu0 %v814
    %919 = vmatprep.subr.mxu0 0.0
    %920 = vmatpush1.msra.mxu0 0.0
    %921 = vmatprep.subr.mxu0 0.0
    %922 = vmatpush1.msra.mxu0 0.0
    %923 = vmatprep.subr.mxu0 0.0
    %924 = vmatpush1.msra.mxu0 0.0
    %925 = vmatprep.subr.mxu0 0.0
    %926 = vmatpush1.msra.mxu0 0.0
    %927 = vmatprep.subr.mxu0 0.0
    %928 = vmatpush1.msra.mxu0 0.0
    %929 = vmatprep.subr.mxu0 0.0
    %930 = vmatpush1.msra.mxu0 0.0
    %931 = vmatprep.subr.mxu0 0.0
    %932 = vmatpush1.msra.mxu0 0.0
    %933 = vmatprep.subr.mxu0 0.0
    %934 = vmatpush1.msra.mxu0 0.0
    %935 = vmatprep.subr.mxu0 0.0
    %936 = vmatpush1.msra.mxu0 0.0
    %937 = vmatprep.subr.mxu0 0.0
    %938 = vmatpush1.msra.mxu0 0.0
    %939 = vmatprep.subr.mxu0 0.0
    %940 = vmatpush1.msra.mxu0 0.0
    %941 = vmatprep.subr.mxu0 0.0
    %942 = vmatpush1.msra.mxu0 0.0
    %943 = vmatprep.subr.mxu0 0.0
    %944 = vmatpush1.msra.mxu0 0.0
    %945 = vmatprep.subr.mxu0 0.0
    %946 = vmatpush1.msra.mxu0 0.0
    %947 = vmatprep.subr.mxu0 0.0
    %948 = vmatpush1.msra.mxu0 0.0
    %949 = vmatprep.subr.mxu0 0.0
    %950 = vmatpush1.msra.mxu0 0.0
    %951 = vmatprep.mubr.f32.mxu0 0.0
    %952 = vmatmul.mubr.f32.gmra.mrb[0].mxu0 %v283
    %v953 = vpop.f32.mrb[0].mxu0
    %v954 = vadd.f32 0.0, %v953
    %v955 = vpop.f32.mrb[0].mxu0
    %v956 = vadd.f32 0.0, %v955
    %957 = vdwg.mxu0
    %v958 = vadd.f32 %v748, %v883
    %v959 = vadd.f32 %v749, %v885
    %v960 = vadd.f32 %v750, %v954
    %v961 = vadd.f32 %v751, %v956
    %v962 = vxor.u32 %v958, 2147483648
    %v963 = vxor.u32 %v959, 2147483648
    %v964 = vxor.u32 %v960, 2147483648
    %v965 = vmul.f32 %v962, 1.442695
    %v966 = vpow.pop %v965
    %v967 = vmul.f32 %v963, 1.442695
    %v968 = vpow.pop %v967
    %v969 = vmul.f32 %v964, 1.442695
    %v970 = vpow.pop %v969
    %v971 = vadd.f32 %v966, 1.0
    %v972 = vadd.f32 %v968, 1.0
    %v973 = vadd.f32 %v970, 1.0
    %v974 = vrcp.pop %v971
    %v975 = vmul.f32 1.0, %v974
    %v976 = vrcp.pop %v972
    %v977 = vmul.f32 1.0, %v976
    %v978 = vrcp.pop %v973
    %v979 = vmul.f32 1.0, %v978
    %v980 = vtanh.pop %v961
    %v981 = vmul.f32 %v977, %v281
    %v982 = vmul.f32 %v975, %v980
    %v983 = vadd.f32 %v981, %v982
    %v984 = vtanh.pop %v983
    %v985 = vmul.f32 %v979, %v984
    %v986 = vld [vmem:[%s2] sm:$0xff]
    %v987 = vld [vmem:[%s2 + $0x8] sm:$0xff]
    %v988 = vld [vmem:[%s2 + $0x10] sm:$0xff]
    %v989 = vld [vmem:[%s2 + $0x18] sm:$0xff]
    %v990 = vld [vmem:[%s2 + $0x20] sm:$0xff]
    %v991 = vld [vmem:[%s2 + $0x28] sm:$0xff]
    %v992 = vld [vmem:[%s2 + $0x30] sm:$0xff]
    %v993 = vld [vmem:[%s2 + $0x38] sm:$0xff]
    %v994 = vld [vmem:[%s2 + $0x40] sm:$0xff]
    %v995 = vld [vmem:[%s2 + $0x48] sm:$0xff]
    %v996 = vld [vmem:[%s2 + $0x50] sm:$0xff]
    %v997 = vld [vmem:[%s2 + $0x58] sm:$0xff]
    %v998 = vld [vmem:[%s2 + $0x60] sm:$0xff]
    %v999 = vld [vmem:[%s2 + $0x68] sm:$0xff]
    %v1000 = vld [vmem:[%s2 + $0x70] sm:$0xff]
    %v1001 = vld [vmem:[%s2 + $0x78] sm:$0xff]
    %v1002 = vld [vmem:[%s2 + $0x80] sm:$0xff]
    %v1003 = vld [vmem:[%s2 + $0x88] sm:$0xff]
    %v1004 = vld [vmem:[%s2 + $0x90] sm:$0xff]
    %v1005 = vld [vmem:[%s2 + $0x98] sm:$0xff]
    %v1006 = vld [vmem:[%s2 + $0xa0] sm:$0xff]
    %v1007 = vld [vmem:[%s2 + $0xa8] sm:$0xff]
    %v1008 = vld [vmem:[%s2 + $0xb0] sm:$0xff]
    %v1009 = vld [vmem:[%s2 + $0xb8] sm:$0xff]
    %v1010 = vld [vmem:[%s2 + $0xc0] sm:$0xff]
    %v1011 = vld [vmem:[%s2 + $0xc8] sm:$0xff]
    %v1012 = vld [vmem:[%s2 + $0xd0] sm:$0xff]
    %v1013 = vld [vmem:[%s2 + $0xd8] sm:$0xff]
    %v1014 = vld [vmem:[%s2 + $0xe0] sm:$0xff]
    %v1015 = vld [vmem:[%s2 + $0xe8] sm:$0xff]
    %v1016 = vld [vmem:[%s2 + $0xf0] sm:$0xff]
    %v1017 = vld [vmem:[%s2 + $0xf8] sm:$0xff]
    %v1018 = vld [vmem:[%s2 + $0x100] sm:$0xff]
    %v1019 = vld [vmem:[%s2 + $0x108] sm:$0xff]
    %v1020 = vld [vmem:[%s2 + $0x110] sm:$0xff]
    %v1021 = vld [vmem:[%s2 + $0x118] sm:$0xff]
    %v1022 = vld [vmem:[%s2 + $0x120] sm:$0xff]
    %v1023 = vld [vmem:[%s2 + $0x128] sm:$0xff]
    %v1024 = vld [vmem:[%s2 + $0x130] sm:$0xff]
    %v1025 = vld [vmem:[%s2 + $0x138] sm:$0xff]
    %v1026 = vld [vmem:[%s2 + $0x140] sm:$0xff]
    %v1027 = vld [vmem:[%s2 + $0x148] sm:$0xff]
    %v1028 = vld [vmem:[%s2 + $0x150] sm:$0xff]
    %v1029 = vld [vmem:[%s2 + $0x158] sm:$0xff]
    %v1030 = vld [vmem:[%s2 + $0x160] sm:$0xff]
    %v1031 = vld [vmem:[%s2 + $0x168] sm:$0xff]
    %v1032 = vld [vmem:[%s2 + $0x170] sm:$0xff]
    %v1033 = vld [vmem:[%s2 + $0x178] sm:$0xff]
    %v1034 = vld [vmem:[%s2 + $0x180] sm:$0xff]
    %v1035 = vld [vmem:[%s2 + $0x188] sm:$0xff]
    %v1036 = vld [vmem:[%s2 + $0x190] sm:$0xff]
    %v1037 = vld [vmem:[%s2 + $0x198] sm:$0xff]
    %v1038 = vld [vmem:[%s2 + $0x1a0] sm:$0xff]
    %v1039 = vld [vmem:[%s2 + $0x1a8] sm:$0xff]
    %v1040 = vld [vmem:[%s2 + $0x1b0] sm:$0xff]
    %v1041 = vld [vmem:[%s2 + $0x1b8] sm:$0xff]
    %v1042 = vld [vmem:[%s2 + $0x1c0] sm:$0xff]
    %v1043 = vld [vmem:[%s2 + $0x1c8] sm:$0xff]
    %v1044 = vld [vmem:[%s2 + $0x1d0] sm:$0xff]
    %v1045 = vld [vmem:[%s2 + $0x1d8] sm:$0xff]
    %v1046 = vld [vmem:[%s2 + $0x1e0] sm:$0xff]
    %v1047 = vld [vmem:[%s2 + $0x1e8] sm:$0xff]
    %v1048 = vld [vmem:[%s2 + $0x1f0] sm:$0xff]
    %v1049 = vld [vmem:[%s2 + $0x1f8] sm:$0xff]
    %v1050 = vld [vmem:[#allocation6] sm:$0xff]
    %v1051 = vld [vmem:[#allocation6 + $0x8] sm:$0xff]
    %v1052 = vld [vmem:[#allocation6 + $0x10] sm:$0xff]
    %v1053 = vld [vmem:[#allocation6 + $0x18] sm:$0xff]
    %v1054 = vld [vmem:[#allocation6 + $0x20] sm:$0xff]
    %v1055 = vld [vmem:[#allocation6 + $0x28] sm:$0xff]
    %v1056 = vld [vmem:[#allocation6 + $0x30] sm:$0xff]
    %v1057 = vld [vmem:[#allocation6 + $0x38] sm:$0xff]
    %v1058 = vld [vmem:[#allocation6 + $0x40] sm:$0xff]
    %v1059 = vld [vmem:[#allocation6 + $0x48] sm:$0xff]
    %v1060 = vld [vmem:[#allocation6 + $0x50] sm:$0xff]
    %v1061 = vld [vmem:[#allocation6 + $0x58] sm:$0xff]
    %v1062 = vld [vmem:[#allocation6 + $0x60] sm:$0xff]
    %v1063 = vld [vmem:[#allocation6 + $0x68] sm:$0xff]
    %v1064 = vld [vmem:[#allocation6 + $0x70] sm:$0xff]
    %v1065 = vld [vmem:[#allocation6 + $0x78] sm:$0xff]
    %v1066 = vld [vmem:[#allocation6 + $0x80] sm:$0xff]
    %v1067 = vld [vmem:[#allocation6 + $0x88] sm:$0xff]
    %v1068 = vld [vmem:[#allocation6 + $0x90] sm:$0xff]
    %v1069 = vld [vmem:[#allocation6 + $0x98] sm:$0xff]
    %v1070 = vld [vmem:[#allocation6 + $0xa0] sm:$0xff]
    %v1071 = vld [vmem:[#allocation6 + $0xa8] sm:$0xff]
    %v1072 = vld [vmem:[#allocation6 + $0xb0] sm:$0xff]
    %v1073 = vld [vmem:[#allocation6 + $0xb8] sm:$0xff]
    %v1074 = vld [vmem:[#allocation6 + $0xc0] sm:$0xff]
    %v1075 = vld [vmem:[#allocation6 + $0xc8] sm:$0xff]
    %v1076 = vld [vmem:[#allocation6 + $0xd0] sm:$0xff]
    %v1077 = vld [vmem:[#allocation6 + $0xd8] sm:$0xff]
    %v1078 = vld [vmem:[#allocation6 + $0xe0] sm:$0xff]
    %v1079 = vld [vmem:[#allocation6 + $0xe8] sm:$0xff]
    %v1080 = vld [vmem:[#allocation6 + $0xf0] sm:$0xff]
    %v1081 = vld [vmem:[#allocation6 + $0xf8] sm:$0xff]
    %v1082 = vld [vmem:[#allocation6 + $0x100] sm:$0xff]
    %v1083 = vld [vmem:[#allocation6 + $0x108] sm:$0xff]
    %v1084 = vld [vmem:[#allocation6 + $0x110] sm:$0xff]
    %v1085 = vld [vmem:[#allocation6 + $0x118] sm:$0xff]
    %v1086 = vld [vmem:[#allocation6 + $0x120] sm:$0xff]
    %v1087 = vld [vmem:[#allocation6 + $0x128] sm:$0xff]
    %v1088 = vld [vmem:[#allocation6 + $0x130] sm:$0xff]
    %v1089 = vld [vmem:[#allocation6 + $0x138] sm:$0xff]
    %v1090 = vld [vmem:[#allocation6 + $0x140] sm:$0xff]
    %v1091 = vld [vmem:[#allocation6 + $0x148] sm:$0xff]
    %v1092 = vld [vmem:[#allocation6 + $0x150] sm:$0xff]
    %v1093 = vld [vmem:[#allocation6 + $0x158] sm:$0xff]
    %v1094 = vld [vmem:[#allocation6 + $0x160] sm:$0xff]
    %v1095 = vld [vmem:[#allocation6 + $0x168] sm:$0xff]
    %v1096 = vld [vmem:[#allocation6 + $0x170] sm:$0xff]
    %v1097 = vld [vmem:[#allocation6 + $0x178] sm:$0xff]
    %v1098 = vld [vmem:[#allocation6 + $0x180] sm:$0xff]
    %v1099 = vld [vmem:[#allocation6 + $0x188] sm:$0xff]
    %v1100 = vld [vmem:[#allocation6 + $0x190] sm:$0xff]
    %v1101 = vld [vmem:[#allocation6 + $0x198] sm:$0xff]
    %v1102 = vld [vmem:[#allocation6 + $0x1a0] sm:$0xff]
    %v1103 = vld [vmem:[#allocation6 + $0x1a8] sm:$0xff]
    %v1104 = vld [vmem:[#allocation6 + $0x1b0] sm:$0xff]
    %v1105 = vld [vmem:[#allocation6 + $0x1b8] sm:$0xff]
    %v1106 = vld [vmem:[#allocation6 + $0x1c0] sm:$0xff]
    %v1107 = vld [vmem:[#allocation6 + $0x1c8] sm:$0xff]
    %v1108 = vld [vmem:[#allocation6 + $0x1d0] sm:$0xff]
    %v1109 = vld [vmem:[#allocation6 + $0x1d8] sm:$0xff]
    %v1110 = vld [vmem:[#allocation6 + $0x1e0] sm:$0xff]
    %v1111 = vld [vmem:[#allocation6 + $0x1e8] sm:$0xff]
    %v1112 = vld [vmem:[#allocation6 + $0x1f0] sm:$0xff]
    %v1113 = vld [vmem:[#allocation6 + $0x1f8] sm:$0xff]
    %1114 = vmatprep.subr.mxu0 %v1051
    %1115 = vmatpush1.msra.mxu0 %v1050
    %1116 = vmatprep.subr.mxu0 %v1055
    %1117 = vmatpush1.msra.mxu0 %v1054
    %1118 = vmatprep.subr.mxu0 %v1059
    %1119 = vmatpush1.msra.mxu0 %v1058
    %1120 = vmatprep.subr.mxu0 %v1063
    %1121 = vmatpush1.msra.mxu0 %v1062
    %1122 = vmatprep.subr.mxu0 %v1067
    %1123 = vmatpush1.msra.mxu0 %v1066
    %1124 = vmatprep.subr.mxu0 %v1071
    %1125 = vmatpush1.msra.mxu0 %v1070
    %1126 = vmatprep.subr.mxu0 %v1075
    %1127 = vmatpush1.msra.mxu0 %v1074
    %1128 = vmatprep.subr.mxu0 %v1079
    %1129 = vmatpush1.msra.mxu0 %v1078
    %1130 = vmatprep.subr.mxu0 %v1083
    %1131 = vmatpush1.msra.mxu0 %v1082
    %1132 = vmatprep.subr.mxu0 %v1087
    %1133 = vmatpush1.msra.mxu0 %v1086
    %1134 = vmatprep.subr.mxu0 %v1091
    %1135 = vmatpush1.msra.mxu0 %v1090
    %1136 = vmatprep.subr.mxu0 %v1095
    %1137 = vmatpush1.msra.mxu0 %v1094
    %1138 = vmatprep.subr.mxu0 %v1099
    %1139 = vmatpush1.msra.mxu0 %v1098
    %1140 = vmatprep.subr.mxu0 %v1103
    %1141 = vmatpush1.msra.mxu0 %v1102
    %1142 = vmatprep.subr.mxu0 %v1107
    %1143 = vmatpush1.msra.mxu0 %v1106
    %1144 = vmatprep.subr.mxu0 %v1111
    %1145 = vmatpush1.msra.mxu0 %v1110
    %1146 = vmatprep.subr.mxu0 0.0
    %1147 = vmatpush1.msra.mxu0 0.0
    %1148 = vmatprep.subr.mxu0 0.0
    %1149 = vmatpush1.msra.mxu0 0.0
    %1150 = vmatprep.subr.mxu0 0.0
    %1151 = vmatpush1.msra.mxu0 0.0
    %1152 = vmatprep.subr.mxu0 0.0
    %1153 = vmatpush1.msra.mxu0 0.0
    %1154 = vmatprep.subr.mxu0 0.0
    %1155 = vmatpush1.msra.mxu0 0.0
    %1156 = vmatprep.subr.mxu0 0.0
    %1157 = vmatpush1.msra.mxu0 0.0
    %1158 = vmatprep.subr.mxu0 0.0
    %1159 = vmatpush1.msra.mxu0 0.0
    %1160 = vmatprep.subr.mxu0 0.0
    %1161 = vmatpush1.msra.mxu0 0.0
    %1162 = vmatprep.subr.mxu0 0.0
    %1163 = vmatpush1.msra.mxu0 0.0
    %1164 = vmatprep.subr.mxu0 0.0
    %1165 = vmatpush1.msra.mxu0 0.0
    %1166 = vmatprep.subr.mxu0 0.0
    %1167 = vmatpush1.msra.mxu0 0.0
    %1168 = vmatprep.subr.mxu0 0.0
    %1169 = vmatpush1.msra.mxu0 0.0
    %1170 = vmatprep.subr.mxu0 0.0
    %1171 = vmatpush1.msra.mxu0 0.0
    %1172 = vmatprep.subr.mxu0 0.0
    %1173 = vmatpush1.msra.mxu0 0.0
    %1174 = vmatprep.subr.mxu0 0.0
    %1175 = vmatpush1.msra.mxu0 0.0
    %1176 = vmatprep.subr.mxu0 0.0
    %1177 = vmatpush1.msra.mxu0 0.0
    %1178 = vmatprep.mubr.f32.mxu0 0.0
    %1179 = vmatmul.mubr.f32.gmra.mrb[0].mxu0 %v745
    %v1180 = vpop.f32.mrb[0].mxu0
    %v1181 = vadd.f32 0.0, %v1180
    %v1182 = vpop.f32.mrb[0].mxu0
    %v1183 = vadd.f32 0.0, %v1182
    %1184 = vdwg.mxu0
    %1185 = vmatprep.subr.mxu0 %v1053
    %1186 = vmatpush1.msra.mxu0 %v1052
    %1187 = vmatprep.subr.mxu0 %v1057
    %1188 = vmatpush1.msra.mxu0 %v1056
    %1189 = vmatprep.subr.mxu0 %v1061
    %1190 = vmatpush1.msra.mxu0 %v1060
    %1191 = vmatprep.subr.mxu0 %v1065
    %1192 = vmatpush1.msra.mxu0 %v1064
    %1193 = vmatprep.subr.mxu0 %v1069
    %1194 = vmatpush1.msra.mxu0 %v1068
    %1195 = vmatprep.subr.mxu0 %v1073
    %1196 = vmatpush1.msra.mxu0 %v1072
    %1197 = vmatprep.subr.mxu0 %v1077
    %1198 = vmatpush1.msra.mxu0 %v1076
    %1199 = vmatprep.subr.mxu0 %v1081
    %1200 = vmatpush1.msra.mxu0 %v1080
    %1201 = vmatprep.subr.mxu0 %v1085
    %1202 = vmatpush1.msra.mxu0 %v1084
    %1203 = vmatprep.subr.mxu0 %v1089
    %1204 = vmatpush1.msra.mxu0 %v1088
    %1205 = vmatprep.subr.mxu0 %v1093
    %1206 = vmatpush1.msra.mxu0 %v1092
    %1207 = vmatprep.subr.mxu0 %v1097
    %1208 = vmatpush1.msra.mxu0 %v1096
    %1209 = vmatprep.subr.mxu0 %v1101
    %1210 = vmatpush1.msra.mxu0 %v1100
    %1211 = vmatprep.subr.mxu0 %v1105
    %1212 = vmatpush1.msra.mxu0 %v1104
    %1213 = vmatprep.subr.mxu0 %v1109
    %1214 = vmatpush1.msra.mxu0 %v1108
    %1215 = vmatprep.subr.mxu0 %v1113
    %1216 = vmatpush1.msra.mxu0 %v1112
    %1217 = vmatprep.subr.mxu0 0.0
    %1218 = vmatpush1.msra.mxu0 0.0
    %1219 = vmatprep.subr.mxu0 0.0
    %1220 = vmatpush1.msra.mxu0 0.0
    %1221 = vmatprep.subr.mxu0 0.0
    %1222 = vmatpush1.msra.mxu0 0.0
    %1223 = vmatprep.subr.mxu0 0.0
    %1224 = vmatpush1.msra.mxu0 0.0
    %1225 = vmatprep.subr.mxu0 0.0
    %1226 = vmatpush1.msra.mxu0 0.0
    %1227 = vmatprep.subr.mxu0 0.0
    %1228 = vmatpush1.msra.mxu0 0.0
    %1229 = vmatprep.subr.mxu0 0.0
    %1230 = vmatpush1.msra.mxu0 0.0
    %1231 = vmatprep.subr.mxu0 0.0
    %1232 = vmatpush1.msra.mxu0 0.0
    %1233 = vmatprep.subr.mxu0 0.0
    %1234 = vmatpush1.msra.mxu0 0.0
    %1235 = vmatprep.subr.mxu0 0.0
    %1236 = vmatpush1.msra.mxu0 0.0
    %1237 = vmatprep.subr.mxu0 0.0
    %1238 = vmatpush1.msra.mxu0 0.0
    %1239 = vmatprep.subr.mxu0 0.0
    %1240 = vmatpush1.msra.mxu0 0.0
    %1241 = vmatprep.subr.mxu0 0.0
    %1242 = vmatpush1.msra.mxu0 0.0
    %1243 = vmatprep.subr.mxu0 0.0
    %1244 = vmatpush1.msra.mxu0 0.0
    %1245 = vmatprep.subr.mxu0 0.0
    %1246 = vmatpush1.msra.mxu0 0.0
    %1247 = vmatprep.subr.mxu0 0.0
    %1248 = vmatpush1.msra.mxu0 0.0
    %1249 = vmatprep.mubr.f32.mxu0 0.0
    %1250 = vmatmul.mubr.f32.gmra.mrb[0].mxu0 %v745
    %v1251 = vpop.f32.mrb[0].mxu0
    %v1252 = vadd.f32 0.0, %v1251
    %v1253 = vpop.f32.mrb[0].mxu0
    %v1254 = vadd.f32 0.0, %v1253
    %1255 = vdwg.mxu0
    %1256 = vmatprep.subr.mxu0 %v987
    %1257 = vmatpush1.msra.mxu0 %v986
    %1258 = vmatprep.subr.mxu0 %v991
    %1259 = vmatpush1.msra.mxu0 %v990
    %1260 = vmatprep.subr.mxu0 %v995
    %1261 = vmatpush1.msra.mxu0 %v994
    %1262 = vmatprep.subr.mxu0 %v999
    %1263 = vmatpush1.msra.mxu0 %v998
    %1264 = vmatprep.subr.mxu0 %v1003
    %1265 = vmatpush1.msra.mxu0 %v1002
    %1266 = vmatprep.subr.mxu0 %v1007
    %1267 = vmatpush1.msra.mxu0 %v1006
    %1268 = vmatprep.subr.mxu0 %v1011
    %1269 = vmatpush1.msra.mxu0 %v1010
    %1270 = vmatprep.subr.mxu0 %v1015
    %1271 = vmatpush1.msra.mxu0 %v1014
    %1272 = vmatprep.subr.mxu0 %v1019
    %1273 = vmatpush1.msra.mxu0 %v1018
    %1274 = vmatprep.subr.mxu0 %v1023
    %1275 = vmatpush1.msra.mxu0 %v1022
    %1276 = vmatprep.subr.mxu0 %v1027
    %1277 = vmatpush1.msra.mxu0 %v1026
    %1278 = vmatprep.subr.mxu0 %v1031
    %1279 = vmatpush1.msra.mxu0 %v1030
    %1280 = vmatprep.subr.mxu0 %v1035
    %1281 = vmatpush1.msra.mxu0 %v1034
    %1282 = vmatprep.subr.mxu0 %v1039
    %1283 = vmatpush1.msra.mxu0 %v1038
    %1284 = vmatprep.subr.mxu0 %v1043
    %1285 = vmatpush1.msra.mxu0 %v1042
    %1286 = vmatprep.subr.mxu0 %v1047
    %1287 = vmatpush1.msra.mxu0 %v1046
    %1288 = vmatprep.subr.mxu0 0.0
    %1289 = vmatpush1.msra.mxu0 0.0
    %1290 = vmatprep.subr.mxu0 0.0
    %1291 = vmatpush1.msra.mxu0 0.0
    %1292 = vmatprep.subr.mxu0 0.0
    %1293 = vmatpush1.msra.mxu0 0.0
    %1294 = vmatprep.subr.mxu0 0.0
    %1295 = vmatpush1.msra.mxu0 0.0
    %1296 = vmatprep.subr.mxu0 0.0
    %1297 = vmatpush1.msra.mxu0 0.0
    %1298 = vmatprep.subr.mxu0 0.0
    %1299 = vmatpush1.msra.mxu0 0.0
    %1300 = vmatprep.subr.mxu0 0.0
    %1301 = vmatpush1.msra.mxu0 0.0
    %1302 = vmatprep.subr.mxu0 0.0
    %1303 = vmatpush1.msra.mxu0 0.0
    %1304 = vmatprep.subr.mxu0 0.0
    %1305 = vmatpush1.msra.mxu0 0.0
    %1306 = vmatprep.subr.mxu0 0.0
    %1307 = vmatpush1.msra.mxu0 0.0
    %1308 = vmatprep.subr.mxu0 0.0
    %1309 = vmatpush1.msra.mxu0 0.0
    %1310 = vmatprep.subr.mxu0 0.0
    %1311 = vmatpush1.msra.mxu0 0.0
    %1312 = vmatprep.subr.mxu0 0.0
    %1313 = vmatpush1.msra.mxu0 0.0
    %1314 = vmatprep.subr.mxu0 0.0
    %1315 = vmatpush1.msra.mxu0 0.0
    %1316 = vmatprep.subr.mxu0 0.0
    %1317 = vmatpush1.msra.mxu0 0.0
    %1318 = vmatprep.subr.mxu0 0.0
    %1319 = vmatpush1.msra.mxu0 0.0
    %1320 = vmatprep.mubr.f32.mxu0 0.0
    %1321 = vmatmul.mubr.f32.gmra.mrb[0].mxu0 %v985
    %v1322 = vpop.f32.mrb[0].mxu0
    %v1323 = vadd.f32 %v1181, %v1322
    %v1324 = vpop.f32.mrb[0].mxu0
    %v1325 = vadd.f32 %v1183, %v1324
    %1326 = vdwg.mxu0
    %1327 = vmatprep.subr.mxu0 %v989
    %1328 = vmatpush1.msra.mxu0 %v988
    %1329 = vmatprep.subr.mxu0 %v993
    %1330 = vmatpush1.msra.mxu0 %v992
    %1331 = vmatprep.subr.mxu0 %v997
    %1332 = vmatpush1.msra.mxu0 %v996
    %1333 = vmatprep.subr.mxu0 %v1001
    %1334 = vmatpush1.msra.mxu0 %v1000
    %1335 = vmatprep.subr.mxu0 %v1005
    %1336 = vmatpush1.msra.mxu0 %v1004
    %1337 = vmatprep.subr.mxu0 %v1009
    %1338 = vmatpush1.msra.mxu0 %v1008
    %1339 = vmatprep.subr.mxu0 %v1013
    %1340 = vmatpush1.msra.mxu0 %v1012
    %1341 = vmatprep.subr.mxu0 %v1017
    %1342 = vmatpush1.msra.mxu0 %v1016
    %1343 = vmatprep.subr.mxu0 %v1021
    %1344 = vmatpush1.msra.mxu0 %v1020
    %1345 = vmatprep.subr.mxu0 %v1025
    %1346 = vmatpush1.msra.mxu0 %v1024
    %1347 = vmatprep.subr.mxu0 %v1029
    %1348 = vmatpush1.msra.mxu0 %v1028
    %1349 = vmatprep.subr.mxu0 %v1033
    %1350 = vmatpush1.msra.mxu0 %v1032
    %1351 = vmatprep.subr.mxu0 %v1037
    %1352 = vmatpush1.msra.mxu0 %v1036
    %1353 = vmatprep.subr.mxu0 %v1041
    %1354 = vmatpush1.msra.mxu0 %v1040
    %1355 = vmatprep.subr.mxu0 %v1045
    %1356 = vmatpush1.msra.mxu0 %v1044
    %1357 = vmatprep.subr.mxu0 %v1049
    %1358 = vmatpush1.msra.mxu0 %v1048
    %1359 = vmatprep.subr.mxu0 0.0
    %1360 = vmatpush1.msra.mxu0 0.0
    %1361 = vmatprep.subr.mxu0 0.0
    %1362 = vmatpush1.msra.mxu0 0.0
    %1363 = vmatprep.subr.mxu0 0.0
    %1364 = vmatpush1.msra.mxu0 0.0
    %1365 = vmatprep.subr.mxu0 0.0
    %1366 = vmatpush1.msra.mxu0 0.0
    %1367 = vmatprep.subr.mxu0 0.0
    %1368 = vmatpush1.msra.mxu0 0.0
    %1369 = vmatprep.subr.mxu0 0.0
    %1370 = vmatpush1.msra.mxu0 0.0
    %1371 = vmatprep.subr.mxu0 0.0
    %1372 = vmatpush1.msra.mxu0 0.0
    %1373 = vmatprep.subr.mxu0 0.0
    %1374 = vmatpush1.msra.mxu0 0.0
    %1375 = vmatprep.subr.mxu0 0.0
    %1376 = vmatpush1.msra.mxu0 0.0
    %1377 = vmatprep.subr.mxu0 0.0
    %1378 = vmatpush1.msra.mxu0 0.0
    %1379 = vmatprep.subr.mxu0 0.0
    %1380 = vmatpush1.msra.mxu0 0.0
    %1381 = vmatprep.subr.mxu0 0.0
    %1382 = vmatpush1.msra.mxu0 0.0
    %1383 = vmatprep.subr.mxu0 0.0
    %1384 = vmatpush1.msra.mxu0 0.0
    %1385 = vmatprep.subr.mxu0 0.0
    %1386 = vmatpush1.msra.mxu0 0.0
    %1387 = vmatprep.subr.mxu0 0.0
    %1388 = vmatpush1.msra.mxu0 0.0
    %1389 = vmatprep.subr.mxu0 0.0
    %1390 = vmatpush1.msra.mxu0 0.0
    %1391 = vmatprep.mubr.f32.mxu0 0.0
    %1392 = vmatmul.mubr.f32.gmra.mrb[0].mxu0 %v985
    %v1393 = vpop.f32.mrb[0].mxu0
    %v1394 = vadd.f32 %v1252, %v1393
    %v1395 = vpop.f32.mrb[0].mxu0
    %v1396 = vadd.f32 %v1254, %v1395
    %1397 = vdwg.mxu0
    %v1398 = vld [vmem:[%s4] sm:$0xf]
    %v1400 = vlaneseq
    %v1401 = vshrl.u32 %v1400, 7
    %v1402 = vsub.s32 0, %v1401
    %v1403 = vrot.slane %v1398, %v1402
    %v1404 = vlaneseq
    %v1405 = vshrl.u32 %v1404, 7
    %v1406 = vsub.s32 1, %v1405
    %v1407 = vrot.slane %v1398, %v1406
    %v1408 = vlaneseq
    %v1409 = vshrl.u32 %v1408, 7
    %v1410 = vsub.s32 2, %v1409
    %v1411 = vrot.slane %v1398, %v1410
    %v1412 = vlaneseq
    %v1413 = vshrl.u32 %v1412, 7
    %v1414 = vsub.s32 3, %v1413
    %v1415 = vrot.slane %v1398, %v1414
    %v1420 = vadd.f32 %v1323, %v1403
    %v1421 = vadd.f32 %v1325, %v1407
    %v1422 = vadd.f32 %v1394, %v1411
    %v1423 = vadd.f32 %v1396, %v1415
    %v1424 = vxor.u32 %v1420, 2147483648
    %v1425 = vxor.u32 %v1421, 2147483648
    %v1426 = vxor.u32 %v1422, 2147483648
    %v1427 = vmul.f32 %v1424, 1.442695
    %v1428 = vpow.pop %v1427
    %v1429 = vmul.f32 %v1425, 1.442695
    %v1430 = vpow.pop %v1429
    %v1431 = vmul.f32 %v1426, 1.442695
    %v1432 = vpow.pop %v1431
    %v1433 = vadd.f32 %v1428, 1.0
    %v1434 = vadd.f32 %v1430, 1.0
    %v1435 = vadd.f32 %v1432, 1.0
    %v1436 = vrcp.pop %v1433
    %v1437 = vmul.f32 1.0, %v1436
    %v1438 = vrcp.pop %v1434
    %v1439 = vmul.f32 1.0, %v1438
    %v1440 = vrcp.pop %v1435
    %v1441 = vmul.f32 1.0, %v1440
    %v1442 = vtanh.pop %v1423
    %v1443 = vmul.f32 %v1439, %v743
    %v1444 = vmul.f32 %v1437, %v1442
    %v1445 = vadd.f32 %v1443, %v1444
    %v1446 = vtanh.pop %v1445
    %v1447 = vmul.f32 %v1441, %v1446
    %s1448 = scalar_lea.vmem %s5, 8
    %1449 = vst [vmem:[%s1448] sm:$0xff] %v1447
    %s1450 = scalar_lea.vmem %s0, 64
    %v1451 = vld [vmem:[%s1450] sm:$0xff]
    %v1452 = vld [vmem:[%s1450 + $0x8] sm:$0xff]
    %v1453 = vld [vmem:[%s1450 + $0x10] sm:$0xff]
    %v1454 = vld [vmem:[%s1450 + $0x18] sm:$0xff]
    %v1455 = vld [vmem:[%s1] sm:$0xff]
    %v1456 = vld [vmem:[%s1 + $0x8] sm:$0xff]
    %v1457 = vld [vmem:[%s1 + $0x10] sm:$0xff]
    %v1458 = vld [vmem:[%s1 + $0x18] sm:$0xff]
    %v1459 = vld [vmem:[%s1 + $0x20] sm:$0xff]
    %v1460 = vld [vmem:[%s1 + $0x28] sm:$0xff]
    %v1461 = vld [vmem:[%s1 + $0x30] sm:$0xff]
    %v1462 = vld [vmem:[%s1 + $0x38] sm:$0xff]
    %v1463 = vld [vmem:[%s1 + $0x40] sm:$0xff]
    %v1464 = vld [vmem:[%s1 + $0x48] sm:$0xff]
    %v1465 = vld [vmem:[%s1 + $0x50] sm:$0xff]
    %v1466 = vld [vmem:[%s1 + $0x58] sm:$0xff]
    %v1467 = vld [vmem:[%s1 + $0x60] sm:$0xff]
    %v1468 = vld [vmem:[%s1 + $0x68] sm:$0xff]
    %v1469 = vld [vmem:[%s1 + $0x70] sm:$0xff]
    %v1470 = vld [vmem:[%s1 + $0x78] sm:$0xff]
    %v1471 = vld [vmem:[%s1 + $0x80] sm:$0xff]
    %v1472 = vld [vmem:[%s1 + $0x88] sm:$0xff]
    %v1473 = vld [vmem:[%s1 + $0x90] sm:$0xff]
    %v1474 = vld [vmem:[%s1 + $0x98] sm:$0xff]
    %v1475 = vld [vmem:[%s1 + $0xa0] sm:$0xff]
    %v1476 = vld [vmem:[%s1 + $0xa8] sm:$0xff]
    %v1477 = vld [vmem:[%s1 + $0xb0] sm:$0xff]
    %v1478 = vld [vmem:[%s1 + $0xb8] sm:$0xff]
    %v1479 = vld [vmem:[%s1 + $0xc0] sm:$0xff]
    %v1480 = vld [vmem:[%s1 + $0xc8] sm:$0xff]
    %v1481 = vld [vmem:[%s1 + $0xd0] sm:$0xff]
    %v1482 = vld [vmem:[%s1 + $0xd8] sm:$0xff]
    %v1483 = vld [vmem:[%s1 + $0xe0] sm:$0xff]
    %v1484 = vld [vmem:[%s1 + $0xe8] sm:$0xff]
    %v1485 = vld [vmem:[%s1 + $0xf0] sm:$0xff]
    %v1486 = vld [vmem:[%s1 + $0xf8] sm:$0xff]
    %v1487 = vld [vmem:[%s1 + $0x100] sm:$0xff]
    %v1488 = vld [vmem:[%s1 + $0x108] sm:$0xff]
    %v1489 = vld [vmem:[%s1 + $0x110] sm:$0xff]
    %v1490 = vld [vmem:[%s1 + $0x118] sm:$0xff]
    %v1491 = vld [vmem:[%s1 + $0x120] sm:$0xff]
    %v1492 = vld [vmem:[%s1 + $0x128] sm:$0xff]
    %v1493 = vld [vmem:[%s1 + $0x130] sm:$0xff]
    %v1494 = vld [vmem:[%s1 + $0x138] sm:$0xff]
    %v1495 = vld [vmem:[%s1 + $0x140] sm:$0xff]
    %v1496 = vld [vmem:[%s1 + $0x148] sm:$0xff]
    %v1497 = vld [vmem:[%s1 + $0x150] sm:$0xff]
    %v1498 = vld [vmem:[%s1 + $0x158] sm:$0xff]
    %v1499 = vld [vmem:[%s1 + $0x160] sm:$0xff]
    %v1500 = vld [vmem:[%s1 + $0x168] sm:$0xff]
    %v1501 = vld [vmem:[%s1 + $0x170] sm:$0xff]
    %v1502 = vld [vmem:[%s1 + $0x178] sm:$0xff]
    %v1503 = vld [vmem:[%s1 + $0x180] sm:$0xff]
    %v1504 = vld [vmem:[%s1 + $0x188] sm:$0xff]
    %v1505 = vld [vmem:[%s1 + $0x190] sm:$0xff]
    %v1506 = vld [vmem:[%s1 + $0x198] sm:$0xff]
    %v1507 = vld [vmem:[%s1 + $0x1a0] sm:$0xff]
    %v1508 = vld [vmem:[%s1 + $0x1a8] sm:$0xff]
    %v1509 = vld [vmem:[%s1 + $0x1b0] sm:$0xff]
    %v1510 = vld [vmem:[%s1 + $0x1b8] sm:$0xff]
    %v1511 = vld [vmem:[%s1 + $0x1c0] sm:$0xff]
    %v1512 = vld [vmem:[%s1 + $0x1c8] sm:$0xff]
    %v1513 = vld [vmem:[%s1 + $0x1d0] sm:$0xff]
    %v1514 = vld [vmem:[%s1 + $0x1d8] sm:$0xff]
    %v1515 = vld [vmem:[%s1 + $0x1e0] sm:$0xff]
    %v1516 = vld [vmem:[%s1 + $0x1e8] sm:$0xff]
    %v1517 = vld [vmem:[%s1 + $0x1f0] sm:$0xff]
    %v1518 = vld [vmem:[%s1 + $0x1f8] sm:$0xff]
    %1519 = vmatprep.subr.mxu0 %v1456
    %1520 = vmatpush1.msra.mxu0 %v1455
    %1521 = vmatprep.subr.mxu0 %v1460
    %1522 = vmatpush1.msra.mxu0 %v1459
    %1523 = vmatprep.subr.mxu0 %v1464
    %1524 = vmatpush1.msra.mxu0 %v1463
    %1525 = vmatprep.subr.mxu0 %v1468
    %1526 = vmatpush1.msra.mxu0 %v1467
    %1527 = vmatprep.subr.mxu0 %v1472
    %1528 = vmatpush1.msra.mxu0 %v1471
    %1529 = vmatprep.subr.mxu0 %v1476
    %1530 = vmatpush1.msra.mxu0 %v1475
    %1531 = vmatprep.subr.mxu0 %v1480
    %1532 = vmatpush1.msra.mxu0 %v1479
    %1533 = vmatprep.subr.mxu0 %v1484
    %1534 = vmatpush1.msra.mxu0 %v1483
    %1535 = vmatprep.subr.mxu0 %v1488
    %1536 = vmatpush1.msra.mxu0 %v1487
    %1537 = vmatprep.subr.mxu0 %v1492
    %1538 = vmatpush1.msra.mxu0 %v1491
    %1539 = vmatprep.subr.mxu0 %v1496
    %1540 = vmatpush1.msra.mxu0 %v1495
    %1541 = vmatprep.subr.mxu0 %v1500
    %1542 = vmatpush1.msra.mxu0 %v1499
    %1543 = vmatprep.subr.mxu0 %v1504
    %1544 = vmatpush1.msra.mxu0 %v1503
    %1545 = vmatprep.subr.mxu0 %v1508
    %1546 = vmatpush1.msra.mxu0 %v1507
    %1547 = vmatprep.subr.mxu0 %v1512
    %1548 = vmatpush1.msra.mxu0 %v1511
    %1549 = vmatprep.subr.mxu0 %v1516
    %1550 = vmatpush1.msra.mxu0 %v1515
    %1551 = vmatprep.subr.mxu0 0.0
    %1552 = vmatpush1.msra.mxu0 0.0
    %1553 = vmatprep.subr.mxu0 0.0
    %1554 = vmatpush1.msra.mxu0 0.0
    %1555 = vmatprep.subr.mxu0 0.0
    %1556 = vmatpush1.msra.mxu0 0.0
    %1557 = vmatprep.subr.mxu0 0.0
    %1558 = vmatpush1.msra.mxu0 0.0
    %1559 = vmatprep.subr.mxu0 0.0
    %1560 = vmatpush1.msra.mxu0 0.0
    %1561 = vmatprep.subr.mxu0 0.0
    %1562 = vmatpush1.msra.mxu0 0.0
    %1563 = vmatprep.subr.mxu0 0.0
    %1564 = vmatpush1.msra.mxu0 0.0
    %1565 = vmatprep.subr.mxu0 0.0
    %1566 = vmatpush1.msra.mxu0 0.0
    %1567 = vmatprep.subr.mxu0 0.0
    %1568 = vmatpush1.msra.mxu0 0.0
    %1569 = vmatprep.subr.mxu0 0.0
    %1570 = vmatpush1.msra.mxu0 0.0
    %1571 = vmatprep.subr.mxu0 0.0
    %1572 = vmatpush1.msra.mxu0 0.0
    %1573 = vmatprep.subr.mxu0 0.0
    %1574 = vmatpush1.msra.mxu0 0.0
    %1575 = vmatprep.subr.mxu0 0.0
    %1576 = vmatpush1.msra.mxu0 0.0
    %1577 = vmatprep.subr.mxu0 0.0
    %1578 = vmatpush1.msra.mxu0 0.0
    %1579 = vmatprep.subr.mxu0 0.0
    %1580 = vmatpush1.msra.mxu0 0.0
    %1581 = vmatprep.subr.mxu0 0.0
    %1582 = vmatpush1.msra.mxu0 0.0
    %1583 = vmatprep.mubr.f32.mxu0 0.0
    %1584 = vmatmul.mubr.f32.gmra.mrb[0].mxu0 %v985
    %v1585 = vpop.f32.mrb[0].mxu0
    %v1586 = vadd.f32 0.0, %v1585
    %v1587 = vpop.f32.mrb[0].mxu0
    %v1588 = vadd.f32 0.0, %v1587
    %1589 = vdwg.mxu0
    %1590 = vmatprep.subr.mxu0 %v1458
    %1591 = vmatpush1.msra.mxu0 %v1457
    %1592 = vmatprep.subr.mxu0 %v1462
    %1593 = vmatpush1.msra.mxu0 %v1461
    %1594 = vmatprep.subr.mxu0 %v1466
    %1595 = vmatpush1.msra.mxu0 %v1465
    %1596 = vmatprep.subr.mxu0 %v1470
    %1597 = vmatpush1.msra.mxu0 %v1469
    %1598 = vmatprep.subr.mxu0 %v1474
    %1599 = vmatpush1.msra.mxu0 %v1473
    %1600 = vmatprep.subr.mxu0 %v1478
    %1601 = vmatpush1.msra.mxu0 %v1477
    %1602 = vmatprep.subr.mxu0 %v1482
    %1603 = vmatpush1.msra.mxu0 %v1481
    %1604 = vmatprep.subr.mxu0 %v1486
    %1605 = vmatpush1.msra.mxu0 %v1485
    %1606 = vmatprep.subr.mxu0 %v1490
    %1607 = vmatpush1.msra.mxu0 %v1489
    %1608 = vmatprep.subr.mxu0 %v1494
    %1609 = vmatpush1.msra.mxu0 %v1493
    %1610 = vmatprep.subr.mxu0 %v1498
    %1611 = vmatpush1.msra.mxu0 %v1497
    %1612 = vmatprep.subr.mxu0 %v1502
    %1613 = vmatpush1.msra.mxu0 %v1501
    %1614 = vmatprep.subr.mxu0 %v1506
    %1615 = vmatpush1.msra.mxu0 %v1505
    %1616 = vmatprep.subr.mxu0 %v1510
    %1617 = vmatpush1.msra.mxu0 %v1509
    %1618 = vmatprep.subr.mxu0 %v1514
    %1619 = vmatpush1.msra.mxu0 %v1513
    %1620 = vmatprep.subr.mxu0 %v1518
    %1621 = vmatpush1.msra.mxu0 %v1517
    %1622 = vmatprep.subr.mxu0 0.0
    %1623 = vmatpush1.msra.mxu0 0.0
    %1624 = vmatprep.subr.mxu0 0.0
    %1625 = vmatpush1.msra.mxu0 0.0
    %1626 = vmatprep.subr.mxu0 0.0
    %1627 = vmatpush1.msra.mxu0 0.0
    %1628 = vmatprep.subr.mxu0 0.0
    %1629 = vmatpush1.msra.mxu0 0.0
    %1630 = vmatprep.subr.mxu0 0.0
    %1631 = vmatpush1.msra.mxu0 0.0
    %1632 = vmatprep.subr.mxu0 0.0
    %1633 = vmatpush1.msra.mxu0 0.0
    %1634 = vmatprep.subr.mxu0 0.0
    %1635 = vmatpush1.msra.mxu0 0.0
    %1636 = vmatprep.subr.mxu0 0.0
    %1637 = vmatpush1.msra.mxu0 0.0
    %1638 = vmatprep.subr.mxu0 0.0
    %1639 = vmatpush1.msra.mxu0 0.0
    %1640 = vmatprep.subr.mxu0 0.0
    %1641 = vmatpush1.msra.mxu0 0.0
    %1642 = vmatprep.subr.mxu0 0.0
    %1643 = vmatpush1.msra.mxu0 0.0
    %1644 = vmatprep.subr.mxu0 0.0
    %1645 = vmatpush1.msra.mxu0 0.0
    %1646 = vmatprep.subr.mxu0 0.0
    %1647 = vmatpush1.msra.mxu0 0.0
    %1648 = vmatprep.subr.mxu0 0.0
    %1649 = vmatpush1.msra.mxu0 0.0
    %1650 = vmatprep.subr.mxu0 0.0
    %1651 = vmatpush1.msra.mxu0 0.0
    %1652 = vmatprep.subr.mxu0 0.0
    %1653 = vmatpush1.msra.mxu0 0.0
    %1654 = vmatprep.mubr.f32.mxu0 0.0
    %1655 = vmatmul.mubr.f32.gmra.mrb[0].mxu0 %v985
    %v1656 = vpop.f32.mrb[0].mxu0
    %v1657 = vadd.f32 0.0, %v1656
    %v1658 = vpop.f32.mrb[0].mxu0
    %v1659 = vadd.f32 0.0, %v1658
    %1660 = vdwg.mxu0
    %v1661 = vadd.f32 %v1451, %v1586
    %v1662 = vadd.f32 %v1452, %v1588
    %v1663 = vadd.f32 %v1453, %v1657
    %v1664 = vadd.f32 %v1454, %v1659
    %v1665 = vxor.u32 %v1661, 2147483648
    %v1666 = vxor.u32 %v1662, 2147483648
    %v1667 = vxor.u32 %v1663, 2147483648
    %v1668 = vmul.f32 %v1665, 1.442695
    %v1669 = vpow.pop %v1668
    %v1670 = vmul.f32 %v1666, 1.442695
    %v1671 = vpow.pop %v1670
    %v1672 = vmul.f32 %v1667, 1.442695
    %v1673 = vpow.pop %v1672
    %v1674 = vadd.f32 %v1669, 1.0
    %v1675 = vadd.f32 %v1671, 1.0
    %v1676 = vadd.f32 %v1673, 1.0
    %v1677 = vrcp.pop %v1674
    %v1678 = vmul.f32 1.0, %v1677
    %v1679 = vrcp.pop %v1675
    %v1680 = vmul.f32 1.0, %v1679
    %v1681 = vrcp.pop %v1676
    %v1682 = vmul.f32 1.0, %v1681
    %v1683 = vtanh.pop %v1664
    %v1684 = vmul.f32 %v1680, %v983
    %v1685 = vmul.f32 %v1678, %v1683
    %v1686 = vadd.f32 %v1684, %v1685
    %v1687 = vtanh.pop %v1686
    %v1688 = vmul.f32 %v1682, %v1687
    %v1689 = vld [vmem:[%s2] sm:$0xff]
    %v1690 = vld [vmem:[%s2 + $0x8] sm:$0xff]
    %v1691 = vld [vmem:[%s2 + $0x10] sm:$0xff]
    %v1692 = vld [vmem:[%s2 + $0x18] sm:$0xff]
    %v1693 = vld [vmem:[%s2 + $0x20] sm:$0xff]
    %v1694 = vld [vmem:[%s2 + $0x28] sm:$0xff]
    %v1695 = vld [vmem:[%s2 + $0x30] sm:$0xff]
    %v1696 = vld [vmem:[%s2 + $0x38] sm:$0xff]
    %v1697 = vld [vmem:[%s2 + $0x40] sm:$0xff]
    %v1698 = vld [vmem:[%s2 + $0x48] sm:$0xff]
    %v1699 = vld [vmem:[%s2 + $0x50] sm:$0xff]
    %v1700 = vld [vmem:[%s2 + $0x58] sm:$0xff]
    %v1701 = vld [vmem:[%s2 + $0x60] sm:$0xff]
    %v1702 = vld [vmem:[%s2 + $0x68] sm:$0xff]
    %v1703 = vld [vmem:[%s2 + $0x70] sm:$0xff]
    %v1704 = vld [vmem:[%s2 + $0x78] sm:$0xff]
    %v1705 = vld [vmem:[%s2 + $0x80] sm:$0xff]
    %v1706 = vld [vmem:[%s2 + $0x88] sm:$0xff]
    %v1707 = vld [vmem:[%s2 + $0x90] sm:$0xff]
    %v1708 = vld [vmem:[%s2 + $0x98] sm:$0xff]
    %v1709 = vld [vmem:[%s2 + $0xa0] sm:$0xff]
    %v1710 = vld [vmem:[%s2 + $0xa8] sm:$0xff]
    %v1711 = vld [vmem:[%s2 + $0xb0] sm:$0xff]
    %v1712 = vld [vmem:[%s2 + $0xb8] sm:$0xff]
    %v1713 = vld [vmem:[%s2 + $0xc0] sm:$0xff]
    %v1714 = vld [vmem:[%s2 + $0xc8] sm:$0xff]
    %v1715 = vld [vmem:[%s2 + $0xd0] sm:$0xff]
    %v1716 = vld [vmem:[%s2 + $0xd8] sm:$0xff]
    %v1717 = vld [vmem:[%s2 + $0xe0] sm:$0xff]
    %v1718 = vld [vmem:[%s2 + $0xe8] sm:$0xff]
    %v1719 = vld [vmem:[%s2 + $0xf0] sm:$0xff]
    %v1720 = vld [vmem:[%s2 + $0xf8] sm:$0xff]
    %v1721 = vld [vmem:[%s2 + $0x100] sm:$0xff]
    %v1722 = vld [vmem:[%s2 + $0x108] sm:$0xff]
    %v1723 = vld [vmem:[%s2 + $0x110] sm:$0xff]
    %v1724 = vld [vmem:[%s2 + $0x118] sm:$0xff]
    %v1725 = vld [vmem:[%s2 + $0x120] sm:$0xff]
    %v1726 = vld [vmem:[%s2 + $0x128] sm:$0xff]
    %v1727 = vld [vmem:[%s2 + $0x130] sm:$0xff]
    %v1728 = vld [vmem:[%s2 + $0x138] sm:$0xff]
    %v1729 = vld [vmem:[%s2 + $0x140] sm:$0xff]
    %v1730 = vld [vmem:[%s2 + $0x148] sm:$0xff]
    %v1731 = vld [vmem:[%s2 + $0x150] sm:$0xff]
    %v1732 = vld [vmem:[%s2 + $0x158] sm:$0xff]
    %v1733 = vld [vmem:[%s2 + $0x160] sm:$0xff]
    %v1734 = vld [vmem:[%s2 + $0x168] sm:$0xff]
    %v1735 = vld [vmem:[%s2 + $0x170] sm:$0xff]
    %v1736 = vld [vmem:[%s2 + $0x178] sm:$0xff]
    %v1737 = vld [vmem:[%s2 + $0x180] sm:$0xff]
    %v1738 = vld [vmem:[%s2 + $0x188] sm:$0xff]
    %v1739 = vld [vmem:[%s2 + $0x190] sm:$0xff]
    %v1740 = vld [vmem:[%s2 + $0x198] sm:$0xff]
    %v1741 = vld [vmem:[%s2 + $0x1a0] sm:$0xff]
    %v1742 = vld [vmem:[%s2 + $0x1a8] sm:$0xff]
    %v1743 = vld [vmem:[%s2 + $0x1b0] sm:$0xff]
    %v1744 = vld [vmem:[%s2 + $0x1b8] sm:$0xff]
    %v1745 = vld [vmem:[%s2 + $0x1c0] sm:$0xff]
    %v1746 = vld [vmem:[%s2 + $0x1c8] sm:$0xff]
    %v1747 = vld [vmem:[%s2 + $0x1d0] sm:$0xff]
    %v1748 = vld [vmem:[%s2 + $0x1d8] sm:$0xff]
    %v1749 = vld [vmem:[%s2 + $0x1e0] sm:$0xff]
    %v1750 = vld [vmem:[%s2 + $0x1e8] sm:$0xff]
    %v1751 = vld [vmem:[%s2 + $0x1f0] sm:$0xff]
    %v1752 = vld [vmem:[%s2 + $0x1f8] sm:$0xff]
    %v1753 = vld [vmem:[#allocation6] sm:$0xff]
    %v1754 = vld [vmem:[#allocation6 + $0x8] sm:$0xff]
    %v1755 = vld [vmem:[#allocation6 + $0x10] sm:$0xff]
    %v1756 = vld [vmem:[#allocation6 + $0x18] sm:$0xff]
    %v1757 = vld [vmem:[#allocation6 + $0x20] sm:$0xff]
    %v1758 = vld [vmem:[#allocation6 + $0x28] sm:$0xff]
    %v1759 = vld [vmem:[#allocation6 + $0x30] sm:$0xff]
    %v1760 = vld [vmem:[#allocation6 + $0x38] sm:$0xff]
    %v1761 = vld [vmem:[#allocation6 + $0x40] sm:$0xff]
    %v1762 = vld [vmem:[#allocation6 + $0x48] sm:$0xff]
    %v1763 = vld [vmem:[#allocation6 + $0x50] sm:$0xff]
    %v1764 = vld [vmem:[#allocation6 + $0x58] sm:$0xff]
    %v1765 = vld [vmem:[#allocation6 + $0x60] sm:$0xff]
    %v1766 = vld [vmem:[#allocation6 + $0x68] sm:$0xff]
    %v1767 = vld [vmem:[#allocation6 + $0x70] sm:$0xff]
    %v1768 = vld [vmem:[#allocation6 + $0x78] sm:$0xff]
    %v1769 = vld [vmem:[#allocation6 + $0x80] sm:$0xff]
    %v1770 = vld [vmem:[#allocation6 + $0x88] sm:$0xff]
    %v1771 = vld [vmem:[#allocation6 + $0x90] sm:$0xff]
    %v1772 = vld [vmem:[#allocation6 + $0x98] sm:$0xff]
    %v1773 = vld [vmem:[#allocation6 + $0xa0] sm:$0xff]
    %v1774 = vld [vmem:[#allocation6 + $0xa8] sm:$0xff]
    %v1775 = vld [vmem:[#allocation6 + $0xb0] sm:$0xff]
    %v1776 = vld [vmem:[#allocation6 + $0xb8] sm:$0xff]
    %v1777 = vld [vmem:[#allocation6 + $0xc0] sm:$0xff]
    %v1778 = vld [vmem:[#allocation6 + $0xc8] sm:$0xff]
    %v1779 = vld [vmem:[#allocation6 + $0xd0] sm:$0xff]
    %v1780 = vld [vmem:[#allocation6 + $0xd8] sm:$0xff]
    %v1781 = vld [vmem:[#allocation6 + $0xe0] sm:$0xff]
    %v1782 = vld [vmem:[#allocation6 + $0xe8] sm:$0xff]
    %v1783 = vld [vmem:[#allocation6 + $0xf0] sm:$0xff]
    %v1784 = vld [vmem:[#allocation6 + $0xf8] sm:$0xff]
    %v1785 = vld [vmem:[#allocation6 + $0x100] sm:$0xff]
    %v1786 = vld [vmem:[#allocation6 + $0x108] sm:$0xff]
    %v1787 = vld [vmem:[#allocation6 + $0x110] sm:$0xff]
    %v1788 = vld [vmem:[#allocation6 + $0x118] sm:$0xff]
    %v1789 = vld [vmem:[#allocation6 + $0x120] sm:$0xff]
    %v1790 = vld [vmem:[#allocation6 + $0x128] sm:$0xff]
    %v1791 = vld [vmem:[#allocation6 + $0x130] sm:$0xff]
    %v1792 = vld [vmem:[#allocation6 + $0x138] sm:$0xff]
    %v1793 = vld [vmem:[#allocation6 + $0x140] sm:$0xff]
    %v1794 = vld [vmem:[#allocation6 + $0x148] sm:$0xff]
    %v1795 = vld [vmem:[#allocation6 + $0x150] sm:$0xff]
    %v1796 = vld [vmem:[#allocation6 + $0x158] sm:$0xff]
    %v1797 = vld [vmem:[#allocation6 + $0x160] sm:$0xff]
    %v1798 = vld [vmem:[#allocation6 + $0x168] sm:$0xff]
    %v1799 = vld [vmem:[#allocation6 + $0x170] sm:$0xff]
    %v1800 = vld [vmem:[#allocation6 + $0x178] sm:$0xff]
    %v1801 = vld [vmem:[#allocation6 + $0x180] sm:$0xff]
    %v1802 = vld [vmem:[#allocation6 + $0x188] sm:$0xff]
    %v1803 = vld [vmem:[#allocation6 + $0x190] sm:$0xff]
    %v1804 = vld [vmem:[#allocation6 + $0x198] sm:$0xff]
    %v1805 = vld [vmem:[#allocation6 + $0x1a0] sm:$0xff]
    %v1806 = vld [vmem:[#allocation6 + $0x1a8] sm:$0xff]
    %v1807 = vld [vmem:[#allocation6 + $0x1b0] sm:$0xff]
    %v1808 = vld [vmem:[#allocation6 + $0x1b8] sm:$0xff]
    %v1809 = vld [vmem:[#allocation6 + $0x1c0] sm:$0xff]
    %v1810 = vld [vmem:[#allocation6 + $0x1c8] sm:$0xff]
    %v1811 = vld [vmem:[#allocation6 + $0x1d0] sm:$0xff]
    %v1812 = vld [vmem:[#allocation6 + $0x1d8] sm:$0xff]
    %v1813 = vld [vmem:[#allocation6 + $0x1e0] sm:$0xff]
    %v1814 = vld [vmem:[#allocation6 + $0x1e8] sm:$0xff]
    %v1815 = vld [vmem:[#allocation6 + $0x1f0] sm:$0xff]
    %v1816 = vld [vmem:[#allocation6 + $0x1f8] sm:$0xff]
    %1817 = vmatprep.subr.mxu0 %v1754
    %1818 = vmatpush1.msra.mxu0 %v1753
    %1819 = vmatprep.subr.mxu0 %v1758
    %1820 = vmatpush1.msra.mxu0 %v1757
    %1821 = vmatprep.subr.mxu0 %v1762
    %1822 = vmatpush1.msra.mxu0 %v1761
    %1823 = vmatprep.subr.mxu0 %v1766
    %1824 = vmatpush1.msra.mxu0 %v1765
    %1825 = vmatprep.subr.mxu0 %v1770
    %1826 = vmatpush1.msra.mxu0 %v1769
    %1827 = vmatprep.subr.mxu0 %v1774
    %1828 = vmatpush1.msra.mxu0 %v1773
    %1829 = vmatprep.subr.mxu0 %v1778
    %1830 = vmatpush1.msra.mxu0 %v1777
    %1831 = vmatprep.subr.mxu0 %v1782
    %1832 = vmatpush1.msra.mxu0 %v1781
    %1833 = vmatprep.subr.mxu0 %v1786
    %1834 = vmatpush1.msra.mxu0 %v1785
    %1835 = vmatprep.subr.mxu0 %v1790
    %1836 = vmatpush1.msra.mxu0 %v1789
    %1837 = vmatprep.subr.mxu0 %v1794
    %1838 = vmatpush1.msra.mxu0 %v1793
    %1839 = vmatprep.subr.mxu0 %v1798
    %1840 = vmatpush1.msra.mxu0 %v1797
    %1841 = vmatprep.subr.mxu0 %v1802
    %1842 = vmatpush1.msra.mxu0 %v1801
    %1843 = vmatprep.subr.mxu0 %v1806
    %1844 = vmatpush1.msra.mxu0 %v1805
    %1845 = vmatprep.subr.mxu0 %v1810
    %1846 = vmatpush1.msra.mxu0 %v1809
    %1847 = vmatprep.subr.mxu0 %v1814
    %1848 = vmatpush1.msra.mxu0 %v1813
    %1849 = vmatprep.subr.mxu0 0.0
    %1850 = vmatpush1.msra.mxu0 0.0
    %1851 = vmatprep.subr.mxu0 0.0
    %1852 = vmatpush1.msra.mxu0 0.0
    %1853 = vmatprep.subr.mxu0 0.0
    %1854 = vmatpush1.msra.mxu0 0.0
    %1855 = vmatprep.subr.mxu0 0.0
    %1856 = vmatpush1.msra.mxu0 0.0
    %1857 = vmatprep.subr.mxu0 0.0
    %1858 = vmatpush1.msra.mxu0 0.0
    %1859 = vmatprep.subr.mxu0 0.0
    %1860 = vmatpush1.msra.mxu0 0.0
    %1861 = vmatprep.subr.mxu0 0.0
    %1862 = vmatpush1.msra.mxu0 0.0
    %1863 = vmatprep.subr.mxu0 0.0
    %1864 = vmatpush1.msra.mxu0 0.0
    %1865 = vmatprep.subr.mxu0 0.0
    %1866 = vmatpush1.msra.mxu0 0.0
    %1867 = vmatprep.subr.mxu0 0.0
    %1868 = vmatpush1.msra.mxu0 0.0
    %1869 = vmatprep.subr.mxu0 0.0
    %1870 = vmatpush1.msra.mxu0 0.0
    %1871 = vmatprep.subr.mxu0 0.0
    %1872 = vmatpush1.msra.mxu0 0.0
    %1873 = vmatprep.subr.mxu0 0.0
    %1874 = vmatpush1.msra.mxu0 0.0
    %1875 = vmatprep.subr.mxu0 0.0
    %1876 = vmatpush1.msra.mxu0 0.0
    %1877 = vmatprep.subr.mxu0 0.0
    %1878 = vmatpush1.msra.mxu0 0.0
    %1879 = vmatprep.subr.mxu0 0.0
    %1880 = vmatpush1.msra.mxu0 0.0
    %1881 = vmatprep.mubr.f32.mxu0 0.0
    %1882 = vmatmul.mubr.f32.gmra.mrb[0].mxu0 %v1447
    %v1883 = vpop.f32.mrb[0].mxu0
    %v1884 = vadd.f32 0.0, %v1883
    %v1885 = vpop.f32.mrb[0].mxu0
    %v1886 = vadd.f32 0.0, %v1885
    %1887 = vdwg.mxu0
    %1888 = vmatprep.subr.mxu0 %v1756
    %1889 = vmatpush1.msra.mxu0 %v1755
    %1890 = vmatprep.subr.mxu0 %v1760
    %1891 = vmatpush1.msra.mxu0 %v1759
    %1892 = vmatprep.subr.mxu0 %v1764
    %1893 = vmatpush1.msra.mxu0 %v1763
    %1894 = vmatprep.subr.mxu0 %v1768
    %1895 = vmatpush1.msra.mxu0 %v1767
    %1896 = vmatprep.subr.mxu0 %v1772
    %1897 = vmatpush1.msra.mxu0 %v1771
    %1898 = vmatprep.subr.mxu0 %v1776
    %1899 = vmatpush1.msra.mxu0 %v1775
    %1900 = vmatprep.subr.mxu0 %v1780
    %1901 = vmatpush1.msra.mxu0 %v1779
    %1902 = vmatprep.subr.mxu0 %v1784
    %1903 = vmatpush1.msra.mxu0 %v1783
    %1904 = vmatprep.subr.mxu0 %v1788
    %1905 = vmatpush1.msra.mxu0 %v1787
    %1906 = vmatprep.subr.mxu0 %v1792
    %1907 = vmatpush1.msra.mxu0 %v1791
    %1908 = vmatprep.subr.mxu0 %v1796
    %1909 = vmatpush1.msra.mxu0 %v1795
    %1910 = vmatprep.subr.mxu0 %v1800
    %1911 = vmatpush1.msra.mxu0 %v1799
    %1912 = vmatprep.subr.mxu0 %v1804
    %1913 = vmatpush1.msra.mxu0 %v1803
    %1914 = vmatprep.subr.mxu0 %v1808
    %1915 = vmatpush1.msra.mxu0 %v1807
    %1916 = vmatprep.subr.mxu0 %v1812
    %1917 = vmatpush1.msra.mxu0 %v1811
    %1918 = vmatprep.subr.mxu0 %v1816
    %1919 = vmatpush1.msra.mxu0 %v1815
    %1920 = vmatprep.subr.mxu0 0.0
    %1921 = vmatpush1.msra.mxu0 0.0
    %1922 = vmatprep.subr.mxu0 0.0
    %1923 = vmatpush1.msra.mxu0 0.0
    %1924 = vmatprep.subr.mxu0 0.0
    %1925 = vmatpush1.msra.mxu0 0.0
    %1926 = vmatprep.subr.mxu0 0.0
    %1927 = vmatpush1.msra.mxu0 0.0
    %1928 = vmatprep.subr.mxu0 0.0
    %1929 = vmatpush1.msra.mxu0 0.0
    %1930 = vmatprep.subr.mxu0 0.0
    %1931 = vmatpush1.msra.mxu0 0.0
    %1932 = vmatprep.subr.mxu0 0.0
    %1933 = vmatpush1.msra.mxu0 0.0
    %1934 = vmatprep.subr.mxu0 0.0
    %1935 = vmatpush1.msra.mxu0 0.0
    %1936 = vmatprep.subr.mxu0 0.0
    %1937 = vmatpush1.msra.mxu0 0.0
    %1938 = vmatprep.subr.mxu0 0.0
    %1939 = vmatpush1.msra.mxu0 0.0
    %1940 = vmatprep.subr.mxu0 0.0
    %1941 = vmatpush1.msra.mxu0 0.0
    %1942 = vmatprep.subr.mxu0 0.0
    %1943 = vmatpush1.msra.mxu0 0.0
    %1944 = vmatprep.subr.mxu0 0.0
    %1945 = vmatpush1.msra.mxu0 0.0
    %1946 = vmatprep.subr.mxu0 0.0
    %1947 = vmatpush1.msra.mxu0 0.0
    %1948 = vmatprep.subr.mxu0 0.0
    %1949 = vmatpush1.msra.mxu0 0.0
    %1950 = vmatprep.subr.mxu0 0.0
    %1951 = vmatpush1.msra.mxu0 0.0
    %1952 = vmatprep.mubr.f32.mxu0 0.0
    %1953 = vmatmul.mubr.f32.gmra.mrb[0].mxu0 %v1447
    %v1954 = vpop.f32.mrb[0].mxu0
    %v1955 = vadd.f32 0.0, %v1954
    %v1956 = vpop.f32.mrb[0].mxu0
    %v1957 = vadd.f32 0.0, %v1956
    %1958 = vdwg.mxu0
    %1959 = vmatprep.subr.mxu0 %v1690
    %1960 = vmatpush1.msra.mxu0 %v1689
    %1961 = vmatprep.subr.mxu0 %v1694
    %1962 = vmatpush1.msra.mxu0 %v1693
    %1963 = vmatprep.subr.mxu0 %v1698
    %1964 = vmatpush1.msra.mxu0 %v1697
    %1965 = vmatprep.subr.mxu0 %v1702
    %1966 = vmatpush1.msra.mxu0 %v1701
    %1967 = vmatprep.subr.mxu0 %v1706
    %1968 = vmatpush1.msra.mxu0 %v1705
    %1969 = vmatprep.subr.mxu0 %v1710
    %1970 = vmatpush1.msra.mxu0 %v1709
    %1971 = vmatprep.subr.mxu0 %v1714
    %1972 = vmatpush1.msra.mxu0 %v1713
    %1973 = vmatprep.subr.mxu0 %v1718
    %1974 = vmatpush1.msra.mxu0 %v1717
    %1975 = vmatprep.subr.mxu0 %v1722
    %1976 = vmatpush1.msra.mxu0 %v1721
    %1977 = vmatprep.subr.mxu0 %v1726
    %1978 = vmatpush1.msra.mxu0 %v1725
    %1979 = vmatprep.subr.mxu0 %v1730
    %1980 = vmatpush1.msra.mxu0 %v1729
    %1981 = vmatprep.subr.mxu0 %v1734
    %1982 = vmatpush1.msra.mxu0 %v1733
    %1983 = vmatprep.subr.mxu0 %v1738
    %1984 = vmatpush1.msra.mxu0 %v1737
    %1985 = vmatprep.subr.mxu0 %v1742
    %1986 = vmatpush1.msra.mxu0 %v1741
    %1987 = vmatprep.subr.mxu0 %v1746
    %1988 = vmatpush1.msra.mxu0 %v1745
    %1989 = vmatprep.subr.mxu0 %v1750
    %1990 = vmatpush1.msra.mxu0 %v1749
    %1991 = vmatprep.subr.mxu0 0.0
    %1992 = vmatpush1.msra.mxu0 0.0
    %1993 = vmatprep.subr.mxu0 0.0
    %1994 = vmatpush1.msra.mxu0 0.0
    %1995 = vmatprep.subr.mxu0 0.0
    %1996 = vmatpush1.msra.mxu0 0.0
    %1997 = vmatprep.subr.mxu0 0.0
    %1998 = vmatpush1.msra.mxu0 0.0
    %1999 = vmatprep.subr.mxu0 0.0
    %2000 = vmatpush1.msra.mxu0 0.0
    %2001 = vmatprep.subr.mxu0 0.0
    %2002 = vmatpush1.msra.mxu0 0.0
    %2003 = vmatprep.subr.mxu0 0.0
    %2004 = vmatpush1.msra.mxu0 0.0
    %2005 = vmatprep.subr.mxu0 0.0
    %2006 = vmatpush1.msra.mxu0 0.0
    %2007 = vmatprep.subr.mxu0 0.0
    %2008 = vmatpush1.msra.mxu0 0.0
    %2009 = vmatprep.subr.mxu0 0.0
    %2010 = vmatpush1.msra.mxu0 0.0
    %2011 = vmatprep.subr.mxu0 0.0
    %2012 = vmatpush1.msra.mxu0 0.0
    %2013 = vmatprep.subr.mxu0 0.0
    %2014 = vmatpush1.msra.mxu0 0.0
    %2015 = vmatprep.subr.mxu0 0.0
    %2016 = vmatpush1.msra.mxu0 0.0
    %2017 = vmatprep.subr.mxu0 0.0
    %2018 = vmatpush1.msra.mxu0 0.0
    %2019 = vmatprep.subr.mxu0 0.0
    %2020 = vmatpush1.msra.mxu0 0.0
    %2021 = vmatprep.subr.mxu0 0.0
    %2022 = vmatpush1.msra.mxu0 0.0
    %2023 = vmatprep.mubr.f32.mxu0 0.0
    %2024 = vmatmul.mubr.f32.gmra.mrb[0].mxu0 %v1688
    %v2025 = vpop.f32.mrb[0].mxu0
    %v2026 = vadd.f32 %v1884, %v2025
    %v2027 = vpop.f32.mrb[0].mxu0
    %v2028 = vadd.f32 %v1886, %v2027
    %2029 = vdwg.mxu0
    %2030 = vmatprep.subr.mxu0 %v1692
    %2031 = vmatpush1.msra.mxu0 %v1691
    %2032 = vmatprep.subr.mxu0 %v1696
    %2033 = vmatpush1.msra.mxu0 %v1695
    %2034 = vmatprep.subr.mxu0 %v1700
    %2035 = vmatpush1.msra.mxu0 %v1699
    %2036 = vmatprep.subr.mxu0 %v1704
    %2037 = vmatpush1.msra.mxu0 %v1703
    %2038 = vmatprep.subr.mxu0 %v1708
    %2039 = vmatpush1.msra.mxu0 %v1707
    %2040 = vmatprep.subr.mxu0 %v1712
    %2041 = vmatpush1.msra.mxu0 %v1711
    %2042 = vmatprep.subr.mxu0 %v1716
    %2043 = vmatpush1.msra.mxu0 %v1715
    %2044 = vmatprep.subr.mxu0 %v1720
    %2045 = vmatpush1.msra.mxu0 %v1719
    %2046 = vmatprep.subr.mxu0 %v1724
    %2047 = vmatpush1.msra.mxu0 %v1723
    %2048 = vmatprep.subr.mxu0 %v1728
    %2049 = vmatpush1.msra.mxu0 %v1727
    %2050 = vmatprep.subr.mxu0 %v1732
    %2051 = vmatpush1.msra.mxu0 %v1731
    %2052 = vmatprep.subr.mxu0 %v1736
    %2053 = vmatpush1.msra.mxu0 %v1735
    %2054 = vmatprep.subr.mxu0 %v1740
    %2055 = vmatpush1.msra.mxu0 %v1739
    %2056 = vmatprep.subr.mxu0 %v1744
    %2057 = vmatpush1.msra.mxu0 %v1743
    %2058 = vmatprep.subr.mxu0 %v1748
    %2059 = vmatpush1.msra.mxu0 %v1747
    %2060 = vmatprep.subr.mxu0 %v1752
    %2061 = vmatpush1.msra.mxu0 %v1751
    %2062 = vmatprep.subr.mxu0 0.0
    %2063 = vmatpush1.msra.mxu0 0.0
    %2064 = vmatprep.subr.mxu0 0.0
    %2065 = vmatpush1.msra.mxu0 0.0
    %2066 = vmatprep.subr.mxu0 0.0
    %2067 = vmatpush1.msra.mxu0 0.0
    %2068 = vmatprep.subr.mxu0 0.0
    %2069 = vmatpush1.msra.mxu0 0.0
    %2070 = vmatprep.subr.mxu0 0.0
    %2071 = vmatpush1.msra.mxu0 0.0
    %2072 = vmatprep.subr.mxu0 0.0
    %2073 = vmatpush1.msra.mxu0 0.0
    %2074 = vmatprep.subr.mxu0 0.0
    %2075 = vmatpush1.msra.mxu0 0.0
    %2076 = vmatprep.subr.mxu0 0.0
    %2077 = vmatpush1.msra.mxu0 0.0
    %2078 = vmatprep.subr.mxu0 0.0
    %2079 = vmatpush1.msra.mxu0 0.0
    %2080 = vmatprep.subr.mxu0 0.0
    %2081 = vmatpush1.msra.mxu0 0.0
    %2082 = vmatprep.subr.mxu0 0.0
    %2083 = vmatpush1.msra.mxu0 0.0
    %2084 = vmatprep.subr.mxu0 0.0
    %2085 = vmatpush1.msra.mxu0 0.0
    %2086 = vmatprep.subr.mxu0 0.0
    %2087 = vmatpush1.msra.mxu0 0.0
    %2088 = vmatprep.subr.mxu0 0.0
    %2089 = vmatpush1.msra.mxu0 0.0
    %2090 = vmatprep.subr.mxu0 0.0
    %2091 = vmatpush1.msra.mxu0 0.0
    %2092 = vmatprep.subr.mxu0 0.0
    %2093 = vmatpush1.msra.mxu0 0.0
    %2094 = vmatprep.mubr.f32.mxu0 0.0
    %2095 = vmatmul.mubr.f32.gmra.mrb[0].mxu0 %v1688
    %v2096 = vpop.f32.mrb[0].mxu0
    %v2097 = vadd.f32 %v1955, %v2096
    %v2098 = vpop.f32.mrb[0].mxu0
    %v2099 = vadd.f32 %v1957, %v2098
    %2100 = vdwg.mxu0
    %v2101 = vld [vmem:[%s4] sm:$0xf]
    %v2103 = vlaneseq
    %v2104 = vshrl.u32 %v2103, 7
    %v2105 = vsub.s32 0, %v2104
    %v2106 = vrot.slane %v2101, %v2105
    %v2107 = vlaneseq
    %v2108 = vshrl.u32 %v2107, 7
    %v2109 = vsub.s32 1, %v2108
    %v2110 = vrot.slane %v2101, %v2109
    %v2111 = vlaneseq
    %v2112 = vshrl.u32 %v2111, 7
    %v2113 = vsub.s32 2, %v2112
    %v2114 = vrot.slane %v2101, %v2113
    %v2115 = vlaneseq
    %v2116 = vshrl.u32 %v2115, 7
    %v2117 = vsub.s32 3, %v2116
    %v2118 = vrot.slane %v2101, %v2117
    %v2123 = vadd.f32 %v2026, %v2106
    %v2124 = vadd.f32 %v2028, %v2110
    %v2125 = vadd.f32 %v2097, %v2114
    %v2126 = vadd.f32 %v2099, %v2118
    %v2127 = vxor.u32 %v2123, 2147483648
    %v2128 = vxor.u32 %v2124, 2147483648
    %v2129 = vxor.u32 %v2125, 2147483648
    %v2130 = vmul.f32 %v2127, 1.442695
    %v2131 = vpow.pop %v2130
    %v2132 = vmul.f32 %v2128, 1.442695
    %v2133 = vpow.pop %v2132
    %v2134 = vmul.f32 %v2129, 1.442695
    %v2135 = vpow.pop %v2134
    %v2136 = vadd.f32 %v2131, 1.0
    %v2137 = vadd.f32 %v2133, 1.0
    %v2138 = vadd.f32 %v2135, 1.0
    %v2139 = vrcp.pop %v2136
    %v2140 = vmul.f32 1.0, %v2139
    %v2141 = vrcp.pop %v2137
    %v2142 = vmul.f32 1.0, %v2141
    %v2143 = vrcp.pop %v2138
    %v2144 = vmul.f32 1.0, %v2143
    %v2145 = vtanh.pop %v2126
    %v2146 = vmul.f32 %v2142, %v1445
    %v2147 = vmul.f32 %v2140, %v2145
    %v2148 = vadd.f32 %v2146, %v2147
    %v2149 = vtanh.pop %v2148
    %v2150 = vmul.f32 %v2144, %v2149
    %s2151 = scalar_lea.vmem %s5, 16
    %2152 = vst [vmem:[%s2151] sm:$0xff] %v2150
    %s2153 = scalar_lea.vmem %s0, 96
    %v2154 = vld [vmem:[%s2153] sm:$0xff]
    %v2155 = vld [vmem:[%s2153 + $0x8] sm:$0xff]
    %v2156 = vld [vmem:[%s2153 + $0x10] sm:$0xff]
    %v2157 = vld [vmem:[%s2153 + $0x18] sm:$0xff]
    %v2158 = vld [vmem:[%s1] sm:$0xff]
    %v2159 = vld [vmem:[%s1 + $0x8] sm:$0xff]
    %v2160 = vld [vmem:[%s1 + $0x10] sm:$0xff]
    %v2161 = vld [vmem:[%s1 + $0x18] sm:$0xff]
    %v2162 = vld [vmem:[%s1 + $0x20] sm:$0xff]
    %v2163 = vld [vmem:[%s1 + $0x28] sm:$0xff]
    %v2164 = vld [vmem:[%s1 + $0x30] sm:$0xff]
    %v2165 = vld [vmem:[%s1 + $0x38] sm:$0xff]
    %v2166 = vld [vmem:[%s1 + $0x40] sm:$0xff]
    %v2167 = vld [vmem:[%s1 + $0x48] sm:$0xff]
    %v2168 = vld [vmem:[%s1 + $0x50] sm:$0xff]
    %v2169 = vld [vmem:[%s1 + $0x58] sm:$0xff]
    %v2170 = vld [vmem:[%s1 + $0x60] sm:$0xff]
    %v2171 = vld [vmem:[%s1 + $0x68] sm:$0xff]
    %v2172 = vld [vmem:[%s1 + $0x70] sm:$0xff]
    %v2173 = vld [vmem:[%s1 + $0x78] sm:$0xff]
    %v2174 = vld [vmem:[%s1 + $0x80] sm:$0xff]
    %v2175 = vld [vmem:[%s1 + $0x88] sm:$0xff]
    %v2176 = vld [vmem:[%s1 + $0x90] sm:$0xff]
    %v2177 = vld [vmem:[%s1 + $0x98] sm:$0xff]
    %v2178 = vld [vmem:[%s1 + $0xa0] sm:$0xff]
    %v2179 = vld [vmem:[%s1 + $0xa8] sm:$0xff]
    %v2180 = vld [vmem:[%s1 + $0xb0] sm:$0xff]
    %v2181 = vld [vmem:[%s1 + $0xb8] sm:$0xff]
    %v2182 = vld [vmem:[%s1 + $0xc0] sm:$0xff]
    %v2183 = vld [vmem:[%s1 + $0xc8] sm:$0xff]
    %v2184 = vld [vmem:[%s1 + $0xd0] sm:$0xff]
    %v2185 = vld [vmem:[%s1 + $0xd8] sm:$0xff]
    %v2186 = vld [vmem:[%s1 + $0xe0] sm:$0xff]
    %v2187 = vld [vmem:[%s1 + $0xe8] sm:$0xff]
    %v2188 = vld [vmem:[%s1 + $0xf0] sm:$0xff]
    %v2189 = vld [vmem:[%s1 + $0xf8] sm:$0xff]
    %v2190 = vld [vmem:[%s1 + $0x100] sm:$0xff]
    %v2191 = vld [vmem:[%s1 + $0x108] sm:$0xff]
    %v2192 = vld [vmem:[%s1 + $0x110] sm:$0xff]
    %v2193 = vld [vmem:[%s1 + $0x118] sm:$0xff]
    %v2194 = vld [vmem:[%s1 + $0x120] sm:$0xff]
    %v2195 = vld [vmem:[%s1 + $0x128] sm:$0xff]
    %v2196 = vld [vmem:[%s1 + $0x130] sm:$0xff]
    %v2197 = vld [vmem:[%s1 + $0x138] sm:$0xff]
    %v2198 = vld [vmem:[%s1 + $0x140] sm:$0xff]
    %v2199 = vld [vmem:[%s1 + $0x148] sm:$0xff]
    %v2200 = vld [vmem:[%s1 + $0x150] sm:$0xff]
    %v2201 = vld [vmem:[%s1 + $0x158] sm:$0xff]
    %v2202 = vld [vmem:[%s1 + $0x160] sm:$0xff]
    %v2203 = vld [vmem:[%s1 + $0x168] sm:$0xff]
    %v2204 = vld [vmem:[%s1 + $0x170] sm:$0xff]
    %v2205 = vld [vmem:[%s1 + $0x178] sm:$0xff]
    %v2206 = vld [vmem:[%s1 + $0x180] sm:$0xff]
    %v2207 = vld [vmem:[%s1 + $0x188] sm:$0xff]
    %v2208 = vld [vmem:[%s1 + $0x190] sm:$0xff]
    %v2209 = vld [vmem:[%s1 + $0x198] sm:$0xff]
    %v2210 = vld [vmem:[%s1 + $0x1a0] sm:$0xff]
    %v2211 = vld [vmem:[%s1 + $0x1a8] sm:$0xff]
    %v2212 = vld [vmem:[%s1 + $0x1b0] sm:$0xff]
    %v2213 = vld [vmem:[%s1 + $0x1b8] sm:$0xff]
    %v2214 = vld [vmem:[%s1 + $0x1c0] sm:$0xff]
    %v2215 = vld [vmem:[%s1 + $0x1c8] sm:$0xff]
    %v2216 = vld [vmem:[%s1 + $0x1d0] sm:$0xff]
    %v2217 = vld [vmem:[%s1 + $0x1d8] sm:$0xff]
    %v2218 = vld [vmem:[%s1 + $0x1e0] sm:$0xff]
    %v2219 = vld [vmem:[%s1 + $0x1e8] sm:$0xff]
    %v2220 = vld [vmem:[%s1 + $0x1f0] sm:$0xff]
    %v2221 = vld [vmem:[%s1 + $0x1f8] sm:$0xff]
    %2222 = vmatprep.subr.mxu0 %v2159
    %2223 = vmatpush1.msra.mxu0 %v2158
    %2224 = vmatprep.subr.mxu0 %v2163
    %2225 = vmatpush1.msra.mxu0 %v2162
    %2226 = vmatprep.subr.mxu0 %v2167
    %2227 = vmatpush1.msra.mxu0 %v2166
    %2228 = vmatprep.subr.mxu0 %v2171
    %2229 = vmatpush1.msra.mxu0 %v2170
    %2230 = vmatprep.subr.mxu0 %v2175
    %2231 = vmatpush1.msra.mxu0 %v2174
    %2232 = vmatprep.subr.mxu0 %v2179
    %2233 = vmatpush1.msra.mxu0 %v2178
    %2234 = vmatprep.subr.mxu0 %v2183
    %2235 = vmatpush1.msra.mxu0 %v2182
    %2236 = vmatprep.subr.mxu0 %v2187
    %2237 = vmatpush1.msra.mxu0 %v2186
    %2238 = vmatprep.subr.mxu0 %v2191
    %2239 = vmatpush1.msra.mxu0 %v2190
    %2240 = vmatprep.subr.mxu0 %v2195
    %2241 = vmatpush1.msra.mxu0 %v2194
    %2242 = vmatprep.subr.mxu0 %v2199
    %2243 = vmatpush1.msra.mxu0 %v2198
    %2244 = vmatprep.subr.mxu0 %v2203
    %2245 = vmatpush1.msra.mxu0 %v2202
    %2246 = vmatprep.subr.mxu0 %v2207
    %2247 = vmatpush1.msra.mxu0 %v2206
    %2248 = vmatprep.subr.mxu0 %v2211
    %2249 = vmatpush1.msra.mxu0 %v2210
    %2250 = vmatprep.subr.mxu0 %v2215
    %2251 = vmatpush1.msra.mxu0 %v2214
    %2252 = vmatprep.subr.mxu0 %v2219
    %2253 = vmatpush1.msra.mxu0 %v2218
    %2254 = vmatprep.subr.mxu0 0.0
    %2255 = vmatpush1.msra.mxu0 0.0
    %2256 = vmatprep.subr.mxu0 0.0
    %2257 = vmatpush1.msra.mxu0 0.0
    %2258 = vmatprep.subr.mxu0 0.0
    %2259 = vmatpush1.msra.mxu0 0.0
    %2260 = vmatprep.subr.mxu0 0.0
    %2261 = vmatpush1.msra.mxu0 0.0
    %2262 = vmatprep.subr.mxu0 0.0
    %2263 = vmatpush1.msra.mxu0 0.0
    %2264 = vmatprep.subr.mxu0 0.0
    %2265 = vmatpush1.msra.mxu0 0.0
    %2266 = vmatprep.subr.mxu0 0.0
    %2267 = vmatpush1.msra.mxu0 0.0
    %2268 = vmatprep.subr.mxu0 0.0
    %2269 = vmatpush1.msra.mxu0 0.0
    %2270 = vmatprep.subr.mxu0 0.0
    %2271 = vmatpush1.msra.mxu0 0.0
    %2272 = vmatprep.subr.mxu0 0.0
    %2273 = vmatpush1.msra.mxu0 0.0
    %2274 = vmatprep.subr.mxu0 0.0
    %2275 = vmatpush1.msra.mxu0 0.0
    %2276 = vmatprep.subr.mxu0 0.0
    %2277 = vmatpush1.msra.mxu0 0.0
    %2278 = vmatprep.subr.mxu0 0.0
    %2279 = vmatpush1.msra.mxu0 0.0
    %2280 = vmatprep.subr.mxu0 0.0
    %2281 = vmatpush1.msra.mxu0 0.0
    %2282 = vmatprep.subr.mxu0 0.0
    %2283 = vmatpush1.msra.mxu0 0.0
    %2284 = vmatprep.subr.mxu0 0.0
    %2285 = vmatpush1.msra.mxu0 0.0
    %2286 = vmatprep.mubr.f32.mxu0 0.0
    %2287 = vmatmul.mubr.f32.gmra.mrb[0].mxu0 %v1688
    %v2288 = vpop.f32.mrb[0].mxu0
    %v2289 = vadd.f32 0.0, %v2288
    %v2290 = vpop.f32.mrb[0].mxu0
    %v2291 = vadd.f32 0.0, %v2290
    %2292 = vdwg.mxu0
    %2293 = vmatprep.subr.mxu0 %v2161
    %2294 = vmatpush1.msra.mxu0 %v2160
    %2295 = vmatprep.subr.mxu0 %v2165
    %2296 = vmatpush1.msra.mxu0 %v2164
    %2297 = vmatprep.subr.mxu0 %v2169
    %2298 = vmatpush1.msra.mxu0 %v2168
    %2299 = vmatprep.subr.mxu0 %v2173
    %2300 = vmatpush1.msra.mxu0 %v2172
    %2301 = vmatprep.subr.mxu0 %v2177
    %2302 = vmatpush1.msra.mxu0 %v2176
    %2303 = vmatprep.subr.mxu0 %v2181
    %2304 = vmatpush1.msra.mxu0 %v2180
    %2305 = vmatprep.subr.mxu0 %v2185
    %2306 = vmatpush1.msra.mxu0 %v2184
    %2307 = vmatprep.subr.mxu0 %v2189
    %2308 = vmatpush1.msra.mxu0 %v2188
    %2309 = vmatprep.subr.mxu0 %v2193
    %2310 = vmatpush1.msra.mxu0 %v2192
    %2311 = vmatprep.subr.mxu0 %v2197
    %2312 = vmatpush1.msra.mxu0 %v2196
    %2313 = vmatprep.subr.mxu0 %v2201
    %2314 = vmatpush1.msra.mxu0 %v2200
    %2315 = vmatprep.subr.mxu0 %v2205
    %2316 = vmatpush1.msra.mxu0 %v2204
    %2317 = vmatprep.subr.mxu0 %v2209
    %2318 = vmatpush1.msra.mxu0 %v2208
    %2319 = vmatprep.subr.mxu0 %v2213
    %2320 = vmatpush1.msra.mxu0 %v2212
    %2321 = vmatprep.subr.mxu0 %v2217
    %2322 = vmatpush1.msra.mxu0 %v2216
    %2323 = vmatprep.subr.mxu0 %v2221
    %2324 = vmatpush1.msra.mxu0 %v2220
    %2325 = vmatprep.subr.mxu0 0.0
    %2326 = vmatpush1.msra.mxu0 0.0
    %2327 = vmatprep.subr.mxu0 0.0
    %2328 = vmatpush1.msra.mxu0 0.0
    %2329 = vmatprep.subr.mxu0 0.0
    %2330 = vmatpush1.msra.mxu0 0.0
    %2331 = vmatprep.subr.mxu0 0.0
    %2332 = vmatpush1.msra.mxu0 0.0
    %2333 = vmatprep.subr.mxu0 0.0
    %2334 = vmatpush1.msra.mxu0 0.0
    %2335 = vmatprep.subr.mxu0 0.0
    %2336 = vmatpush1.msra.mxu0 0.0
    %2337 = vmatprep.subr.mxu0 0.0
    %2338 = vmatpush1.msra.mxu0 0.0
    %2339 = vmatprep.subr.mxu0 0.0
    %2340 = vmatpush1.msra.mxu0 0.0
    %2341 = vmatprep.subr.mxu0 0.0
    %2342 = vmatpush1.msra.mxu0 0.0
    %2343 = vmatprep.subr.mxu0 0.0
    %2344 = vmatpush1.msra.mxu0 0.0
    %2345 = vmatprep.subr.mxu0 0.0
    %2346 = vmatpush1.msra.mxu0 0.0
    %2347 = vmatprep.subr.mxu0 0.0
    %2348 = vmatpush1.msra.mxu0 0.0
    %2349 = vmatprep.subr.mxu0 0.0
    %2350 = vmatpush1.msra.mxu0 0.0
    %2351 = vmatprep.subr.mxu0 0.0
    %2352 = vmatpush1.msra.mxu0 0.0
    %2353 = vmatprep.subr.mxu0 0.0
    %2354 = vmatpush1.msra.mxu0 0.0
    %2355 = vmatprep.subr.mxu0 0.0
    %2356 = vmatpush1.msra.mxu0 0.0
    %2357 = vmatprep.mubr.f32.mxu0 0.0
    %2358 = vmatmul.mubr.f32.gmra.mrb[0].mxu0 %v1688
    %v2359 = vpop.f32.mrb[0].mxu0
    %v2360 = vadd.f32 0.0, %v2359
    %v2361 = vpop.f32.mrb[0].mxu0
    %v2362 = vadd.f32 0.0, %v2361
    %2363 = vdwg.mxu0
    %v2364 = vadd.f32 %v2154, %v2289
    %v2365 = vadd.f32 %v2155, %v2291
    %v2366 = vadd.f32 %v2156, %v2360
    %v2367 = vadd.f32 %v2157, %v2362
    %v2368 = vxor.u32 %v2364, 2147483648
    %v2369 = vxor.u32 %v2365, 2147483648
    %v2370 = vxor.u32 %v2366, 2147483648
    %v2371 = vmul.f32 %v2368, 1.442695
    %v2372 = vpow.pop %v2371
    %v2373 = vmul.f32 %v2369, 1.442695
    %v2374 = vpow.pop %v2373
    %v2375 = vmul.f32 %v2370, 1.442695
    %v2376 = vpow.pop %v2375
    %v2377 = vadd.f32 %v2372, 1.0
    %v2378 = vadd.f32 %v2374, 1.0
    %v2379 = vadd.f32 %v2376, 1.0
    %v2380 = vrcp.pop %v2377
    %v2381 = vmul.f32 1.0, %v2380
    %v2382 = vrcp.pop %v2378
    %v2383 = vmul.f32 1.0, %v2382
    %v2384 = vrcp.pop %v2379
    %v2385 = vmul.f32 1.0, %v2384
    %v2386 = vtanh.pop %v2367
    %v2387 = vmul.f32 %v2383, %v1686
    %v2388 = vmul.f32 %v2381, %v2386
    %v2389 = vadd.f32 %v2387, %v2388
    %v2390 = vtanh.pop %v2389
    %v2391 = vmul.f32 %v2385, %v2390
    %v2392 = vld [vmem:[%s2] sm:$0xff]
    %v2393 = vld [vmem:[%s2 + $0x8] sm:$0xff]
    %v2394 = vld [vmem:[%s2 + $0x10] sm:$0xff]
    %v2395 = vld [vmem:[%s2 + $0x18] sm:$0xff]
    %v2396 = vld [vmem:[%s2 + $0x20] sm:$0xff]
    %v2397 = vld [vmem:[%s2 + $0x28] sm:$0xff]
    %v2398 = vld [vmem:[%s2 + $0x30] sm:$0xff]
    %v2399 = vld [vmem:[%s2 + $0x38] sm:$0xff]
    %v2400 = vld [vmem:[%s2 + $0x40] sm:$0xff]
    %v2401 = vld [vmem:[%s2 + $0x48] sm:$0xff]
    %v2402 = vld [vmem:[%s2 + $0x50] sm:$0xff]
    %v2403 = vld [vmem:[%s2 + $0x58] sm:$0xff]
    %v2404 = vld [vmem:[%s2 + $0x60] sm:$0xff]
    %v2405 = vld [vmem:[%s2 + $0x68] sm:$0xff]
    %v2406 = vld [vmem:[%s2 + $0x70] sm:$0xff]
    %v2407 = vld [vmem:[%s2 + $0x78] sm:$0xff]
    %v2408 = vld [vmem:[%s2 + $0x80] sm:$0xff]
    %v2409 = vld [vmem:[%s2 + $0x88] sm:$0xff]
    %v2410 = vld [vmem:[%s2 + $0x90] sm:$0xff]
    %v2411 = vld [vmem:[%s2 + $0x98] sm:$0xff]
    %v2412 = vld [vmem:[%s2 + $0xa0] sm:$0xff]
    %v2413 = vld [vmem:[%s2 + $0xa8] sm:$0xff]
    %v2414 = vld [vmem:[%s2 + $0xb0] sm:$0xff]
    %v2415 = vld [vmem:[%s2 + $0xb8] sm:$0xff]
    %v2416 = vld [vmem:[%s2 + $0xc0] sm:$0xff]
    %v2417 = vld [vmem:[%s2 + $0xc8] sm:$0xff]
    %v2418 = vld [vmem:[%s2 + $0xd0] sm:$0xff]
    %v2419 = vld [vmem:[%s2 + $0xd8] sm:$0xff]
    %v2420 = vld [vmem:[%s2 + $0xe0] sm:$0xff]
    %v2421 = vld [vmem:[%s2 + $0xe8] sm:$0xff]
    %v2422 = vld [vmem:[%s2 + $0xf0] sm:$0xff]
    %v2423 = vld [vmem:[%s2 + $0xf8] sm:$0xff]
    %v2424 = vld [vmem:[%s2 + $0x100] sm:$0xff]
    %v2425 = vld [vmem:[%s2 + $0x108] sm:$0xff]
    %v2426 = vld [vmem:[%s2 + $0x110] sm:$0xff]
    %v2427 = vld [vmem:[%s2 + $0x118] sm:$0xff]
    %v2428 = vld [vmem:[%s2 + $0x120] sm:$0xff]
    %v2429 = vld [vmem:[%s2 + $0x128] sm:$0xff]
    %v2430 = vld [vmem:[%s2 + $0x130] sm:$0xff]
    %v2431 = vld [vmem:[%s2 + $0x138] sm:$0xff]
    %v2432 = vld [vmem:[%s2 + $0x140] sm:$0xff]
    %v2433 = vld [vmem:[%s2 + $0x148] sm:$0xff]
    %v2434 = vld [vmem:[%s2 + $0x150] sm:$0xff]
    %v2435 = vld [vmem:[%s2 + $0x158] sm:$0xff]
    %v2436 = vld [vmem:[%s2 + $0x160] sm:$0xff]
    %v2437 = vld [vmem:[%s2 + $0x168] sm:$0xff]
    %v2438 = vld [vmem:[%s2 + $0x170] sm:$0xff]
    %v2439 = vld [vmem:[%s2 + $0x178] sm:$0xff]
    %v2440 = vld [vmem:[%s2 + $0x180] sm:$0xff]
    %v2441 = vld [vmem:[%s2 + $0x188] sm:$0xff]
    %v2442 = vld [vmem:[%s2 + $0x190] sm:$0xff]
    %v2443 = vld [vmem:[%s2 + $0x198] sm:$0xff]
    %v2444 = vld [vmem:[%s2 + $0x1a0] sm:$0xff]
    %v2445 = vld [vmem:[%s2 + $0x1a8] sm:$0xff]
    %v2446 = vld [vmem:[%s2 + $0x1b0] sm:$0xff]
    %v2447 = vld [vmem:[%s2 + $0x1b8] sm:$0xff]
    %v2448 = vld [vmem:[%s2 + $0x1c0] sm:$0xff]
    %v2449 = vld [vmem:[%s2 + $0x1c8] sm:$0xff]
    %v2450 = vld [vmem:[%s2 + $0x1d0] sm:$0xff]
    %v2451 = vld [vmem:[%s2 + $0x1d8] sm:$0xff]
    %v2452 = vld [vmem:[%s2 + $0x1e0] sm:$0xff]
    %v2453 = vld [vmem:[%s2 + $0x1e8] sm:$0xff]
    %v2454 = vld [vmem:[%s2 + $0x1f0] sm:$0xff]
    %v2455 = vld [vmem:[%s2 + $0x1f8] sm:$0xff]
    %v2456 = vld [vmem:[#allocation6] sm:$0xff]
    %v2457 = vld [vmem:[#allocation6 + $0x8] sm:$0xff]
    %v2458 = vld [vmem:[#allocation6 + $0x10] sm:$0xff]
    %v2459 = vld [vmem:[#allocation6 + $0x18] sm:$0xff]
    %v2460 = vld [vmem:[#allocation6 + $0x20] sm:$0xff]
    %v2461 = vld [vmem:[#allocation6 + $0x28] sm:$0xff]
    %v2462 = vld [vmem:[#allocation6 + $0x30] sm:$0xff]
    %v2463 = vld [vmem:[#allocation6 + $0x38] sm:$0xff]
    %v2464 = vld [vmem:[#allocation6 + $0x40] sm:$0xff]
    %v2465 = vld [vmem:[#allocation6 + $0x48] sm:$0xff]
    %v2466 = vld [vmem:[#allocation6 + $0x50] sm:$0xff]
    %v2467 = vld [vmem:[#allocation6 + $0x58] sm:$0xff]
    %v2468 = vld [vmem:[#allocation6 + $0x60] sm:$0xff]
    %v2469 = vld [vmem:[#allocation6 + $0x68] sm:$0xff]
    %v2470 = vld [vmem:[#allocation6 + $0x70] sm:$0xff]
    %v2471 = vld [vmem:[#allocation6 + $0x78] sm:$0xff]
    %v2472 = vld [vmem:[#allocation6 + $0x80] sm:$0xff]
    %v2473 = vld [vmem:[#allocation6 + $0x88] sm:$0xff]
    %v2474 = vld [vmem:[#allocation6 + $0x90] sm:$0xff]
    %v2475 = vld [vmem:[#allocation6 + $0x98] sm:$0xff]
    %v2476 = vld [vmem:[#allocation6 + $0xa0] sm:$0xff]
    %v2477 = vld [vmem:[#allocation6 + $0xa8] sm:$0xff]
    %v2478 = vld [vmem:[#allocation6 + $0xb0] sm:$0xff]
    %v2479 = vld [vmem:[#allocation6 + $0xb8] sm:$0xff]
    %v2480 = vld [vmem:[#allocation6 + $0xc0] sm:$0xff]
    %v2481 = vld [vmem:[#allocation6 + $0xc8] sm:$0xff]
    %v2482 = vld [vmem:[#allocation6 + $0xd0] sm:$0xff]
    %v2483 = vld [vmem:[#allocation6 + $0xd8] sm:$0xff]
    %v2484 = vld [vmem:[#allocation6 + $0xe0] sm:$0xff]
    %v2485 = vld [vmem:[#allocation6 + $0xe8] sm:$0xff]
    %v2486 = vld [vmem:[#allocation6 + $0xf0] sm:$0xff]
    %v2487 = vld [vmem:[#allocation6 + $0xf8] sm:$0xff]
    %v2488 = vld [vmem:[#allocation6 + $0x100] sm:$0xff]
    %v2489 = vld [vmem:[#allocation6 + $0x108] sm:$0xff]
    %v2490 = vld [vmem:[#allocation6 + $0x110] sm:$0xff]
    %v2491 = vld [vmem:[#allocation6 + $0x118] sm:$0xff]
    %v2492 = vld [vmem:[#allocation6 + $0x120] sm:$0xff]
    %v2493 = vld [vmem:[#allocation6 + $0x128] sm:$0xff]
    %v2494 = vld [vmem:[#allocation6 + $0x130] sm:$0xff]
    %v2495 = vld [vmem:[#allocation6 + $0x138] sm:$0xff]
    %v2496 = vld [vmem:[#allocation6 + $0x140] sm:$0xff]
    %v2497 = vld [vmem:[#allocation6 + $0x148] sm:$0xff]
    %v2498 = vld [vmem:[#allocation6 + $0x150] sm:$0xff]
    %v2499 = vld [vmem:[#allocation6 + $0x158] sm:$0xff]
    %v2500 = vld [vmem:[#allocation6 + $0x160] sm:$0xff]
    %v2501 = vld [vmem:[#allocation6 + $0x168] sm:$0xff]
    %v2502 = vld [vmem:[#allocation6 + $0x170] sm:$0xff]
    %v2503 = vld [vmem:[#allocation6 + $0x178] sm:$0xff]
    %v2504 = vld [vmem:[#allocation6 + $0x180] sm:$0xff]
    %v2505 = vld [vmem:[#allocation6 + $0x188] sm:$0xff]
    %v2506 = vld [vmem:[#allocation6 + $0x190] sm:$0xff]
    %v2507 = vld [vmem:[#allocation6 + $0x198] sm:$0xff]
    %v2508 = vld [vmem:[#allocation6 + $0x1a0] sm:$0xff]
    %v2509 = vld [vmem:[#allocation6 + $0x1a8] sm:$0xff]
    %v2510 = vld [vmem:[#allocation6 + $0x1b0] sm:$0xff]
    %v2511 = vld [vmem:[#allocation6 + $0x1b8] sm:$0xff]
    %v2512 = vld [vmem:[#allocation6 + $0x1c0] sm:$0xff]
    %v2513 = vld [vmem:[#allocation6 + $0x1c8] sm:$0xff]
    %v2514 = vld [vmem:[#allocation6 + $0x1d0] sm:$0xff]
    %v2515 = vld [vmem:[#allocation6 + $0x1d8] sm:$0xff]
    %v2516 = vld [vmem:[#allocation6 + $0x1e0] sm:$0xff]
    %v2517 = vld [vmem:[#allocation6 + $0x1e8] sm:$0xff]
    %v2518 = vld [vmem:[#allocation6 + $0x1f0] sm:$0xff]
    %v2519 = vld [vmem:[#allocation6 + $0x1f8] sm:$0xff]
    %2520 = vmatprep.subr.mxu0 %v2457
    %2521 = vmatpush1.msra.mxu0 %v2456
    %2522 = vmatprep.subr.mxu0 %v2461
    %2523 = vmatpush1.msra.mxu0 %v2460
    %2524 = vmatprep.subr.mxu0 %v2465
    %2525 = vmatpush1.msra.mxu0 %v2464
    %2526 = vmatprep.subr.mxu0 %v2469
    %2527 = vmatpush1.msra.mxu0 %v2468
    %2528 = vmatprep.subr.mxu0 %v2473
    %2529 = vmatpush1.msra.mxu0 %v2472
    %2530 = vmatprep.subr.mxu0 %v2477
    %2531 = vmatpush1.msra.mxu0 %v2476
    %2532 = vmatprep.subr.mxu0 %v2481
    %2533 = vmatpush1.msra.mxu0 %v2480
    %2534 = vmatprep.subr.mxu0 %v2485
    %2535 = vmatpush1.msra.mxu0 %v2484
    %2536 = vmatprep.subr.mxu0 %v2489
    %2537 = vmatpush1.msra.mxu0 %v2488
    %2538 = vmatprep.subr.mxu0 %v2493
    %2539 = vmatpush1.msra.mxu0 %v2492
    %2540 = vmatprep.subr.mxu0 %v2497
    %2541 = vmatpush1.msra.mxu0 %v2496
    %2542 = vmatprep.subr.mxu0 %v2501
    %2543 = vmatpush1.msra.mxu0 %v2500
    %2544 = vmatprep.subr.mxu0 %v2505
    %2545 = vmatpush1.msra.mxu0 %v2504
    %2546 = vmatprep.subr.mxu0 %v2509
    %2547 = vmatpush1.msra.mxu0 %v2508
    %2548 = vmatprep.subr.mxu0 %v2513
    %2549 = vmatpush1.msra.mxu0 %v2512
    %2550 = vmatprep.subr.mxu0 %v2517
    %2551 = vmatpush1.msra.mxu0 %v2516
    %2552 = vmatprep.subr.mxu0 0.0
    %2553 = vmatpush1.msra.mxu0 0.0
    %2554 = vmatprep.subr.mxu0 0.0
    %2555 = vmatpush1.msra.mxu0 0.0
    %2556 = vmatprep.subr.mxu0 0.0
    %2557 = vmatpush1.msra.mxu0 0.0
    %2558 = vmatprep.subr.mxu0 0.0
    %2559 = vmatpush1.msra.mxu0 0.0
    %2560 = vmatprep.subr.mxu0 0.0
    %2561 = vmatpush1.msra.mxu0 0.0
    %2562 = vmatprep.subr.mxu0 0.0
    %2563 = vmatpush1.msra.mxu0 0.0
    %2564 = vmatprep.subr.mxu0 0.0
    %2565 = vmatpush1.msra.mxu0 0.0
    %2566 = vmatprep.subr.mxu0 0.0
    %2567 = vmatpush1.msra.mxu0 0.0
    %2568 = vmatprep.subr.mxu0 0.0
    %2569 = vmatpush1.msra.mxu0 0.0
    %2570 = vmatprep.subr.mxu0 0.0
    %2571 = vmatpush1.msra.mxu0 0.0
    %2572 = vmatprep.subr.mxu0 0.0
    %2573 = vmatpush1.msra.mxu0 0.0
    %2574 = vmatprep.subr.mxu0 0.0
    %2575 = vmatpush1.msra.mxu0 0.0
    %2576 = vmatprep.subr.mxu0 0.0
    %2577 = vmatpush1.msra.mxu0 0.0
    %2578 = vmatprep.subr.mxu0 0.0
    %2579 = vmatpush1.msra.mxu0 0.0
    %2580 = vmatprep.subr.mxu0 0.0
    %2581 = vmatpush1.msra.mxu0 0.0
    %2582 = vmatprep.subr.mxu0 0.0
    %2583 = vmatpush1.msra.mxu0 0.0
    %2584 = vmatprep.mubr.f32.mxu0 0.0
    %2585 = vmatmul.mubr.f32.gmra.mrb[0].mxu0 %v2150
    %v2586 = vpop.f32.mrb[0].mxu0
    %v2587 = vadd.f32 0.0, %v2586
    %v2588 = vpop.f32.mrb[0].mxu0
    %v2589 = vadd.f32 0.0, %v2588
    %2590 = vdwg.mxu0
    %2591 = vmatprep.subr.mxu0 %v2459
    %2592 = vmatpush1.msra.mxu0 %v2458
    %2593 = vmatprep.subr.mxu0 %v2463
    %2594 = vmatpush1.msra.mxu0 %v2462
    %2595 = vmatprep.subr.mxu0 %v2467
    %2596 = vmatpush1.msra.mxu0 %v2466
    %2597 = vmatprep.subr.mxu0 %v2471
    %2598 = vmatpush1.msra.mxu0 %v2470
    %2599 = vmatprep.subr.mxu0 %v2475
    %2600 = vmatpush1.msra.mxu0 %v2474
    %2601 = vmatprep.subr.mxu0 %v2479
    %2602 = vmatpush1.msra.mxu0 %v2478
    %2603 = vmatprep.subr.mxu0 %v2483
    %2604 = vmatpush1.msra.mxu0 %v2482
    %2605 = vmatprep.subr.mxu0 %v2487
    %2606 = vmatpush1.msra.mxu0 %v2486
    %2607 = vmatprep.subr.mxu0 %v2491
    %2608 = vmatpush1.msra.mxu0 %v2490
    %2609 = vmatprep.subr.mxu0 %v2495
    %2610 = vmatpush1.msra.mxu0 %v2494
    %2611 = vmatprep.subr.mxu0 %v2499
    %2612 = vmatpush1.msra.mxu0 %v2498
    %2613 = vmatprep.subr.mxu0 %v2503
    %2614 = vmatpush1.msra.mxu0 %v2502
    %2615 = vmatprep.subr.mxu0 %v2507
    %2616 = vmatpush1.msra.mxu0 %v2506
    %2617 = vmatprep.subr.mxu0 %v2511
    %2618 = vmatpush1.msra.mxu0 %v2510
    %2619 = vmatprep.subr.mxu0 %v2515
    %2620 = vmatpush1.msra.mxu0 %v2514
    %2621 = vmatprep.subr.mxu0 %v2519
    %2622 = vmatpush1.msra.mxu0 %v2518
    %2623 = vmatprep.subr.mxu0 0.0
    %2624 = vmatpush1.msra.mxu0 0.0
    %2625 = vmatprep.subr.mxu0 0.0
    %2626 = vmatpush1.msra.mxu0 0.0
    %2627 = vmatprep.subr.mxu0 0.0
    %2628 = vmatpush1.msra.mxu0 0.0
    %2629 = vmatprep.subr.mxu0 0.0
    %2630 = vmatpush1.msra.mxu0 0.0
    %2631 = vmatprep.subr.mxu0 0.0
    %2632 = vmatpush1.msra.mxu0 0.0
    %2633 = vmatprep.subr.mxu0 0.0
    %2634 = vmatpush1.msra.mxu0 0.0
    %2635 = vmatprep.subr.mxu0 0.0
    %2636 = vmatpush1.msra.mxu0 0.0
    %2637 = vmatprep.subr.mxu0 0.0
    %2638 = vmatpush1.msra.mxu0 0.0
    %2639 = vmatprep.subr.mxu0 0.0
    %2640 = vmatpush1.msra.mxu0 0.0
    %2641 = vmatprep.subr.mxu0 0.0
    %2642 = vmatpush1.msra.mxu0 0.0
    %2643 = vmatprep.subr.mxu0 0.0
    %2644 = vmatpush1.msra.mxu0 0.0
    %2645 = vmatprep.subr.mxu0 0.0
    %2646 = vmatpush1.msra.mxu0 0.0
    %2647 = vmatprep.subr.mxu0 0.0
    %2648 = vmatpush1.msra.mxu0 0.0
    %2649 = vmatprep.subr.mxu0 0.0
    %2650 = vmatpush1.msra.mxu0 0.0
    %2651 = vmatprep.subr.mxu0 0.0
    %2652 = vmatpush1.msra.mxu0 0.0
    %2653 = vmatprep.subr.mxu0 0.0
    %2654 = vmatpush1.msra.mxu0 0.0
    %2655 = vmatprep.mubr.f32.mxu0 0.0
    %2656 = vmatmul.mubr.f32.gmra.mrb[0].mxu0 %v2150
    %v2657 = vpop.f32.mrb[0].mxu0
    %v2658 = vadd.f32 0.0, %v2657
    %v2659 = vpop.f32.mrb[0].mxu0
    %v2660 = vadd.f32 0.0, %v2659
    %2661 = vdwg.mxu0
    %2662 = vmatprep.subr.mxu0 %v2393
    %2663 = vmatpush1.msra.mxu0 %v2392
    %2664 = vmatprep.subr.mxu0 %v2397
    %2665 = vmatpush1.msra.mxu0 %v2396
    %2666 = vmatprep.subr.mxu0 %v2401
    %2667 = vmatpush1.msra.mxu0 %v2400
    %2668 = vmatprep.subr.mxu0 %v2405
    %2669 = vmatpush1.msra.mxu0 %v2404
    %2670 = vmatprep.subr.mxu0 %v2409
    %2671 = vmatpush1.msra.mxu0 %v2408
    %2672 = vmatprep.subr.mxu0 %v2413
    %2673 = vmatpush1.msra.mxu0 %v2412
    %2674 = vmatprep.subr.mxu0 %v2417
    %2675 = vmatpush1.msra.mxu0 %v2416
    %2676 = vmatprep.subr.mxu0 %v2421
    %2677 = vmatpush1.msra.mxu0 %v2420
    %2678 = vmatprep.subr.mxu0 %v2425
    %2679 = vmatpush1.msra.mxu0 %v2424
    %2680 = vmatprep.subr.mxu0 %v2429
    %2681 = vmatpush1.msra.mxu0 %v2428
    %2682 = vmatprep.subr.mxu0 %v2433
    %2683 = vmatpush1.msra.mxu0 %v2432
    %2684 = vmatprep.subr.mxu0 %v2437
    %2685 = vmatpush1.msra.mxu0 %v2436
    %2686 = vmatprep.subr.mxu0 %v2441
    %2687 = vmatpush1.msra.mxu0 %v2440
    %2688 = vmatprep.subr.mxu0 %v2445
    %2689 = vmatpush1.msra.mxu0 %v2444
    %2690 = vmatprep.subr.mxu0 %v2449
    %2691 = vmatpush1.msra.mxu0 %v2448
    %2692 = vmatprep.subr.mxu0 %v2453
    %2693 = vmatpush1.msra.mxu0 %v2452
    %2694 = vmatprep.subr.mxu0 0.0
    %2695 = vmatpush1.msra.mxu0 0.0
    %2696 = vmatprep.subr.mxu0 0.0
    %2697 = vmatpush1.msra.mxu0 0.0
    %2698 = vmatprep.subr.mxu0 0.0
    %2699 = vmatpush1.msra.mxu0 0.0
    %2700 = vmatprep.subr.mxu0 0.0
    %2701 = vmatpush1.msra.mxu0 0.0
    %2702 = vmatprep.subr.mxu0 0.0
    %2703 = vmatpush1.msra.mxu0 0.0
    %2704 = vmatprep.subr.mxu0 0.0
    %2705 = vmatpush1.msra.mxu0 0.0
    %2706 = vmatprep.subr.mxu0 0.0
    %2707 = vmatpush1.msra.mxu0 0.0
    %2708 = vmatprep.subr.mxu0 0.0
    %2709 = vmatpush1.msra.mxu0 0.0
    %2710 = vmatprep.subr.mxu0 0.0
    %2711 = vmatpush1.msra.mxu0 0.0
    %2712 = vmatprep.subr.mxu0 0.0
    %2713 = vmatpush1.msra.mxu0 0.0
    %2714 = vmatprep.subr.mxu0 0.0
    %2715 = vmatpush1.msra.mxu0 0.0
    %2716 = vmatprep.subr.mxu0 0.0
    %2717 = vmatpush1.msra.mxu0 0.0
    %2718 = vmatprep.subr.mxu0 0.0
    %2719 = vmatpush1.msra.mxu0 0.0
    %2720 = vmatprep.subr.mxu0 0.0
    %2721 = vmatpush1.msra.mxu0 0.0
    %2722 = vmatprep.subr.mxu0 0.0
    %2723 = vmatpush1.msra.mxu0 0.0
    %2724 = vmatprep.subr.mxu0 0.0
    %2725 = vmatpush1.msra.mxu0 0.0
    %2726 = vmatprep.mubr.f32.mxu0 0.0
    %2727 = vmatmul.mubr.f32.gmra.mrb[0].mxu0 %v2391
    %v2728 = vpop.f32.mrb[0].mxu0
    %v2729 = vadd.f32 %v2587, %v2728
    %v2730 = vpop.f32.mrb[0].mxu0
    %v2731 = vadd.f32 %v2589, %v2730
    %2732 = vdwg.mxu0
    %2733 = vmatprep.subr.mxu0 %v2395
    %2734 = vmatpush1.msra.mxu0 %v2394
    %2735 = vmatprep.subr.mxu0 %v2399
    %2736 = vmatpush1.msra.mxu0 %v2398
    %2737 = vmatprep.subr.mxu0 %v2403
    %2738 = vmatpush1.msra.mxu0 %v2402
    %2739 = vmatprep.subr.mxu0 %v2407
    %2740 = vmatpush1.msra.mxu0 %v2406
    %2741 = vmatprep.subr.mxu0 %v2411
    %2742 = vmatpush1.msra.mxu0 %v2410
    %2743 = vmatprep.subr.mxu0 %v2415
    %2744 = vmatpush1.msra.mxu0 %v2414
    %2745 = vmatprep.subr.mxu0 %v2419
    %2746 = vmatpush1.msra.mxu0 %v2418
    %2747 = vmatprep.subr.mxu0 %v2423
    %2748 = vmatpush1.msra.mxu0 %v2422
    %2749 = vmatprep.subr.mxu0 %v2427
    %2750 = vmatpush1.msra.mxu0 %v2426
    %2751 = vmatprep.subr.mxu0 %v2431
    %2752 = vmatpush1.msra.mxu0 %v2430
    %2753 = vmatprep.subr.mxu0 %v2435
    %2754 = vmatpush1.msra.mxu0 %v2434
    %2755 = vmatprep.subr.mxu0 %v2439
    %2756 = vmatpush1.msra.mxu0 %v2438
    %2757 = vmatprep.subr.mxu0 %v2443
    %2758 = vmatpush1.msra.mxu0 %v2442
    %2759 = vmatprep.subr.mxu0 %v2447
    %2760 = vmatpush1.msra.mxu0 %v2446
    %2761 = vmatprep.subr.mxu0 %v2451
    %2762 = vmatpush1.msra.mxu0 %v2450
    %2763 = vmatprep.subr.mxu0 %v2455
    %2764 = vmatpush1.msra.mxu0 %v2454
    %2765 = vmatprep.subr.mxu0 0.0
    %2766 = vmatpush1.msra.mxu0 0.0
    %2767 = vmatprep.subr.mxu0 0.0
    %2768 = vmatpush1.msra.mxu0 0.0
    %2769 = vmatprep.subr.mxu0 0.0
    %2770 = vmatpush1.msra.mxu0 0.0
    %2771 = vmatprep.subr.mxu0 0.0
    %2772 = vmatpush1.msra.mxu0 0.0
    %2773 = vmatprep.subr.mxu0 0.0
    %2774 = vmatpush1.msra.mxu0 0.0
    %2775 = vmatprep.subr.mxu0 0.0
    %2776 = vmatpush1.msra.mxu0 0.0
    %2777 = vmatprep.subr.mxu0 0.0
    %2778 = vmatpush1.msra.mxu0 0.0
    %2779 = vmatprep.subr.mxu0 0.0
    %2780 = vmatpush1.msra.mxu0 0.0
    %2781 = vmatprep.subr.mxu0 0.0
    %2782 = vmatpush1.msra.mxu0 0.0
    %2783 = vmatprep.subr.mxu0 0.0
    %2784 = vmatpush1.msra.mxu0 0.0
    %2785 = vmatprep.subr.mxu0 0.0
    %2786 = vmatpush1.msra.mxu0 0.0
    %2787 = vmatprep.subr.mxu0 0.0
    %2788 = vmatpush1.msra.mxu0 0.0
    %2789 = vmatprep.subr.mxu0 0.0
    %2790 = vmatpush1.msra.mxu0 0.0
    %2791 = vmatprep.subr.mxu0 0.0
    %2792 = vmatpush1.msra.mxu0 0.0
    %2793 = vmatprep.subr.mxu0 0.0
    %2794 = vmatpush1.msra.mxu0 0.0
    %2795 = vmatprep.subr.mxu0 0.0
    %2796 = vmatpush1.msra.mxu0 0.0
    %2797 = vmatprep.mubr.f32.mxu0 0.0
    %2798 = vmatmul.mubr.f32.gmra.mrb[0].mxu0 %v2391
    %v2799 = vpop.f32.mrb[0].mxu0
    %v2800 = vadd.f32 %v2658, %v2799
    %v2801 = vpop.f32.mrb[0].mxu0
    %v2802 = vadd.f32 %v2660, %v2801
    %2803 = vdwg.mxu0
    %v2804 = vld [vmem:[%s4] sm:$0xf]
    %v2806 = vlaneseq
    %v2807 = vshrl.u32 %v2806, 7
    %v2808 = vsub.s32 0, %v2807
    %v2809 = vrot.slane %v2804, %v2808
    %v2810 = vlaneseq
    %v2811 = vshrl.u32 %v2810, 7
    %v2812 = vsub.s32 1, %v2811
    %v2813 = vrot.slane %v2804, %v2812
    %v2814 = vlaneseq
    %v2815 = vshrl.u32 %v2814, 7
    %v2816 = vsub.s32 2, %v2815
    %v2817 = vrot.slane %v2804, %v2816
    %v2818 = vlaneseq
    %v2819 = vshrl.u32 %v2818, 7
    %v2820 = vsub.s32 3, %v2819
    %v2821 = vrot.slane %v2804, %v2820
    %v2826 = vadd.f32 %v2729, %v2809
    %v2827 = vadd.f32 %v2731, %v2813
    %v2828 = vadd.f32 %v2800, %v2817
    %v2829 = vadd.f32 %v2802, %v2821
    %v2830 = vxor.u32 %v2826, 2147483648
    %v2831 = vxor.u32 %v2827, 2147483648
    %v2832 = vxor.u32 %v2828, 2147483648
    %v2833 = vmul.f32 %v2830, 1.442695
    %v2834 = vpow.pop %v2833
    %v2835 = vmul.f32 %v2831, 1.442695
    %v2836 = vpow.pop %v2835
    %v2837 = vmul.f32 %v2832, 1.442695
    %v2838 = vpow.pop %v2837
    %v2839 = vadd.f32 %v2834, 1.0
    %v2840 = vadd.f32 %v2836, 1.0
    %v2841 = vadd.f32 %v2838, 1.0
    %v2842 = vrcp.pop %v2839
    %v2843 = vmul.f32 1.0, %v2842
    %v2844 = vrcp.pop %v2840
    %v2845 = vmul.f32 1.0, %v2844
    %v2846 = vrcp.pop %v2841
    %v2847 = vmul.f32 1.0, %v2846
    %v2848 = vtanh.pop %v2829
    %v2849 = vmul.f32 %v2845, %v2148
    %v2850 = vmul.f32 %v2843, %v2848
    %v2851 = vadd.f32 %v2849, %v2850
    %v2852 = vtanh.pop %v2851
    %v2853 = vmul.f32 %v2847, %v2852
    %s2854 = scalar_lea.vmem %s5, 24
    %2855 = vst [vmem:[%s2854] sm:$0xff] %v2853
    %s2856 = scalar_lea.vmem %s0, 128
    %v2857 = vld [vmem:[%s2856] sm:$0xff]
    %v2858 = vld [vmem:[%s2856 + $0x8] sm:$0xff]
    %v2859 = vld [vmem:[%s2856 + $0x10] sm:$0xff]
    %v2860 = vld [vmem:[%s2856 + $0x18] sm:$0xff]
    %v2861 = vld [vmem:[%s1] sm:$0xff]
    %v2862 = vld [vmem:[%s1 + $0x8] sm:$0xff]
    %v2863 = vld [vmem:[%s1 + $0x10] sm:$0xff]
    %v2864 = vld [vmem:[%s1 + $0x18] sm:$0xff]
    %v2865 = vld [vmem:[%s1 + $0x20] sm:$0xff]
    %v2866 = vld [vmem:[%s1 + $0x28] sm:$0xff]
    %v2867 = vld [vmem:[%s1 + $0x30] sm:$0xff]
    %v2868 = vld [vmem:[%s1 + $0x38] sm:$0xff]
    %v2869 = vld [vmem:[%s1 + $0x40] sm:$0xff]
    %v2870 = vld [vmem:[%s1 + $0x48] sm:$0xff]
    %v2871 = vld [vmem:[%s1 + $0x50] sm:$0xff]
    %v2872 = vld [vmem:[%s1 + $0x58] sm:$0xff]
    %v2873 = vld [vmem:[%s1 + $0x60] sm:$0xff]
    %v2874 = vld [vmem:[%s1 + $0x68] sm:$0xff]
    %v2875 = vld [vmem:[%s1 + $0x70] sm:$0xff]
    %v2876 = vld [vmem:[%s1 + $0x78] sm:$0xff]
    %v2877 = vld [vmem:[%s1 + $0x80] sm:$0xff]
    %v2878 = vld [vmem:[%s1 + $0x88] sm:$0xff]
    %v2879 = vld [vmem:[%s1 + $0x90] sm:$0xff]
    %v2880 = vld [vmem:[%s1 + $0x98] sm:$0xff]
    %v2881 = vld [vmem:[%s1 + $0xa0] sm:$0xff]
    %v2882 = vld [vmem:[%s1 + $0xa8] sm:$0xff]
    %v2883 = vld [vmem:[%s1 + $0xb0] sm:$0xff]
    %v2884 = vld [vmem:[%s1 + $0xb8] sm:$0xff]
    %v2885 = vld [vmem:[%s1 + $0xc0] sm:$0xff]
    %v2886 = vld [vmem:[%s1 + $0xc8] sm:$0xff]
    %v2887 = vld [vmem:[%s1 + $0xd0] sm:$0xff]
    %v2888 = vld [vmem:[%s1 + $0xd8] sm:$0xff]
    %v2889 = vld [vmem:[%s1 + $0xe0] sm:$0xff]
    %v2890 = vld [vmem:[%s1 + $0xe8] sm:$0xff]
    %v2891 = vld [vmem:[%s1 + $0xf0] sm:$0xff]
    %v2892 = vld [vmem:[%s1 + $0xf8] sm:$0xff]
    %v2893 = vld [vmem:[%s1 + $0x100] sm:$0xff]
    %v2894 = vld [vmem:[%s1 + $0x108] sm:$0xff]
    %v2895 = vld [vmem:[%s1 + $0x110] sm:$0xff]
    %v2896 = vld [vmem:[%s1 + $0x118] sm:$0xff]
    %v2897 = vld [vmem:[%s1 + $0x120] sm:$0xff]
    %v2898 = vld [vmem:[%s1 + $0x128] sm:$0xff]
    %v2899 = vld [vmem:[%s1 + $0x130] sm:$0xff]
    %v2900 = vld [vmem:[%s1 + $0x138] sm:$0xff]
    %v2901 = vld [vmem:[%s1 + $0x140] sm:$0xff]
    %v2902 = vld [vmem:[%s1 + $0x148] sm:$0xff]
    %v2903 = vld [vmem:[%s1 + $0x150] sm:$0xff]
    %v2904 = vld [vmem:[%s1 + $0x158] sm:$0xff]
    %v2905 = vld [vmem:[%s1 + $0x160] sm:$0xff]
    %v2906 = vld [vmem:[%s1 + $0x168] sm:$0xff]
    %v2907 = vld [vmem:[%s1 + $0x170] sm:$0xff]
    %v2908 = vld [vmem:[%s1 + $0x178] sm:$0xff]
    %v2909 = vld [vmem:[%s1 + $0x180] sm:$0xff]
    %v2910 = vld [vmem:[%s1 + $0x188] sm:$0xff]
    %v2911 = vld [vmem:[%s1 + $0x190] sm:$0xff]
    %v2912 = vld [vmem:[%s1 + $0x198] sm:$0xff]
    %v2913 = vld [vmem:[%s1 + $0x1a0] sm:$0xff]
    %v2914 = vld [vmem:[%s1 + $0x1a8] sm:$0xff]
    %v2915 = vld [vmem:[%s1 + $0x1b0] sm:$0xff]
    %v2916 = vld [vmem:[%s1 + $0x1b8] sm:$0xff]
    %v2917 = vld [vmem:[%s1 + $0x1c0] sm:$0xff]
    %v2918 = vld [vmem:[%s1 + $0x1c8] sm:$0xff]
    %v2919 = vld [vmem:[%s1 + $0x1d0] sm:$0xff]
    %v2920 = vld [vmem:[%s1 + $0x1d8] sm:$0xff]
    %v2921 = vld [vmem:[%s1 + $0x1e0] sm:$0xff]
    %v2922 = vld [vmem:[%s1 + $0x1e8] sm:$0xff]
    %v2923 = vld [vmem:[%s1 + $0x1f0] sm:$0xff]
    %v2924 = vld [vmem:[%s1 + $0x1f8] sm:$0xff]
    %2925 = vmatprep.subr.mxu0 %v2862
    %2926 = vmatpush1.msra.mxu0 %v2861
    %2927 = vmatprep.subr.mxu0 %v2866
    %2928 = vmatpush1.msra.mxu0 %v2865
    %2929 = vmatprep.subr.mxu0 %v2870
    %2930 = vmatpush1.msra.mxu0 %v2869
    %2931 = vmatprep.subr.mxu0 %v2874
    %2932 = vmatpush1.msra.mxu0 %v2873
    %2933 = vmatprep.subr.mxu0 %v2878
    %2934 = vmatpush1.msra.mxu0 %v2877
    %2935 = vmatprep.subr.mxu0 %v2882
    %2936 = vmatpush1.msra.mxu0 %v2881
    %2937 = vmatprep.subr.mxu0 %v2886
    %2938 = vmatpush1.msra.mxu0 %v2885
    %2939 = vmatprep.subr.mxu0 %v2890
    %2940 = vmatpush1.msra.mxu0 %v2889
    %2941 = vmatprep.subr.mxu0 %v2894
    %2942 = vmatpush1.msra.mxu0 %v2893
    %2943 = vmatprep.subr.mxu0 %v2898
    %2944 = vmatpush1.msra.mxu0 %v2897
    %2945 = vmatprep.subr.mxu0 %v2902
    %2946 = vmatpush1.msra.mxu0 %v2901
    %2947 = vmatprep.subr.mxu0 %v2906
    %2948 = vmatpush1.msra.mxu0 %v2905
    %2949 = vmatprep.subr.mxu0 %v2910
    %2950 = vmatpush1.msra.mxu0 %v2909
    %2951 = vmatprep.subr.mxu0 %v2914
    %2952 = vmatpush1.msra.mxu0 %v2913
    %2953 = vmatprep.subr.mxu0 %v2918
    %2954 = vmatpush1.msra.mxu0 %v2917
    %2955 = vmatprep.subr.mxu0 %v2922
    %2956 = vmatpush1.msra.mxu0 %v2921
    %2957 = vmatprep.subr.mxu0 0.0
    %2958 = vmatpush1.msra.mxu0 0.0
    %2959 = vmatprep.subr.mxu0 0.0
    %2960 = vmatpush1.msra.mxu0 0.0
    %2961 = vmatprep.subr.mxu0 0.0
    %2962 = vmatpush1.msra.mxu0 0.0
    %2963 = vmatprep.subr.mxu0 0.0
    %2964 = vmatpush1.msra.mxu0 0.0
    %2965 = vmatprep.subr.mxu0 0.0
    %2966 = vmatpush1.msra.mxu0 0.0
    %2967 = vmatprep.subr.mxu0 0.0
    %2968 = vmatpush1.msra.mxu0 0.0
    %2969 = vmatprep.subr.mxu0 0.0
    %2970 = vmatpush1.msra.mxu0 0.0
    %2971 = vmatprep.subr.mxu0 0.0
    %2972 = vmatpush1.msra.mxu0 0.0
    %2973 = vmatprep.subr.mxu0 0.0
    %2974 = vmatpush1.msra.mxu0 0.0
    %2975 = vmatprep.subr.mxu0 0.0
    %2976 = vmatpush1.msra.mxu0 0.0
    %2977 = vmatprep.subr.mxu0 0.0
    %2978 = vmatpush1.msra.mxu0 0.0
    %2979 = vmatprep.subr.mxu0 0.0
    %2980 = vmatpush1.msra.mxu0 0.0
    %2981 = vmatprep.subr.mxu0 0.0
    %2982 = vmatpush1.msra.mxu0 0.0
    %2983 = vmatprep.subr.mxu0 0.0
    %2984 = vmatpush1.msra.mxu0 0.0
    %2985 = vmatprep.subr.mxu0 0.0
    %2986 = vmatpush1.msra.mxu0 0.0
    %2987 = vmatprep.subr.mxu0 0.0
    %2988 = vmatpush1.msra.mxu0 0.0
    %2989 = vmatprep.mubr.f32.mxu0 0.0
    %2990 = vmatmul.mubr.f32.gmra.mrb[0].mxu0 %v2391
    %v2991 = vpop.f32.mrb[0].mxu0
    %v2992 = vadd.f32 0.0, %v2991
    %v2993 = vpop.f32.mrb[0].mxu0
    %v2994 = vadd.f32 0.0, %v2993
    %2995 = vdwg.mxu0
    %2996 = vmatprep.subr.mxu0 %v2864
    %2997 = vmatpush1.msra.mxu0 %v2863
    %2998 = vmatprep.subr.mxu0 %v2868
    %2999 = vmatpush1.msra.mxu0 %v2867
    %3000 = vmatprep.subr.mxu0 %v2872
    %3001 = vmatpush1.msra.mxu0 %v2871
    %3002 = vmatprep.subr.mxu0 %v2876
    %3003 = vmatpush1.msra.mxu0 %v2875
    %3004 = vmatprep.subr.mxu0 %v2880
    %3005 = vmatpush1.msra.mxu0 %v2879
    %3006 = vmatprep.subr.mxu0 %v2884
    %3007 = vmatpush1.msra.mxu0 %v2883
    %3008 = vmatprep.subr.mxu0 %v2888
    %3009 = vmatpush1.msra.mxu0 %v2887
    %3010 = vmatprep.subr.mxu0 %v2892
    %3011 = vmatpush1.msra.mxu0 %v2891
    %3012 = vmatprep.subr.mxu0 %v2896
    %3013 = vmatpush1.msra.mxu0 %v2895
    %3014 = vmatprep.subr.mxu0 %v2900
    %3015 = vmatpush1.msra.mxu0 %v2899
    %3016 = vmatprep.subr.mxu0 %v2904
    %3017 = vmatpush1.msra.mxu0 %v2903
    %3018 = vmatprep.subr.mxu0 %v2908
    %3019 = vmatpush1.msra.mxu0 %v2907
    %3020 = vmatprep.subr.mxu0 %v2912
    %3021 = vmatpush1.msra.mxu0 %v2911
    %3022 = vmatprep.subr.mxu0 %v2916
    %3023 = vmatpush1.msra.mxu0 %v2915
    %3024 = vmatprep.subr.mxu0 %v2920
    %3025 = vmatpush1.msra.mxu0 %v2919
    %3026 = vmatprep.subr.mxu0 %v2924
    %3027 = vmatpush1.msra.mxu0 %v2923
    %3028 = vmatprep.subr.mxu0 0.0
    %3029 = vmatpush1.msra.mxu0 0.0
    %3030 = vmatprep.subr.mxu0 0.0
    %3031 = vmatpush1.msra.mxu0 0.0
    %3032 = vmatprep.subr.mxu0 0.0
    %3033 = vmatpush1.msra.mxu0 0.0
    %3034 = vmatprep.subr.mxu0 0.0
    %3035 = vmatpush1.msra.mxu0 0.0
    %3036 = vmatprep.subr.mxu0 0.0
    %3037 = vmatpush1.msra.mxu0 0.0
    %3038 = vmatprep.subr.mxu0 0.0
    %3039 = vmatpush1.msra.mxu0 0.0
    %3040 = vmatprep.subr.mxu0 0.0
    %3041 = vmatpush1.msra.mxu0 0.0
    %3042 = vmatprep.subr.mxu0 0.0
    %3043 = vmatpush1.msra.mxu0 0.0
    %3044 = vmatprep.subr.mxu0 0.0
    %3045 = vmatpush1.msra.mxu0 0.0
    %3046 = vmatprep.subr.mxu0 0.0
    %3047 = vmatpush1.msra.mxu0 0.0
    %3048 = vmatprep.subr.mxu0 0.0
    %3049 = vmatpush1.msra.mxu0 0.0
    %3050 = vmatprep.subr.mxu0 0.0
    %3051 = vmatpush1.msra.mxu0 0.0
    %3052 = vmatprep.subr.mxu0 0.0
    %3053 = vmatpush1.msra.mxu0 0.0
    %3054 = vmatprep.subr.mxu0 0.0
    %3055 = vmatpush1.msra.mxu0 0.0
    %3056 = vmatprep.subr.mxu0 0.0
    %3057 = vmatpush1.msra.mxu0 0.0
    %3058 = vmatprep.subr.mxu0 0.0
    %3059 = vmatpush1.msra.mxu0 0.0
    %3060 = vmatprep.mubr.f32.mxu0 0.0
    %3061 = vmatmul.mubr.f32.gmra.mrb[0].mxu0 %v2391
    %v3062 = vpop.f32.mrb[0].mxu0
    %v3063 = vadd.f32 0.0, %v3062
    %v3064 = vpop.f32.mrb[0].mxu0
    %v3065 = vadd.f32 0.0, %v3064
    %3066 = vdwg.mxu0
    %v3067 = vadd.f32 %v2857, %v2992
    %v3068 = vadd.f32 %v2858, %v2994
    %v3069 = vadd.f32 %v2859, %v3063
    %v3070 = vadd.f32 %v2860, %v3065
    %v3071 = vxor.u32 %v3067, 2147483648
    %v3072 = vxor.u32 %v3068, 2147483648
    %v3073 = vxor.u32 %v3069, 2147483648
    %v3074 = vmul.f32 %v3071, 1.442695
    %v3075 = vpow.pop %v3074
    %v3076 = vmul.f32 %v3072, 1.442695
    %v3077 = vpow.pop %v3076
    %v3078 = vmul.f32 %v3073, 1.442695
    %v3079 = vpow.pop %v3078
    %v3080 = vadd.f32 %v3075, 1.0
    %v3081 = vadd.f32 %v3077, 1.0
    %v3082 = vadd.f32 %v3079, 1.0
    %v3083 = vrcp.pop %v3080
    %v3084 = vmul.f32 1.0, %v3083
    %v3085 = vrcp.pop %v3081
    %v3086 = vmul.f32 1.0, %v3085
    %v3087 = vrcp.pop %v3082
    %v3088 = vmul.f32 1.0, %v3087
    %v3089 = vtanh.pop %v3070
    %v3090 = vmul.f32 %v3086, %v2389
    %v3091 = vmul.f32 %v3084, %v3089
    %v3092 = vadd.f32 %v3090, %v3091
    %v3093 = vtanh.pop %v3092
    %v3094 = vmul.f32 %v3088, %v3093
    %v3095 = vld [vmem:[%s2] sm:$0xff]
    %v3096 = vld [vmem:[%s2 + $0x8] sm:$0xff]
    %v3097 = vld [vmem:[%s2 + $0x10] sm:$0xff]
    %v3098 = vld [vmem:[%s2 + $0x18] sm:$0xff]
    %v3099 = vld [vmem:[%s2 + $0x20] sm:$0xff]
    %v3100 = vld [vmem:[%s2 + $0x28] sm:$0xff]
    %v3101 = vld [vmem:[%s2 + $0x30] sm:$0xff]
    %v3102 = vld [vmem:[%s2 + $0x38] sm:$0xff]
    %v3103 = vld [vmem:[%s2 + $0x40] sm:$0xff]
    %v3104 = vld [vmem:[%s2 + $0x48] sm:$0xff]
    %v3105 = vld [vmem:[%s2 + $0x50] sm:$0xff]
    %v3106 = vld [vmem:[%s2 + $0x58] sm:$0xff]
    %v3107 = vld [vmem:[%s2 + $0x60] sm:$0xff]
    %v3108 = vld [vmem:[%s2 + $0x68] sm:$0xff]
    %v3109 = vld [vmem:[%s2 + $0x70] sm:$0xff]
    %v3110 = vld [vmem:[%s2 + $0x78] sm:$0xff]
    %v3111 = vld [vmem:[%s2 + $0x80] sm:$0xff]
    %v3112 = vld [vmem:[%s2 + $0x88] sm:$0xff]
    %v3113 = vld [vmem:[%s2 + $0x90] sm:$0xff]
    %v3114 = vld [vmem:[%s2 + $0x98] sm:$0xff]
    %v3115 = vld [vmem:[%s2 + $0xa0] sm:$0xff]
    %v3116 = vld [vmem:[%s2 + $0xa8] sm:$0xff]
    %v3117 = vld [vmem:[%s2 + $0xb0] sm:$0xff]
    %v3118 = vld [vmem:[%s2 + $0xb8] sm:$0xff]
    %v3119 = vld [vmem:[%s2 + $0xc0] sm:$0xff]
    %v3120 = vld [vmem:[%s2 + $0xc8] sm:$0xff]
    %v3121 = vld [vmem:[%s2 + $0xd0] sm:$0xff]
    %v3122 = vld [vmem:[%s2 + $0xd8] sm:$0xff]
    %v3123 = vld [vmem:[%s2 + $0xe0] sm:$0xff]
    %v3124 = vld [vmem:[%s2 + $0xe8] sm:$0xff]
    %v3125 = vld [vmem:[%s2 + $0xf0] sm:$0xff]
    %v3126 = vld [vmem:[%s2 + $0xf8] sm:$0xff]
    %v3127 = vld [vmem:[%s2 + $0x100] sm:$0xff]
    %v3128 = vld [vmem:[%s2 + $0x108] sm:$0xff]
    %v3129 = vld [vmem:[%s2 + $0x110] sm:$0xff]
    %v3130 = vld [vmem:[%s2 + $0x118] sm:$0xff]
    %v3131 = vld [vmem:[%s2 + $0x120] sm:$0xff]
    %v3132 = vld [vmem:[%s2 + $0x128] sm:$0xff]
    %v3133 = vld [vmem:[%s2 + $0x130] sm:$0xff]
    %v3134 = vld [vmem:[%s2 + $0x138] sm:$0xff]
    %v3135 = vld [vmem:[%s2 + $0x140] sm:$0xff]
    %v3136 = vld [vmem:[%s2 + $0x148] sm:$0xff]
    %v3137 = vld [vmem:[%s2 + $0x150] sm:$0xff]
    %v3138 = vld [vmem:[%s2 + $0x158] sm:$0xff]
    %v3139 = vld [vmem:[%s2 + $0x160] sm:$0xff]
    %v3140 = vld [vmem:[%s2 + $0x168] sm:$0xff]
    %v3141 = vld [vmem:[%s2 + $0x170] sm:$0xff]
    %v3142 = vld [vmem:[%s2 + $0x178] sm:$0xff]
    %v3143 = vld [vmem:[%s2 + $0x180] sm:$0xff]
    %v3144 = vld [vmem:[%s2 + $0x188] sm:$0xff]
    %v3145 = vld [vmem:[%s2 + $0x190] sm:$0xff]
    %v3146 = vld [vmem:[%s2 + $0x198] sm:$0xff]
    %v3147 = vld [vmem:[%s2 + $0x1a0] sm:$0xff]
    %v3148 = vld [vmem:[%s2 + $0x1a8] sm:$0xff]
    %v3149 = vld [vmem:[%s2 + $0x1b0] sm:$0xff]
    %v3150 = vld [vmem:[%s2 + $0x1b8] sm:$0xff]
    %v3151 = vld [vmem:[%s2 + $0x1c0] sm:$0xff]
    %v3152 = vld [vmem:[%s2 + $0x1c8] sm:$0xff]
    %v3153 = vld [vmem:[%s2 + $0x1d0] sm:$0xff]
    %v3154 = vld [vmem:[%s2 + $0x1d8] sm:$0xff]
    %v3155 = vld [vmem:[%s2 + $0x1e0] sm:$0xff]
    %v3156 = vld [vmem:[%s2 + $0x1e8] sm:$0xff]
    %v3157 = vld [vmem:[%s2 + $0x1f0] sm:$0xff]
    %v3158 = vld [vmem:[%s2 + $0x1f8] sm:$0xff]
    %v3159 = vld [vmem:[#allocation6] sm:$0xff]
    %v3160 = vld [vmem:[#allocation6 + $0x8] sm:$0xff]
    %v3161 = vld [vmem:[#allocation6 + $0x10] sm:$0xff]
    %v3162 = vld [vmem:[#allocation6 + $0x18] sm:$0xff]
    %v3163 = vld [vmem:[#allocation6 + $0x20] sm:$0xff]
    %v3164 = vld [vmem:[#allocation6 + $0x28] sm:$0xff]
    %v3165 = vld [vmem:[#allocation6 + $0x30] sm:$0xff]
    %v3166 = vld [vmem:[#allocation6 + $0x38] sm:$0xff]
    %v3167 = vld [vmem:[#allocation6 + $0x40] sm:$0xff]
    %v3168 = vld [vmem:[#allocation6 + $0x48] sm:$0xff]
    %v3169 = vld [vmem:[#allocation6 + $0x50] sm:$0xff]
    %v3170 = vld [vmem:[#allocation6 + $0x58] sm:$0xff]
    %v3171 = vld [vmem:[#allocation6 + $0x60] sm:$0xff]
    %v3172 = vld [vmem:[#allocation6 + $0x68] sm:$0xff]
    %v3173 = vld [vmem:[#allocation6 + $0x70] sm:$0xff]
    %v3174 = vld [vmem:[#allocation6 + $0x78] sm:$0xff]
    %v3175 = vld [vmem:[#allocation6 + $0x80] sm:$0xff]
    %v3176 = vld [vmem:[#allocation6 + $0x88] sm:$0xff]
    %v3177 = vld [vmem:[#allocation6 + $0x90] sm:$0xff]
    %v3178 = vld [vmem:[#allocation6 + $0x98] sm:$0xff]
    %v3179 = vld [vmem:[#allocation6 + $0xa0] sm:$0xff]
    %v3180 = vld [vmem:[#allocation6 + $0xa8] sm:$0xff]
    %v3181 = vld [vmem:[#allocation6 + $0xb0] sm:$0xff]
    %v3182 = vld [vmem:[#allocation6 + $0xb8] sm:$0xff]
    %v3183 = vld [vmem:[#allocation6 + $0xc0] sm:$0xff]
    %v3184 = vld [vmem:[#allocation6 + $0xc8] sm:$0xff]
    %v3185 = vld [vmem:[#allocation6 + $0xd0] sm:$0xff]
    %v3186 = vld [vmem:[#allocation6 + $0xd8] sm:$0xff]
    %v3187 = vld [vmem:[#allocation6 + $0xe0] sm:$0xff]
    %v3188 = vld [vmem:[#allocation6 + $0xe8] sm:$0xff]
    %v3189 = vld [vmem:[#allocation6 + $0xf0] sm:$0xff]
    %v3190 = vld [vmem:[#allocation6 + $0xf8] sm:$0xff]
    %v3191 = vld [vmem:[#allocation6 + $0x100] sm:$0xff]
    %v3192 = vld [vmem:[#allocation6 + $0x108] sm:$0xff]
    %v3193 = vld [vmem:[#allocation6 + $0x110] sm:$0xff]
    %v3194 = vld [vmem:[#allocation6 + $0x118] sm:$0xff]
    %v3195 = vld [vmem:[#allocation6 + $0x120] sm:$0xff]
    %v3196 = vld [vmem:[#allocation6 + $0x128] sm:$0xff]
    %v3197 = vld [vmem:[#allocation6 + $0x130] sm:$0xff]
    %v3198 = vld [vmem:[#allocation6 + $0x138] sm:$0xff]
    %v3199 = vld [vmem:[#allocation6 + $0x140] sm:$0xff]
    %v3200 = vld [vmem:[#allocation6 + $0x148] sm:$0xff]
    %v3201 = vld [vmem:[#allocation6 + $0x150] sm:$0xff]
    %v3202 = vld [vmem:[#allocation6 + $0x158] sm:$0xff]
    %v3203 = vld [vmem:[#allocation6 + $0x160] sm:$0xff]
    %v3204 = vld [vmem:[#allocation6 + $0x168] sm:$0xff]
    %v3205 = vld [vmem:[#allocation6 + $0x170] sm:$0xff]
    %v3206 = vld [vmem:[#allocation6 + $0x178] sm:$0xff]
    %v3207 = vld [vmem:[#allocation6 + $0x180] sm:$0xff]
    %v3208 = vld [vmem:[#allocation6 + $0x188] sm:$0xff]
    %v3209 = vld [vmem:[#allocation6 + $0x190] sm:$0xff]
    %v3210 = vld [vmem:[#allocation6 + $0x198] sm:$0xff]
    %v3211 = vld [vmem:[#allocation6 + $0x1a0] sm:$0xff]
    %v3212 = vld [vmem:[#allocation6 + $0x1a8] sm:$0xff]
    %v3213 = vld [vmem:[#allocation6 + $0x1b0] sm:$0xff]
    %v3214 = vld [vmem:[#allocation6 + $0x1b8] sm:$0xff]
    %v3215 = vld [vmem:[#allocation6 + $0x1c0] sm:$0xff]
    %v3216 = vld [vmem:[#allocation6 + $0x1c8] sm:$0xff]
    %v3217 = vld [vmem:[#allocation6 + $0x1d0] sm:$0xff]
    %v3218 = vld [vmem:[#allocation6 + $0x1d8] sm:$0xff]
    %v3219 = vld [vmem:[#allocation6 + $0x1e0] sm:$0xff]
    %v3220 = vld [vmem:[#allocation6 + $0x1e8] sm:$0xff]
    %v3221 = vld [vmem:[#allocation6 + $0x1f0] sm:$0xff]
    %v3222 = vld [vmem:[#allocation6 + $0x1f8] sm:$0xff]
    %3223 = vmatprep.subr.mxu0 %v3160
    %3224 = vmatpush1.msra.mxu0 %v3159
    %3225 = vmatprep.subr.mxu0 %v3164
    %3226 = vmatpush1.msra.mxu0 %v3163
    %3227 = vmatprep.subr.mxu0 %v3168
    %3228 = vmatpush1.msra.mxu0 %v3167
    %3229 = vmatprep.subr.mxu0 %v3172
    %3230 = vmatpush1.msra.mxu0 %v3171
    %3231 = vmatprep.subr.mxu0 %v3176
    %3232 = vmatpush1.msra.mxu0 %v3175
    %3233 = vmatprep.subr.mxu0 %v3180
    %3234 = vmatpush1.msra.mxu0 %v3179
    %3235 = vmatprep.subr.mxu0 %v3184
    %3236 = vmatpush1.msra.mxu0 %v3183
    %3237 = vmatprep.subr.mxu0 %v3188
    %3238 = vmatpush1.msra.mxu0 %v3187
    %3239 = vmatprep.subr.mxu0 %v3192
    %3240 = vmatpush1.msra.mxu0 %v3191
    %3241 = vmatprep.subr.mxu0 %v3196
    %3242 = vmatpush1.msra.mxu0 %v3195
    %3243 = vmatprep.subr.mxu0 %v3200
    %3244 = vmatpush1.msra.mxu0 %v3199
    %3245 = vmatprep.subr.mxu0 %v3204
    %3246 = vmatpush1.msra.mxu0 %v3203
    %3247 = vmatprep.subr.mxu0 %v3208
    %3248 = vmatpush1.msra.mxu0 %v3207
    %3249 = vmatprep.subr.mxu0 %v3212
    %3250 = vmatpush1.msra.mxu0 %v3211
    %3251 = vmatprep.subr.mxu0 %v3216
    %3252 = vmatpush1.msra.mxu0 %v3215
    %3253 = vmatprep.subr.mxu0 %v3220
    %3254 = vmatpush1.msra.mxu0 %v3219
    %3255 = vmatprep.subr.mxu0 0.0
    %3256 = vmatpush1.msra.mxu0 0.0
    %3257 = vmatprep.subr.mxu0 0.0
    %3258 = vmatpush1.msra.mxu0 0.0
    %3259 = vmatprep.subr.mxu0 0.0
    %3260 = vmatpush1.msra.mxu0 0.0
    %3261 = vmatprep.subr.mxu0 0.0
    %3262 = vmatpush1.msra.mxu0 0.0
    %3263 = vmatprep.subr.mxu0 0.0
    %3264 = vmatpush1.msra.mxu0 0.0
    %3265 = vmatprep.subr.mxu0 0.0
    %3266 = vmatpush1.msra.mxu0 0.0
    %3267 = vmatprep.subr.mxu0 0.0
    %3268 = vmatpush1.msra.mxu0 0.0
    %3269 = vmatprep.subr.mxu0 0.0
    %3270 = vmatpush1.msra.mxu0 0.0
    %3271 = vmatprep.subr.mxu0 0.0
    %3272 = vmatpush1.msra.mxu0 0.0
    %3273 = vmatprep.subr.mxu0 0.0
    %3274 = vmatpush1.msra.mxu0 0.0
    %3275 = vmatprep.subr.mxu0 0.0
    %3276 = vmatpush1.msra.mxu0 0.0
    %3277 = vmatprep.subr.mxu0 0.0
    %3278 = vmatpush1.msra.mxu0 0.0
    %3279 = vmatprep.subr.mxu0 0.0
    %3280 = vmatpush1.msra.mxu0 0.0
    %3281 = vmatprep.subr.mxu0 0.0
    %3282 = vmatpush1.msra.mxu0 0.0
    %3283 = vmatprep.subr.mxu0 0.0
    %3284 = vmatpush1.msra.mxu0 0.0
    %3285 = vmatprep.subr.mxu0 0.0
    %3286 = vmatpush1.msra.mxu0 0.0
    %3287 = vmatprep.mubr.f32.mxu0 0.0
    %3288 = vmatmul.mubr.f32.gmra.mrb[0].mxu0 %v2853
    %v3289 = vpop.f32.mrb[0].mxu0
    %v3290 = vadd.f32 0.0, %v3289
    %v3291 = vpop.f32.mrb[0].mxu0
    %v3292 = vadd.f32 0.0, %v3291
    %3293 = vdwg.mxu0
    %3294 = vmatprep.subr.mxu0 %v3162
    %3295 = vmatpush1.msra.mxu0 %v3161
    %3296 = vmatprep.subr.mxu0 %v3166
    %3297 = vmatpush1.msra.mxu0 %v3165
    %3298 = vmatprep.subr.mxu0 %v3170
    %3299 = vmatpush1.msra.mxu0 %v3169
    %3300 = vmatprep.subr.mxu0 %v3174
    %3301 = vmatpush1.msra.mxu0 %v3173
    %3302 = vmatprep.subr.mxu0 %v3178
    %3303 = vmatpush1.msra.mxu0 %v3177
    %3304 = vmatprep.subr.mxu0 %v3182
    %3305 = vmatpush1.msra.mxu0 %v3181
    %3306 = vmatprep.subr.mxu0 %v3186
    %3307 = vmatpush1.msra.mxu0 %v3185
    %3308 = vmatprep.subr.mxu0 %v3190
    %3309 = vmatpush1.msra.mxu0 %v3189
    %3310 = vmatprep.subr.mxu0 %v3194
    %3311 = vmatpush1.msra.mxu0 %v3193
    %3312 = vmatprep.subr.mxu0 %v3198
    %3313 = vmatpush1.msra.mxu0 %v3197
    %3314 = vmatprep.subr.mxu0 %v3202
    %3315 = vmatpush1.msra.mxu0 %v3201
    %3316 = vmatprep.subr.mxu0 %v3206
    %3317 = vmatpush1.msra.mxu0 %v3205
    %3318 = vmatprep.subr.mxu0 %v3210
    %3319 = vmatpush1.msra.mxu0 %v3209
    %3320 = vmatprep.subr.mxu0 %v3214
    %3321 = vmatpush1.msra.mxu0 %v3213
    %3322 = vmatprep.subr.mxu0 %v3218
    %3323 = vmatpush1.msra.mxu0 %v3217
    %3324 = vmatprep.subr.mxu0 %v3222
    %3325 = vmatpush1.msra.mxu0 %v3221
    %3326 = vmatprep.subr.mxu0 0.0
    %3327 = vmatpush1.msra.mxu0 0.0
    %3328 = vmatprep.subr.mxu0 0.0
    %3329 = vmatpush1.msra.mxu0 0.0
    %3330 = vmatprep.subr.mxu0 0.0
    %3331 = vmatpush1.msra.mxu0 0.0
    %3332 = vmatprep.subr.mxu0 0.0
    %3333 = vmatpush1.msra.mxu0 0.0
    %3334 = vmatprep.subr.mxu0 0.0
    %3335 = vmatpush1.msra.mxu0 0.0
    %3336 = vmatprep.subr.mxu0 0.0
    %3337 = vmatpush1.msra.mxu0 0.0
    %3338 = vmatprep.subr.mxu0 0.0
    %3339 = vmatpush1.msra.mxu0 0.0
    %3340 = vmatprep.subr.mxu0 0.0
    %3341 = vmatpush1.msra.mxu0 0.0
    %3342 = vmatprep.subr.mxu0 0.0
    %3343 = vmatpush1.msra.mxu0 0.0
    %3344 = vmatprep.subr.mxu0 0.0
    %3345 = vmatpush1.msra.mxu0 0.0
    %3346 = vmatprep.subr.mxu0 0.0
    %3347 = vmatpush1.msra.mxu0 0.0
    %3348 = vmatprep.subr.mxu0 0.0
    %3349 = vmatpush1.msra.mxu0 0.0
    %3350 = vmatprep.subr.mxu0 0.0
    %3351 = vmatpush1.msra.mxu0 0.0
    %3352 = vmatprep.subr.mxu0 0.0
    %3353 = vmatpush1.msra.mxu0 0.0
    %3354 = vmatprep.subr.mxu0 0.0
    %3355 = vmatpush1.msra.mxu0 0.0
    %3356 = vmatprep.subr.mxu0 0.0
    %3357 = vmatpush1.msra.mxu0 0.0
    %3358 = vmatprep.mubr.f32.mxu0 0.0
    %3359 = vmatmul.mubr.f32.gmra.mrb[0].mxu0 %v2853
    %v3360 = vpop.f32.mrb[0].mxu0
    %v3361 = vadd.f32 0.0, %v3360
    %v3362 = vpop.f32.mrb[0].mxu0
    %v3363 = vadd.f32 0.0, %v3362
    %3364 = vdwg.mxu0
    %3365 = vmatprep.subr.mxu0 %v3096
    %3366 = vmatpush1.msra.mxu0 %v3095
    %3367 = vmatprep.subr.mxu0 %v3100
    %3368 = vmatpush1.msra.mxu0 %v3099
    %3369 = vmatprep.subr.mxu0 %v3104
    %3370 = vmatpush1.msra.mxu0 %v3103
    %3371 = vmatprep.subr.mxu0 %v3108
    %3372 = vmatpush1.msra.mxu0 %v3107
    %3373 = vmatprep.subr.mxu0 %v3112
    %3374 = vmatpush1.msra.mxu0 %v3111
    %3375 = vmatprep.subr.mxu0 %v3116
    %3376 = vmatpush1.msra.mxu0 %v3115
    %3377 = vmatprep.subr.mxu0 %v3120
    %3378 = vmatpush1.msra.mxu0 %v3119
    %3379 = vmatprep.subr.mxu0 %v3124
    %3380 = vmatpush1.msra.mxu0 %v3123
    %3381 = vmatprep.subr.mxu0 %v3128
    %3382 = vmatpush1.msra.mxu0 %v3127
    %3383 = vmatprep.subr.mxu0 %v3132
    %3384 = vmatpush1.msra.mxu0 %v3131
    %3385 = vmatprep.subr.mxu0 %v3136
    %3386 = vmatpush1.msra.mxu0 %v3135
    %3387 = vmatprep.subr.mxu0 %v3140
    %3388 = vmatpush1.msra.mxu0 %v3139
    %3389 = vmatprep.subr.mxu0 %v3144
    %3390 = vmatpush1.msra.mxu0 %v3143
    %3391 = vmatprep.subr.mxu0 %v3148
    %3392 = vmatpush1.msra.mxu0 %v3147
    %3393 = vmatprep.subr.mxu0 %v3152
    %3394 = vmatpush1.msra.mxu0 %v3151
    %3395 = vmatprep.subr.mxu0 %v3156
    %3396 = vmatpush1.msra.mxu0 %v3155
    %3397 = vmatprep.subr.mxu0 0.0
    %3398 = vmatpush1.msra.mxu0 0.0
    %3399 = vmatprep.subr.mxu0 0.0
    %3400 = vmatpush1.msra.mxu0 0.0
    %3401 = vmatprep.subr.mxu0 0.0
    %3402 = vmatpush1.msra.mxu0 0.0
    %3403 = vmatprep.subr.mxu0 0.0
    %3404 = vmatpush1.msra.mxu0 0.0
    %3405 = vmatprep.subr.mxu0 0.0
    %3406 = vmatpush1.msra.mxu0 0.0
    %3407 = vmatprep.subr.mxu0 0.0
    %3408 = vmatpush1.msra.mxu0 0.0
    %3409 = vmatprep.subr.mxu0 0.0
    %3410 = vmatpush1.msra.mxu0 0.0
    %3411 = vmatprep.subr.mxu0 0.0
    %3412 = vmatpush1.msra.mxu0 0.0
    %3413 = vmatprep.subr.mxu0 0.0
    %3414 = vmatpush1.msra.mxu0 0.0
    %3415 = vmatprep.subr.mxu0 0.0
    %3416 = vmatpush1.msra.mxu0 0.0
    %3417 = vmatprep.subr.mxu0 0.0
    %3418 = vmatpush1.msra.mxu0 0.0
    %3419 = vmatprep.subr.mxu0 0.0
    %3420 = vmatpush1.msra.mxu0 0.0
    %3421 = vmatprep.subr.mxu0 0.0
    %3422 = vmatpush1.msra.mxu0 0.0
    %3423 = vmatprep.subr.mxu0 0.0
    %3424 = vmatpush1.msra.mxu0 0.0
    %3425 = vmatprep.subr.mxu0 0.0
    %3426 = vmatpush1.msra.mxu0 0.0
    %3427 = vmatprep.subr.mxu0 0.0
    %3428 = vmatpush1.msra.mxu0 0.0
    %3429 = vmatprep.mubr.f32.mxu0 0.0
    %3430 = vmatmul.mubr.f32.gmra.mrb[0].mxu0 %v3094
    %v3431 = vpop.f32.mrb[0].mxu0
    %v3432 = vadd.f32 %v3290, %v3431
    %v3433 = vpop.f32.mrb[0].mxu0
    %v3434 = vadd.f32 %v3292, %v3433
    %3435 = vdwg.mxu0
    %3436 = vmatprep.subr.mxu0 %v3098
    %3437 = vmatpush1.msra.mxu0 %v3097
    %3438 = vmatprep.subr.mxu0 %v3102
    %3439 = vmatpush1.msra.mxu0 %v3101
    %3440 = vmatprep.subr.mxu0 %v3106
    %3441 = vmatpush1.msra.mxu0 %v3105
    %3442 = vmatprep.subr.mxu0 %v3110
    %3443 = vmatpush1.msra.mxu0 %v3109
    %3444 = vmatprep.subr.mxu0 %v3114
    %3445 = vmatpush1.msra.mxu0 %v3113
    %3446 = vmatprep.subr.mxu0 %v3118
    %3447 = vmatpush1.msra.mxu0 %v3117
    %3448 = vmatprep.subr.mxu0 %v3122
    %3449 = vmatpush1.msra.mxu0 %v3121
    %3450 = vmatprep.subr.mxu0 %v3126
    %3451 = vmatpush1.msra.mxu0 %v3125
    %3452 = vmatprep.subr.mxu0 %v3130
    %3453 = vmatpush1.msra.mxu0 %v3129
    %3454 = vmatprep.subr.mxu0 %v3134
    %3455 = vmatpush1.msra.mxu0 %v3133
    %3456 = vmatprep.subr.mxu0 %v3138
    %3457 = vmatpush1.msra.mxu0 %v3137
    %3458 = vmatprep.subr.mxu0 %v3142
    %3459 = vmatpush1.msra.mxu0 %v3141
    %3460 = vmatprep.subr.mxu0 %v3146
    %3461 = vmatpush1.msra.mxu0 %v3145
    %3462 = vmatprep.subr.mxu0 %v3150
    %3463 = vmatpush1.msra.mxu0 %v3149
    %3464 = vmatprep.subr.mxu0 %v3154
    %3465 = vmatpush1.msra.mxu0 %v3153
    %3466 = vmatprep.subr.mxu0 %v3158
    %3467 = vmatpush1.msra.mxu0 %v3157
    %3468 = vmatprep.subr.mxu0 0.0
    %3469 = vmatpush1.msra.mxu0 0.0
    %3470 = vmatprep.subr.mxu0 0.0
    %3471 = vmatpush1.msra.mxu0 0.0
    %3472 = vmatprep.subr.mxu0 0.0
    %3473 = vmatpush1.msra.mxu0 0.0
    %3474 = vmatprep.subr.mxu0 0.0
    %3475 = vmatpush1.msra.mxu0 0.0
    %3476 = vmatprep.subr.mxu0 0.0
    %3477 = vmatpush1.msra.mxu0 0.0
    %3478 = vmatprep.subr.mxu0 0.0
    %3479 = vmatpush1.msra.mxu0 0.0
    %3480 = vmatprep.subr.mxu0 0.0
    %3481 = vmatpush1.msra.mxu0 0.0
    %3482 = vmatprep.subr.mxu0 0.0
    %3483 = vmatpush1.msra.mxu0 0.0
    %3484 = vmatprep.subr.mxu0 0.0
    %3485 = vmatpush1.msra.mxu0 0.0
    %3486 = vmatprep.subr.mxu0 0.0
    %3487 = vmatpush1.msra.mxu0 0.0
    %3488 = vmatprep.subr.mxu0 0.0
    %3489 = vmatpush1.msra.mxu0 0.0
    %3490 = vmatprep.subr.mxu0 0.0
    %3491 = vmatpush1.msra.mxu0 0.0
    %3492 = vmatprep.subr.mxu0 0.0
    %3493 = vmatpush1.msra.mxu0 0.0
    %3494 = vmatprep.subr.mxu0 0.0
    %3495 = vmatpush1.msra.mxu0 0.0
    %3496 = vmatprep.subr.mxu0 0.0
    %3497 = vmatpush1.msra.mxu0 0.0
    %3498 = vmatprep.subr.mxu0 0.0
    %3499 = vmatpush1.msra.mxu0 0.0
    %3500 = vmatprep.mubr.f32.mxu0 0.0
    %3501 = vmatmul.mubr.f32.gmra.mrb[0].mxu0 %v3094
    %v3502 = vpop.f32.mrb[0].mxu0
    %v3503 = vadd.f32 %v3361, %v3502
    %v3504 = vpop.f32.mrb[0].mxu0
    %v3505 = vadd.f32 %v3363, %v3504
    %3506 = vdwg.mxu0
    %v3507 = vld [vmem:[%s4] sm:$0xf]
    %v3509 = vlaneseq
    %v3510 = vshrl.u32 %v3509, 7
    %v3511 = vsub.s32 0, %v3510
    %v3512 = vrot.slane %v3507, %v3511
    %v3513 = vlaneseq
    %v3514 = vshrl.u32 %v3513, 7
    %v3515 = vsub.s32 1, %v3514
    %v3516 = vrot.slane %v3507, %v3515
    %v3517 = vlaneseq
    %v3518 = vshrl.u32 %v3517, 7
    %v3519 = vsub.s32 2, %v3518
    %v3520 = vrot.slane %v3507, %v3519
    %v3521 = vlaneseq
    %v3522 = vshrl.u32 %v3521, 7
    %v3523 = vsub.s32 3, %v3522
    %v3524 = vrot.slane %v3507, %v3523
    %v3529 = vadd.f32 %v3432, %v3512
    %v3530 = vadd.f32 %v3434, %v3516
    %v3531 = vadd.f32 %v3503, %v3520
    %v3532 = vadd.f32 %v3505, %v3524
    %v3533 = vxor.u32 %v3529, 2147483648
    %v3534 = vxor.u32 %v3530, 2147483648
    %v3535 = vxor.u32 %v3531, 2147483648
    %v3536 = vmul.f32 %v3533, 1.442695
    %v3537 = vpow.pop %v3536
    %v3538 = vmul.f32 %v3534, 1.442695
    %v3539 = vpow.pop %v3538
    %v3540 = vmul.f32 %v3535, 1.442695
    %v3541 = vpow.pop %v3540
    %v3542 = vadd.f32 %v3537, 1.0
    %v3543 = vadd.f32 %v3539, 1.0
    %v3544 = vadd.f32 %v3541, 1.0
    %v3545 = vrcp.pop %v3542
    %v3546 = vmul.f32 1.0, %v3545
    %v3547 = vrcp.pop %v3543
    %v3548 = vmul.f32 1.0, %v3547
    %v3549 = vrcp.pop %v3544
    %v3550 = vmul.f32 1.0, %v3549
    %v3551 = vtanh.pop %v3532
    %v3552 = vmul.f32 %v3548, %v2851
    %v3553 = vmul.f32 %v3546, %v3551
    %v3554 = vadd.f32 %v3552, %v3553
    %v3555 = vtanh.pop %v3554
    %v3556 = vmul.f32 %v3550, %v3555
    %s3557 = scalar_lea.vmem %s5, 32
    %3558 = vst [vmem:[%s3557] sm:$0xff] %v3556
    %s3559 = scalar_lea.vmem %s0, 160
    %v3560 = vld [vmem:[%s3559] sm:$0xff]
    %v3561 = vld [vmem:[%s3559 + $0x8] sm:$0xff]
    %v3562 = vld [vmem:[%s3559 + $0x10] sm:$0xff]
    %v3563 = vld [vmem:[%s3559 + $0x18] sm:$0xff]
    %v3564 = vld [vmem:[%s1] sm:$0xff]
    %v3565 = vld [vmem:[%s1 + $0x8] sm:$0xff]
    %v3566 = vld [vmem:[%s1 + $0x10] sm:$0xff]
    %v3567 = vld [vmem:[%s1 + $0x18] sm:$0xff]
    %v3568 = vld [vmem:[%s1 + $0x20] sm:$0xff]
    %v3569 = vld [vmem:[%s1 + $0x28] sm:$0xff]
    %v3570 = vld [vmem:[%s1 + $0x30] sm:$0xff]
    %v3571 = vld [vmem:[%s1 + $0x38] sm:$0xff]
    %v3572 = vld [vmem:[%s1 + $0x40] sm:$0xff]
    %v3573 = vld [vmem:[%s1 + $0x48] sm:$0xff]
    %v3574 = vld [vmem:[%s1 + $0x50] sm:$0xff]
    %v3575 = vld [vmem:[%s1 + $0x58] sm:$0xff]
    %v3576 = vld [vmem:[%s1 + $0x60] sm:$0xff]
    %v3577 = vld [vmem:[%s1 + $0x68] sm:$0xff]
    %v3578 = vld [vmem:[%s1 + $0x70] sm:$0xff]
    %v3579 = vld [vmem:[%s1 + $0x78] sm:$0xff]
    %v3580 = vld [vmem:[%s1 + $0x80] sm:$0xff]
    %v3581 = vld [vmem:[%s1 + $0x88] sm:$0xff]
    %v3582 = vld [vmem:[%s1 + $0x90] sm:$0xff]
    %v3583 = vld [vmem:[%s1 + $0x98] sm:$0xff]
    %v3584 = vld [vmem:[%s1 + $0xa0] sm:$0xff]
    %v3585 = vld [vmem:[%s1 + $0xa8] sm:$0xff]
    %v3586 = vld [vmem:[%s1 + $0xb0] sm:$0xff]
    %v3587 = vld [vmem:[%s1 + $0xb8] sm:$0xff]
    %v3588 = vld [vmem:[%s1 + $0xc0] sm:$0xff]
    %v3589 = vld [vmem:[%s1 + $0xc8] sm:$0xff]
    %v3590 = vld [vmem:[%s1 + $0xd0] sm:$0xff]
    %v3591 = vld [vmem:[%s1 + $0xd8] sm:$0xff]
    %v3592 = vld [vmem:[%s1 + $0xe0] sm:$0xff]
    %v3593 = vld [vmem:[%s1 + $0xe8] sm:$0xff]
    %v3594 = vld [vmem:[%s1 + $0xf0] sm:$0xff]
    %v3595 = vld [vmem:[%s1 + $0xf8] sm:$0xff]
    %v3596 = vld [vmem:[%s1 + $0x100] sm:$0xff]
    %v3597 = vld [vmem:[%s1 + $0x108] sm:$0xff]
    %v3598 = vld [vmem:[%s1 + $0x110] sm:$0xff]
    %v3599 = vld [vmem:[%s1 + $0x118] sm:$0xff]
    %v3600 = vld [vmem:[%s1 + $0x120] sm:$0xff]
    %v3601 = vld [vmem:[%s1 + $0x128] sm:$0xff]
    %v3602 = vld [vmem:[%s1 + $0x130] sm:$0xff]
    %v3603 = vld [vmem:[%s1 + $0x138] sm:$0xff]
    %v3604 = vld [vmem:[%s1 + $0x140] sm:$0xff]
    %v3605 = vld [vmem:[%s1 + $0x148] sm:$0xff]
    %v3606 = vld [vmem:[%s1 + $0x150] sm:$0xff]
    %v3607 = vld [vmem:[%s1 + $0x158] sm:$0xff]
    %v3608 = vld [vmem:[%s1 + $0x160] sm:$0xff]
    %v3609 = vld [vmem:[%s1 + $0x168] sm:$0xff]
    %v3610 = vld [vmem:[%s1 + $0x170] sm:$0xff]
    %v3611 = vld [vmem:[%s1 + $0x178] sm:$0xff]
    %v3612 = vld [vmem:[%s1 + $0x180] sm:$0xff]
    %v3613 = vld [vmem:[%s1 + $0x188] sm:$0xff]
    %v3614 = vld [vmem:[%s1 + $0x190] sm:$0xff]
    %v3615 = vld [vmem:[%s1 + $0x198] sm:$0xff]
    %v3616 = vld [vmem:[%s1 + $0x1a0] sm:$0xff]
    %v3617 = vld [vmem:[%s1 + $0x1a8] sm:$0xff]
    %v3618 = vld [vmem:[%s1 + $0x1b0] sm:$0xff]
    %v3619 = vld [vmem:[%s1 + $0x1b8] sm:$0xff]
    %v3620 = vld [vmem:[%s1 + $0x1c0] sm:$0xff]
    %v3621 = vld [vmem:[%s1 + $0x1c8] sm:$0xff]
    %v3622 = vld [vmem:[%s1 + $0x1d0] sm:$0xff]
    %v3623 = vld [vmem:[%s1 + $0x1d8] sm:$0xff]
    %v3624 = vld [vmem:[%s1 + $0x1e0] sm:$0xff]
    %v3625 = vld [vmem:[%s1 + $0x1e8] sm:$0xff]
    %v3626 = vld [vmem:[%s1 + $0x1f0] sm:$0xff]
    %v3627 = vld [vmem:[%s1 + $0x1f8] sm:$0xff]
    %3628 = vmatprep.subr.mxu0 %v3565
    %3629 = vmatpush1.msra.mxu0 %v3564
    %3630 = vmatprep.subr.mxu0 %v3569
    %3631 = vmatpush1.msra.mxu0 %v3568
    %3632 = vmatprep.subr.mxu0 %v3573
    %3633 = vmatpush1.msra.mxu0 %v3572
    %3634 = vmatprep.subr.mxu0 %v3577
    %3635 = vmatpush1.msra.mxu0 %v3576
    %3636 = vmatprep.subr.mxu0 %v3581
    %3637 = vmatpush1.msra.mxu0 %v3580
    %3638 = vmatprep.subr.mxu0 %v3585
    %3639 = vmatpush1.msra.mxu0 %v3584
    %3640 = vmatprep.subr.mxu0 %v3589
    %3641 = vmatpush1.msra.mxu0 %v3588
    %3642 = vmatprep.subr.mxu0 %v3593
    %3643 = vmatpush1.msra.mxu0 %v3592
    %3644 = vmatprep.subr.mxu0 %v3597
    %3645 = vmatpush1.msra.mxu0 %v3596
    %3646 = vmatprep.subr.mxu0 %v3601
    %3647 = vmatpush1.msra.mxu0 %v3600
    %3648 = vmatprep.subr.mxu0 %v3605
    %3649 = vmatpush1.msra.mxu0 %v3604
    %3650 = vmatprep.subr.mxu0 %v3609
    %3651 = vmatpush1.msra.mxu0 %v3608
    %3652 = vmatprep.subr.mxu0 %v3613
    %3653 = vmatpush1.msra.mxu0 %v3612
    %3654 = vmatprep.subr.mxu0 %v3617
    %3655 = vmatpush1.msra.mxu0 %v3616
    %3656 = vmatprep.subr.mxu0 %v3621
    %3657 = vmatpush1.msra.mxu0 %v3620
    %3658 = vmatprep.subr.mxu0 %v3625
    %3659 = vmatpush1.msra.mxu0 %v3624
    %3660 = vmatprep.subr.mxu0 0.0
    %3661 = vmatpush1.msra.mxu0 0.0
    %3662 = vmatprep.subr.mxu0 0.0
    %3663 = vmatpush1.msra.mxu0 0.0
    %3664 = vmatprep.subr.mxu0 0.0
    %3665 = vmatpush1.msra.mxu0 0.0
    %3666 = vmatprep.subr.mxu0 0.0
    %3667 = vmatpush1.msra.mxu0 0.0
    %3668 = vmatprep.subr.mxu0 0.0
    %3669 = vmatpush1.msra.mxu0 0.0
    %3670 = vmatprep.subr.mxu0 0.0
    %3671 = vmatpush1.msra.mxu0 0.0
    %3672 = vmatprep.subr.mxu0 0.0
    %3673 = vmatpush1.msra.mxu0 0.0
    %3674 = vmatprep.subr.mxu0 0.0
    %3675 = vmatpush1.msra.mxu0 0.0
    %3676 = vmatprep.subr.mxu0 0.0
    %3677 = vmatpush1.msra.mxu0 0.0
    %3678 = vmatprep.subr.mxu0 0.0
    %3679 = vmatpush1.msra.mxu0 0.0
    %3680 = vmatprep.subr.mxu0 0.0
    %3681 = vmatpush1.msra.mxu0 0.0
    %3682 = vmatprep.subr.mxu0 0.0
    %3683 = vmatpush1.msra.mxu0 0.0
    %3684 = vmatprep.subr.mxu0 0.0
    %3685 = vmatpush1.msra.mxu0 0.0
    %3686 = vmatprep.subr.mxu0 0.0
    %3687 = vmatpush1.msra.mxu0 0.0
    %3688 = vmatprep.subr.mxu0 0.0
    %3689 = vmatpush1.msra.mxu0 0.0
    %3690 = vmatprep.subr.mxu0 0.0
    %3691 = vmatpush1.msra.mxu0 0.0
    %3692 = vmatprep.mubr.f32.mxu0 0.0
    %3693 = vmatmul.mubr.f32.gmra.mrb[0].mxu0 %v3094
    %v3694 = vpop.f32.mrb[0].mxu0
    %v3695 = vadd.f32 0.0, %v3694
    %v3696 = vpop.f32.mrb[0].mxu0
    %v3697 = vadd.f32 0.0, %v3696
    %3698 = vdwg.mxu0
    %3699 = vmatprep.subr.mxu0 %v3567
    %3700 = vmatpush1.msra.mxu0 %v3566
    %3701 = vmatprep.subr.mxu0 %v3571
    %3702 = vmatpush1.msra.mxu0 %v3570
    %3703 = vmatprep.subr.mxu0 %v3575
    %3704 = vmatpush1.msra.mxu0 %v3574
    %3705 = vmatprep.subr.mxu0 %v3579
    %3706 = vmatpush1.msra.mxu0 %v3578
    %3707 = vmatprep.subr.mxu0 %v3583
    %3708 = vmatpush1.msra.mxu0 %v3582
    %3709 = vmatprep.subr.mxu0 %v3587
    %3710 = vmatpush1.msra.mxu0 %v3586
    %3711 = vmatprep.subr.mxu0 %v3591
    %3712 = vmatpush1.msra.mxu0 %v3590
    %3713 = vmatprep.subr.mxu0 %v3595
    %3714 = vmatpush1.msra.mxu0 %v3594
    %3715 = vmatprep.subr.mxu0 %v3599
    %3716 = vmatpush1.msra.mxu0 %v3598
    %3717 = vmatprep.subr.mxu0 %v3603
    %3718 = vmatpush1.msra.mxu0 %v3602
    %3719 = vmatprep.subr.mxu0 %v3607
    %3720 = vmatpush1.msra.mxu0 %v3606
    %3721 = vmatprep.subr.mxu0 %v3611
    %3722 = vmatpush1.msra.mxu0 %v3610
    %3723 = vmatprep.subr.mxu0 %v3615
    %3724 = vmatpush1.msra.mxu0 %v3614
    %3725 = vmatprep.subr.mxu0 %v3619
    %3726 = vmatpush1.msra.mxu0 %v3618
    %3727 = vmatprep.subr.mxu0 %v3623
    %3728 = vmatpush1.msra.mxu0 %v3622
    %3729 = vmatprep.subr.mxu0 %v3627
    %3730 = vmatpush1.msra.mxu0 %v3626
    %3731 = vmatprep.subr.mxu0 0.0
    %3732 = vmatpush1.msra.mxu0 0.0
    %3733 = vmatprep.subr.mxu0 0.0
    %3734 = vmatpush1.msra.mxu0 0.0
    %3735 = vmatprep.subr.mxu0 0.0
    %3736 = vmatpush1.msra.mxu0 0.0
    %3737 = vmatprep.subr.mxu0 0.0
    %3738 = vmatpush1.msra.mxu0 0.0
    %3739 = vmatprep.subr.mxu0 0.0
    %3740 = vmatpush1.msra.mxu0 0.0
    %3741 = vmatprep.subr.mxu0 0.0
    %3742 = vmatpush1.msra.mxu0 0.0
    %3743 = vmatprep.subr.mxu0 0.0
    %3744 = vmatpush1.msra.mxu0 0.0
    %3745 = vmatprep.subr.mxu0 0.0
    %3746 = vmatpush1.msra.mxu0 0.0
    %3747 = vmatprep.subr.mxu0 0.0
    %3748 = vmatpush1.msra.mxu0 0.0
    %3749 = vmatprep.subr.mxu0 0.0
    %3750 = vmatpush1.msra.mxu0 0.0
    %3751 = vmatprep.subr.mxu0 0.0
    %3752 = vmatpush1.msra.mxu0 0.0
    %3753 = vmatprep.subr.mxu0 0.0
    %3754 = vmatpush1.msra.mxu0 0.0
    %3755 = vmatprep.subr.mxu0 0.0
    %3756 = vmatpush1.msra.mxu0 0.0
    %3757 = vmatprep.subr.mxu0 0.0
    %3758 = vmatpush1.msra.mxu0 0.0
    %3759 = vmatprep.subr.mxu0 0.0
    %3760 = vmatpush1.msra.mxu0 0.0
    %3761 = vmatprep.subr.mxu0 0.0
    %3762 = vmatpush1.msra.mxu0 0.0
    %3763 = vmatprep.mubr.f32.mxu0 0.0
    %3764 = vmatmul.mubr.f32.gmra.mrb[0].mxu0 %v3094
    %v3765 = vpop.f32.mrb[0].mxu0
    %v3766 = vadd.f32 0.0, %v3765
    %v3767 = vpop.f32.mrb[0].mxu0
    %v3768 = vadd.f32 0.0, %v3767
    %3769 = vdwg.mxu0
    %v3770 = vadd.f32 %v3560, %v3695
    %v3771 = vadd.f32 %v3561, %v3697
    %v3772 = vadd.f32 %v3562, %v3766
    %v3773 = vadd.f32 %v3563, %v3768
    %v3774 = vxor.u32 %v3770, 2147483648
    %v3775 = vxor.u32 %v3771, 2147483648
    %v3776 = vxor.u32 %v3772, 2147483648
    %v3777 = vmul.f32 %v3774, 1.442695
    %v3778 = vpow.pop %v3777
    %v3779 = vmul.f32 %v3775, 1.442695
    %v3780 = vpow.pop %v3779
    %v3781 = vmul.f32 %v3776, 1.442695
    %v3782 = vpow.pop %v3781
    %v3783 = vadd.f32 %v3778, 1.0
    %v3784 = vadd.f32 %v3780, 1.0
    %v3785 = vadd.f32 %v3782, 1.0
    %v3786 = vrcp.pop %v3783
    %v3787 = vmul.f32 1.0, %v3786
    %v3788 = vrcp.pop %v3784
    %v3789 = vmul.f32 1.0, %v3788
    %v3790 = vrcp.pop %v3785
    %v3791 = vmul.f32 1.0, %v3790
    %v3792 = vtanh.pop %v3773
    %v3793 = vmul.f32 %v3789, %v3092
    %v3794 = vmul.f32 %v3787, %v3792
    %v3795 = vadd.f32 %v3793, %v3794
    %v3796 = vtanh.pop %v3795
    %v3797 = vmul.f32 %v3791, %v3796
    %v3798 = vld [vmem:[%s2] sm:$0xff]
    %v3799 = vld [vmem:[%s2 + $0x8] sm:$0xff]
    %v3800 = vld [vmem:[%s2 + $0x10] sm:$0xff]
    %v3801 = vld [vmem:[%s2 + $0x18] sm:$0xff]
    %v3802 = vld [vmem:[%s2 + $0x20] sm:$0xff]
    %v3803 = vld [vmem:[%s2 + $0x28] sm:$0xff]
    %v3804 = vld [vmem:[%s2 + $0x30] sm:$0xff]
    %v3805 = vld [vmem:[%s2 + $0x38] sm:$0xff]
    %v3806 = vld [vmem:[%s2 + $0x40] sm:$0xff]
    %v3807 = vld [vmem:[%s2 + $0x48] sm:$0xff]
    %v3808 = vld [vmem:[%s2 + $0x50] sm:$0xff]
    %v3809 = vld [vmem:[%s2 + $0x58] sm:$0xff]
    %v3810 = vld [vmem:[%s2 + $0x60] sm:$0xff]
    %v3811 = vld [vmem:[%s2 + $0x68] sm:$0xff]
    %v3812 = vld [vmem:[%s2 + $0x70] sm:$0xff]
    %v3813 = vld [vmem:[%s2 + $0x78] sm:$0xff]
    %v3814 = vld [vmem:[%s2 + $0x80] sm:$0xff]
    %v3815 = vld [vmem:[%s2 + $0x88] sm:$0xff]
    %v3816 = vld [vmem:[%s2 + $0x90] sm:$0xff]
    %v3817 = vld [vmem:[%s2 + $0x98] sm:$0xff]
    %v3818 = vld [vmem:[%s2 + $0xa0] sm:$0xff]
    %v3819 = vld [vmem:[%s2 + $0xa8] sm:$0xff]
    %v3820 = vld [vmem:[%s2 + $0xb0] sm:$0xff]
    %v3821 = vld [vmem:[%s2 + $0xb8] sm:$0xff]
    %v3822 = vld [vmem:[%s2 + $0xc0] sm:$0xff]
    %v3823 = vld [vmem:[%s2 + $0xc8] sm:$0xff]
    %v3824 = vld [vmem:[%s2 + $0xd0] sm:$0xff]
    %v3825 = vld [vmem:[%s2 + $0xd8] sm:$0xff]
    %v3826 = vld [vmem:[%s2 + $0xe0] sm:$0xff]
    %v3827 = vld [vmem:[%s2 + $0xe8] sm:$0xff]
    %v3828 = vld [vmem:[%s2 + $0xf0] sm:$0xff]
    %v3829 = vld [vmem:[%s2 + $0xf8] sm:$0xff]
    %v3830 = vld [vmem:[%s2 + $0x100] sm:$0xff]
    %v3831 = vld [vmem:[%s2 + $0x108] sm:$0xff]
    %v3832 = vld [vmem:[%s2 + $0x110] sm:$0xff]
    %v3833 = vld [vmem:[%s2 + $0x118] sm:$0xff]
    %v3834 = vld [vmem:[%s2 + $0x120] sm:$0xff]
    %v3835 = vld [vmem:[%s2 + $0x128] sm:$0xff]
    %v3836 = vld [vmem:[%s2 + $0x130] sm:$0xff]
    %v3837 = vld [vmem:[%s2 + $0x138] sm:$0xff]
    %v3838 = vld [vmem:[%s2 + $0x140] sm:$0xff]
    %v3839 = vld [vmem:[%s2 + $0x148] sm:$0xff]
    %v3840 = vld [vmem:[%s2 + $0x150] sm:$0xff]
    %v3841 = vld [vmem:[%s2 + $0x158] sm:$0xff]
    %v3842 = vld [vmem:[%s2 + $0x160] sm:$0xff]
    %v3843 = vld [vmem:[%s2 + $0x168] sm:$0xff]
    %v3844 = vld [vmem:[%s2 + $0x170] sm:$0xff]
    %v3845 = vld [vmem:[%s2 + $0x178] sm:$0xff]
    %v3846 = vld [vmem:[%s2 + $0x180] sm:$0xff]
    %v3847 = vld [vmem:[%s2 + $0x188] sm:$0xff]
    %v3848 = vld [vmem:[%s2 + $0x190] sm:$0xff]
    %v3849 = vld [vmem:[%s2 + $0x198] sm:$0xff]
    %v3850 = vld [vmem:[%s2 + $0x1a0] sm:$0xff]
    %v3851 = vld [vmem:[%s2 + $0x1a8] sm:$0xff]
    %v3852 = vld [vmem:[%s2 + $0x1b0] sm:$0xff]
    %v3853 = vld [vmem:[%s2 + $0x1b8] sm:$0xff]
    %v3854 = vld [vmem:[%s2 + $0x1c0] sm:$0xff]
    %v3855 = vld [vmem:[%s2 + $0x1c8] sm:$0xff]
    %v3856 = vld [vmem:[%s2 + $0x1d0] sm:$0xff]
    %v3857 = vld [vmem:[%s2 + $0x1d8] sm:$0xff]
    %v3858 = vld [vmem:[%s2 + $0x1e0] sm:$0xff]
    %v3859 = vld [vmem:[%s2 + $0x1e8] sm:$0xff]
    %v3860 = vld [vmem:[%s2 + $0x1f0] sm:$0xff]
    %v3861 = vld [vmem:[%s2 + $0x1f8] sm:$0xff]
    %v3862 = vld [vmem:[#allocation6] sm:$0xff]
    %v3863 = vld [vmem:[#allocation6 + $0x8] sm:$0xff]
    %v3864 = vld [vmem:[#allocation6 + $0x10] sm:$0xff]
    %v3865 = vld [vmem:[#allocation6 + $0x18] sm:$0xff]
    %v3866 = vld [vmem:[#allocation6 + $0x20] sm:$0xff]
    %v3867 = vld [vmem:[#allocation6 + $0x28] sm:$0xff]
    %v3868 = vld [vmem:[#allocation6 + $0x30] sm:$0xff]
    %v3869 = vld [vmem:[#allocation6 + $0x38] sm:$0xff]
    %v3870 = vld [vmem:[#allocation6 + $0x40] sm:$0xff]
    %v3871 = vld [vmem:[#allocation6 + $0x48] sm:$0xff]
    %v3872 = vld [vmem:[#allocation6 + $0x50] sm:$0xff]
    %v3873 = vld [vmem:[#allocation6 + $0x58] sm:$0xff]
    %v3874 = vld [vmem:[#allocation6 + $0x60] sm:$0xff]
    %v3875 = vld [vmem:[#allocation6 + $0x68] sm:$0xff]
    %v3876 = vld [vmem:[#allocation6 + $0x70] sm:$0xff]
    %v3877 = vld [vmem:[#allocation6 + $0x78] sm:$0xff]
    %v3878 = vld [vmem:[#allocation6 + $0x80] sm:$0xff]
    %v3879 = vld [vmem:[#allocation6 + $0x88] sm:$0xff]
    %v3880 = vld [vmem:[#allocation6 + $0x90] sm:$0xff]
    %v3881 = vld [vmem:[#allocation6 + $0x98] sm:$0xff]
    %v3882 = vld [vmem:[#allocation6 + $0xa0] sm:$0xff]
    %v3883 = vld [vmem:[#allocation6 + $0xa8] sm:$0xff]
    %v3884 = vld [vmem:[#allocation6 + $0xb0] sm:$0xff]
    %v3885 = vld [vmem:[#allocation6 + $0xb8] sm:$0xff]
    %v3886 = vld [vmem:[#allocation6 + $0xc0] sm:$0xff]
    %v3887 = vld [vmem:[#allocation6 + $0xc8] sm:$0xff]
    %v3888 = vld [vmem:[#allocation6 + $0xd0] sm:$0xff]
    %v3889 = vld [vmem:[#allocation6 + $0xd8] sm:$0xff]
    %v3890 = vld [vmem:[#allocation6 + $0xe0] sm:$0xff]
    %v3891 = vld [vmem:[#allocation6 + $0xe8] sm:$0xff]
    %v3892 = vld [vmem:[#allocation6 + $0xf0] sm:$0xff]
    %v3893 = vld [vmem:[#allocation6 + $0xf8] sm:$0xff]
    %v3894 = vld [vmem:[#allocation6 + $0x100] sm:$0xff]
    %v3895 = vld [vmem:[#allocation6 + $0x108] sm:$0xff]
    %v3896 = vld [vmem:[#allocation6 + $0x110] sm:$0xff]
    %v3897 = vld [vmem:[#allocation6 + $0x118] sm:$0xff]
    %v3898 = vld [vmem:[#allocation6 + $0x120] sm:$0xff]
    %v3899 = vld [vmem:[#allocation6 + $0x128] sm:$0xff]
    %v3900 = vld [vmem:[#allocation6 + $0x130] sm:$0xff]
    %v3901 = vld [vmem:[#allocation6 + $0x138] sm:$0xff]
    %v3902 = vld [vmem:[#allocation6 + $0x140] sm:$0xff]
    %v3903 = vld [vmem:[#allocation6 + $0x148] sm:$0xff]
    %v3904 = vld [vmem:[#allocation6 + $0x150] sm:$0xff]
    %v3905 = vld [vmem:[#allocation6 + $0x158] sm:$0xff]
    %v3906 = vld [vmem:[#allocation6 + $0x160] sm:$0xff]
    %v3907 = vld [vmem:[#allocation6 + $0x168] sm:$0xff]
    %v3908 = vld [vmem:[#allocation6 + $0x170] sm:$0xff]
    %v3909 = vld [vmem:[#allocation6 + $0x178] sm:$0xff]
    %v3910 = vld [vmem:[#allocation6 + $0x180] sm:$0xff]
    %v3911 = vld [vmem:[#allocation6 + $0x188] sm:$0xff]
    %v3912 = vld [vmem:[#allocation6 + $0x190] sm:$0xff]
    %v3913 = vld [vmem:[#allocation6 + $0x198] sm:$0xff]
    %v3914 = vld [vmem:[#allocation6 + $0x1a0] sm:$0xff]
    %v3915 = vld [vmem:[#allocation6 + $0x1a8] sm:$0xff]
    %v3916 = vld [vmem:[#allocation6 + $0x1b0] sm:$0xff]
    %v3917 = vld [vmem:[#allocation6 + $0x1b8] sm:$0xff]
    %v3918 = vld [vmem:[#allocation6 + $0x1c0] sm:$0xff]
    %v3919 = vld [vmem:[#allocation6 + $0x1c8] sm:$0xff]
    %v3920 = vld [vmem:[#allocation6 + $0x1d0] sm:$0xff]
    %v3921 = vld [vmem:[#allocation6 + $0x1d8] sm:$0xff]
    %v3922 = vld [vmem:[#allocation6 + $0x1e0] sm:$0xff]
    %v3923 = vld [vmem:[#allocation6 + $0x1e8] sm:$0xff]
    %v3924 = vld [vmem:[#allocation6 + $0x1f0] sm:$0xff]
    %v3925 = vld [vmem:[#allocation6 + $0x1f8] sm:$0xff]
    %3926 = vmatprep.subr.mxu0 %v3863
    %3927 = vmatpush1.msra.mxu0 %v3862
    %3928 = vmatprep.subr.mxu0 %v3867
    %3929 = vmatpush1.msra.mxu0 %v3866
    %3930 = vmatprep.subr.mxu0 %v3871
    %3931 = vmatpush1.msra.mxu0 %v3870
    %3932 = vmatprep.subr.mxu0 %v3875
    %3933 = vmatpush1.msra.mxu0 %v3874
    %3934 = vmatprep.subr.mxu0 %v3879
    %3935 = vmatpush1.msra.mxu0 %v3878
    %3936 = vmatprep.subr.mxu0 %v3883
    %3937 = vmatpush1.msra.mxu0 %v3882
    %3938 = vmatprep.subr.mxu0 %v3887
    %3939 = vmatpush1.msra.mxu0 %v3886
    %3940 = vmatprep.subr.mxu0 %v3891
    %3941 = vmatpush1.msra.mxu0 %v3890
    %3942 = vmatprep.subr.mxu0 %v3895
    %3943 = vmatpush1.msra.mxu0 %v3894
    %3944 = vmatprep.subr.mxu0 %v3899
    %3945 = vmatpush1.msra.mxu0 %v3898
    %3946 = vmatprep.subr.mxu0 %v3903
    %3947 = vmatpush1.msra.mxu0 %v3902
    %3948 = vmatprep.subr.mxu0 %v3907
    %3949 = vmatpush1.msra.mxu0 %v3906
    %3950 = vmatprep.subr.mxu0 %v3911
    %3951 = vmatpush1.msra.mxu0 %v3910
    %3952 = vmatprep.subr.mxu0 %v3915
    %3953 = vmatpush1.msra.mxu0 %v3914
    %3954 = vmatprep.subr.mxu0 %v3919
    %3955 = vmatpush1.msra.mxu0 %v3918
    %3956 = vmatprep.subr.mxu0 %v3923
    %3957 = vmatpush1.msra.mxu0 %v3922
    %3958 = vmatprep.subr.mxu0 0.0
    %3959 = vmatpush1.msra.mxu0 0.0
    %3960 = vmatprep.subr.mxu0 0.0
    %3961 = vmatpush1.msra.mxu0 0.0
    %3962 = vmatprep.subr.mxu0 0.0
    %3963 = vmatpush1.msra.mxu0 0.0
    %3964 = vmatprep.subr.mxu0 0.0
    %3965 = vmatpush1.msra.mxu0 0.0
    %3966 = vmatprep.subr.mxu0 0.0
    %3967 = vmatpush1.msra.mxu0 0.0
    %3968 = vmatprep.subr.mxu0 0.0
    %3969 = vmatpush1.msra.mxu0 0.0
    %3970 = vmatprep.subr.mxu0 0.0
    %3971 = vmatpush1.msra.mxu0 0.0
    %3972 = vmatprep.subr.mxu0 0.0
    %3973 = vmatpush1.msra.mxu0 0.0
    %3974 = vmatprep.subr.mxu0 0.0
    %3975 = vmatpush1.msra.mxu0 0.0
    %3976 = vmatprep.subr.mxu0 0.0
    %3977 = vmatpush1.msra.mxu0 0.0
    %3978 = vmatprep.subr.mxu0 0.0
    %3979 = vmatpush1.msra.mxu0 0.0
    %3980 = vmatprep.subr.mxu0 0.0
    %3981 = vmatpush1.msra.mxu0 0.0
    %3982 = vmatprep.subr.mxu0 0.0
    %3983 = vmatpush1.msra.mxu0 0.0
    %3984 = vmatprep.subr.mxu0 0.0
    %3985 = vmatpush1.msra.mxu0 0.0
    %3986 = vmatprep.subr.mxu0 0.0
    %3987 = vmatpush1.msra.mxu0 0.0
    %3988 = vmatprep.subr.mxu0 0.0
    %3989 = vmatpush1.msra.mxu0 0.0
    %3990 = vmatprep.mubr.f32.mxu0 0.0
    %3991 = vmatmul.mubr.f32.gmra.mrb[0].mxu0 %v3556
    %v3992 = vpop.f32.mrb[0].mxu0
    %v3993 = vadd.f32 0.0, %v3992
    %v3994 = vpop.f32.mrb[0].mxu0
    %v3995 = vadd.f32 0.0, %v3994
    %3996 = vdwg.mxu0
    %3997 = vmatprep.subr.mxu0 %v3865
    %3998 = vmatpush1.msra.mxu0 %v3864
    %3999 = vmatprep.subr.mxu0 %v3869
    %4000 = vmatpush1.msra.mxu0 %v3868
    %4001 = vmatprep.subr.mxu0 %v3873
    %4002 = vmatpush1.msra.mxu0 %v3872
    %4003 = vmatprep.subr.mxu0 %v3877
    %4004 = vmatpush1.msra.mxu0 %v3876
    %4005 = vmatprep.subr.mxu0 %v3881
    %4006 = vmatpush1.msra.mxu0 %v3880
    %4007 = vmatprep.subr.mxu0 %v3885
    %4008 = vmatpush1.msra.mxu0 %v3884
    %4009 = vmatprep.subr.mxu0 %v3889
    %4010 = vmatpush1.msra.mxu0 %v3888
    %4011 = vmatprep.subr.mxu0 %v3893
    %4012 = vmatpush1.msra.mxu0 %v3892
    %4013 = vmatprep.subr.mxu0 %v3897
    %4014 = vmatpush1.msra.mxu0 %v3896
    %4015 = vmatprep.subr.mxu0 %v3901
    %4016 = vmatpush1.msra.mxu0 %v3900
    %4017 = vmatprep.subr.mxu0 %v3905
    %4018 = vmatpush1.msra.mxu0 %v3904
    %4019 = vmatprep.subr.mxu0 %v3909
    %4020 = vmatpush1.msra.mxu0 %v3908
    %4021 = vmatprep.subr.mxu0 %v3913
    %4022 = vmatpush1.msra.mxu0 %v3912
    %4023 = vmatprep.subr.mxu0 %v3917
    %4024 = vmatpush1.msra.mxu0 %v3916
    %4025 = vmatprep.subr.mxu0 %v3921
    %4026 = vmatpush1.msra.mxu0 %v3920
    %4027 = vmatprep.subr.mxu0 %v3925
    %4028 = vmatpush1.msra.mxu0 %v3924
    %4029 = vmatprep.subr.mxu0 0.0
    %4030 = vmatpush1.msra.mxu0 0.0
    %4031 = vmatprep.subr.mxu0 0.0
    %4032 = vmatpush1.msra.mxu0 0.0
    %4033 = vmatprep.subr.mxu0 0.0
    %4034 = vmatpush1.msra.mxu0 0.0
    %4035 = vmatprep.subr.mxu0 0.0
    %4036 = vmatpush1.msra.mxu0 0.0
    %4037 = vmatprep.subr.mxu0 0.0
    %4038 = vmatpush1.msra.mxu0 0.0
    %4039 = vmatprep.subr.mxu0 0.0
    %4040 = vmatpush1.msra.mxu0 0.0
    %4041 = vmatprep.subr.mxu0 0.0
    %4042 = vmatpush1.msra.mxu0 0.0
    %4043 = vmatprep.subr.mxu0 0.0
    %4044 = vmatpush1.msra.mxu0 0.0
    %4045 = vmatprep.subr.mxu0 0.0
    %4046 = vmatpush1.msra.mxu0 0.0
    %4047 = vmatprep.subr.mxu0 0.0
    %4048 = vmatpush1.msra.mxu0 0.0
    %4049 = vmatprep.subr.mxu0 0.0
    %4050 = vmatpush1.msra.mxu0 0.0
    %4051 = vmatprep.subr.mxu0 0.0
    %4052 = vmatpush1.msra.mxu0 0.0
    %4053 = vmatprep.subr.mxu0 0.0
    %4054 = vmatpush1.msra.mxu0 0.0
    %4055 = vmatprep.subr.mxu0 0.0
    %4056 = vmatpush1.msra.mxu0 0.0
    %4057 = vmatprep.subr.mxu0 0.0
    %4058 = vmatpush1.msra.mxu0 0.0
    %4059 = vmatprep.subr.mxu0 0.0
    %4060 = vmatpush1.msra.mxu0 0.0
    %4061 = vmatprep.mubr.f32.mxu0 0.0
    %4062 = vmatmul.mubr.f32.gmra.mrb[0].mxu0 %v3556
    %v4063 = vpop.f32.mrb[0].mxu0
    %v4064 = vadd.f32 0.0, %v4063
    %v4065 = vpop.f32.mrb[0].mxu0
    %v4066 = vadd.f32 0.0, %v4065
    %4067 = vdwg.mxu0
    %4068 = vmatprep.subr.mxu0 %v3799
    %4069 = vmatpush1.msra.mxu0 %v3798
    %4070 = vmatprep.subr.mxu0 %v3803
    %4071 = vmatpush1.msra.mxu0 %v3802
    %4072 = vmatprep.subr.mxu0 %v3807
    %4073 = vmatpush1.msra.mxu0 %v3806
    %4074 = vmatprep.subr.mxu0 %v3811
    %4075 = vmatpush1.msra.mxu0 %v3810
    %4076 = vmatprep.subr.mxu0 %v3815
    %4077 = vmatpush1.msra.mxu0 %v3814
    %4078 = vmatprep.subr.mxu0 %v3819
    %4079 = vmatpush1.msra.mxu0 %v3818
    %4080 = vmatprep.subr.mxu0 %v3823
    %4081 = vmatpush1.msra.mxu0 %v3822
    %4082 = vmatprep.subr.mxu0 %v3827
    %4083 = vmatpush1.msra.mxu0 %v3826
    %4084 = vmatprep.subr.mxu0 %v3831
    %4085 = vmatpush1.msra.mxu0 %v3830
    %4086 = vmatprep.subr.mxu0 %v3835
    %4087 = vmatpush1.msra.mxu0 %v3834
    %4088 = vmatprep.subr.mxu0 %v3839
    %4089 = vmatpush1.msra.mxu0 %v3838
    %4090 = vmatprep.subr.mxu0 %v3843
    %4091 = vmatpush1.msra.mxu0 %v3842
    %4092 = vmatprep.subr.mxu0 %v3847
    %4093 = vmatpush1.msra.mxu0 %v3846
    %4094 = vmatprep.subr.mxu0 %v3851
    %4095 = vmatpush1.msra.mxu0 %v3850
    %4096 = vmatprep.subr.mxu0 %v3855
    %4097 = vmatpush1.msra.mxu0 %v3854
    %4098 = vmatprep.subr.mxu0 %v3859
    %4099 = vmatpush1.msra.mxu0 %v3858
    %4100 = vmatprep.subr.mxu0 0.0
    %4101 = vmatpush1.msra.mxu0 0.0
    %4102 = vmatprep.subr.mxu0 0.0
    %4103 = vmatpush1.msra.mxu0 0.0
    %4104 = vmatprep.subr.mxu0 0.0
    %4105 = vmatpush1.msra.mxu0 0.0
    %4106 = vmatprep.subr.mxu0 0.0
    %4107 = vmatpush1.msra.mxu0 0.0
    %4108 = vmatprep.subr.mxu0 0.0
    %4109 = vmatpush1.msra.mxu0 0.0
    %4110 = vmatprep.subr.mxu0 0.0
    %4111 = vmatpush1.msra.mxu0 0.0
    %4112 = vmatprep.subr.mxu0 0.0
    %4113 = vmatpush1.msra.mxu0 0.0
    %4114 = vmatprep.subr.mxu0 0.0
    %4115 = vmatpush1.msra.mxu0 0.0
    %4116 = vmatprep.subr.mxu0 0.0
    %4117 = vmatpush1.msra.mxu0 0.0
    %4118 = vmatprep.subr.mxu0 0.0
    %4119 = vmatpush1.msra.mxu0 0.0
    %4120 = vmatprep.subr.mxu0 0.0
    %4121 = vmatpush1.msra.mxu0 0.0
    %4122 = vmatprep.subr.mxu0 0.0
    %4123 = vmatpush1.msra.mxu0 0.0
    %4124 = vmatprep.subr.mxu0 0.0
    %4125 = vmatpush1.msra.mxu0 0.0
    %4126 = vmatprep.subr.mxu0 0.0
    %4127 = vmatpush1.msra.mxu0 0.0
    %4128 = vmatprep.subr.mxu0 0.0
    %4129 = vmatpush1.msra.mxu0 0.0
    %4130 = vmatprep.subr.mxu0 0.0
    %4131 = vmatpush1.msra.mxu0 0.0
    %4132 = vmatprep.mubr.f32.mxu0 0.0
    %4133 = vmatmul.mubr.f32.gmra.mrb[0].mxu0 %v3797
    %v4134 = vpop.f32.mrb[0].mxu0
    %v4135 = vadd.f32 %v3993, %v4134
    %v4136 = vpop.f32.mrb[0].mxu0
    %v4137 = vadd.f32 %v3995, %v4136
    %4138 = vdwg.mxu0
    %4139 = vmatprep.subr.mxu0 %v3801
    %4140 = vmatpush1.msra.mxu0 %v3800
    %4141 = vmatprep.subr.mxu0 %v3805
    %4142 = vmatpush1.msra.mxu0 %v3804
    %4143 = vmatprep.subr.mxu0 %v3809
    %4144 = vmatpush1.msra.mxu0 %v3808
    %4145 = vmatprep.subr.mxu0 %v3813
    %4146 = vmatpush1.msra.mxu0 %v3812
    %4147 = vmatprep.subr.mxu0 %v3817
    %4148 = vmatpush1.msra.mxu0 %v3816
    %4149 = vmatprep.subr.mxu0 %v3821
    %4150 = vmatpush1.msra.mxu0 %v3820
    %4151 = vmatprep.subr.mxu0 %v3825
    %4152 = vmatpush1.msra.mxu0 %v3824
    %4153 = vmatprep.subr.mxu0 %v3829
    %4154 = vmatpush1.msra.mxu0 %v3828
    %4155 = vmatprep.subr.mxu0 %v3833
    %4156 = vmatpush1.msra.mxu0 %v3832
    %4157 = vmatprep.subr.mxu0 %v3837
    %4158 = vmatpush1.msra.mxu0 %v3836
    %4159 = vmatprep.subr.mxu0 %v3841
    %4160 = vmatpush1.msra.mxu0 %v3840
    %4161 = vmatprep.subr.mxu0 %v3845
    %4162 = vmatpush1.msra.mxu0 %v3844
    %4163 = vmatprep.subr.mxu0 %v3849
    %4164 = vmatpush1.msra.mxu0 %v3848
    %4165 = vmatprep.subr.mxu0 %v3853
    %4166 = vmatpush1.msra.mxu0 %v3852
    %4167 = vmatprep.subr.mxu0 %v3857
    %4168 = vmatpush1.msra.mxu0 %v3856
    %4169 = vmatprep.subr.mxu0 %v3861
    %4170 = vmatpush1.msra.mxu0 %v3860
    %4171 = vmatprep.subr.mxu0 0.0
    %4172 = vmatpush1.msra.mxu0 0.0
    %4173 = vmatprep.subr.mxu0 0.0
    %4174 = vmatpush1.msra.mxu0 0.0
    %4175 = vmatprep.subr.mxu0 0.0
    %4176 = vmatpush1.msra.mxu0 0.0
    %4177 = vmatprep.subr.mxu0 0.0
    %4178 = vmatpush1.msra.mxu0 0.0
    %4179 = vmatprep.subr.mxu0 0.0
    %4180 = vmatpush1.msra.mxu0 0.0
    %4181 = vmatprep.subr.mxu0 0.0
    %4182 = vmatpush1.msra.mxu0 0.0
    %4183 = vmatprep.subr.mxu0 0.0
    %4184 = vmatpush1.msra.mxu0 0.0
    %4185 = vmatprep.subr.mxu0 0.0
    %4186 = vmatpush1.msra.mxu0 0.0
    %4187 = vmatprep.subr.mxu0 0.0
    %4188 = vmatpush1.msra.mxu0 0.0
    %4189 = vmatprep.subr.mxu0 0.0
    %4190 = vmatpush1.msra.mxu0 0.0
    %4191 = vmatprep.subr.mxu0 0.0
    %4192 = vmatpush1.msra.mxu0 0.0
    %4193 = vmatprep.subr.mxu0 0.0
    %4194 = vmatpush1.msra.mxu0 0.0
    %4195 = vmatprep.subr.mxu0 0.0
    %4196 = vmatpush1.msra.mxu0 0.0
    %4197 = vmatprep.subr.mxu0 0.0
    %4198 = vmatpush1.msra.mxu0 0.0
    %4199 = vmatprep.subr.mxu0 0.0
    %4200 = vmatpush1.msra.mxu0 0.0
    %4201 = vmatprep.subr.mxu0 0.0
    %4202 = vmatpush1.msra.mxu0 0.0
    %4203 = vmatprep.mubr.f32.mxu0 0.0
    %4204 = vmatmul.mubr.f32.gmra.mrb[0].mxu0 %v3797
    %v4205 = vpop.f32.mrb[0].mxu0
    %v4206 = vadd.f32 %v4064, %v4205
    %v4207 = vpop.f32.mrb[0].mxu0
    %v4208 = vadd.f32 %v4066, %v4207
    %4209 = vdwg.mxu0
    %v4210 = vld [vmem:[%s4] sm:$0xf]
    %v4212 = vlaneseq
    %v4213 = vshrl.u32 %v4212, 7
    %v4214 = vsub.s32 0, %v4213
    %v4215 = vrot.slane %v4210, %v4214
    %v4216 = vlaneseq
    %v4217 = vshrl.u32 %v4216, 7
    %v4218 = vsub.s32 1, %v4217
    %v4219 = vrot.slane %v4210, %v4218
    %v4220 = vlaneseq
    %v4221 = vshrl.u32 %v4220, 7
    %v4222 = vsub.s32 2, %v4221
    %v4223 = vrot.slane %v4210, %v4222
    %v4224 = vlaneseq
    %v4225 = vshrl.u32 %v4224, 7
    %v4226 = vsub.s32 3, %v4225
    %v4227 = vrot.slane %v4210, %v4226
    %v4232 = vadd.f32 %v4135, %v4215
    %v4233 = vadd.f32 %v4137, %v4219
    %v4234 = vadd.f32 %v4206, %v4223
    %v4235 = vadd.f32 %v4208, %v4227
    %v4236 = vxor.u32 %v4232, 2147483648
    %v4237 = vxor.u32 %v4233, 2147483648
    %v4238 = vxor.u32 %v4234, 2147483648
    %v4239 = vmul.f32 %v4236, 1.442695
    %v4240 = vpow.pop %v4239
    %v4241 = vmul.f32 %v4237, 1.442695
    %v4242 = vpow.pop %v4241
    %v4243 = vmul.f32 %v4238, 1.442695
    %v4244 = vpow.pop %v4243
    %v4245 = vadd.f32 %v4240, 1.0
    %v4246 = vadd.f32 %v4242, 1.0
    %v4247 = vadd.f32 %v4244, 1.0
    %v4248 = vrcp.pop %v4245
    %v4249 = vmul.f32 1.0, %v4248
    %v4250 = vrcp.pop %v4246
    %v4251 = vmul.f32 1.0, %v4250
    %v4252 = vrcp.pop %v4247
    %v4253 = vmul.f32 1.0, %v4252
    %v4254 = vtanh.pop %v4235
    %v4255 = vmul.f32 %v4251, %v3554
    %v4256 = vmul.f32 %v4249, %v4254
    %v4257 = vadd.f32 %v4255, %v4256
    %v4258 = vtanh.pop %v4257
    %v4259 = vmul.f32 %v4253, %v4258
    %s4260 = scalar_lea.vmem %s5, 40
    %4261 = vst [vmem:[%s4260] sm:$0xff] %v4259
    %s4262 = scalar_lea.vmem %s0, 192
    %v4263 = vld [vmem:[%s4262] sm:$0xff]
    %v4264 = vld [vmem:[%s4262 + $0x8] sm:$0xff]
    %v4265 = vld [vmem:[%s4262 + $0x10] sm:$0xff]
    %v4266 = vld [vmem:[%s4262 + $0x18] sm:$0xff]
    %v4267 = vld [vmem:[%s1] sm:$0xff]
    %v4268 = vld [vmem:[%s1 + $0x8] sm:$0xff]
    %v4269 = vld [vmem:[%s1 + $0x10] sm:$0xff]
    %v4270 = vld [vmem:[%s1 + $0x18] sm:$0xff]
    %v4271 = vld [vmem:[%s1 + $0x20] sm:$0xff]
    %v4272 = vld [vmem:[%s1 + $0x28] sm:$0xff]
    %v4273 = vld [vmem:[%s1 + $0x30] sm:$0xff]
    %v4274 = vld [vmem:[%s1 + $0x38] sm:$0xff]
    %v4275 = vld [vmem:[%s1 + $0x40] sm:$0xff]
    %v4276 = vld [vmem:[%s1 + $0x48] sm:$0xff]
    %v4277 = vld [vmem:[%s1 + $0x50] sm:$0xff]
    %v4278 = vld [vmem:[%s1 + $0x58] sm:$0xff]
    %v4279 = vld [vmem:[%s1 + $0x60] sm:$0xff]
    %v4280 = vld [vmem:[%s1 + $0x68] sm:$0xff]
    %v4281 = vld [vmem:[%s1 + $0x70] sm:$0xff]
    %v4282 = vld [vmem:[%s1 + $0x78] sm:$0xff]
    %v4283 = vld [vmem:[%s1 + $0x80] sm:$0xff]
    %v4284 = vld [vmem:[%s1 + $0x88] sm:$0xff]
    %v4285 = vld [vmem:[%s1 + $0x90] sm:$0xff]
    %v4286 = vld [vmem:[%s1 + $0x98] sm:$0xff]
    %v4287 = vld [vmem:[%s1 + $0xa0] sm:$0xff]
    %v4288 = vld [vmem:[%s1 + $0xa8] sm:$0xff]
    %v4289 = vld [vmem:[%s1 + $0xb0] sm:$0xff]
    %v4290 = vld [vmem:[%s1 + $0xb8] sm:$0xff]
    %v4291 = vld [vmem:[%s1 + $0xc0] sm:$0xff]
    %v4292 = vld [vmem:[%s1 + $0xc8] sm:$0xff]
    %v4293 = vld [vmem:[%s1 + $0xd0] sm:$0xff]
    %v4294 = vld [vmem:[%s1 + $0xd8] sm:$0xff]
    %v4295 = vld [vmem:[%s1 + $0xe0] sm:$0xff]
    %v4296 = vld [vmem:[%s1 + $0xe8] sm:$0xff]
    %v4297 = vld [vmem:[%s1 + $0xf0] sm:$0xff]
    %v4298 = vld [vmem:[%s1 + $0xf8] sm:$0xff]
    %v4299 = vld [vmem:[%s1 + $0x100] sm:$0xff]
    %v4300 = vld [vmem:[%s1 + $0x108] sm:$0xff]
    %v4301 = vld [vmem:[%s1 + $0x110] sm:$0xff]
    %v4302 = vld [vmem:[%s1 + $0x118] sm:$0xff]
    %v4303 = vld [vmem:[%s1 + $0x120] sm:$0xff]
    %v4304 = vld [vmem:[%s1 + $0x128] sm:$0xff]
    %v4305 = vld [vmem:[%s1 + $0x130] sm:$0xff]
    %v4306 = vld [vmem:[%s1 + $0x138] sm:$0xff]
    %v4307 = vld [vmem:[%s1 + $0x140] sm:$0xff]
    %v4308 = vld [vmem:[%s1 + $0x148] sm:$0xff]
    %v4309 = vld [vmem:[%s1 + $0x150] sm:$0xff]
    %v4310 = vld [vmem:[%s1 + $0x158] sm:$0xff]
    %v4311 = vld [vmem:[%s1 + $0x160] sm:$0xff]
    %v4312 = vld [vmem:[%s1 + $0x168] sm:$0xff]
    %v4313 = vld [vmem:[%s1 + $0x170] sm:$0xff]
    %v4314 = vld [vmem:[%s1 + $0x178] sm:$0xff]
    %v4315 = vld [vmem:[%s1 + $0x180] sm:$0xff]
    %v4316 = vld [vmem:[%s1 + $0x188] sm:$0xff]
    %v4317 = vld [vmem:[%s1 + $0x190] sm:$0xff]
    %v4318 = vld [vmem:[%s1 + $0x198] sm:$0xff]
    %v4319 = vld [vmem:[%s1 + $0x1a0] sm:$0xff]
    %v4320 = vld [vmem:[%s1 + $0x1a8] sm:$0xff]
    %v4321 = vld [vmem:[%s1 + $0x1b0] sm:$0xff]
    %v4322 = vld [vmem:[%s1 + $0x1b8] sm:$0xff]
    %v4323 = vld [vmem:[%s1 + $0x1c0] sm:$0xff]
    %v4324 = vld [vmem:[%s1 + $0x1c8] sm:$0xff]
    %v4325 = vld [vmem:[%s1 + $0x1d0] sm:$0xff]
    %v4326 = vld [vmem:[%s1 + $0x1d8] sm:$0xff]
    %v4327 = vld [vmem:[%s1 + $0x1e0] sm:$0xff]
    %v4328 = vld [vmem:[%s1 + $0x1e8] sm:$0xff]
    %v4329 = vld [vmem:[%s1 + $0x1f0] sm:$0xff]
    %v4330 = vld [vmem:[%s1 + $0x1f8] sm:$0xff]
    %4331 = vmatprep.subr.mxu0 %v4268
    %4332 = vmatpush1.msra.mxu0 %v4267
    %4333 = vmatprep.subr.mxu0 %v4272
    %4334 = vmatpush1.msra.mxu0 %v4271
    %4335 = vmatprep.subr.mxu0 %v4276
    %4336 = vmatpush1.msra.mxu0 %v4275
    %4337 = vmatprep.subr.mxu0 %v4280
    %4338 = vmatpush1.msra.mxu0 %v4279
    %4339 = vmatprep.subr.mxu0 %v4284
    %4340 = vmatpush1.msra.mxu0 %v4283
    %4341 = vmatprep.subr.mxu0 %v4288
    %4342 = vmatpush1.msra.mxu0 %v4287
    %4343 = vmatprep.subr.mxu0 %v4292
    %4344 = vmatpush1.msra.mxu0 %v4291
    %4345 = vmatprep.subr.mxu0 %v4296
    %4346 = vmatpush1.msra.mxu0 %v4295
    %4347 = vmatprep.subr.mxu0 %v4300
    %4348 = vmatpush1.msra.mxu0 %v4299
    %4349 = vmatprep.subr.mxu0 %v4304
    %4350 = vmatpush1.msra.mxu0 %v4303
    %4351 = vmatprep.subr.mxu0 %v4308
    %4352 = vmatpush1.msra.mxu0 %v4307
    %4353 = vmatprep.subr.mxu0 %v4312
    %4354 = vmatpush1.msra.mxu0 %v4311
    %4355 = vmatprep.subr.mxu0 %v4316
    %4356 = vmatpush1.msra.mxu0 %v4315
    %4357 = vmatprep.subr.mxu0 %v4320
    %4358 = vmatpush1.msra.mxu0 %v4319
    %4359 = vmatprep.subr.mxu0 %v4324
    %4360 = vmatpush1.msra.mxu0 %v4323
    %4361 = vmatprep.subr.mxu0 %v4328
    %4362 = vmatpush1.msra.mxu0 %v4327
    %4363 = vmatprep.subr.mxu0 0.0
    %4364 = vmatpush1.msra.mxu0 0.0
    %4365 = vmatprep.subr.mxu0 0.0
    %4366 = vmatpush1.msra.mxu0 0.0
    %4367 = vmatprep.subr.mxu0 0.0
    %4368 = vmatpush1.msra.mxu0 0.0
    %4369 = vmatprep.subr.mxu0 0.0
    %4370 = vmatpush1.msra.mxu0 0.0
    %4371 = vmatprep.subr.mxu0 0.0
    %4372 = vmatpush1.msra.mxu0 0.0
    %4373 = vmatprep.subr.mxu0 0.0
    %4374 = vmatpush1.msra.mxu0 0.0
    %4375 = vmatprep.subr.mxu0 0.0
    %4376 = vmatpush1.msra.mxu0 0.0
    %4377 = vmatprep.subr.mxu0 0.0
    %4378 = vmatpush1.msra.mxu0 0.0
    %4379 = vmatprep.subr.mxu0 0.0
    %4380 = vmatpush1.msra.mxu0 0.0
    %4381 = vmatprep.subr.mxu0 0.0
    %4382 = vmatpush1.msra.mxu0 0.0
    %4383 = vmatprep.subr.mxu0 0.0
    %4384 = vmatpush1.msra.mxu0 0.0
    %4385 = vmatprep.subr.mxu0 0.0
    %4386 = vmatpush1.msra.mxu0 0.0
    %4387 = vmatprep.subr.mxu0 0.0
    %4388 = vmatpush1.msra.mxu0 0.0
    %4389 = vmatprep.subr.mxu0 0.0
    %4390 = vmatpush1.msra.mxu0 0.0
    %4391 = vmatprep.subr.mxu0 0.0
    %4392 = vmatpush1.msra.mxu0 0.0
    %4393 = vmatprep.subr.mxu0 0.0
    %4394 = vmatpush1.msra.mxu0 0.0
    %4395 = vmatprep.mubr.f32.mxu0 0.0
    %4396 = vmatmul.mubr.f32.gmra.mrb[0].mxu0 %v3797
    %v4397 = vpop.f32.mrb[0].mxu0
    %v4398 = vadd.f32 0.0, %v4397
    %v4399 = vpop.f32.mrb[0].mxu0
    %v4400 = vadd.f32 0.0, %v4399
    %4401 = vdwg.mxu0
    %4402 = vmatprep.subr.mxu0 %v4270
    %4403 = vmatpush1.msra.mxu0 %v4269
    %4404 = vmatprep.subr.mxu0 %v4274
    %4405 = vmatpush1.msra.mxu0 %v4273
    %4406 = vmatprep.subr.mxu0 %v4278
    %4407 = vmatpush1.msra.mxu0 %v4277
    %4408 = vmatprep.subr.mxu0 %v4282
    %4409 = vmatpush1.msra.mxu0 %v4281
    %4410 = vmatprep.subr.mxu0 %v4286
    %4411 = vmatpush1.msra.mxu0 %v4285
    %4412 = vmatprep.subr.mxu0 %v4290
    %4413 = vmatpush1.msra.mxu0 %v4289
    %4414 = vmatprep.subr.mxu0 %v4294
    %4415 = vmatpush1.msra.mxu0 %v4293
    %4416 = vmatprep.subr.mxu0 %v4298
    %4417 = vmatpush1.msra.mxu0 %v4297
    %4418 = vmatprep.subr.mxu0 %v4302
    %4419 = vmatpush1.msra.mxu0 %v4301
    %4420 = vmatprep.subr.mxu0 %v4306
    %4421 = vmatpush1.msra.mxu0 %v4305
    %4422 = vmatprep.subr.mxu0 %v4310
    %4423 = vmatpush1.msra.mxu0 %v4309
    %4424 = vmatprep.subr.mxu0 %v4314
    %4425 = vmatpush1.msra.mxu0 %v4313
    %4426 = vmatprep.subr.mxu0 %v4318
    %4427 = vmatpush1.msra.mxu0 %v4317
    %4428 = vmatprep.subr.mxu0 %v4322
    %4429 = vmatpush1.msra.mxu0 %v4321
    %4430 = vmatprep.subr.mxu0 %v4326
    %4431 = vmatpush1.msra.mxu0 %v4325
    %4432 = vmatprep.subr.mxu0 %v4330
    %4433 = vmatpush1.msra.mxu0 %v4329
    %4434 = vmatprep.subr.mxu0 0.0
    %4435 = vmatpush1.msra.mxu0 0.0
    %4436 = vmatprep.subr.mxu0 0.0
    %4437 = vmatpush1.msra.mxu0 0.0
    %4438 = vmatprep.subr.mxu0 0.0
    %4439 = vmatpush1.msra.mxu0 0.0
    %4440 = vmatprep.subr.mxu0 0.0
    %4441 = vmatpush1.msra.mxu0 0.0
    %4442 = vmatprep.subr.mxu0 0.0
    %4443 = vmatpush1.msra.mxu0 0.0
    %4444 = vmatprep.subr.mxu0 0.0
    %4445 = vmatpush1.msra.mxu0 0.0
    %4446 = vmatprep.subr.mxu0 0.0
    %4447 = vmatpush1.msra.mxu0 0.0
    %4448 = vmatprep.subr.mxu0 0.0
    %4449 = vmatpush1.msra.mxu0 0.0
    %4450 = vmatprep.subr.mxu0 0.0
    %4451 = vmatpush1.msra.mxu0 0.0
    %4452 = vmatprep.subr.mxu0 0.0
    %4453 = vmatpush1.msra.mxu0 0.0
    %4454 = vmatprep.subr.mxu0 0.0
    %4455 = vmatpush1.msra.mxu0 0.0
    %4456 = vmatprep.subr.mxu0 0.0
    %4457 = vmatpush1.msra.mxu0 0.0
    %4458 = vmatprep.subr.mxu0 0.0
    %4459 = vmatpush1.msra.mxu0 0.0
    %4460 = vmatprep.subr.mxu0 0.0
    %4461 = vmatpush1.msra.mxu0 0.0
    %4462 = vmatprep.subr.mxu0 0.0
    %4463 = vmatpush1.msra.mxu0 0.0
    %4464 = vmatprep.subr.mxu0 0.0
    %4465 = vmatpush1.msra.mxu0 0.0
    %4466 = vmatprep.mubr.f32.mxu0 0.0
    %4467 = vmatmul.mubr.f32.gmra.mrb[0].mxu0 %v3797
    %v4468 = vpop.f32.mrb[0].mxu0
    %v4469 = vadd.f32 0.0, %v4468
    %v4470 = vpop.f32.mrb[0].mxu0
    %v4471 = vadd.f32 0.0, %v4470
    %4472 = vdwg.mxu0
    %v4473 = vadd.f32 %v4263, %v4398
    %v4474 = vadd.f32 %v4264, %v4400
    %v4475 = vadd.f32 %v4265, %v4469
    %v4476 = vadd.f32 %v4266, %v4471
    %v4477 = vxor.u32 %v4473, 2147483648
    %v4478 = vxor.u32 %v4474, 2147483648
    %v4479 = vxor.u32 %v4475, 2147483648
    %v4480 = vmul.f32 %v4477, 1.442695
    %v4481 = vpow.pop %v4480
    %v4482 = vmul.f32 %v4478, 1.442695
    %v4483 = vpow.pop %v4482
    %v4484 = vmul.f32 %v4479, 1.442695
    %v4485 = vpow.pop %v4484
    %v4486 = vadd.f32 %v4481, 1.0
    %v4487 = vadd.f32 %v4483, 1.0
    %v4488 = vadd.f32 %v4485, 1.0
    %v4489 = vrcp.pop %v4486
    %v4490 = vmul.f32 1.0, %v4489
    %v4491 = vrcp.pop %v4487
    %v4492 = vmul.f32 1.0, %v4491
    %v4493 = vrcp.pop %v4488
    %v4494 = vmul.f32 1.0, %v4493
    %v4495 = vtanh.pop %v4476
    %v4496 = vmul.f32 %v4492, %v3795
    %v4497 = vmul.f32 %v4490, %v4495
    %v4498 = vadd.f32 %v4496, %v4497
    %v4499 = vtanh.pop %v4498
    %v4500 = vmul.f32 %v4494, %v4499
    %v4501 = vld [vmem:[%s2] sm:$0xff]
    %v4502 = vld [vmem:[%s2 + $0x8] sm:$0xff]
    %v4503 = vld [vmem:[%s2 + $0x10] sm:$0xff]
    %v4504 = vld [vmem:[%s2 + $0x18] sm:$0xff]
    %v4505 = vld [vmem:[%s2 + $0x20] sm:$0xff]
    %v4506 = vld [vmem:[%s2 + $0x28] sm:$0xff]
    %v4507 = vld [vmem:[%s2 + $0x30] sm:$0xff]
    %v4508 = vld [vmem:[%s2 + $0x38] sm:$0xff]
    %v4509 = vld [vmem:[%s2 + $0x40] sm:$0xff]
    %v4510 = vld [vmem:[%s2 + $0x48] sm:$0xff]
    %v4511 = vld [vmem:[%s2 + $0x50] sm:$0xff]
    %v4512 = vld [vmem:[%s2 + $0x58] sm:$0xff]
    %v4513 = vld [vmem:[%s2 + $0x60] sm:$0xff]
    %v4514 = vld [vmem:[%s2 + $0x68] sm:$0xff]
    %v4515 = vld [vmem:[%s2 + $0x70] sm:$0xff]
    %v4516 = vld [vmem:[%s2 + $0x78] sm:$0xff]
    %v4517 = vld [vmem:[%s2 + $0x80] sm:$0xff]
    %v4518 = vld [vmem:[%s2 + $0x88] sm:$0xff]
    %v4519 = vld [vmem:[%s2 + $0x90] sm:$0xff]
    %v4520 = vld [vmem:[%s2 + $0x98] sm:$0xff]
    %v4521 = vld [vmem:[%s2 + $0xa0] sm:$0xff]
    %v4522 = vld [vmem:[%s2 + $0xa8] sm:$0xff]
    %v4523 = vld [vmem:[%s2 + $0xb0] sm:$0xff]
    %v4524 = vld [vmem:[%s2 + $0xb8] sm:$0xff]
    %v4525 = vld [vmem:[%s2 + $0xc0] sm:$0xff]
    %v4526 = vld [vmem:[%s2 + $0xc8] sm:$0xff]
    %v4527 = vld [vmem:[%s2 + $0xd0] sm:$0xff]
    %v4528 = vld [vmem:[%s2 + $0xd8] sm:$0xff]
    %v4529 = vld [vmem:[%s2 + $0xe0] sm:$0xff]
    %v4530 = vld [vmem:[%s2 + $0xe8] sm:$0xff]
    %v4531 = vld [vmem:[%s2 + $0xf0] sm:$0xff]
    %v4532 = vld [vmem:[%s2 + $0xf8] sm:$0xff]
    %v4533 = vld [vmem:[%s2 + $0x100] sm:$0xff]
    %v4534 = vld [vmem:[%s2 + $0x108] sm:$0xff]
    %v4535 = vld [vmem:[%s2 + $0x110] sm:$0xff]
    %v4536 = vld [vmem:[%s2 + $0x118] sm:$0xff]
    %v4537 = vld [vmem:[%s2 + $0x120] sm:$0xff]
    %v4538 = vld [vmem:[%s2 + $0x128] sm:$0xff]
    %v4539 = vld [vmem:[%s2 + $0x130] sm:$0xff]
    %v4540 = vld [vmem:[%s2 + $0x138] sm:$0xff]
    %v4541 = vld [vmem:[%s2 + $0x140] sm:$0xff]
    %v4542 = vld [vmem:[%s2 + $0x148] sm:$0xff]
    %v4543 = vld [vmem:[%s2 + $0x150] sm:$0xff]
    %v4544 = vld [vmem:[%s2 + $0x158] sm:$0xff]
    %v4545 = vld [vmem:[%s2 + $0x160] sm:$0xff]
    %v4546 = vld [vmem:[%s2 + $0x168] sm:$0xff]
    %v4547 = vld [vmem:[%s2 + $0x170] sm:$0xff]
    %v4548 = vld [vmem:[%s2 + $0x178] sm:$0xff]
    %v4549 = vld [vmem:[%s2 + $0x180] sm:$0xff]
    %v4550 = vld [vmem:[%s2 + $0x188] sm:$0xff]
    %v4551 = vld [vmem:[%s2 + $0x190] sm:$0xff]
    %v4552 = vld [vmem:[%s2 + $0x198] sm:$0xff]
    %v4553 = vld [vmem:[%s2 + $0x1a0] sm:$0xff]
    %v4554 = vld [vmem:[%s2 + $0x1a8] sm:$0xff]
    %v4555 = vld [vmem:[%s2 + $0x1b0] sm:$0xff]
    %v4556 = vld [vmem:[%s2 + $0x1b8] sm:$0xff]
    %v4557 = vld [vmem:[%s2 + $0x1c0] sm:$0xff]
    %v4558 = vld [vmem:[%s2 + $0x1c8] sm:$0xff]
    %v4559 = vld [vmem:[%s2 + $0x1d0] sm:$0xff]
    %v4560 = vld [vmem:[%s2 + $0x1d8] sm:$0xff]
    %v4561 = vld [vmem:[%s2 + $0x1e0] sm:$0xff]
    %v4562 = vld [vmem:[%s2 + $0x1e8] sm:$0xff]
    %v4563 = vld [vmem:[%s2 + $0x1f0] sm:$0xff]
    %v4564 = vld [vmem:[%s2 + $0x1f8] sm:$0xff]
    %v4565 = vld [vmem:[#allocation6] sm:$0xff]
    %v4566 = vld [vmem:[#allocation6 + $0x8] sm:$0xff]
    %v4567 = vld [vmem:[#allocation6 + $0x10] sm:$0xff]
    %v4568 = vld [vmem:[#allocation6 + $0x18] sm:$0xff]
    %v4569 = vld [vmem:[#allocation6 + $0x20] sm:$0xff]
    %v4570 = vld [vmem:[#allocation6 + $0x28] sm:$0xff]
    %v4571 = vld [vmem:[#allocation6 + $0x30] sm:$0xff]
    %v4572 = vld [vmem:[#allocation6 + $0x38] sm:$0xff]
    %v4573 = vld [vmem:[#allocation6 + $0x40] sm:$0xff]
    %v4574 = vld [vmem:[#allocation6 + $0x48] sm:$0xff]
    %v4575 = vld [vmem:[#allocation6 + $0x50] sm:$0xff]
    %v4576 = vld [vmem:[#allocation6 + $0x58] sm:$0xff]
    %v4577 = vld [vmem:[#allocation6 + $0x60] sm:$0xff]
    %v4578 = vld [vmem:[#allocation6 + $0x68] sm:$0xff]
    %v4579 = vld [vmem:[#allocation6 + $0x70] sm:$0xff]
    %v4580 = vld [vmem:[#allocation6 + $0x78] sm:$0xff]
    %v4581 = vld [vmem:[#allocation6 + $0x80] sm:$0xff]
    %v4582 = vld [vmem:[#allocation6 + $0x88] sm:$0xff]
    %v4583 = vld [vmem:[#allocation6 + $0x90] sm:$0xff]
    %v4584 = vld [vmem:[#allocation6 + $0x98] sm:$0xff]
    %v4585 = vld [vmem:[#allocation6 + $0xa0] sm:$0xff]
    %v4586 = vld [vmem:[#allocation6 + $0xa8] sm:$0xff]
    %v4587 = vld [vmem:[#allocation6 + $0xb0] sm:$0xff]
    %v4588 = vld [vmem:[#allocation6 + $0xb8] sm:$0xff]
    %v4589 = vld [vmem:[#allocation6 + $0xc0] sm:$0xff]
    %v4590 = vld [vmem:[#allocation6 + $0xc8] sm:$0xff]
    %v4591 = vld [vmem:[#allocation6 + $0xd0] sm:$0xff]
    %v4592 = vld [vmem:[#allocation6 + $0xd8] sm:$0xff]
    %v4593 = vld [vmem:[#allocation6 + $0xe0] sm:$0xff]
    %v4594 = vld [vmem:[#allocation6 + $0xe8] sm:$0xff]
    %v4595 = vld [vmem:[#allocation6 + $0xf0] sm:$0xff]
    %v4596 = vld [vmem:[#allocation6 + $0xf8] sm:$0xff]
    %v4597 = vld [vmem:[#allocation6 + $0x100] sm:$0xff]
    %v4598 = vld [vmem:[#allocation6 + $0x108] sm:$0xff]
    %v4599 = vld [vmem:[#allocation6 + $0x110] sm:$0xff]
    %v4600 = vld [vmem:[#allocation6 + $0x118] sm:$0xff]
    %v4601 = vld [vmem:[#allocation6 + $0x120] sm:$0xff]
    %v4602 = vld [vmem:[#allocation6 + $0x128] sm:$0xff]
    %v4603 = vld [vmem:[#allocation6 + $0x130] sm:$0xff]
    %v4604 = vld [vmem:[#allocation6 + $0x138] sm:$0xff]
    %v4605 = vld [vmem:[#allocation6 + $0x140] sm:$0xff]
    %v4606 = vld [vmem:[#allocation6 + $0x148] sm:$0xff]
    %v4607 = vld [vmem:[#allocation6 + $0x150] sm:$0xff]
    %v4608 = vld [vmem:[#allocation6 + $0x158] sm:$0xff]
    %v4609 = vld [vmem:[#allocation6 + $0x160] sm:$0xff]
    %v4610 = vld [vmem:[#allocation6 + $0x168] sm:$0xff]
    %v4611 = vld [vmem:[#allocation6 + $0x170] sm:$0xff]
    %v4612 = vld [vmem:[#allocation6 + $0x178] sm:$0xff]
    %v4613 = vld [vmem:[#allocation6 + $0x180] sm:$0xff]
    %v4614 = vld [vmem:[#allocation6 + $0x188] sm:$0xff]
    %v4615 = vld [vmem:[#allocation6 + $0x190] sm:$0xff]
    %v4616 = vld [vmem:[#allocation6 + $0x198] sm:$0xff]
    %v4617 = vld [vmem:[#allocation6 + $0x1a0] sm:$0xff]
    %v4618 = vld [vmem:[#allocation6 + $0x1a8] sm:$0xff]
    %v4619 = vld [vmem:[#allocation6 + $0x1b0] sm:$0xff]
    %v4620 = vld [vmem:[#allocation6 + $0x1b8] sm:$0xff]
    %v4621 = vld [vmem:[#allocation6 + $0x1c0] sm:$0xff]
    %v4622 = vld [vmem:[#allocation6 + $0x1c8] sm:$0xff]
    %v4623 = vld [vmem:[#allocation6 + $0x1d0] sm:$0xff]
    %v4624 = vld [vmem:[#allocation6 + $0x1d8] sm:$0xff]
    %v4625 = vld [vmem:[#allocation6 + $0x1e0] sm:$0xff]
    %v4626 = vld [vmem:[#allocation6 + $0x1e8] sm:$0xff]
    %v4627 = vld [vmem:[#allocation6 + $0x1f0] sm:$0xff]
    %v4628 = vld [vmem:[#allocation6 + $0x1f8] sm:$0xff]
    %4629 = vmatprep.subr.mxu0 %v4566
    %4630 = vmatpush1.msra.mxu0 %v4565
    %4631 = vmatprep.subr.mxu0 %v4570
    %4632 = vmatpush1.msra.mxu0 %v4569
    %4633 = vmatprep.subr.mxu0 %v4574
    %4634 = vmatpush1.msra.mxu0 %v4573
    %4635 = vmatprep.subr.mxu0 %v4578
    %4636 = vmatpush1.msra.mxu0 %v4577
    %4637 = vmatprep.subr.mxu0 %v4582
    %4638 = vmatpush1.msra.mxu0 %v4581
    %4639 = vmatprep.subr.mxu0 %v4586
    %4640 = vmatpush1.msra.mxu0 %v4585
    %4641 = vmatprep.subr.mxu0 %v4590
    %4642 = vmatpush1.msra.mxu0 %v4589
    %4643 = vmatprep.subr.mxu0 %v4594
    %4644 = vmatpush1.msra.mxu0 %v4593
    %4645 = vmatprep.subr.mxu0 %v4598
    %4646 = vmatpush1.msra.mxu0 %v4597
    %4647 = vmatprep.subr.mxu0 %v4602
    %4648 = vmatpush1.msra.mxu0 %v4601
    %4649 = vmatprep.subr.mxu0 %v4606
    %4650 = vmatpush1.msra.mxu0 %v4605
    %4651 = vmatprep.subr.mxu0 %v4610
    %4652 = vmatpush1.msra.mxu0 %v4609
    %4653 = vmatprep.subr.mxu0 %v4614
    %4654 = vmatpush1.msra.mxu0 %v4613
    %4655 = vmatprep.subr.mxu0 %v4618
    %4656 = vmatpush1.msra.mxu0 %v4617
    %4657 = vmatprep.subr.mxu0 %v4622
    %4658 = vmatpush1.msra.mxu0 %v4621
    %4659 = vmatprep.subr.mxu0 %v4626
    %4660 = vmatpush1.msra.mxu0 %v4625
    %4661 = vmatprep.subr.mxu0 0.0
    %4662 = vmatpush1.msra.mxu0 0.0
    %4663 = vmatprep.subr.mxu0 0.0
    %4664 = vmatpush1.msra.mxu0 0.0
    %4665 = vmatprep.subr.mxu0 0.0
    %4666 = vmatpush1.msra.mxu0 0.0
    %4667 = vmatprep.subr.mxu0 0.0
    %4668 = vmatpush1.msra.mxu0 0.0
    %4669 = vmatprep.subr.mxu0 0.0
    %4670 = vmatpush1.msra.mxu0 0.0
    %4671 = vmatprep.subr.mxu0 0.0
    %4672 = vmatpush1.msra.mxu0 0.0
    %4673 = vmatprep.subr.mxu0 0.0
    %4674 = vmatpush1.msra.mxu0 0.0
    %4675 = vmatprep.subr.mxu0 0.0
    %4676 = vmatpush1.msra.mxu0 0.0
    %4677 = vmatprep.subr.mxu0 0.0
    %4678 = vmatpush1.msra.mxu0 0.0
    %4679 = vmatprep.subr.mxu0 0.0
    %4680 = vmatpush1.msra.mxu0 0.0
    %4681 = vmatprep.subr.mxu0 0.0
    %4682 = vmatpush1.msra.mxu0 0.0
    %4683 = vmatprep.subr.mxu0 0.0
    %4684 = vmatpush1.msra.mxu0 0.0
    %4685 = vmatprep.subr.mxu0 0.0
    %4686 = vmatpush1.msra.mxu0 0.0
    %4687 = vmatprep.subr.mxu0 0.0
    %4688 = vmatpush1.msra.mxu0 0.0
    %4689 = vmatprep.subr.mxu0 0.0
    %4690 = vmatpush1.msra.mxu0 0.0
    %4691 = vmatprep.subr.mxu0 0.0
    %4692 = vmatpush1.msra.mxu0 0.0
    %4693 = vmatprep.mubr.f32.mxu0 0.0
    %4694 = vmatmul.mubr.f32.gmra.mrb[0].mxu0 %v4259
    %v4695 = vpop.f32.mrb[0].mxu0
    %v4696 = vadd.f32 0.0, %v4695
    %v4697 = vpop.f32.mrb[0].mxu0
    %v4698 = vadd.f32 0.0, %v4697
    %4699 = vdwg.mxu0
    %4700 = vmatprep.subr.mxu0 %v4568
    %4701 = vmatpush1.msra.mxu0 %v4567
    %4702 = vmatprep.subr.mxu0 %v4572
    %4703 = vmatpush1.msra.mxu0 %v4571
    %4704 = vmatprep.subr.mxu0 %v4576
    %4705 = vmatpush1.msra.mxu0 %v4575
    %4706 = vmatprep.subr.mxu0 %v4580
    %4707 = vmatpush1.msra.mxu0 %v4579
    %4708 = vmatprep.subr.mxu0 %v4584
    %4709 = vmatpush1.msra.mxu0 %v4583
    %4710 = vmatprep.subr.mxu0 %v4588
    %4711 = vmatpush1.msra.mxu0 %v4587
    %4712 = vmatprep.subr.mxu0 %v4592
    %4713 = vmatpush1.msra.mxu0 %v4591
    %4714 = vmatprep.subr.mxu0 %v4596
    %4715 = vmatpush1.msra.mxu0 %v4595
    %4716 = vmatprep.subr.mxu0 %v4600
    %4717 = vmatpush1.msra.mxu0 %v4599
    %4718 = vmatprep.subr.mxu0 %v4604
    %4719 = vmatpush1.msra.mxu0 %v4603
    %4720 = vmatprep.subr.mxu0 %v4608
    %4721 = vmatpush1.msra.mxu0 %v4607
    %4722 = vmatprep.subr.mxu0 %v4612
    %4723 = vmatpush1.msra.mxu0 %v4611
    %4724 = vmatprep.subr.mxu0 %v4616
    %4725 = vmatpush1.msra.mxu0 %v4615
    %4726 = vmatprep.subr.mxu0 %v4620
    %4727 = vmatpush1.msra.mxu0 %v4619
    %4728 = vmatprep.subr.mxu0 %v4624
    %4729 = vmatpush1.msra.mxu0 %v4623
    %4730 = vmatprep.subr.mxu0 %v4628
    %4731 = vmatpush1.msra.mxu0 %v4627
    %4732 = vmatprep.subr.mxu0 0.0
    %4733 = vmatpush1.msra.mxu0 0.0
    %4734 = vmatprep.subr.mxu0 0.0
    %4735 = vmatpush1.msra.mxu0 0.0
    %4736 = vmatprep.subr.mxu0 0.0
    %4737 = vmatpush1.msra.mxu0 0.0
    %4738 = vmatprep.subr.mxu0 0.0
    %4739 = vmatpush1.msra.mxu0 0.0
    %4740 = vmatprep.subr.mxu0 0.0
    %4741 = vmatpush1.msra.mxu0 0.0
    %4742 = vmatprep.subr.mxu0 0.0
    %4743 = vmatpush1.msra.mxu0 0.0
    %4744 = vmatprep.subr.mxu0 0.0
    %4745 = vmatpush1.msra.mxu0 0.0
    %4746 = vmatprep.subr.mxu0 0.0
    %4747 = vmatpush1.msra.mxu0 0.0
    %4748 = vmatprep.subr.mxu0 0.0
    %4749 = vmatpush1.msra.mxu0 0.0
    %4750 = vmatprep.subr.mxu0 0.0
    %4751 = vmatpush1.msra.mxu0 0.0
    %4752 = vmatprep.subr.mxu0 0.0
    %4753 = vmatpush1.msra.mxu0 0.0
    %4754 = vmatprep.subr.mxu0 0.0
    %4755 = vmatpush1.msra.mxu0 0.0
    %4756 = vmatprep.subr.mxu0 0.0
    %4757 = vmatpush1.msra.mxu0 0.0
    %4758 = vmatprep.subr.mxu0 0.0
    %4759 = vmatpush1.msra.mxu0 0.0
    %4760 = vmatprep.subr.mxu0 0.0
    %4761 = vmatpush1.msra.mxu0 0.0
    %4762 = vmatprep.subr.mxu0 0.0
    %4763 = vmatpush1.msra.mxu0 0.0
    %4764 = vmatprep.mubr.f32.mxu0 0.0
    %4765 = vmatmul.mubr.f32.gmra.mrb[0].mxu0 %v4259
    %v4766 = vpop.f32.mrb[0].mxu0
    %v4767 = vadd.f32 0.0, %v4766
    %v4768 = vpop.f32.mrb[0].mxu0
    %v4769 = vadd.f32 0.0, %v4768
    %4770 = vdwg.mxu0
    %4771 = vmatprep.subr.mxu0 %v4502
    %4772 = vmatpush1.msra.mxu0 %v4501
    %4773 = vmatprep.subr.mxu0 %v4506
    %4774 = vmatpush1.msra.mxu0 %v4505
    %4775 = vmatprep.subr.mxu0 %v4510
    %4776 = vmatpush1.msra.mxu0 %v4509
    %4777 = vmatprep.subr.mxu0 %v4514
    %4778 = vmatpush1.msra.mxu0 %v4513
    %4779 = vmatprep.subr.mxu0 %v4518
    %4780 = vmatpush1.msra.mxu0 %v4517
    %4781 = vmatprep.subr.mxu0 %v4522
    %4782 = vmatpush1.msra.mxu0 %v4521
    %4783 = vmatprep.subr.mxu0 %v4526
    %4784 = vmatpush1.msra.mxu0 %v4525
    %4785 = vmatprep.subr.mxu0 %v4530
    %4786 = vmatpush1.msra.mxu0 %v4529
    %4787 = vmatprep.subr.mxu0 %v4534
    %4788 = vmatpush1.msra.mxu0 %v4533
    %4789 = vmatprep.subr.mxu0 %v4538
    %4790 = vmatpush1.msra.mxu0 %v4537
    %4791 = vmatprep.subr.mxu0 %v4542
    %4792 = vmatpush1.msra.mxu0 %v4541
    %4793 = vmatprep.subr.mxu0 %v4546
    %4794 = vmatpush1.msra.mxu0 %v4545
    %4795 = vmatprep.subr.mxu0 %v4550
    %4796 = vmatpush1.msra.mxu0 %v4549
    %4797 = vmatprep.subr.mxu0 %v4554
    %4798 = vmatpush1.msra.mxu0 %v4553
    %4799 = vmatprep.subr.mxu0 %v4558
    %4800 = vmatpush1.msra.mxu0 %v4557
    %4801 = vmatprep.subr.mxu0 %v4562
    %4802 = vmatpush1.msra.mxu0 %v4561
    %4803 = vmatprep.subr.mxu0 0.0
    %4804 = vmatpush1.msra.mxu0 0.0
    %4805 = vmatprep.subr.mxu0 0.0
    %4806 = vmatpush1.msra.mxu0 0.0
    %4807 = vmatprep.subr.mxu0 0.0
    %4808 = vmatpush1.msra.mxu0 0.0
    %4809 = vmatprep.subr.mxu0 0.0
    %4810 = vmatpush1.msra.mxu0 0.0
    %4811 = vmatprep.subr.mxu0 0.0
    %4812 = vmatpush1.msra.mxu0 0.0
    %4813 = vmatprep.subr.mxu0 0.0
    %4814 = vmatpush1.msra.mxu0 0.0
    %4815 = vmatprep.subr.mxu0 0.0
    %4816 = vmatpush1.msra.mxu0 0.0
    %4817 = vmatprep.subr.mxu0 0.0
    %4818 = vmatpush1.msra.mxu0 0.0
    %4819 = vmatprep.subr.mxu0 0.0
    %4820 = vmatpush1.msra.mxu0 0.0
    %4821 = vmatprep.subr.mxu0 0.0
    %4822 = vmatpush1.msra.mxu0 0.0
    %4823 = vmatprep.subr.mxu0 0.0
    %4824 = vmatpush1.msra.mxu0 0.0
    %4825 = vmatprep.subr.mxu0 0.0
    %4826 = vmatpush1.msra.mxu0 0.0
    %4827 = vmatprep.subr.mxu0 0.0
    %4828 = vmatpush1.msra.mxu0 0.0
    %4829 = vmatprep.subr.mxu0 0.0
    %4830 = vmatpush1.msra.mxu0 0.0
    %4831 = vmatprep.subr.mxu0 0.0
    %4832 = vmatpush1.msra.mxu0 0.0
    %4833 = vmatprep.subr.mxu0 0.0
    %4834 = vmatpush1.msra.mxu0 0.0
    %4835 = vmatprep.mubr.f32.mxu0 0.0
    %4836 = vmatmul.mubr.f32.gmra.mrb[0].mxu0 %v4500
    %v4837 = vpop.f32.mrb[0].mxu0
    %v4838 = vadd.f32 %v4696, %v4837
    %v4839 = vpop.f32.mrb[0].mxu0
    %v4840 = vadd.f32 %v4698, %v4839
    %4841 = vdwg.mxu0
    %4842 = vmatprep.subr.mxu0 %v4504
    %4843 = vmatpush1.msra.mxu0 %v4503
    %4844 = vmatprep.subr.mxu0 %v4508
    %4845 = vmatpush1.msra.mxu0 %v4507
    %4846 = vmatprep.subr.mxu0 %v4512
    %4847 = vmatpush1.msra.mxu0 %v4511
    %4848 = vmatprep.subr.mxu0 %v4516
    %4849 = vmatpush1.msra.mxu0 %v4515
    %4850 = vmatprep.subr.mxu0 %v4520
    %4851 = vmatpush1.msra.mxu0 %v4519
    %4852 = vmatprep.subr.mxu0 %v4524
    %4853 = vmatpush1.msra.mxu0 %v4523
    %4854 = vmatprep.subr.mxu0 %v4528
    %4855 = vmatpush1.msra.mxu0 %v4527
    %4856 = vmatprep.subr.mxu0 %v4532
    %4857 = vmatpush1.msra.mxu0 %v4531
    %4858 = vmatprep.subr.mxu0 %v4536
    %4859 = vmatpush1.msra.mxu0 %v4535
    %4860 = vmatprep.subr.mxu0 %v4540
    %4861 = vmatpush1.msra.mxu0 %v4539
    %4862 = vmatprep.subr.mxu0 %v4544
    %4863 = vmatpush1.msra.mxu0 %v4543
    %4864 = vmatprep.subr.mxu0 %v4548
    %4865 = vmatpush1.msra.mxu0 %v4547
    %4866 = vmatprep.subr.mxu0 %v4552
    %4867 = vmatpush1.msra.mxu0 %v4551
    %4868 = vmatprep.subr.mxu0 %v4556
    %4869 = vmatpush1.msra.mxu0 %v4555
    %4870 = vmatprep.subr.mxu0 %v4560
    %4871 = vmatpush1.msra.mxu0 %v4559
    %4872 = vmatprep.subr.mxu0 %v4564
    %4873 = vmatpush1.msra.mxu0 %v4563
    %4874 = vmatprep.subr.mxu0 0.0
    %4875 = vmatpush1.msra.mxu0 0.0
    %4876 = vmatprep.subr.mxu0 0.0
    %4877 = vmatpush1.msra.mxu0 0.0
    %4878 = vmatprep.subr.mxu0 0.0
    %4879 = vmatpush1.msra.mxu0 0.0
    %4880 = vmatprep.subr.mxu0 0.0
    %4881 = vmatpush1.msra.mxu0 0.0
    %4882 = vmatprep.subr.mxu0 0.0
    %4883 = vmatpush1.msra.mxu0 0.0
    %4884 = vmatprep.subr.mxu0 0.0
    %4885 = vmatpush1.msra.mxu0 0.0
    %4886 = vmatprep.subr.mxu0 0.0
    %4887 = vmatpush1.msra.mxu0 0.0
    %4888 = vmatprep.subr.mxu0 0.0
    %4889 = vmatpush1.msra.mxu0 0.0
    %4890 = vmatprep.subr.mxu0 0.0
    %4891 = vmatpush1.msra.mxu0 0.0
    %4892 = vmatprep.subr.mxu0 0.0
    %4893 = vmatpush1.msra.mxu0 0.0
    %4894 = vmatprep.subr.mxu0 0.0
    %4895 = vmatpush1.msra.mxu0 0.0
    %4896 = vmatprep.subr.mxu0 0.0
    %4897 = vmatpush1.msra.mxu0 0.0
    %4898 = vmatprep.subr.mxu0 0.0
    %4899 = vmatpush1.msra.mxu0 0.0
    %4900 = vmatprep.subr.mxu0 0.0
    %4901 = vmatpush1.msra.mxu0 0.0
    %4902 = vmatprep.subr.mxu0 0.0
    %4903 = vmatpush1.msra.mxu0 0.0
    %4904 = vmatprep.subr.mxu0 0.0
    %4905 = vmatpush1.msra.mxu0 0.0
    %4906 = vmatprep.mubr.f32.mxu0 0.0
    %4907 = vmatmul.mubr.f32.gmra.mrb[0].mxu0 %v4500
    %v4908 = vpop.f32.mrb[0].mxu0
    %v4909 = vadd.f32 %v4767, %v4908
    %v4910 = vpop.f32.mrb[0].mxu0
    %v4911 = vadd.f32 %v4769, %v4910
    %4912 = vdwg.mxu0
    %v4913 = vld [vmem:[%s4] sm:$0xf]
    %v4915 = vlaneseq
    %v4916 = vshrl.u32 %v4915, 7
    %v4917 = vsub.s32 0, %v4916
    %v4918 = vrot.slane %v4913, %v4917
    %v4919 = vlaneseq
    %v4920 = vshrl.u32 %v4919, 7
    %v4921 = vsub.s32 1, %v4920
    %v4922 = vrot.slane %v4913, %v4921
    %v4923 = vlaneseq
    %v4924 = vshrl.u32 %v4923, 7
    %v4925 = vsub.s32 2, %v4924
    %v4926 = vrot.slane %v4913, %v4925
    %v4927 = vlaneseq
    %v4928 = vshrl.u32 %v4927, 7
    %v4929 = vsub.s32 3, %v4928
    %v4930 = vrot.slane %v4913, %v4929
    %v4935 = vadd.f32 %v4838, %v4918
    %v4936 = vadd.f32 %v4840, %v4922
    %v4937 = vadd.f32 %v4909, %v4926
    %v4938 = vadd.f32 %v4911, %v4930
    %v4939 = vxor.u32 %v4935, 2147483648
    %v4940 = vxor.u32 %v4936, 2147483648
    %v4941 = vxor.u32 %v4937, 2147483648
    %v4942 = vmul.f32 %v4939, 1.442695
    %v4943 = vpow.pop %v4942
    %v4944 = vmul.f32 %v4940, 1.442695
    %v4945 = vpow.pop %v4944
    %v4946 = vmul.f32 %v4941, 1.442695
    %v4947 = vpow.pop %v4946
    %v4948 = vadd.f32 %v4943, 1.0
    %v4949 = vadd.f32 %v4945, 1.0
    %v4950 = vadd.f32 %v4947, 1.0
    %v4951 = vrcp.pop %v4948
    %v4952 = vmul.f32 1.0, %v4951
    %v4953 = vrcp.pop %v4949
    %v4954 = vmul.f32 1.0, %v4953
    %v4955 = vrcp.pop %v4950
    %v4956 = vmul.f32 1.0, %v4955
    %v4957 = vtanh.pop %v4938
    %v4958 = vmul.f32 %v4954, %v4257
    %v4959 = vmul.f32 %v4952, %v4957
    %v4960 = vadd.f32 %v4958, %v4959
    %v4961 = vtanh.pop %v4960
    %v4962 = vmul.f32 %v4956, %v4961
    %s4963 = scalar_lea.vmem %s5, 48
    %4964 = vst [vmem:[%s4963] sm:$0xff] %v4962
    %s4965 = scalar_lea.vmem %s0, 224
    %v4966 = vld [vmem:[%s4965] sm:$0xff]
    %v4967 = vld [vmem:[%s4965 + $0x8] sm:$0xff]
    %v4968 = vld [vmem:[%s4965 + $0x10] sm:$0xff]
    %v4969 = vld [vmem:[%s4965 + $0x18] sm:$0xff]
    %v4970 = vld [vmem:[%s1] sm:$0xff]
    %v4971 = vld [vmem:[%s1 + $0x8] sm:$0xff]
    %v4972 = vld [vmem:[%s1 + $0x10] sm:$0xff]
    %v4973 = vld [vmem:[%s1 + $0x18] sm:$0xff]
    %v4974 = vld [vmem:[%s1 + $0x20] sm:$0xff]
    %v4975 = vld [vmem:[%s1 + $0x28] sm:$0xff]
    %v4976 = vld [vmem:[%s1 + $0x30] sm:$0xff]
    %v4977 = vld [vmem:[%s1 + $0x38] sm:$0xff]
    %v4978 = vld [vmem:[%s1 + $0x40] sm:$0xff]
    %v4979 = vld [vmem:[%s1 + $0x48] sm:$0xff]
    %v4980 = vld [vmem:[%s1 + $0x50] sm:$0xff]
    %v4981 = vld [vmem:[%s1 + $0x58] sm:$0xff]
    %v4982 = vld [vmem:[%s1 + $0x60] sm:$0xff]
    %v4983 = vld [vmem:[%s1 + $0x68] sm:$0xff]
    %v4984 = vld [vmem:[%s1 + $0x70] sm:$0xff]
    %v4985 = vld [vmem:[%s1 + $0x78] sm:$0xff]
    %v4986 = vld [vmem:[%s1 + $0x80] sm:$0xff]
    %v4987 = vld [vmem:[%s1 + $0x88] sm:$0xff]
    %v4988 = vld [vmem:[%s1 + $0x90] sm:$0xff]
    %v4989 = vld [vmem:[%s1 + $0x98] sm:$0xff]
    %v4990 = vld [vmem:[%s1 + $0xa0] sm:$0xff]
    %v4991 = vld [vmem:[%s1 + $0xa8] sm:$0xff]
    %v4992 = vld [vmem:[%s1 + $0xb0] sm:$0xff]
    %v4993 = vld [vmem:[%s1 + $0xb8] sm:$0xff]
    %v4994 = vld [vmem:[%s1 + $0xc0] sm:$0xff]
    %v4995 = vld [vmem:[%s1 + $0xc8] sm:$0xff]
    %v4996 = vld [vmem:[%s1 + $0xd0] sm:$0xff]
    %v4997 = vld [vmem:[%s1 + $0xd8] sm:$0xff]
    %v4998 = vld [vmem:[%s1 + $0xe0] sm:$0xff]
    %v4999 = vld [vmem:[%s1 + $0xe8] sm:$0xff]
    %v5000 = vld [vmem:[%s1 + $0xf0] sm:$0xff]
    %v5001 = vld [vmem:[%s1 + $0xf8] sm:$0xff]
    %v5002 = vld [vmem:[%s1 + $0x100] sm:$0xff]
    %v5003 = vld [vmem:[%s1 + $0x108] sm:$0xff]
    %v5004 = vld [vmem:[%s1 + $0x110] sm:$0xff]
    %v5005 = vld [vmem:[%s1 + $0x118] sm:$0xff]
    %v5006 = vld [vmem:[%s1 + $0x120] sm:$0xff]
    %v5007 = vld [vmem:[%s1 + $0x128] sm:$0xff]
    %v5008 = vld [vmem:[%s1 + $0x130] sm:$0xff]
    %v5009 = vld [vmem:[%s1 + $0x138] sm:$0xff]
    %v5010 = vld [vmem:[%s1 + $0x140] sm:$0xff]
    %v5011 = vld [vmem:[%s1 + $0x148] sm:$0xff]
    %v5012 = vld [vmem:[%s1 + $0x150] sm:$0xff]
    %v5013 = vld [vmem:[%s1 + $0x158] sm:$0xff]
    %v5014 = vld [vmem:[%s1 + $0x160] sm:$0xff]
    %v5015 = vld [vmem:[%s1 + $0x168] sm:$0xff]
    %v5016 = vld [vmem:[%s1 + $0x170] sm:$0xff]
    %v5017 = vld [vmem:[%s1 + $0x178] sm:$0xff]
    %v5018 = vld [vmem:[%s1 + $0x180] sm:$0xff]
    %v5019 = vld [vmem:[%s1 + $0x188] sm:$0xff]
    %v5020 = vld [vmem:[%s1 + $0x190] sm:$0xff]
    %v5021 = vld [vmem:[%s1 + $0x198] sm:$0xff]
    %v5022 = vld [vmem:[%s1 + $0x1a0] sm:$0xff]
    %v5023 = vld [vmem:[%s1 + $0x1a8] sm:$0xff]
    %v5024 = vld [vmem:[%s1 + $0x1b0] sm:$0xff]
    %v5025 = vld [vmem:[%s1 + $0x1b8] sm:$0xff]
    %v5026 = vld [vmem:[%s1 + $0x1c0] sm:$0xff]
    %v5027 = vld [vmem:[%s1 + $0x1c8] sm:$0xff]
    %v5028 = vld [vmem:[%s1 + $0x1d0] sm:$0xff]
    %v5029 = vld [vmem:[%s1 + $0x1d8] sm:$0xff]
    %v5030 = vld [vmem:[%s1 + $0x1e0] sm:$0xff]
    %v5031 = vld [vmem:[%s1 + $0x1e8] sm:$0xff]
    %v5032 = vld [vmem:[%s1 + $0x1f0] sm:$0xff]
    %v5033 = vld [vmem:[%s1 + $0x1f8] sm:$0xff]
    %5034 = vmatprep.subr.mxu0 %v4971
    %5035 = vmatpush1.msra.mxu0 %v4970
    %5036 = vmatprep.subr.mxu0 %v4975
    %5037 = vmatpush1.msra.mxu0 %v4974
    %5038 = vmatprep.subr.mxu0 %v4979
    %5039 = vmatpush1.msra.mxu0 %v4978
    %5040 = vmatprep.subr.mxu0 %v4983
    %5041 = vmatpush1.msra.mxu0 %v4982
    %5042 = vmatprep.subr.mxu0 %v4987
    %5043 = vmatpush1.msra.mxu0 %v4986
    %5044 = vmatprep.subr.mxu0 %v4991
    %5045 = vmatpush1.msra.mxu0 %v4990
    %5046 = vmatprep.subr.mxu0 %v4995
    %5047 = vmatpush1.msra.mxu0 %v4994
    %5048 = vmatprep.subr.mxu0 %v4999
    %5049 = vmatpush1.msra.mxu0 %v4998
    %5050 = vmatprep.subr.mxu0 %v5003
    %5051 = vmatpush1.msra.mxu0 %v5002
    %5052 = vmatprep.subr.mxu0 %v5007
    %5053 = vmatpush1.msra.mxu0 %v5006
    %5054 = vmatprep.subr.mxu0 %v5011
    %5055 = vmatpush1.msra.mxu0 %v5010
    %5056 = vmatprep.subr.mxu0 %v5015
    %5057 = vmatpush1.msra.mxu0 %v5014
    %5058 = vmatprep.subr.mxu0 %v5019
    %5059 = vmatpush1.msra.mxu0 %v5018
    %5060 = vmatprep.subr.mxu0 %v5023
    %5061 = vmatpush1.msra.mxu0 %v5022
    %5062 = vmatprep.subr.mxu0 %v5027
    %5063 = vmatpush1.msra.mxu0 %v5026
    %5064 = vmatprep.subr.mxu0 %v5031
    %5065 = vmatpush1.msra.mxu0 %v5030
    %5066 = vmatprep.subr.mxu0 0.0
    %5067 = vmatpush1.msra.mxu0 0.0
    %5068 = vmatprep.subr.mxu0 0.0
    %5069 = vmatpush1.msra.mxu0 0.0
    %5070 = vmatprep.subr.mxu0 0.0
    %5071 = vmatpush1.msra.mxu0 0.0
    %5072 = vmatprep.subr.mxu0 0.0
    %5073 = vmatpush1.msra.mxu0 0.0
    %5074 = vmatprep.subr.mxu0 0.0
    %5075 = vmatpush1.msra.mxu0 0.0
    %5076 = vmatprep.subr.mxu0 0.0
    %5077 = vmatpush1.msra.mxu0 0.0
    %5078 = vmatprep.subr.mxu0 0.0
    %5079 = vmatpush1.msra.mxu0 0.0
    %5080 = vmatprep.subr.mxu0 0.0
    %5081 = vmatpush1.msra.mxu0 0.0
    %5082 = vmatprep.subr.mxu0 0.0
    %5083 = vmatpush1.msra.mxu0 0.0
    %5084 = vmatprep.subr.mxu0 0.0
    %5085 = vmatpush1.msra.mxu0 0.0
    %5086 = vmatprep.subr.mxu0 0.0
    %5087 = vmatpush1.msra.mxu0 0.0
    %5088 = vmatprep.subr.mxu0 0.0
    %5089 = vmatpush1.msra.mxu0 0.0
    %5090 = vmatprep.subr.mxu0 0.0
    %5091 = vmatpush1.msra.mxu0 0.0
    %5092 = vmatprep.subr.mxu0 0.0
    %5093 = vmatpush1.msra.mxu0 0.0
    %5094 = vmatprep.subr.mxu0 0.0
    %5095 = vmatpush1.msra.mxu0 0.0
    %5096 = vmatprep.subr.mxu0 0.0
    %5097 = vmatpush1.msra.mxu0 0.0
    %5098 = vmatprep.mubr.f32.mxu0 0.0
    %5099 = vmatmul.mubr.f32.gmra.mrb[0].mxu0 %v4500
    %v5100 = vpop.f32.mrb[0].mxu0
    %v5101 = vadd.f32 0.0, %v5100
    %v5102 = vpop.f32.mrb[0].mxu0
    %v5103 = vadd.f32 0.0, %v5102
    %5104 = vdwg.mxu0
    %5105 = vmatprep.subr.mxu0 %v4973
    %5106 = vmatpush1.msra.mxu0 %v4972
    %5107 = vmatprep.subr.mxu0 %v4977
    %5108 = vmatpush1.msra.mxu0 %v4976
    %5109 = vmatprep.subr.mxu0 %v4981
    %5110 = vmatpush1.msra.mxu0 %v4980
    %5111 = vmatprep.subr.mxu0 %v4985
    %5112 = vmatpush1.msra.mxu0 %v4984
    %5113 = vmatprep.subr.mxu0 %v4989
    %5114 = vmatpush1.msra.mxu0 %v4988
    %5115 = vmatprep.subr.mxu0 %v4993
    %5116 = vmatpush1.msra.mxu0 %v4992
    %5117 = vmatprep.subr.mxu0 %v4997
    %5118 = vmatpush1.msra.mxu0 %v4996
    %5119 = vmatprep.subr.mxu0 %v5001
    %5120 = vmatpush1.msra.mxu0 %v5000
    %5121 = vmatprep.subr.mxu0 %v5005
    %5122 = vmatpush1.msra.mxu0 %v5004
    %5123 = vmatprep.subr.mxu0 %v5009
    %5124 = vmatpush1.msra.mxu0 %v5008
    %5125 = vmatprep.subr.mxu0 %v5013
    %5126 = vmatpush1.msra.mxu0 %v5012
    %5127 = vmatprep.subr.mxu0 %v5017
    %5128 = vmatpush1.msra.mxu0 %v5016
    %5129 = vmatprep.subr.mxu0 %v5021
    %5130 = vmatpush1.msra.mxu0 %v5020
    %5131 = vmatprep.subr.mxu0 %v5025
    %5132 = vmatpush1.msra.mxu0 %v5024
    %5133 = vmatprep.subr.mxu0 %v5029
    %5134 = vmatpush1.msra.mxu0 %v5028
    %5135 = vmatprep.subr.mxu0 %v5033
    %5136 = vmatpush1.msra.mxu0 %v5032
    %5137 = vmatprep.subr.mxu0 0.0
    %5138 = vmatpush1.msra.mxu0 0.0
    %5139 = vmatprep.subr.mxu0 0.0
    %5140 = vmatpush1.msra.mxu0 0.0
    %5141 = vmatprep.subr.mxu0 0.0
    %5142 = vmatpush1.msra.mxu0 0.0
    %5143 = vmatprep.subr.mxu0 0.0
    %5144 = vmatpush1.msra.mxu0 0.0
    %5145 = vmatprep.subr.mxu0 0.0
    %5146 = vmatpush1.msra.mxu0 0.0
    %5147 = vmatprep.subr.mxu0 0.0
    %5148 = vmatpush1.msra.mxu0 0.0
    %5149 = vmatprep.subr.mxu0 0.0
    %5150 = vmatpush1.msra.mxu0 0.0
    %5151 = vmatprep.subr.mxu0 0.0
    %5152 = vmatpush1.msra.mxu0 0.0
    %5153 = vmatprep.subr.mxu0 0.0
    %5154 = vmatpush1.msra.mxu0 0.0
    %5155 = vmatprep.subr.mxu0 0.0
    %5156 = vmatpush1.msra.mxu0 0.0
    %5157 = vmatprep.subr.mxu0 0.0
    %5158 = vmatpush1.msra.mxu0 0.0
    %5159 = vmatprep.subr.mxu0 0.0
    %5160 = vmatpush1.msra.mxu0 0.0
    %5161 = vmatprep.subr.mxu0 0.0
    %5162 = vmatpush1.msra.mxu0 0.0
    %5163 = vmatprep.subr.mxu0 0.0
    %5164 = vmatpush1.msra.mxu0 0.0
    %5165 = vmatprep.subr.mxu0 0.0
    %5166 = vmatpush1.msra.mxu0 0.0
    %5167 = vmatprep.subr.mxu0 0.0
    %5168 = vmatpush1.msra.mxu0 0.0
    %5169 = vmatprep.mubr.f32.mxu0 0.0
    %5170 = vmatmul.mubr.f32.gmra.mrb[0].mxu0 %v4500
    %v5171 = vpop.f32.mrb[0].mxu0
    %v5172 = vadd.f32 0.0, %v5171
    %v5173 = vpop.f32.mrb[0].mxu0
    %v5174 = vadd.f32 0.0, %v5173
    %5175 = vdwg.mxu0
    %v5176 = vadd.f32 %v4966, %v5101
    %v5177 = vadd.f32 %v4967, %v5103
    %v5178 = vadd.f32 %v4968, %v5172
    %v5179 = vadd.f32 %v4969, %v5174
    %v5180 = vxor.u32 %v5176, 2147483648
    %v5181 = vxor.u32 %v5177, 2147483648
    %v5182 = vxor.u32 %v5178, 2147483648
    %v5183 = vmul.f32 %v5180, 1.442695
    %v5184 = vpow.pop %v5183
    %v5185 = vmul.f32 %v5181, 1.442695
    %v5186 = vpow.pop %v5185
    %v5187 = vmul.f32 %v5182, 1.442695
    %v5188 = vpow.pop %v5187
    %v5189 = vadd.f32 %v5184, 1.0
    %v5190 = vadd.f32 %v5186, 1.0
    %v5191 = vadd.f32 %v5188, 1.0
    %v5192 = vrcp.pop %v5189
    %v5193 = vmul.f32 1.0, %v5192
    %v5194 = vrcp.pop %v5190
    %v5195 = vmul.f32 1.0, %v5194
    %v5196 = vrcp.pop %v5191
    %v5197 = vmul.f32 1.0, %v5196
    %v5198 = vtanh.pop %v5179
    %v5199 = vmul.f32 %v5195, %v4498
    %v5200 = vmul.f32 %v5193, %v5198
    %v5201 = vadd.f32 %v5199, %v5200
    %v5202 = vtanh.pop %v5201
    %v5203 = vmul.f32 %v5197, %v5202
    %v5204 = vld [vmem:[%s2] sm:$0xff]
    %v5205 = vld [vmem:[%s2 + $0x8] sm:$0xff]
    %v5206 = vld [vmem:[%s2 + $0x10] sm:$0xff]
    %v5207 = vld [vmem:[%s2 + $0x18] sm:$0xff]
    %v5208 = vld [vmem:[%s2 + $0x20] sm:$0xff]
    %v5209 = vld [vmem:[%s2 + $0x28] sm:$0xff]
    %v5210 = vld [vmem:[%s2 + $0x30] sm:$0xff]
    %v5211 = vld [vmem:[%s2 + $0x38] sm:$0xff]
    %v5212 = vld [vmem:[%s2 + $0x40] sm:$0xff]
    %v5213 = vld [vmem:[%s2 + $0x48] sm:$0xff]
    %v5214 = vld [vmem:[%s2 + $0x50] sm:$0xff]
    %v5215 = vld [vmem:[%s2 + $0x58] sm:$0xff]
    %v5216 = vld [vmem:[%s2 + $0x60] sm:$0xff]
    %v5217 = vld [vmem:[%s2 + $0x68] sm:$0xff]
    %v5218 = vld [vmem:[%s2 + $0x70] sm:$0xff]
    %v5219 = vld [vmem:[%s2 + $0x78] sm:$0xff]
    %v5220 = vld [vmem:[%s2 + $0x80] sm:$0xff]
    %v5221 = vld [vmem:[%s2 + $0x88] sm:$0xff]
    %v5222 = vld [vmem:[%s2 + $0x90] sm:$0xff]
    %v5223 = vld [vmem:[%s2 + $0x98] sm:$0xff]
    %v5224 = vld [vmem:[%s2 + $0xa0] sm:$0xff]
    %v5225 = vld [vmem:[%s2 + $0xa8] sm:$0xff]
    %v5226 = vld [vmem:[%s2 + $0xb0] sm:$0xff]
    %v5227 = vld [vmem:[%s2 + $0xb8] sm:$0xff]
    %v5228 = vld [vmem:[%s2 + $0xc0] sm:$0xff]
    %v5229 = vld [vmem:[%s2 + $0xc8] sm:$0xff]
    %v5230 = vld [vmem:[%s2 + $0xd0] sm:$0xff]
    %v5231 = vld [vmem:[%s2 + $0xd8] sm:$0xff]
    %v5232 = vld [vmem:[%s2 + $0xe0] sm:$0xff]
    %v5233 = vld [vmem:[%s2 + $0xe8] sm:$0xff]
    %v5234 = vld [vmem:[%s2 + $0xf0] sm:$0xff]
    %v5235 = vld [vmem:[%s2 + $0xf8] sm:$0xff]
    %v5236 = vld [vmem:[%s2 + $0x100] sm:$0xff]
    %v5237 = vld [vmem:[%s2 + $0x108] sm:$0xff]
    %v5238 = vld [vmem:[%s2 + $0x110] sm:$0xff]
    %v5239 = vld [vmem:[%s2 + $0x118] sm:$0xff]
    %v5240 = vld [vmem:[%s2 + $0x120] sm:$0xff]
    %v5241 = vld [vmem:[%s2 + $0x128] sm:$0xff]
    %v5242 = vld [vmem:[%s2 + $0x130] sm:$0xff]
    %v5243 = vld [vmem:[%s2 + $0x138] sm:$0xff]
    %v5244 = vld [vmem:[%s2 + $0x140] sm:$0xff]
    %v5245 = vld [vmem:[%s2 + $0x148] sm:$0xff]
    %v5246 = vld [vmem:[%s2 + $0x150] sm:$0xff]
    %v5247 = vld [vmem:[%s2 + $0x158] sm:$0xff]
    %v5248 = vld [vmem:[%s2 + $0x160] sm:$0xff]
    %v5249 = vld [vmem:[%s2 + $0x168] sm:$0xff]
    %v5250 = vld [vmem:[%s2 + $0x170] sm:$0xff]
    %v5251 = vld [vmem:[%s2 + $0x178] sm:$0xff]
    %v5252 = vld [vmem:[%s2 + $0x180] sm:$0xff]
    %v5253 = vld [vmem:[%s2 + $0x188] sm:$0xff]
    %v5254 = vld [vmem:[%s2 + $0x190] sm:$0xff]
    %v5255 = vld [vmem:[%s2 + $0x198] sm:$0xff]
    %v5256 = vld [vmem:[%s2 + $0x1a0] sm:$0xff]
    %v5257 = vld [vmem:[%s2 + $0x1a8] sm:$0xff]
    %v5258 = vld [vmem:[%s2 + $0x1b0] sm:$0xff]
    %v5259 = vld [vmem:[%s2 + $0x1b8] sm:$0xff]
    %v5260 = vld [vmem:[%s2 + $0x1c0] sm:$0xff]
    %v5261 = vld [vmem:[%s2 + $0x1c8] sm:$0xff]
    %v5262 = vld [vmem:[%s2 + $0x1d0] sm:$0xff]
    %v5263 = vld [vmem:[%s2 + $0x1d8] sm:$0xff]
    %v5264 = vld [vmem:[%s2 + $0x1e0] sm:$0xff]
    %v5265 = vld [vmem:[%s2 + $0x1e8] sm:$0xff]
    %v5266 = vld [vmem:[%s2 + $0x1f0] sm:$0xff]
    %v5267 = vld [vmem:[%s2 + $0x1f8] sm:$0xff]
    %v5268 = vld [vmem:[#allocation6] sm:$0xff]
    %v5269 = vld [vmem:[#allocation6 + $0x8] sm:$0xff]
    %v5270 = vld [vmem:[#allocation6 + $0x10] sm:$0xff]
    %v5271 = vld [vmem:[#allocation6 + $0x18] sm:$0xff]
    %v5272 = vld [vmem:[#allocation6 + $0x20] sm:$0xff]
    %v5273 = vld [vmem:[#allocation6 + $0x28] sm:$0xff]
    %v5274 = vld [vmem:[#allocation6 + $0x30] sm:$0xff]
    %v5275 = vld [vmem:[#allocation6 + $0x38] sm:$0xff]
    %v5276 = vld [vmem:[#allocation6 + $0x40] sm:$0xff]
    %v5277 = vld [vmem:[#allocation6 + $0x48] sm:$0xff]
    %v5278 = vld [vmem:[#allocation6 + $0x50] sm:$0xff]
    %v5279 = vld [vmem:[#allocation6 + $0x58] sm:$0xff]
    %v5280 = vld [vmem:[#allocation6 + $0x60] sm:$0xff]
    %v5281 = vld [vmem:[#allocation6 + $0x68] sm:$0xff]
    %v5282 = vld [vmem:[#allocation6 + $0x70] sm:$0xff]
    %v5283 = vld [vmem:[#allocation6 + $0x78] sm:$0xff]
    %v5284 = vld [vmem:[#allocation6 + $0x80] sm:$0xff]
    %v5285 = vld [vmem:[#allocation6 + $0x88] sm:$0xff]
    %v5286 = vld [vmem:[#allocation6 + $0x90] sm:$0xff]
    %v5287 = vld [vmem:[#allocation6 + $0x98] sm:$0xff]
    %v5288 = vld [vmem:[#allocation6 + $0xa0] sm:$0xff]
    %v5289 = vld [vmem:[#allocation6 + $0xa8] sm:$0xff]
    %v5290 = vld [vmem:[#allocation6 + $0xb0] sm:$0xff]
    %v5291 = vld [vmem:[#allocation6 + $0xb8] sm:$0xff]
    %v5292 = vld [vmem:[#allocation6 + $0xc0] sm:$0xff]
    %v5293 = vld [vmem:[#allocation6 + $0xc8] sm:$0xff]
    %v5294 = vld [vmem:[#allocation6 + $0xd0] sm:$0xff]
    %v5295 = vld [vmem:[#allocation6 + $0xd8] sm:$0xff]
    %v5296 = vld [vmem:[#allocation6 + $0xe0] sm:$0xff]
    %v5297 = vld [vmem:[#allocation6 + $0xe8] sm:$0xff]
    %v5298 = vld [vmem:[#allocation6 + $0xf0] sm:$0xff]
    %v5299 = vld [vmem:[#allocation6 + $0xf8] sm:$0xff]
    %v5300 = vld [vmem:[#allocation6 + $0x100] sm:$0xff]
    %v5301 = vld [vmem:[#allocation6 + $0x108] sm:$0xff]
    %v5302 = vld [vmem:[#allocation6 + $0x110] sm:$0xff]
    %v5303 = vld [vmem:[#allocation6 + $0x118] sm:$0xff]
    %v5304 = vld [vmem:[#allocation6 + $0x120] sm:$0xff]
    %v5305 = vld [vmem:[#allocation6 + $0x128] sm:$0xff]
    %v5306 = vld [vmem:[#allocation6 + $0x130] sm:$0xff]
    %v5307 = vld [vmem:[#allocation6 + $0x138] sm:$0xff]
    %v5308 = vld [vmem:[#allocation6 + $0x140] sm:$0xff]
    %v5309 = vld [vmem:[#allocation6 + $0x148] sm:$0xff]
    %v5310 = vld [vmem:[#allocation6 + $0x150] sm:$0xff]
    %v5311 = vld [vmem:[#allocation6 + $0x158] sm:$0xff]
    %v5312 = vld [vmem:[#allocation6 + $0x160] sm:$0xff]
    %v5313 = vld [vmem:[#allocation6 + $0x168] sm:$0xff]
    %v5314 = vld [vmem:[#allocation6 + $0x170] sm:$0xff]
    %v5315 = vld [vmem:[#allocation6 + $0x178] sm:$0xff]
    %v5316 = vld [vmem:[#allocation6 + $0x180] sm:$0xff]
    %v5317 = vld [vmem:[#allocation6 + $0x188] sm:$0xff]
    %v5318 = vld [vmem:[#allocation6 + $0x190] sm:$0xff]
    %v5319 = vld [vmem:[#allocation6 + $0x198] sm:$0xff]
    %v5320 = vld [vmem:[#allocation6 + $0x1a0] sm:$0xff]
    %v5321 = vld [vmem:[#allocation6 + $0x1a8] sm:$0xff]
    %v5322 = vld [vmem:[#allocation6 + $0x1b0] sm:$0xff]
    %v5323 = vld [vmem:[#allocation6 + $0x1b8] sm:$0xff]
    %v5324 = vld [vmem:[#allocation6 + $0x1c0] sm:$0xff]
    %v5325 = vld [vmem:[#allocation6 + $0x1c8] sm:$0xff]
    %v5326 = vld [vmem:[#allocation6 + $0x1d0] sm:$0xff]
    %v5327 = vld [vmem:[#allocation6 + $0x1d8] sm:$0xff]
    %v5328 = vld [vmem:[#allocation6 + $0x1e0] sm:$0xff]
    %v5329 = vld [vmem:[#allocation6 + $0x1e8] sm:$0xff]
    %v5330 = vld [vmem:[#allocation6 + $0x1f0] sm:$0xff]
    %v5331 = vld [vmem:[#allocation6 + $0x1f8] sm:$0xff]
    %5332 = vmatprep.subr.mxu0 %v5269
    %5333 = vmatpush1.msra.mxu0 %v5268
    %5334 = vmatprep.subr.mxu0 %v5273
    %5335 = vmatpush1.msra.mxu0 %v5272
    %5336 = vmatprep.subr.mxu0 %v5277
    %5337 = vmatpush1.msra.mxu0 %v5276
    %5338 = vmatprep.subr.mxu0 %v5281
    %5339 = vmatpush1.msra.mxu0 %v5280
    %5340 = vmatprep.subr.mxu0 %v5285
    %5341 = vmatpush1.msra.mxu0 %v5284
    %5342 = vmatprep.subr.mxu0 %v5289
    %5343 = vmatpush1.msra.mxu0 %v5288
    %5344 = vmatprep.subr.mxu0 %v5293
    %5345 = vmatpush1.msra.mxu0 %v5292
    %5346 = vmatprep.subr.mxu0 %v5297
    %5347 = vmatpush1.msra.mxu0 %v5296
    %5348 = vmatprep.subr.mxu0 %v5301
    %5349 = vmatpush1.msra.mxu0 %v5300
    %5350 = vmatprep.subr.mxu0 %v5305
    %5351 = vmatpush1.msra.mxu0 %v5304
    %5352 = vmatprep.subr.mxu0 %v5309
    %5353 = vmatpush1.msra.mxu0 %v5308
    %5354 = vmatprep.subr.mxu0 %v5313
    %5355 = vmatpush1.msra.mxu0 %v5312
    %5356 = vmatprep.subr.mxu0 %v5317
    %5357 = vmatpush1.msra.mxu0 %v5316
    %5358 = vmatprep.subr.mxu0 %v5321
    %5359 = vmatpush1.msra.mxu0 %v5320
    %5360 = vmatprep.subr.mxu0 %v5325
    %5361 = vmatpush1.msra.mxu0 %v5324
    %5362 = vmatprep.subr.mxu0 %v5329
    %5363 = vmatpush1.msra.mxu0 %v5328
    %5364 = vmatprep.subr.mxu0 0.0
    %5365 = vmatpush1.msra.mxu0 0.0
    %5366 = vmatprep.subr.mxu0 0.0
    %5367 = vmatpush1.msra.mxu0 0.0
    %5368 = vmatprep.subr.mxu0 0.0
    %5369 = vmatpush1.msra.mxu0 0.0
    %5370 = vmatprep.subr.mxu0 0.0
    %5371 = vmatpush1.msra.mxu0 0.0
    %5372 = vmatprep.subr.mxu0 0.0
    %5373 = vmatpush1.msra.mxu0 0.0
    %5374 = vmatprep.subr.mxu0 0.0
    %5375 = vmatpush1.msra.mxu0 0.0
    %5376 = vmatprep.subr.mxu0 0.0
    %5377 = vmatpush1.msra.mxu0 0.0
    %5378 = vmatprep.subr.mxu0 0.0
    %5379 = vmatpush1.msra.mxu0 0.0
    %5380 = vmatprep.subr.mxu0 0.0
    %5381 = vmatpush1.msra.mxu0 0.0
    %5382 = vmatprep.subr.mxu0 0.0
    %5383 = vmatpush1.msra.mxu0 0.0
    %5384 = vmatprep.subr.mxu0 0.0
    %5385 = vmatpush1.msra.mxu0 0.0
    %5386 = vmatprep.subr.mxu0 0.0
    %5387 = vmatpush1.msra.mxu0 0.0
    %5388 = vmatprep.subr.mxu0 0.0
    %5389 = vmatpush1.msra.mxu0 0.0
    %5390 = vmatprep.subr.mxu0 0.0
    %5391 = vmatpush1.msra.mxu0 0.0
    %5392 = vmatprep.subr.mxu0 0.0
    %5393 = vmatpush1.msra.mxu0 0.0
    %5394 = vmatprep.subr.mxu0 0.0
    %5395 = vmatpush1.msra.mxu0 0.0
    %5396 = vmatprep.mubr.f32.mxu0 0.0
    %5397 = vmatmul.mubr.f32.gmra.mrb[0].mxu0 %v4962
    %v5398 = vpop.f32.mrb[0].mxu0
    %v5399 = vadd.f32 0.0, %v5398
    %v5400 = vpop.f32.mrb[0].mxu0
    %v5401 = vadd.f32 0.0, %v5400
    %5402 = vdwg.mxu0
    %5403 = vmatprep.subr.mxu0 %v5271
    %5404 = vmatpush1.msra.mxu0 %v5270
    %5405 = vmatprep.subr.mxu0 %v5275
    %5406 = vmatpush1.msra.mxu0 %v5274
    %5407 = vmatprep.subr.mxu0 %v5279
    %5408 = vmatpush1.msra.mxu0 %v5278
    %5409 = vmatprep.subr.mxu0 %v5283
    %5410 = vmatpush1.msra.mxu0 %v5282
    %5411 = vmatprep.subr.mxu0 %v5287
    %5412 = vmatpush1.msra.mxu0 %v5286
    %5413 = vmatprep.subr.mxu0 %v5291
    %5414 = vmatpush1.msra.mxu0 %v5290
    %5415 = vmatprep.subr.mxu0 %v5295
    %5416 = vmatpush1.msra.mxu0 %v5294
    %5417 = vmatprep.subr.mxu0 %v5299
    %5418 = vmatpush1.msra.mxu0 %v5298
    %5419 = vmatprep.subr.mxu0 %v5303
    %5420 = vmatpush1.msra.mxu0 %v5302
    %5421 = vmatprep.subr.mxu0 %v5307
    %5422 = vmatpush1.msra.mxu0 %v5306
    %5423 = vmatprep.subr.mxu0 %v5311
    %5424 = vmatpush1.msra.mxu0 %v5310
    %5425 = vmatprep.subr.mxu0 %v5315
    %5426 = vmatpush1.msra.mxu0 %v5314
    %5427 = vmatprep.subr.mxu0 %v5319
    %5428 = vmatpush1.msra.mxu0 %v5318
    %5429 = vmatprep.subr.mxu0 %v5323
    %5430 = vmatpush1.msra.mxu0 %v5322
    %5431 = vmatprep.subr.mxu0 %v5327
    %5432 = vmatpush1.msra.mxu0 %v5326
    %5433 = vmatprep.subr.mxu0 %v5331
    %5434 = vmatpush1.msra.mxu0 %v5330
    %5435 = vmatprep.subr.mxu0 0.0
    %5436 = vmatpush1.msra.mxu0 0.0
    %5437 = vmatprep.subr.mxu0 0.0
    %5438 = vmatpush1.msra.mxu0 0.0
    %5439 = vmatprep.subr.mxu0 0.0
    %5440 = vmatpush1.msra.mxu0 0.0
    %5441 = vmatprep.subr.mxu0 0.0
    %5442 = vmatpush1.msra.mxu0 0.0
    %5443 = vmatprep.subr.mxu0 0.0
    %5444 = vmatpush1.msra.mxu0 0.0
    %5445 = vmatprep.subr.mxu0 0.0
    %5446 = vmatpush1.msra.mxu0 0.0
    %5447 = vmatprep.subr.mxu0 0.0
    %5448 = vmatpush1.msra.mxu0 0.0
    %5449 = vmatprep.subr.mxu0 0.0
    %5450 = vmatpush1.msra.mxu0 0.0
    %5451 = vmatprep.subr.mxu0 0.0
    %5452 = vmatpush1.msra.mxu0 0.0
    %5453 = vmatprep.subr.mxu0 0.0
    %5454 = vmatpush1.msra.mxu0 0.0
    %5455 = vmatprep.subr.mxu0 0.0
    %5456 = vmatpush1.msra.mxu0 0.0
    %5457 = vmatprep.subr.mxu0 0.0
    %5458 = vmatpush1.msra.mxu0 0.0
    %5459 = vmatprep.subr.mxu0 0.0
    %5460 = vmatpush1.msra.mxu0 0.0
    %5461 = vmatprep.subr.mxu0 0.0
    %5462 = vmatpush1.msra.mxu0 0.0
    %5463 = vmatprep.subr.mxu0 0.0
    %5464 = vmatpush1.msra.mxu0 0.0
    %5465 = vmatprep.subr.mxu0 0.0
    %5466 = vmatpush1.msra.mxu0 0.0
    %5467 = vmatprep.mubr.f32.mxu0 0.0
    %5468 = vmatmul.mubr.f32.gmra.mrb[0].mxu0 %v4962
    %v5469 = vpop.f32.mrb[0].mxu0
    %v5470 = vadd.f32 0.0, %v5469
    %v5471 = vpop.f32.mrb[0].mxu0
    %v5472 = vadd.f32 0.0, %v5471
    %5473 = vdwg.mxu0
    %5474 = vmatprep.subr.mxu0 %v5205
    %5475 = vmatpush1.msra.mxu0 %v5204
    %5476 = vmatprep.subr.mxu0 %v5209
    %5477 = vmatpush1.msra.mxu0 %v5208
    %5478 = vmatprep.subr.mxu0 %v5213
    %5479 = vmatpush1.msra.mxu0 %v5212
    %5480 = vmatprep.subr.mxu0 %v5217
    %5481 = vmatpush1.msra.mxu0 %v5216
    %5482 = vmatprep.subr.mxu0 %v5221
    %5483 = vmatpush1.msra.mxu0 %v5220
    %5484 = vmatprep.subr.mxu0 %v5225
    %5485 = vmatpush1.msra.mxu0 %v5224
    %5486 = vmatprep.subr.mxu0 %v5229
    %5487 = vmatpush1.msra.mxu0 %v5228
    %5488 = vmatprep.subr.mxu0 %v5233
    %5489 = vmatpush1.msra.mxu0 %v5232
    %5490 = vmatprep.subr.mxu0 %v5237
    %5491 = vmatpush1.msra.mxu0 %v5236
    %5492 = vmatprep.subr.mxu0 %v5241
    %5493 = vmatpush1.msra.mxu0 %v5240
    %5494 = vmatprep.subr.mxu0 %v5245
    %5495 = vmatpush1.msra.mxu0 %v5244
    %5496 = vmatprep.subr.mxu0 %v5249
    %5497 = vmatpush1.msra.mxu0 %v5248
    %5498 = vmatprep.subr.mxu0 %v5253
    %5499 = vmatpush1.msra.mxu0 %v5252
    %5500 = vmatprep.subr.mxu0 %v5257
    %5501 = vmatpush1.msra.mxu0 %v5256
    %5502 = vmatprep.subr.mxu0 %v5261
    %5503 = vmatpush1.msra.mxu0 %v5260
    %5504 = vmatprep.subr.mxu0 %v5265
    %5505 = vmatpush1.msra.mxu0 %v5264
    %5506 = vmatprep.subr.mxu0 0.0
    %5507 = vmatpush1.msra.mxu0 0.0
    %5508 = vmatprep.subr.mxu0 0.0
    %5509 = vmatpush1.msra.mxu0 0.0
    %5510 = vmatprep.subr.mxu0 0.0
    %5511 = vmatpush1.msra.mxu0 0.0
    %5512 = vmatprep.subr.mxu0 0.0
    %5513 = vmatpush1.msra.mxu0 0.0
    %5514 = vmatprep.subr.mxu0 0.0
    %5515 = vmatpush1.msra.mxu0 0.0
    %5516 = vmatprep.subr.mxu0 0.0
    %5517 = vmatpush1.msra.mxu0 0.0
    %5518 = vmatprep.subr.mxu0 0.0
    %5519 = vmatpush1.msra.mxu0 0.0
    %5520 = vmatprep.subr.mxu0 0.0
    %5521 = vmatpush1.msra.mxu0 0.0
    %5522 = vmatprep.subr.mxu0 0.0
    %5523 = vmatpush1.msra.mxu0 0.0
    %5524 = vmatprep.subr.mxu0 0.0
    %5525 = vmatpush1.msra.mxu0 0.0
    %5526 = vmatprep.subr.mxu0 0.0
    %5527 = vmatpush1.msra.mxu0 0.0
    %5528 = vmatprep.subr.mxu0 0.0
    %5529 = vmatpush1.msra.mxu0 0.0
    %5530 = vmatprep.subr.mxu0 0.0
    %5531 = vmatpush1.msra.mxu0 0.0
    %5532 = vmatprep.subr.mxu0 0.0
    %5533 = vmatpush1.msra.mxu0 0.0
    %5534 = vmatprep.subr.mxu0 0.0
    %5535 = vmatpush1.msra.mxu0 0.0
    %5536 = vmatprep.subr.mxu0 0.0
    %5537 = vmatpush1.msra.mxu0 0.0
    %5538 = vmatprep.mubr.f32.mxu0 0.0
    %5539 = vmatmul.mubr.f32.gmra.mrb[0].mxu0 %v5203
    %v5540 = vpop.f32.mrb[0].mxu0
    %v5541 = vadd.f32 %v5399, %v5540
    %v5542 = vpop.f32.mrb[0].mxu0
    %v5543 = vadd.f32 %v5401, %v5542
    %5544 = vdwg.mxu0
    %5545 = vmatprep.subr.mxu0 %v5207
    %5546 = vmatpush1.msra.mxu0 %v5206
    %5547 = vmatprep.subr.mxu0 %v5211
    %5548 = vmatpush1.msra.mxu0 %v5210
    %5549 = vmatprep.subr.mxu0 %v5215
    %5550 = vmatpush1.msra.mxu0 %v5214
    %5551 = vmatprep.subr.mxu0 %v5219
    %5552 = vmatpush1.msra.mxu0 %v5218
    %5553 = vmatprep.subr.mxu0 %v5223
    %5554 = vmatpush1.msra.mxu0 %v5222
    %5555 = vmatprep.subr.mxu0 %v5227
    %5556 = vmatpush1.msra.mxu0 %v5226
    %5557 = vmatprep.subr.mxu0 %v5231
    %5558 = vmatpush1.msra.mxu0 %v5230
    %5559 = vmatprep.subr.mxu0 %v5235
    %5560 = vmatpush1.msra.mxu0 %v5234
    %5561 = vmatprep.subr.mxu0 %v5239
    %5562 = vmatpush1.msra.mxu0 %v5238
    %5563 = vmatprep.subr.mxu0 %v5243
    %5564 = vmatpush1.msra.mxu0 %v5242
    %5565 = vmatprep.subr.mxu0 %v5247
    %5566 = vmatpush1.msra.mxu0 %v5246
    %5567 = vmatprep.subr.mxu0 %v5251
    %5568 = vmatpush1.msra.mxu0 %v5250
    %5569 = vmatprep.subr.mxu0 %v5255
    %5570 = vmatpush1.msra.mxu0 %v5254
    %5571 = vmatprep.subr.mxu0 %v5259
    %5572 = vmatpush1.msra.mxu0 %v5258
    %5573 = vmatprep.subr.mxu0 %v5263
    %5574 = vmatpush1.msra.mxu0 %v5262
    %5575 = vmatprep.subr.mxu0 %v5267
    %5576 = vmatpush1.msra.mxu0 %v5266
    %5577 = vmatprep.subr.mxu0 0.0
    %5578 = vmatpush1.msra.mxu0 0.0
    %5579 = vmatprep.subr.mxu0 0.0
    %5580 = vmatpush1.msra.mxu0 0.0
    %5581 = vmatprep.subr.mxu0 0.0
    %5582 = vmatpush1.msra.mxu0 0.0
    %5583 = vmatprep.subr.mxu0 0.0
    %5584 = vmatpush1.msra.mxu0 0.0
    %5585 = vmatprep.subr.mxu0 0.0
    %5586 = vmatpush1.msra.mxu0 0.0
    %5587 = vmatprep.subr.mxu0 0.0
    %5588 = vmatpush1.msra.mxu0 0.0
    %5589 = vmatprep.subr.mxu0 0.0
    %5590 = vmatpush1.msra.mxu0 0.0
    %5591 = vmatprep.subr.mxu0 0.0
    %5592 = vmatpush1.msra.mxu0 0.0
    %5593 = vmatprep.subr.mxu0 0.0
    %5594 = vmatpush1.msra.mxu0 0.0
    %5595 = vmatprep.subr.mxu0 0.0
    %5596 = vmatpush1.msra.mxu0 0.0
    %5597 = vmatprep.subr.mxu0 0.0
    %5598 = vmatpush1.msra.mxu0 0.0
    %5599 = vmatprep.subr.mxu0 0.0
    %5600 = vmatpush1.msra.mxu0 0.0
    %5601 = vmatprep.subr.mxu0 0.0
    %5602 = vmatpush1.msra.mxu0 0.0
    %5603 = vmatprep.subr.mxu0 0.0
    %5604 = vmatpush1.msra.mxu0 0.0
    %5605 = vmatprep.subr.mxu0 0.0
    %5606 = vmatpush1.msra.mxu0 0.0
    %5607 = vmatprep.subr.mxu0 0.0
    %5608 = vmatpush1.msra.mxu0 0.0
    %5609 = vmatprep.mubr.f32.mxu0 0.0
    %5610 = vmatmul.mubr.f32.gmra.mrb[0].mxu0 %v5203
    %v5611 = vpop.f32.mrb[0].mxu0
    %v5612 = vadd.f32 %v5470, %v5611
    %v5613 = vpop.f32.mrb[0].mxu0
    %v5614 = vadd.f32 %v5472, %v5613
    %5615 = vdwg.mxu0
    %v5616 = vld [vmem:[%s4] sm:$0xf]
    %v5618 = vlaneseq
    %v5619 = vshrl.u32 %v5618, 7
    %v5620 = vsub.s32 0, %v5619
    %v5621 = vrot.slane %v5616, %v5620
    %v5622 = vlaneseq
    %v5623 = vshrl.u32 %v5622, 7
    %v5624 = vsub.s32 1, %v5623
    %v5625 = vrot.slane %v5616, %v5624
    %v5626 = vlaneseq
    %v5627 = vshrl.u32 %v5626, 7
    %v5628 = vsub.s32 2, %v5627
    %v5629 = vrot.slane %v5616, %v5628
    %v5630 = vlaneseq
    %v5631 = vshrl.u32 %v5630, 7
    %v5632 = vsub.s32 3, %v5631
    %v5633 = vrot.slane %v5616, %v5632
    %v5638 = vadd.f32 %v5541, %v5621
    %v5639 = vadd.f32 %v5543, %v5625
    %v5640 = vadd.f32 %v5612, %v5629
    %v5641 = vadd.f32 %v5614, %v5633
    %v5642 = vxor.u32 %v5638, 2147483648
    %v5643 = vxor.u32 %v5639, 2147483648
    %v5644 = vxor.u32 %v5640, 2147483648
    %v5645 = vmul.f32 %v5642, 1.442695
    %v5646 = vpow.pop %v5645
    %v5647 = vmul.f32 %v5643, 1.442695
    %v5648 = vpow.pop %v5647
    %v5649 = vmul.f32 %v5644, 1.442695
    %v5650 = vpow.pop %v5649
    %v5651 = vadd.f32 %v5646, 1.0
    %v5652 = vadd.f32 %v5648, 1.0
    %v5653 = vadd.f32 %v5650, 1.0
    %v5654 = vrcp.pop %v5651
    %v5655 = vmul.f32 1.0, %v5654
    %v5656 = vrcp.pop %v5652
    %v5657 = vmul.f32 1.0, %v5656
    %v5658 = vrcp.pop %v5653
    %v5659 = vmul.f32 1.0, %v5658
    %v5660 = vtanh.pop %v5641
    %v5661 = vmul.f32 %v5657, %v4960
    %v5662 = vmul.f32 %v5655, %v5660
    %v5663 = vadd.f32 %v5661, %v5662
    %v5664 = vtanh.pop %v5663
    %v5665 = vmul.f32 %v5659, %v5664
    %s5666 = scalar_lea.vmem %s5, 56
    %5667 = vst [vmem:[%s5666] sm:$0xff] %v5665
    %5668 = vst [vmem:[#allocation2] sm:$0xff] %v5203
    %5669 = vst [vmem:[#allocation3] sm:$0xff] %v5201
    %5670 = vst [vmem:[#allocation4] sm:$0xff] %v5665
    %5671 = vst [vmem:[#allocation5] sm:$0xff] %v5663
    // Predicated region
    $region30: #{char_rnn_forward.4} parent=1 // pred_check
      _
    $region31: #{char_rnn_forward.4} parent=1 // pred_check_branch
      %5673 = sbr.rel (0) target = $region33
    $region32: #{char_rnn_forward.4} parent=1 // pred_region
      _
    $region33: #{char_rnn_forward.4} parent=1 // pred_fallthru
      _
    // Predicated region
    $region34: #{char_rnn_forward.4} parent=1 // pred_check
      _
    $region35: #{char_rnn_forward.4} parent=1 // pred_check_branch
      %5675 = sbr.rel (0) target = $region37
    $region36: #{char_rnn_forward.4} parent=1 // pred_region
      _
    $region37: #{char_rnn_forward.4} parent=1 // pred_fallthru
      _
    %5676 = vsyncpa [#allocation7], 1

</llo_original>
